<compile_context>
chip_gen: v6e
topology: v6e:2x2x1
jax: 0.10.0
libtpu: 0.0.40
codegen_flags: <defaults>
</compile_context>

<pallas_src>
import functools

import numpy as np
import jax
import jax.numpy as jnp
from jax.experimental import pallas as pl
from jax.experimental.pallas import tpu as pltpu

# ---------------- ANI-1x-like hyperparameters (synthetic, deterministic) -----------------
ELEMENTS = (1, 6, 7, 8)          # H, C, N, O  -> species indices 0..3
NS = len(ELEMENTS)               # number of species
RCR = 5.2                        # radial cutoff (Angstrom)
RCA = 3.5                        # angular cutoff
ETA_R = 16.0
ETA_A = 8.0
# Zeta = 32 (power of two -> repeated squaring inside the kernel)
NR = 16                          # radial shifts per species
N_SHFA = 4
N_SHFZ = 8
NAF = N_SHFA * N_SHFZ            # 32 angular sub-features
NPAIR = NS * (NS + 1) // 2       # 10 unordered species pairs
RAD_LEN = NS * NR                # 64
ANG_LEN = NPAIR * NAF            # 320
AEV_LEN = RAD_LEN + ANG_LEN      # 384 = 3 * 128 (lane-dense)

# per-species MLP sizes (ANI-1x H-network sizes, shared across species here)
H1, H2, H3 = 160, 128, 96
CELU_ALPHA = 0.1


def _celu(x, alpha=CELU_ALPHA):
    return jnp.maximum(x, 0.0) + alpha * (jnp.exp(jnp.minimum(x, 0.0) / alpha) - 1.0)


# ====================== fused AEV (symmetry functions) + MLP kernel ======================
def _ani_fused_kernel(counts_ref,                                     # SMEM scalar prefetch (M, S)
                      crow_ref, ccol_ref, oh_ref, ohT_ref, pm_ref,    # per-molecule geometry/species
                      shfr_ref, cz_ref, sz_ref, sa_ref,               # tiny AEV constants
                      w1_ref, b1_ref, w2_ref, b2_ref,                 # stacked per-species MLP params
                      w3_ref, b3_ref, w4_ref, b4_ref,
                      out_ref, acc_ref):
    mol = pl.program_id(0)
    crow = crow_ref[0]            # (3, N)   row-layout coordinates
    ccol = ccol_ref[0]            # (N, 3)   column-layout coordinates
    oh = oh_ref[0]                # (S, N)   one-hot species
    ohT = ohT_ref[0]              # (N, S)   one-hot species (atom-major, for energy masks)
    pm = pm_ref[0]                # (NPAIR, N*N) unordered species-pair masks over (j, k)
    shfr = shfr_ref[...]          # (NR, 1)      ShfR
    cz = cz_ref[...]              # (N_SHFZ, 1)  cos(ShfZ)
    sz = sz_ref[...]              # (N_SHFZ, 1)  sin(ShfZ)
    sa = sa_ref[...]              # (N_SHFA, 1)  ShfA

    n = ccol.shape[0]
    s = oh.shape[0]
    n2 = n * n

    # ---------------- pairwise geometry:  d*[i, j] = p_i - p_j ----------------------------
    dx = ccol[:, 0:1] - crow[0:1, :]
    dy = ccol[:, 1:2] - crow[1:2, :]
    dz = ccol[:, 2:3] - crow[2:3, :]
    dist = jnp.sqrt(dx * dx + dy * dy + dz * dz + 1e-12)                    # (N, N)

    rows = jax.lax.broadcasted_iota(jnp.int32, (n, n), 0)
    cols = jax.lax.broadcasted_iota(jnp.int32, (n, n), 1)
    notdiag = (rows != cols).astype(jnp.float32)

    # cosine cutoff functions (zero beyond cutoff, self-pair masked out)
    fc_r = jnp.where(dist < RCR, 0.5 * jnp.cos(jnp.pi * dist / RCR) + 0.5, 0.0) * notdiag
    fc_a = jnp.where(dist < RCA, 0.5 * jnp.cos(jnp.pi * dist / RCA) + 0.5, 0.0) * notdiag

    # -------- radial: rad[i, s, q] = sum_j oh[s, j] 0.25 exp(-etaR (R_ij - ShfR_q)^2) fc(R_ij)
    gauss_r = jnp.exp(-ETA_R * (dist[:, None, :] - shfr[None, :, :]) ** 2)  # (N, NR, N)
    k3 = gauss_r * (0.25 * fc_r)[:, None, :]                                # (N, NR, N)
    oh_b = jnp.broadcast_to(oh[None, :, :], (n, s, n))                      # (N, S, N)
    rad3 = jnp.einsum('isj,iqj->isq', oh_b, k3,
                      preferred_element_type=jnp.float32)                   # (N, S, NR)  MXU
    rad2d = rad3.reshape(n, s * NR)                                         # (N, 64)

    # -------- angular ---------------------------------------------------------------------
    dot3 = (dx[:, :, None] * dx[:, None, :] + dy[:, :, None] * dy[:, None, :]
            + dz[:, :, None] * dz[:, None, :])                              # (N, N, N)
    rij = dist[:, :, None]                                                  # R_ij
    rik = dist[:, None, :]                                                  # R_ik
    inv_rr = pl.reciprocal(rij * rik + 1e-9, approx=True)                   # EUP slot
    cos3 = 0.95 * dot3 * inv_rr                                             # torchani cosine clip
    sin3 = jnp.sqrt(jnp.maximum(1.0 - cos3 * cos3, 0.0))
    avg3 = 0.5 * (rij + rik)
    fcc3 = fc_a[:, :, None] * fc_a[:, None, :] * notdiag[None, :, :]        # masks j==i,k==i,j==k

    cos_f = cos3.reshape(n, n2)
    sin_f = sin3.reshape(n, n2)
    avg_f = avg3.reshape(n, n2)
    fcc_f = fcc3.reshape(n, n2)

    # zeta-power term on the 8 ShfZ planes only:
    # cos(theta - ShfZ) = cos(theta)cos(ShfZ) + sin(theta)sin(ShfZ)   (exact, avoids acos)
    cosd = cos_f[:, None, :] * cz[None, :, :] + sin_f[:, None, :] * sz[None, :, :]  # (N, 8, N^2)
    f1 = 0.5 * (1.0 + cosd)
    for _ in range(5):                                                      # Zeta = 32 = 2**5
        f1 = f1 * f1

    # Gaussian + cutoff product + prefactor on the 4 ShfA planes only
    g2 = jnp.exp(-ETA_A * (avg_f[:, None, :] - sa[None, :, :]) ** 2)        # (N, 4, N^2)
    g2 = g2 * (2.0 * fcc_f)[:, None, :]

    # combine 4 x 8 -> 32 planes (outer product), contract (j, k) against pair masks on MXU
    comb = (g2[:, :, None, :] * f1[:, None, :, :]).reshape(n, NAF, n2)      # (N, 32, N^2)
    pm_b = jnp.broadcast_to(pm[None, :, :], (n, NPAIR, n2))                 # (N, 10, N^2)
    ang3 = jnp.einsum('ipq,irq->ipr', pm_b, comb,
                      preferred_element_type=jnp.float32)                   # (N, 10, 32)  MXU
    ang2d = ang3.reshape(n, NPAIR * NAF)                                    # (N, 320)

    # lane-dense AEV (384 = 3 * 128 lanes), cast once to bf16 for the MXU matmul chain
    aev_bf = jnp.concatenate([rad2d, ang2d], axis=-1).astype(jnp.bfloat16)  # (N, 384)

    # -------- per-species MLP, species absent from this molecule skipped via pl.when -------
    acc_ref[...] = jnp.zeros_like(acc_ref)                                  # (N, 1) f32 accumulator
    for sp in range(NS):
        @pl.when(counts_ref[mol, sp] > 0)
        def _(sp=sp):
            h = _celu(jnp.dot(aev_bf, w1_ref[sp], preferred_element_type=jnp.float32)
                      + b1_ref[sp:sp + 1, :])
            h = _celu(jnp.dot(h.astype(jnp.bfloat16), w2_ref[sp],
                              preferred_element_type=jnp.float32) + b2_ref[sp:sp + 1, :])
            h = _celu(jnp.dot(h.astype(jnp.bfloat16), w3_ref[sp],
                              preferred_element_type=jnp.float32) + b3_ref[sp:sp + 1, :])
            e = (jnp.dot(h.astype(jnp.bfloat16), w4_ref[sp],
                         preferred_element_type=jnp.float32) + b4_ref[sp:sp + 1, :])  # (N, 1)
            acc_ref[...] += e * ohT[:, sp:sp + 1]          # mask out other-species / padding atoms

    out_ref[0] = acc_ref[...]                              # (N, 1) per-atom energies


def _ani_fused_pallas(counts, crow, ccol, oh, ohT, pm, aev_consts, nn_params):
    m, _, n = crow.shape
    shfr, cz, sz, sa = aev_consts
    w1, b1, w2, b2, w3, b3, w4, b4 = nn_params
    grid_spec = pltpu.PrefetchScalarGridSpec(
        num_scalar_prefetch=1,                          # per-molecule per-species atom counts
        grid=(m,),
        in_specs=[
            pl.BlockSpec((1, 3, n), lambda i, c: (i, 0, 0)),
            pl.BlockSpec((1, n, 3), lambda i, c: (i, 0, 0)),
            pl.BlockSpec((1, NS, n), lambda i, c: (i, 0, 0)),
            pl.BlockSpec((1, n, NS), lambda i, c: (i, 0, 0)),
            pl.BlockSpec((1, NPAIR, n * n), lambda i, c: (i, 0, 0)),
            pl.BlockSpec((NR, 1), lambda i, c: (0, 0)),
            pl.BlockSpec((N_SHFZ, 1), lambda i, c: (0, 0)),
            pl.BlockSpec((N_SHFZ, 1), lambda i, c: (0, 0)),
            pl.BlockSpec((N_SHFA, 1), lambda i, c: (0, 0)),
            pl.BlockSpec(w1.shape, lambda i, c: (0, 0, 0)),   # constant index -> resident weights
            pl.BlockSpec(b1.shape, lambda i, c: (0, 0)),
            pl.BlockSpec(w2.shape, lambda i, c: (0, 0, 0)),
            pl.BlockSpec(b2.shape, lambda i, c: (0, 0)),
            pl.BlockSpec(w3.shape, lambda i, c: (0, 0, 0)),
            pl.BlockSpec(b3.shape, lambda i, c: (0, 0)),
            pl.BlockSpec(w4.shape, lambda i, c: (0, 0, 0)),
            pl.BlockSpec(b4.shape, lambda i, c: (0, 0)),
        ],
        out_specs=pl.BlockSpec((1, n, 1), lambda i, c: (i, 0, 0)),
        scratch_shapes=[pltpu.VMEM((n, 1), jnp.float32)],
    )
    return pl.pallas_call(
        _ani_fused_kernel,
        out_shape=jax.ShapeDtypeStruct((m, n, 1), jnp.float32),
        grid_spec=grid_spec,
        compiler_params=pltpu.CompilerParams(dimension_semantics=("parallel",)),
    )(counts, crow, ccol, oh, ohT, pm, shfr, cz, sz, sa, w1, b1, w2, b2, w3, b3, w4, b4)


# ================================ glue / module forward ==================================
def make_aev_constants():
    shfr = 0.9 + np.arange(NR) * (RCR - 0.9) / NR
    shfa = 0.9 + np.arange(N_SHFA) * (RCA - 0.9) / N_SHFA
    shfz = (np.arange(N_SHFZ) + 0.5) * np.pi / N_SHFZ
    return (jnp.asarray(shfr, jnp.float32).reshape(NR, 1),
            jnp.asarray(np.cos(shfz), jnp.float32).reshape(N_SHFZ, 1),
            jnp.asarray(np.sin(shfz), jnp.float32).reshape(N_SHFZ, 1),
            jnp.asarray(shfa, jnp.float32).reshape(N_SHFA, 1))


def make_nn_params(key):
    sizes = [AEV_LEN, H1, H2, H3, 1]
    params = []
    keys = jax.random.split(key, 2 * (len(sizes) - 1))
    for li in range(len(sizes) - 1):
        fan_in, fan_out = sizes[li], sizes[li + 1]
        w = (jax.random.normal(keys[2 * li], (NS, fan_in, fan_out), jnp.float32)
             / np.sqrt(fan_in)).astype(jnp.bfloat16)          # bf16 weights (f32 accumulation)
        b = 0.01 * jax.random.normal(keys[2 * li + 1], (NS, fan_out), jnp.float32)
        params.extend([w, b])
    return tuple(params)


def mod_optimized_torchani_forward(atomic_numbers, coordinates, nn_params, aev_consts):
    """species_converter -> aev_computer -> neural_networks (mirrors the torch forward)."""
    m, n, _ = coordinates.shape

    # ---- species converter (glue): atomic number -> species index, -1 for unsupported ----
    sp = -jnp.ones((n,), jnp.int32)
    for idx, z in enumerate(ELEMENTS):
        sp = jnp.where(atomic_numbers == z, idx, sp)
    species = jnp.broadcast_to(sp[None, :], (m, n))
    oh = (species[:, None, :] ==
          jnp.arange(NS, dtype=jnp.int32)[None, :, None]).astype(jnp.float32)   # (M, S, N)
    ohT = jnp.transpose(oh, (0, 2, 1))                                          # (M, N, S)

    # unordered species-pair masks over (j, k), flattened: (M, NPAIR, N*N); 0.5 on same-species
    pms = []
    for s1 in range(NS):
        for s2 in range(s1, NS):
            w = 0.5 if s1 == s2 else 1.0
            pms.append(w * ohT[:, :, s1][:, :, None] * ohT[:, :, s2][:, None, :])
    pm = jnp.stack(pms, axis=1).reshape(m, NPAIR, n * n)

    crow = jnp.transpose(coordinates, (0, 2, 1)).astype(jnp.float32)            # (M, 3, N)
    ccol = coordinates.astype(jnp.float32)                                      # (M, N, 3)

    # per-molecule per-species atom counts -> SMEM scalar prefetch (species-branch skipping)
    counts = jnp.sum(oh, axis=-1).astype(jnp.int32)                             # (M, S)

    # ---- fused AEV computer + batched per-species neural networks (one Pallas kernel) ----
    atom_e = _ani_fused_pallas(counts, crow, ccol, oh, ohT, pm,
                               aev_consts, nn_params)                           # (M, N, 1)
    energies = jnp.sum(atom_e[..., 0], axis=-1)                                 # (M,)
    return species, energies   # SpeciesEnergies


if __name__ == "__main__":
    key = jax.random.PRNGKey(0)
    k_coord, k_nn = jax.random.split(key)

    M, N = 2, 8                                                       # molecules, atoms
    atomic_numbers = jnp.array([8, 1, 1, 6, 1, 1, 7, 1], dtype=jnp.int32)   # O H H C H H N H
    coordinates = jax.random.uniform(k_coord, (M, N, 3), jnp.float32,
                                     minval=0.0, maxval=3.5)

    nn_params = make_nn_params(k_nn)
    aev_consts = make_aev_constants()

    fwd = jax.jit(functools.partial(mod_optimized_torchani_forward,
                                    nn_params=nn_params, aev_consts=aev_consts))
    species, energies = fwd(atomic_numbers, coordinates)
    jax.block_until_ready(energies)

    assert species.shape == (M, N)
    assert energies.shape == (M,)
    assert bool(jnp.all(jnp.isfinite(energies)))
    print("KERNEL_OK")
</pallas_src>

<mosaic_0001>
module attributes {stable_mosaic.version = 11 : i64} {
  func.func @_ani_fused_kernel(%arg0: i32, %arg1: memref<2x4xi32, #tpu.memory_space<smem>>, %arg2: memref<1x3x8xf32, #tpu.memory_space<vmem>>, %arg3: memref<1x8x3xf32, #tpu.memory_space<vmem>>, %arg4: memref<1x4x8xf32, #tpu.memory_space<vmem>>, %arg5: memref<1x8x4xf32, #tpu.memory_space<vmem>>, %arg6: memref<1x10x64xf32, #tpu.memory_space<vmem>>, %arg7: memref<16x1xf32, #tpu.memory_space<vmem>>, %arg8: memref<8x1xf32, #tpu.memory_space<vmem>>, %arg9: memref<8x1xf32, #tpu.memory_space<vmem>>, %arg10: memref<4x1xf32, #tpu.memory_space<vmem>>, %arg11: memref<4x384x160xbf16, #tpu.memory_space<vmem>>, %arg12: memref<4x160xf32, #tpu.memory_space<vmem>>, %arg13: memref<4x160x128xbf16, #tpu.memory_space<vmem>>, %arg14: memref<4x128xf32, #tpu.memory_space<vmem>>, %arg15: memref<4x128x96xbf16, #tpu.memory_space<vmem>>, %arg16: memref<4x96xf32, #tpu.memory_space<vmem>>, %arg17: memref<4x96x1xbf16, #tpu.memory_space<vmem>>, %arg18: memref<4x1xf32, #tpu.memory_space<vmem>>, %arg19: memref<1x8x1xf32, #tpu.memory_space<vmem>>, %arg20: memref<8x1xf32, #tpu.memory_space<vmem>>) attributes {dimension_semantics = [#tpu.dimension_semantics<parallel>], iteration_bounds = array<i64: 2>, scalar_prefetch = 1 : i64, scratch_operands = 1 : i64, tpu.core_type = #tpu.core_type<tc>, window_params = [{transform_indices = @transform_0, window_bounds = array<i64: 1, 3, 8>}, {transform_indices = @transform_1, window_bounds = array<i64: 1, 8, 3>}, {transform_indices = @transform_2, window_bounds = array<i64: 1, 4, 8>}, {transform_indices = @transform_3, window_bounds = array<i64: 1, 8, 4>}, {transform_indices = @transform_4, window_bounds = array<i64: 1, 10, 64>}, {pipeline_mode = #tpu.pipeline_mode<synchronous>, transform_indices = @transform_5, window_bounds = array<i64: 16, 1>}, {pipeline_mode = #tpu.pipeline_mode<synchronous>, transform_indices = @transform_6, window_bounds = array<i64: 8, 1>}, {pipeline_mode = #tpu.pipeline_mode<synchronous>, transform_indices = @transform_7, window_bounds = array<i64: 8, 1>}, {pipeline_mode = #tpu.pipeline_mode<synchronous>, transform_indices = @transform_8, window_bounds = array<i64: 4, 1>}, {pipeline_mode = #tpu.pipeline_mode<synchronous>, transform_indices = @transform_9, window_bounds = array<i64: 4, 384, 160>}, {pipeline_mode = #tpu.pipeline_mode<synchronous>, transform_indices = @transform_10, window_bounds = array<i64: 4, 160>}, {pipeline_mode = #tpu.pipeline_mode<synchronous>, transform_indices = @transform_11, window_bounds = array<i64: 4, 160, 128>}, {pipeline_mode = #tpu.pipeline_mode<synchronous>, transform_indices = @transform_12, window_bounds = array<i64: 4, 128>}, {pipeline_mode = #tpu.pipeline_mode<synchronous>, transform_indices = @transform_13, window_bounds = array<i64: 4, 128, 96>}, {pipeline_mode = #tpu.pipeline_mode<synchronous>, transform_indices = @transform_14, window_bounds = array<i64: 4, 96>}, {pipeline_mode = #tpu.pipeline_mode<synchronous>, transform_indices = @transform_15, window_bounds = array<i64: 4, 96, 1>}, {pipeline_mode = #tpu.pipeline_mode<synchronous>, transform_indices = @transform_16, window_bounds = array<i64: 4, 1>}, {transform_indices = @transform_17, window_bounds = array<i64: 1, 8, 1>}]} {
    %c0 = arith.constant 0 : index
    %c0_0 = arith.constant 0 : index
    %c0_1 = arith.constant 0 : index
    %0 = vector.load %arg2[%c0, %c0_0, %c0_1] : memref<1x3x8xf32, #tpu.memory_space<vmem>>, vector<1x3x8xf32>
    %1 = vector.shape_cast %0 : vector<1x3x8xf32> to vector<3x8xf32>
    %c0_2 = arith.constant 0 : index
    %c0_3 = arith.constant 0 : index
    %c0_4 = arith.constant 0 : index
    %2 = vector.load %arg3[%c0_2, %c0_3, %c0_4] : memref<1x8x3xf32, #tpu.memory_space<vmem>>, vector<1x8x3xf32>
    %3 = vector.shape_cast %2 : vector<1x8x3xf32> to vector<8x3xf32>
    %c0_5 = arith.constant 0 : index
    %c0_6 = arith.constant 0 : index
    %c0_7 = arith.constant 0 : index
    %4 = vector.load %arg4[%c0_5, %c0_6, %c0_7] : memref<1x4x8xf32, #tpu.memory_space<vmem>>, vector<1x4x8xf32>
    %5 = vector.shape_cast %4 : vector<1x4x8xf32> to vector<4x8xf32>
    %c0_8 = arith.constant 0 : index
    %c0_9 = arith.constant 0 : index
    %c0_10 = arith.constant 0 : index
    %6 = vector.load %arg5[%c0_8, %c0_9, %c0_10] : memref<1x8x4xf32, #tpu.memory_space<vmem>>, vector<1x8x4xf32>
    %7 = vector.shape_cast %6 : vector<1x8x4xf32> to vector<8x4xf32>
    %c0_11 = arith.constant 0 : index
    %c0_12 = arith.constant 0 : index
    %c0_13 = arith.constant 0 : index
    %8 = vector.load %arg6[%c0_11, %c0_12, %c0_13] : memref<1x10x64xf32, #tpu.memory_space<vmem>>, vector<1x10x64xf32>
    %9 = vector.shape_cast %8 : vector<1x10x64xf32> to vector<10x64xf32>
    %c0_14 = arith.constant 0 : index
    %c0_15 = arith.constant 0 : index
    %10 = vector.load %arg7[%c0_14, %c0_15] : memref<16x1xf32, #tpu.memory_space<vmem>>, vector<16x1xf32>
    %c0_16 = arith.constant 0 : index
    %c0_17 = arith.constant 0 : index
    %11 = vector.load %arg8[%c0_16, %c0_17] : memref<8x1xf32, #tpu.memory_space<vmem>>, vector<8x1xf32>
    %c0_18 = arith.constant 0 : index
    %c0_19 = arith.constant 0 : index
    %12 = vector.load %arg9[%c0_18, %c0_19] : memref<8x1xf32, #tpu.memory_space<vmem>>, vector<8x1xf32>
    %c0_20 = arith.constant 0 : index
    %c0_21 = arith.constant 0 : index
    %13 = vector.load %arg10[%c0_20, %c0_21] : memref<4x1xf32, #tpu.memory_space<vmem>>, vector<4x1xf32>
    %14 = vector.extract_strided_slice %3 {offsets = [0, 0], sizes = [8, 1], strides = [1, 1]} : vector<8x3xf32> to vector<8x1xf32>
    %15 = vector.extract_strided_slice %1 {offsets = [0, 0], sizes = [1, 8], strides = [1, 1]} : vector<3x8xf32> to vector<1x8xf32>
    %16 = vector.broadcast %14 : vector<8x1xf32> to vector<8x8xf32>
    %17 = vector.broadcast %15 : vector<1x8xf32> to vector<8x8xf32>
    %18 = arith.subf %16, %17 : vector<8x8xf32>
    %19 = vector.extract_strided_slice %3 {offsets = [0, 1], sizes = [8, 1], strides = [1, 1]} : vector<8x3xf32> to vector<8x1xf32>
    %20 = vector.extract_strided_slice %1 {offsets = [1, 0], sizes = [1, 8], strides = [1, 1]} : vector<3x8xf32> to vector<1x8xf32>
    %21 = vector.broadcast %19 : vector<8x1xf32> to vector<8x8xf32>
    %22 = vector.broadcast %20 : vector<1x8xf32> to vector<8x8xf32>
    %23 = arith.subf %21, %22 : vector<8x8xf32>
    %24 = vector.extract_strided_slice %3 {offsets = [0, 2], sizes = [8, 1], strides = [1, 1]} : vector<8x3xf32> to vector<8x1xf32>
    %25 = vector.extract_strided_slice %1 {offsets = [2, 0], sizes = [1, 8], strides = [1, 1]} : vector<3x8xf32> to vector<1x8xf32>
    %26 = vector.broadcast %24 : vector<8x1xf32> to vector<8x8xf32>
    %27 = vector.broadcast %25 : vector<1x8xf32> to vector<8x8xf32>
    %28 = arith.subf %26, %27 : vector<8x8xf32>
    %29 = arith.mulf %18, %18 : vector<8x8xf32>
    %30 = arith.mulf %23, %23 : vector<8x8xf32>
    %31 = arith.addf %29, %30 : vector<8x8xf32>
    %32 = arith.mulf %28, %28 : vector<8x8xf32>
    %33 = arith.addf %31, %32 : vector<8x8xf32>
    %cst = arith.constant 9.99999996E-13 : f32
    %34 = vector.broadcast %cst : f32 to vector<8x8xf32>
    %35 = arith.addf %33, %34 : vector<8x8xf32>
    %36 = math.sqrt %35 : vector<8x8xf32>
    %37 = tpu.iota {dimensions = array<i32: 0>} : vector<8x8xi32>
    %38 = tpu.iota {dimensions = array<i32: 1>} : vector<8x8xi32>
    %39 = arith.cmpi ne, %37, %38 : vector<8x8xi32>
    %40 = arith.extui %39 : vector<8x8xi1> to vector<8x8xi32>
    %41 = arith.sitofp %40 : vector<8x8xi32> to vector<8x8xf32>
    %cst_22 = arith.constant 5.200000e+00 : f32
    %42 = vector.broadcast %cst_22 : f32 to vector<8x8xf32>
    %43 = arith.cmpf olt, %36, %42 : vector<8x8xf32>
    %cst_23 = arith.constant 3.14159274 : f32
    %44 = vector.broadcast %cst_23 : f32 to vector<8x8xf32>
    %45 = arith.mulf %44, %36 : vector<8x8xf32>
    %cst_24 = arith.constant 5.200000e+00 : f32
    %46 = vector.broadcast %cst_24 : f32 to vector<8x8xf32>
    %47 = arith.divf %45, %46 : vector<8x8xf32>
    %48 = math.cos %47 : vector<8x8xf32>
    %cst_25 = arith.constant 5.000000e-01 : f32
    %49 = vector.broadcast %cst_25 : f32 to vector<8x8xf32>
    %50 = arith.mulf %49, %48 : vector<8x8xf32>
    %cst_26 = arith.constant 5.000000e-01 : f32
    %51 = vector.broadcast %cst_26 : f32 to vector<8x8xf32>
    %52 = arith.addf %50, %51 : vector<8x8xf32>
    %cst_27 = arith.constant 0.000000e+00 : f32
    %53 = vector.broadcast %cst_27 : f32 to vector<8x8xf32>
    %54 = arith.select %43, %52, %53 : vector<8x8xi1>, vector<8x8xf32>
    %55 = arith.mulf %54, %41 : vector<8x8xf32>
    %cst_28 = arith.constant 3.500000e+00 : f32
    %56 = vector.broadcast %cst_28 : f32 to vector<8x8xf32>
    %57 = arith.cmpf olt, %36, %56 : vector<8x8xf32>
    %cst_29 = arith.constant 3.14159274 : f32
    %58 = vector.broadcast %cst_29 : f32 to vector<8x8xf32>
    %59 = arith.mulf %58, %36 : vector<8x8xf32>
    %cst_30 = arith.constant 3.500000e+00 : f32
    %60 = vector.broadcast %cst_30 : f32 to vector<8x8xf32>
    %61 = arith.divf %59, %60 : vector<8x8xf32>
    %62 = math.cos %61 : vector<8x8xf32>
    %cst_31 = arith.constant 5.000000e-01 : f32
    %63 = vector.broadcast %cst_31 : f32 to vector<8x8xf32>
    %64 = arith.mulf %63, %62 : vector<8x8xf32>
    %cst_32 = arith.constant 5.000000e-01 : f32
    %65 = vector.broadcast %cst_32 : f32 to vector<8x8xf32>
    %66 = arith.addf %64, %65 : vector<8x8xf32>
    %cst_33 = arith.constant 0.000000e+00 : f32
    %67 = vector.broadcast %cst_33 : f32 to vector<8x8xf32>
    %68 = arith.select %57, %66, %67 : vector<8x8xi1>, vector<8x8xf32>
    %69 = arith.mulf %68, %41 : vector<8x8xf32>
    %70 = vector.shape_cast %36 : vector<8x8xf32> to vector<8x1x8xf32>
    %71 = vector.shape_cast %10 : vector<16x1xf32> to vector<1x16x1xf32>
    %72 = vector.broadcast %70 : vector<8x1x8xf32> to vector<8x16x8xf32>
    %73 = vector.broadcast %71 : vector<1x16x1xf32> to vector<8x16x8xf32>
    %74 = arith.subf %72, %73 : vector<8x16x8xf32>
    %75 = arith.mulf %74, %74 : vector<8x16x8xf32>
    %cst_34 = arith.constant -1.600000e+01 : f32
    %76 = vector.broadcast %cst_34 : f32 to vector<8x16x8xf32>
    %77 = arith.mulf %76, %75 : vector<8x16x8xf32>
    %78 = math.exp %77 : vector<8x16x8xf32>
    %cst_35 = arith.constant 2.500000e-01 : f32
    %79 = vector.broadcast %cst_35 : f32 to vector<8x8xf32>
    %80 = arith.mulf %79, %55 : vector<8x8xf32>
    %81 = vector.shape_cast %80 : vector<8x8xf32> to vector<8x1x8xf32>
    %82 = vector.broadcast %81 : vector<8x1x8xf32> to vector<8x16x8xf32>
    %83 = arith.mulf %78, %82 : vector<8x16x8xf32>
    %84 = vector.shape_cast %5 : vector<4x8xf32> to vector<1x4x8xf32>
    %85 = vector.shape_cast %84 : vector<1x4x8xf32> to vector<1x4x8xf32>
    %86 = vector.broadcast %85 : vector<1x4x8xf32> to vector<8x4x8xf32>
    "tpu.trace_start"() <{level = 10 : i32, message = "isj,iqj->isq"}> : () -> ()
    %cst_36 = arith.constant dense<0.000000e+00> : vector<8x4x16xf32>
    %87 = tpu.matmul %86, %83, %cst_36 {dimension_numbers = #tpu.dot_dimension_numbers<[2], [2], [1], [1], [0, 0, 0, 1, 1, 1], [0], [0]>} : vector<8x4x8xf32>, vector<8x16x8xf32>, vector<8x4x16xf32> -> vector<8x4x16xf32>
    "tpu.trace_stop"() : () -> ()
    %88 = vector.shape_cast %87 : vector<8x4x16xf32> to vector<8x64xf32>
    %89 = vector.shape_cast %18 : vector<8x8xf32> to vector<8x8x1xf32>
    %90 = vector.shape_cast %18 : vector<8x8xf32> to vector<8x1x8xf32>
    %91 = vector.broadcast %89 : vector<8x8x1xf32> to vector<8x8x8xf32>
    %92 = vector.broadcast %90 : vector<8x1x8xf32> to vector<8x8x8xf32>
    %93 = arith.mulf %91, %92 : vector<8x8x8xf32>
    %94 = vector.shape_cast %23 : vector<8x8xf32> to vector<8x8x1xf32>
    %95 = vector.shape_cast %23 : vector<8x8xf32> to vector<8x1x8xf32>
    %96 = vector.broadcast %94 : vector<8x8x1xf32> to vector<8x8x8xf32>
    %97 = vector.broadcast %95 : vector<8x1x8xf32> to vector<8x8x8xf32>
    %98 = arith.mulf %96, %97 : vector<8x8x8xf32>
    %99 = arith.addf %93, %98 : vector<8x8x8xf32>
    %100 = vector.shape_cast %28 : vector<8x8xf32> to vector<8x8x1xf32>
    %101 = vector.shape_cast %28 : vector<8x8xf32> to vector<8x1x8xf32>
    %102 = vector.broadcast %100 : vector<8x8x1xf32> to vector<8x8x8xf32>
    %103 = vector.broadcast %101 : vector<8x1x8xf32> to vector<8x8x8xf32>
    %104 = arith.mulf %102, %103 : vector<8x8x8xf32>
    %105 = arith.addf %99, %104 : vector<8x8x8xf32>
    %106 = vector.shape_cast %36 : vector<8x8xf32> to vector<8x8x1xf32>
    %107 = vector.shape_cast %36 : vector<8x8xf32> to vector<8x1x8xf32>
    %108 = vector.broadcast %106 : vector<8x8x1xf32> to vector<8x8x8xf32>
    %109 = vector.broadcast %107 : vector<8x1x8xf32> to vector<8x8x8xf32>
    %110 = arith.mulf %108, %109 : vector<8x8x8xf32>
    %cst_37 = arith.constant 9.99999971E-10 : f32
    %111 = vector.broadcast %cst_37 : f32 to vector<8x8x8xf32>
    %112 = arith.addf %110, %111 : vector<8x8x8xf32>
    %113 = tpu.reciprocal %112 {approx = true} : vector<8x8x8xf32> -> vector<8x8x8xf32>
    %cst_38 = arith.constant 0.949999988 : f32
    %114 = vector.broadcast %cst_38 : f32 to vector<8x8x8xf32>
    %115 = arith.mulf %114, %105 : vector<8x8x8xf32>
    %116 = arith.mulf %115, %113 : vector<8x8x8xf32>
    %117 = arith.mulf %116, %116 : vector<8x8x8xf32>
    %cst_39 = arith.constant 1.000000e+00 : f32
    %118 = vector.broadcast %cst_39 : f32 to vector<8x8x8xf32>
    %119 = arith.subf %118, %117 : vector<8x8x8xf32>
    %cst_40 = arith.constant 0.000000e+00 : f32
    %120 = vector.broadcast %cst_40 : f32 to vector<8x8x8xf32>
    %121 = arith.maximumf %119, %120 : vector<8x8x8xf32>
    %122 = math.sqrt %121 : vector<8x8x8xf32>
    %123 = vector.broadcast %106 : vector<8x8x1xf32> to vector<8x8x8xf32>
    %124 = vector.broadcast %107 : vector<8x1x8xf32> to vector<8x8x8xf32>
    %125 = arith.addf %123, %124 : vector<8x8x8xf32>
    %cst_41 = arith.constant 5.000000e-01 : f32
    %126 = vector.broadcast %cst_41 : f32 to vector<8x8x8xf32>
    %127 = arith.mulf %126, %125 : vector<8x8x8xf32>
    %128 = vector.shape_cast %69 : vector<8x8xf32> to vector<8x8x1xf32>
    %129 = vector.shape_cast %69 : vector<8x8xf32> to vector<8x1x8xf32>
    %130 = vector.broadcast %128 : vector<8x8x1xf32> to vector<8x8x8xf32>
    %131 = vector.broadcast %129 : vector<8x1x8xf32> to vector<8x8x8xf32>
    %132 = arith.mulf %130, %131 : vector<8x8x8xf32>
    %133 = vector.shape_cast %41 : vector<8x8xf32> to vector<1x8x8xf32>
    %134 = vector.broadcast %133 : vector<1x8x8xf32> to vector<8x8x8xf32>
    %135 = arith.mulf %132, %134 : vector<8x8x8xf32>
    %136 = vector.shape_cast %116 : vector<8x8x8xf32> to vector<8x64xf32>
    %137 = vector.shape_cast %122 : vector<8x8x8xf32> to vector<8x64xf32>
    %138 = vector.shape_cast %127 : vector<8x8x8xf32> to vector<8x64xf32>
    %139 = vector.shape_cast %135 : vector<8x8x8xf32> to vector<8x64xf32>
    %140 = vector.shape_cast %136 : vector<8x64xf32> to vector<8x1x64xf32>
    %141 = vector.shape_cast %11 : vector<8x1xf32> to vector<1x8x1xf32>
    %142 = vector.broadcast %140 : vector<8x1x64xf32> to vector<8x8x64xf32>
    %143 = vector.broadcast %141 : vector<1x8x1xf32> to vector<8x8x64xf32>
    %144 = arith.mulf %142, %143 : vector<8x8x64xf32>
    %145 = vector.shape_cast %137 : vector<8x64xf32> to vector<8x1x64xf32>
    %146 = vector.shape_cast %12 : vector<8x1xf32> to vector<1x8x1xf32>
    %147 = vector.broadcast %145 : vector<8x1x64xf32> to vector<8x8x64xf32>
    %148 = vector.broadcast %146 : vector<1x8x1xf32> to vector<8x8x64xf32>
    %149 = arith.mulf %147, %148 : vector<8x8x64xf32>
    %150 = arith.addf %144, %149 : vector<8x8x64xf32>
    %cst_42 = arith.constant 1.000000e+00 : f32
    %151 = vector.broadcast %cst_42 : f32 to vector<8x8x64xf32>
    %152 = arith.addf %151, %150 : vector<8x8x64xf32>
    %cst_43 = arith.constant 5.000000e-01 : f32
    %153 = vector.broadcast %cst_43 : f32 to vector<8x8x64xf32>
    %154 = arith.mulf %153, %152 : vector<8x8x64xf32>
    %155 = arith.mulf %154, %154 : vector<8x8x64xf32>
    %156 = arith.mulf %155, %155 : vector<8x8x64xf32>
    %157 = arith.mulf %156, %156 : vector<8x8x64xf32>
    %158 = arith.mulf %157, %157 : vector<8x8x64xf32>
    %159 = arith.mulf %158, %158 : vector<8x8x64xf32>
    %160 = vector.shape_cast %138 : vector<8x64xf32> to vector<8x1x64xf32>
    %161 = vector.shape_cast %13 : vector<4x1xf32> to vector<1x4x1xf32>
    %162 = vector.broadcast %160 : vector<8x1x64xf32> to vector<8x4x64xf32>
    %163 = vector.broadcast %161 : vector<1x4x1xf32> to vector<8x4x64xf32>
    %164 = arith.subf %162, %163 : vector<8x4x64xf32>
    %165 = arith.mulf %164, %164 : vector<8x4x64xf32>
    %cst_44 = arith.constant -8.000000e+00 : f32
    %166 = vector.broadcast %cst_44 : f32 to vector<8x4x64xf32>
    %167 = arith.mulf %166, %165 : vector<8x4x64xf32>
    %168 = math.exp %167 : vector<8x4x64xf32>
    %cst_45 = arith.constant 2.000000e+00 : f32
    %169 = vector.broadcast %cst_45 : f32 to vector<8x64xf32>
    %170 = arith.mulf %169, %139 : vector<8x64xf32>
    %171 = vector.shape_cast %170 : vector<8x64xf32> to vector<8x1x64xf32>
    %172 = vector.broadcast %171 : vector<8x1x64xf32> to vector<8x4x64xf32>
    %173 = arith.mulf %168, %172 : vector<8x4x64xf32>
    %174 = vector.shape_cast %173 : vector<8x4x64xf32> to vector<8x4x1x64xf32>
    %175 = vector.shape_cast %159 : vector<8x8x64xf32> to vector<8x1x8x64xf32>
    %176 = vector.broadcast %174 : vector<8x4x1x64xf32> to vector<8x4x8x64xf32>
    %177 = vector.broadcast %175 : vector<8x1x8x64xf32> to vector<8x4x8x64xf32>
    %178 = arith.mulf %176, %177 : vector<8x4x8x64xf32>
    %179 = vector.shape_cast %178 : vector<8x4x8x64xf32> to vector<8x32x64xf32>
    %180 = vector.shape_cast %9 : vector<10x64xf32> to vector<1x10x64xf32>
    %181 = vector.shape_cast %180 : vector<1x10x64xf32> to vector<1x10x64xf32>
    %182 = vector.broadcast %181 : vector<1x10x64xf32> to vector<8x10x64xf32>
    "tpu.trace_start"() <{level = 10 : i32, message = "ipq,irq->ipr"}> : () -> ()
    %cst_46 = arith.constant dense<0.000000e+00> : vector<8x10x32xf32>
    %183 = tpu.matmul %182, %179, %cst_46 {dimension_numbers = #tpu.dot_dimension_numbers<[2], [2], [1], [1], [0, 0, 0, 1, 1, 1], [0], [0]>} : vector<8x10x64xf32>, vector<8x32x64xf32>, vector<8x10x32xf32> -> vector<8x10x32xf32>
    "tpu.trace_stop"() : () -> ()
    %184 = vector.shape_cast %183 : vector<8x10x32xf32> to vector<8x320xf32>
    %185 = tpu.concatenate %88, %184 in 1 : vector<8x64xf32>, vector<8x320xf32> -> vector<8x384xf32>
    %186 = arith.truncf %185 : vector<8x384xf32> to vector<8x384xbf16>
    %cst_47 = arith.constant 0.000000e+00 : f32
    %187 = vector.broadcast %cst_47 : f32 to vector<8x1xf32>
    %c0_48 = arith.constant 0 : index
    %c0_49 = arith.constant 0 : index
    %188 = vector.load %arg20[%c0_48, %c0_49] : memref<8x1xf32, #tpu.memory_space<vmem>>, vector<8x1xf32>
    tpu.vector_store %arg20[%c0_48, %c0_49], %187 {strides = array<i32>} : memref<8x1xf32, #tpu.memory_space<vmem>>, vector<8x1xf32>,
    %189 = arith.index_cast %arg0 : i32 to index
    %c0_50 = arith.constant 0 : index
    %190 = memref.load %arg1[%189, %c0_50] : memref<2x4xi32, #tpu.memory_space<smem>>
    %c0_i32 = arith.constant 0 : i32
    %191 = arith.cmpi sgt, %190, %c0_i32 : i32
    %192 = arith.extui %191 : i1 to i32
    %c0_i32_51 = arith.constant 0 : i32
    %193 = arith.cmpi ne, %192, %c0_i32_51 : i32
    scf.if %193 {
      %c0_63 = arith.constant 0 : index
      %c0_64 = arith.constant 0 : index
      %c0_65 = arith.constant 0 : index
      %213 = vector.load %arg11[%c0_63, %c0_64, %c0_65] : memref<4x384x160xbf16, #tpu.memory_space<vmem>>, vector<1x384x160xbf16>
      %214 = vector.shape_cast %213 : vector<1x384x160xbf16> to vector<384x160xbf16>
      %cst_66 = arith.constant dense<0.000000e+00> : vector<8x160xf32>
      %215 = tpu.matmul %186, %214, %cst_66 {dimension_numbers = #tpu.dot_dimension_numbers<[1], [0], [0], [1], [0, 0, 1, 1], [], []>} : vector<8x384xbf16>, vector<384x160xbf16>, vector<8x160xf32> -> vector<8x160xf32>
      %c0_67 = arith.constant 0 : index
      %c0_68 = arith.constant 0 : index
      %216 = vector.load %arg12[%c0_67, %c0_68] : memref<4x160xf32, #tpu.memory_space<vmem>>, vector<1x160xf32>
      %217 = vector.broadcast %216 : vector<1x160xf32> to vector<8x160xf32>
      %218 = arith.addf %215, %217 : vector<8x160xf32>
      %cst_69 = arith.constant 0.000000e+00 : f32
      %219 = vector.broadcast %cst_69 : f32 to vector<8x160xf32>
      %220 = arith.maximumf %218, %219 : vector<8x160xf32>
      %cst_70 = arith.constant 0.000000e+00 : f32
      %221 = vector.broadcast %cst_70 : f32 to vector<8x160xf32>
      %222 = arith.minimumf %218, %221 : vector<8x160xf32>
      %cst_71 = arith.constant 1.000000e-01 : f32
      %223 = vector.broadcast %cst_71 : f32 to vector<8x160xf32>
      %224 = arith.divf %222, %223 : vector<8x160xf32>
      %225 = math.exp %224 : vector<8x160xf32>
      %cst_72 = arith.constant 1.000000e+00 : f32
      %226 = vector.broadcast %cst_72 : f32 to vector<8x160xf32>
      %227 = arith.subf %225, %226 : vector<8x160xf32>
      %cst_73 = arith.constant 1.000000e-01 : f32
      %228 = vector.broadcast %cst_73 : f32 to vector<8x160xf32>
      %229 = arith.mulf %228, %227 : vector<8x160xf32>
      %230 = arith.addf %220, %229 : vector<8x160xf32>
      %231 = arith.truncf %230 : vector<8x160xf32> to vector<8x160xbf16>
      %c0_74 = arith.constant 0 : index
      %c0_75 = arith.constant 0 : index
      %c0_76 = arith.constant 0 : index
      %232 = vector.load %arg13[%c0_74, %c0_75, %c0_76] : memref<4x160x128xbf16, #tpu.memory_space<vmem>>, vector<1x160x128xbf16>
      %233 = vector.shape_cast %232 : vector<1x160x128xbf16> to vector<160x128xbf16>
      %cst_77 = arith.constant dense<0.000000e+00> : vector<8x128xf32>
      %234 = tpu.matmul %231, %233, %cst_77 {dimension_numbers = #tpu.dot_dimension_numbers<[1], [0], [0], [1], [0, 0, 1, 1], [], []>} : vector<8x160xbf16>, vector<160x128xbf16>, vector<8x128xf32> -> vector<8x128xf32>
      %c0_78 = arith.constant 0 : index
      %c0_79 = arith.constant 0 : index
      %235 = vector.load %arg14[%c0_78, %c0_79] : memref<4x128xf32, #tpu.memory_space<vmem>>, vector<1x128xf32>
      %236 = vector.broadcast %235 : vector<1x128xf32> to vector<8x128xf32>
      %237 = arith.addf %234, %236 : vector<8x128xf32>
      %cst_80 = arith.constant 0.000000e+00 : f32
      %238 = vector.broadcast %cst_80 : f32 to vector<8x128xf32>
      %239 = arith.maximumf %237, %238 : vector<8x128xf32>
      %cst_81 = arith.constant 0.000000e+00 : f32
      %240 = vector.broadcast %cst_81 : f32 to vector<8x128xf32>
      %241 = arith.minimumf %237, %240 : vector<8x128xf32>
      %cst_82 = arith.constant 1.000000e-01 : f32
      %242 = vector.broadcast %cst_82 : f32 to vector<8x128xf32>
      %243 = arith.divf %241, %242 : vector<8x128xf32>
      %244 = math.exp %243 : vector<8x128xf32>
      %cst_83 = arith.constant 1.000000e+00 : f32
      %245 = vector.broadcast %cst_83 : f32 to vector<8x128xf32>
      %246 = arith.subf %244, %245 : vector<8x128xf32>
      %cst_84 = arith.constant 1.000000e-01 : f32
      %247 = vector.broadcast %cst_84 : f32 to vector<8x128xf32>
      %248 = arith.mulf %247, %246 : vector<8x128xf32>
      %249 = arith.addf %239, %248 : vector<8x128xf32>
      %250 = arith.truncf %249 : vector<8x128xf32> to vector<8x128xbf16>
      %c0_85 = arith.constant 0 : index
      %c0_86 = arith.constant 0 : index
      %c0_87 = arith.constant 0 : index
      %251 = vector.load %arg15[%c0_85, %c0_86, %c0_87] : memref<4x128x96xbf16, #tpu.memory_space<vmem>>, vector<1x128x96xbf16>
      %252 = vector.shape_cast %251 : vector<1x128x96xbf16> to vector<128x96xbf16>
      %cst_88 = arith.constant dense<0.000000e+00> : vector<8x96xf32>
      %253 = tpu.matmul %250, %252, %cst_88 {dimension_numbers = #tpu.dot_dimension_numbers<[1], [0], [0], [1], [0, 0, 1, 1], [], []>} : vector<8x128xbf16>, vector<128x96xbf16>, vector<8x96xf32> -> vector<8x96xf32>
      %c0_89 = arith.constant 0 : index
      %c0_90 = arith.constant 0 : index
      %254 = vector.load %arg16[%c0_89, %c0_90] : memref<4x96xf32, #tpu.memory_space<vmem>>, vector<1x96xf32>
      %255 = vector.broadcast %254 : vector<1x96xf32> to vector<8x96xf32>
      %256 = arith.addf %253, %255 : vector<8x96xf32>
      %cst_91 = arith.constant 0.000000e+00 : f32
      %257 = vector.broadcast %cst_91 : f32 to vector<8x96xf32>
      %258 = arith.maximumf %256, %257 : vector<8x96xf32>
      %cst_92 = arith.constant 0.000000e+00 : f32
      %259 = vector.broadcast %cst_92 : f32 to vector<8x96xf32>
      %260 = arith.minimumf %256, %259 : vector<8x96xf32>
      %cst_93 = arith.constant 1.000000e-01 : f32
      %261 = vector.broadcast %cst_93 : f32 to vector<8x96xf32>
      %262 = arith.divf %260, %261 : vector<8x96xf32>
      %263 = math.exp %262 : vector<8x96xf32>
      %cst_94 = arith.constant 1.000000e+00 : f32
      %264 = vector.broadcast %cst_94 : f32 to vector<8x96xf32>
      %265 = arith.subf %263, %264 : vector<8x96xf32>
      %cst_95 = arith.constant 1.000000e-01 : f32
      %266 = vector.broadcast %cst_95 : f32 to vector<8x96xf32>
      %267 = arith.mulf %266, %265 : vector<8x96xf32>
      %268 = arith.addf %258, %267 : vector<8x96xf32>
      %269 = arith.truncf %268 : vector<8x96xf32> to vector<8x96xbf16>
      %c0_96 = arith.constant 0 : index
      %c0_97 = arith.constant 0 : index
      %c0_98 = arith.constant 0 : index
      %270 = vector.load %arg17[%c0_96, %c0_97, %c0_98] : memref<4x96x1xbf16, #tpu.memory_space<vmem>>, vector<1x96x1xbf16>
      %271 = vector.shape_cast %270 : vector<1x96x1xbf16> to vector<96x1xbf16>
      %cst_99 = arith.constant dense<0.000000e+00> : vector<8x1xf32>
      %272 = tpu.matmul %269, %271, %cst_99 {dimension_numbers = #tpu.dot_dimension_numbers<[1], [0], [0], [1], [0, 0, 1, 1], [], []>} : vector<8x96xbf16>, vector<96x1xbf16>, vector<8x1xf32> -> vector<8x1xf32>
      %c0_100 = arith.constant 0 : index
      %c0_101 = arith.constant 0 : index
      %273 = vector.load %arg18[%c0_100, %c0_101] : memref<4x1xf32, #tpu.memory_space<vmem>>, vector<1x1xf32>
      %274 = vector.broadcast %273 : vector<1x1xf32> to vector<8x1xf32>
      %275 = arith.addf %272, %274 : vector<8x1xf32>
      %c0_102 = arith.constant 0 : index
      %c0_103 = arith.constant 0 : index
      %276 = vector.load %arg20[%c0_102, %c0_103] : memref<8x1xf32, #tpu.memory_space<vmem>>, vector<8x1xf32>
      %277 = vector.extract_strided_slice %7 {offsets = [0, 0], sizes = [8, 1], strides = [1, 1]} : vector<8x4xf32> to vector<8x1xf32>
      %278 = arith.mulf %275, %277 : vector<8x1xf32>
      %279 = arith.addf %276, %278 : vector<8x1xf32>
      %c0_104 = arith.constant 0 : index
      %c0_105 = arith.constant 0 : index
      %280 = vector.load %arg20[%c0_104, %c0_105] : memref<8x1xf32, #tpu.memory_space<vmem>>, vector<8x1xf32>
      tpu.vector_store %arg20[%c0_104, %c0_105], %279 {strides = array<i32>} : memref<8x1xf32, #tpu.memory_space<vmem>>, vector<8x1xf32>,
    } else {
    }
    %194 = arith.index_cast %arg0 : i32 to index
    %c1 = arith.constant 1 : index
    %195 = memref.load %arg1[%194, %c1] : memref<2x4xi32, #tpu.memory_space<smem>>
    %c0_i32_52 = arith.constant 0 : i32
    %196 = arith.cmpi sgt, %195, %c0_i32_52 : i32
    %197 = arith.extui %196 : i1 to i32
    %c0_i32_53 = arith.constant 0 : i32
    %198 = arith.cmpi ne, %197, %c0_i32_53 : i32
    scf.if %198 {
      %c1_63 = arith.constant 1 : index
      %c0_64 = arith.constant 0 : index
      %c0_65 = arith.constant 0 : index
      %213 = vector.load %arg11[%c1_63, %c0_64, %c0_65] : memref<4x384x160xbf16, #tpu.memory_space<vmem>>, vector<1x384x160xbf16>
      %214 = vector.shape_cast %213 : vector<1x384x160xbf16> to vector<384x160xbf16>
      %cst_66 = arith.constant dense<0.000000e+00> : vector<8x160xf32>
      %215 = tpu.matmul %186, %214, %cst_66 {dimension_numbers = #tpu.dot_dimension_numbers<[1], [0], [0], [1], [0, 0, 1, 1], [], []>} : vector<8x384xbf16>, vector<384x160xbf16>, vector<8x160xf32> -> vector<8x160xf32>
      %c1_67 = arith.constant 1 : index
      %c0_68 = arith.constant 0 : index
      %216 = vector.load %arg12[%c1_67, %c0_68] : memref<4x160xf32, #tpu.memory_space<vmem>>, vector<1x160xf32>
      %217 = vector.broadcast %216 : vector<1x160xf32> to vector<8x160xf32>
      %218 = arith.addf %215, %217 : vector<8x160xf32>
      %cst_69 = arith.constant 0.000000e+00 : f32
      %219 = vector.broadcast %cst_69 : f32 to vector<8x160xf32>
      %220 = arith.maximumf %218, %219 : vector<8x160xf32>
      %cst_70 = arith.constant 0.000000e+00 : f32
      %221 = vector.broadcast %cst_70 : f32 to vector<8x160xf32>
      %222 = arith.minimumf %218, %221 : vector<8x160xf32>
      %cst_71 = arith.constant 1.000000e-01 : f32
      %223 = vector.broadcast %cst_71 : f32 to vector<8x160xf32>
      %224 = arith.divf %222, %223 : vector<8x160xf32>
      %225 = math.exp %224 : vector<8x160xf32>
      %cst_72 = arith.constant 1.000000e+00 : f32
      %226 = vector.broadcast %cst_72 : f32 to vector<8x160xf32>
      %227 = arith.subf %225, %226 : vector<8x160xf32>
      %cst_73 = arith.constant 1.000000e-01 : f32
      %228 = vector.broadcast %cst_73 : f32 to vector<8x160xf32>
      %229 = arith.mulf %228, %227 : vector<8x160xf32>
      %230 = arith.addf %220, %229 : vector<8x160xf32>
      %231 = arith.truncf %230 : vector<8x160xf32> to vector<8x160xbf16>
      %c1_74 = arith.constant 1 : index
      %c0_75 = arith.constant 0 : index
      %c0_76 = arith.constant 0 : index
      %232 = vector.load %arg13[%c1_74, %c0_75, %c0_76] : memref<4x160x128xbf16, #tpu.memory_space<vmem>>, vector<1x160x128xbf16>
      %233 = vector.shape_cast %232 : vector<1x160x128xbf16> to vector<160x128xbf16>
      %cst_77 = arith.constant dense<0.000000e+00> : vector<8x128xf32>
      %234 = tpu.matmul %231, %233, %cst_77 {dimension_numbers = #tpu.dot_dimension_numbers<[1], [0], [0], [1], [0, 0, 1, 1], [], []>} : vector<8x160xbf16>, vector<160x128xbf16>, vector<8x128xf32> -> vector<8x128xf32>
      %c1_78 = arith.constant 1 : index
      %c0_79 = arith.constant 0 : index
      %235 = vector.load %arg14[%c1_78, %c0_79] : memref<4x128xf32, #tpu.memory_space<vmem>>, vector<1x128xf32>
      %236 = vector.broadcast %235 : vector<1x128xf32> to vector<8x128xf32>
      %237 = arith.addf %234, %236 : vector<8x128xf32>
      %cst_80 = arith.constant 0.000000e+00 : f32
      %238 = vector.broadcast %cst_80 : f32 to vector<8x128xf32>
      %239 = arith.maximumf %237, %238 : vector<8x128xf32>
      %cst_81 = arith.constant 0.000000e+00 : f32
      %240 = vector.broadcast %cst_81 : f32 to vector<8x128xf32>
      %241 = arith.minimumf %237, %240 : vector<8x128xf32>
      %cst_82 = arith.constant 1.000000e-01 : f32
      %242 = vector.broadcast %cst_82 : f32 to vector<8x128xf32>
      %243 = arith.divf %241, %242 : vector<8x128xf32>
      %244 = math.exp %243 : vector<8x128xf32>
      %cst_83 = arith.constant 1.000000e+00 : f32
      %245 = vector.broadcast %cst_83 : f32 to vector<8x128xf32>
      %246 = arith.subf %244, %245 : vector<8x128xf32>
      %cst_84 = arith.constant 1.000000e-01 : f32
      %247 = vector.broadcast %cst_84 : f32 to vector<8x128xf32>
      %248 = arith.mulf %247, %246 : vector<8x128xf32>
      %249 = arith.addf %239, %248 : vector<8x128xf32>
      %250 = arith.truncf %249 : vector<8x128xf32> to vector<8x128xbf16>
      %c1_85 = arith.constant 1 : index
      %c0_86 = arith.constant 0 : index
      %c0_87 = arith.constant 0 : index
      %251 = vector.load %arg15[%c1_85, %c0_86, %c0_87] : memref<4x128x96xbf16, #tpu.memory_space<vmem>>, vector<1x128x96xbf16>
      %252 = vector.shape_cast %251 : vector<1x128x96xbf16> to vector<128x96xbf16>
      %cst_88 = arith.constant dense<0.000000e+00> : vector<8x96xf32>
      %253 = tpu.matmul %250, %252, %cst_88 {dimension_numbers = #tpu.dot_dimension_numbers<[1], [0], [0], [1], [0, 0, 1, 1], [], []>} : vector<8x128xbf16>, vector<128x96xbf16>, vector<8x96xf32> -> vector<8x96xf32>
      %c1_89 = arith.constant 1 : index
      %c0_90 = arith.constant 0 : index
      %254 = vector.load %arg16[%c1_89, %c0_90] : memref<4x96xf32, #tpu.memory_space<vmem>>, vector<1x96xf32>
      %255 = vector.broadcast %254 : vector<1x96xf32> to vector<8x96xf32>
      %256 = arith.addf %253, %255 : vector<8x96xf32>
      %cst_91 = arith.constant 0.000000e+00 : f32
      %257 = vector.broadcast %cst_91 : f32 to vector<8x96xf32>
      %258 = arith.maximumf %256, %257 : vector<8x96xf32>
      %cst_92 = arith.constant 0.000000e+00 : f32
      %259 = vector.broadcast %cst_92 : f32 to vector<8x96xf32>
      %260 = arith.minimumf %256, %259 : vector<8x96xf32>
      %cst_93 = arith.constant 1.000000e-01 : f32
      %261 = vector.broadcast %cst_93 : f32 to vector<8x96xf32>
      %262 = arith.divf %260, %261 : vector<8x96xf32>
      %263 = math.exp %262 : vector<8x96xf32>
      %cst_94 = arith.constant 1.000000e+00 : f32
      %264 = vector.broadcast %cst_94 : f32 to vector<8x96xf32>
      %265 = arith.subf %263, %264 : vector<8x96xf32>
      %cst_95 = arith.constant 1.000000e-01 : f32
      %266 = vector.broadcast %cst_95 : f32 to vector<8x96xf32>
      %267 = arith.mulf %266, %265 : vector<8x96xf32>
      %268 = arith.addf %258, %267 : vector<8x96xf32>
      %269 = arith.truncf %268 : vector<8x96xf32> to vector<8x96xbf16>
      %c1_96 = arith.constant 1 : index
      %c0_97 = arith.constant 0 : index
      %c0_98 = arith.constant 0 : index
      %270 = vector.load %arg17[%c1_96, %c0_97, %c0_98] : memref<4x96x1xbf16, #tpu.memory_space<vmem>>, vector<1x96x1xbf16>
      %271 = vector.shape_cast %270 : vector<1x96x1xbf16> to vector<96x1xbf16>
      %cst_99 = arith.constant dense<0.000000e+00> : vector<8x1xf32>
      %272 = tpu.matmul %269, %271, %cst_99 {dimension_numbers = #tpu.dot_dimension_numbers<[1], [0], [0], [1], [0, 0, 1, 1], [], []>} : vector<8x96xbf16>, vector<96x1xbf16>, vector<8x1xf32> -> vector<8x1xf32>
      %c1_100 = arith.constant 1 : index
      %c0_101 = arith.constant 0 : index
      %273 = vector.load %arg18[%c1_100, %c0_101] : memref<4x1xf32, #tpu.memory_space<vmem>>, vector<1x1xf32>
      %274 = vector.broadcast %273 : vector<1x1xf32> to vector<8x1xf32>
      %275 = arith.addf %272, %274 : vector<8x1xf32>
      %c0_102 = arith.constant 0 : index
      %c0_103 = arith.constant 0 : index
      %276 = vector.load %arg20[%c0_102, %c0_103] : memref<8x1xf32, #tpu.memory_space<vmem>>, vector<8x1xf32>
      %277 = vector.extract_strided_slice %7 {offsets = [0, 1], sizes = [8, 1], strides = [1, 1]} : vector<8x4xf32> to vector<8x1xf32>
      %278 = arith.mulf %275, %277 : vector<8x1xf32>
      %279 = arith.addf %276, %278 : vector<8x1xf32>
      %c0_104 = arith.constant 0 : index
      %c0_105 = arith.constant 0 : index
      %280 = vector.load %arg20[%c0_104, %c0_105] : memref<8x1xf32, #tpu.memory_space<vmem>>, vector<8x1xf32>
      tpu.vector_store %arg20[%c0_104, %c0_105], %279 {strides = array<i32>} : memref<8x1xf32, #tpu.memory_space<vmem>>, vector<8x1xf32>,
    } else {
    }
    %199 = arith.index_cast %arg0 : i32 to index
    %c2 = arith.constant 2 : index
    %200 = memref.load %arg1[%199, %c2] : memref<2x4xi32, #tpu.memory_space<smem>>
    %c0_i32_54 = arith.constant 0 : i32
    %201 = arith.cmpi sgt, %200, %c0_i32_54 : i32
    %202 = arith.extui %201 : i1 to i32
    %c0_i32_55 = arith.constant 0 : i32
    %203 = arith.cmpi ne, %202, %c0_i32_55 : i32
    scf.if %203 {
      %c2_63 = arith.constant 2 : index
      %c0_64 = arith.constant 0 : index
      %c0_65 = arith.constant 0 : index
      %213 = vector.load %arg11[%c2_63, %c0_64, %c0_65] : memref<4x384x160xbf16, #tpu.memory_space<vmem>>, vector<1x384x160xbf16>
      %214 = vector.shape_cast %213 : vector<1x384x160xbf16> to vector<384x160xbf16>
      %cst_66 = arith.constant dense<0.000000e+00> : vector<8x160xf32>
      %215 = tpu.matmul %186, %214, %cst_66 {dimension_numbers = #tpu.dot_dimension_numbers<[1], [0], [0], [1], [0, 0, 1, 1], [], []>} : vector<8x384xbf16>, vector<384x160xbf16>, vector<8x160xf32> -> vector<8x160xf32>
      %c2_67 = arith.constant 2 : index
      %c0_68 = arith.constant 0 : index
      %216 = vector.load %arg12[%c2_67, %c0_68] : memref<4x160xf32, #tpu.memory_space<vmem>>, vector<1x160xf32>
      %217 = vector.broadcast %216 : vector<1x160xf32> to vector<8x160xf32>
      %218 = arith.addf %215, %217 : vector<8x160xf32>
      %cst_69 = arith.constant 0.000000e+00 : f32
      %219 = vector.broadcast %cst_69 : f32 to vector<8x160xf32>
      %220 = arith.maximumf %218, %219 : vector<8x160xf32>
      %cst_70 = arith.constant 0.000000e+00 : f32
      %221 = vector.broadcast %cst_70 : f32 to vector<8x160xf32>
      %222 = arith.minimumf %218, %221 : vector<8x160xf32>
      %cst_71 = arith.constant 1.000000e-01 : f32
      %223 = vector.broadcast %cst_71 : f32 to vector<8x160xf32>
      %224 = arith.divf %222, %223 : vector<8x160xf32>
      %225 = math.exp %224 : vector<8x160xf32>
      %cst_72 = arith.constant 1.000000e+00 : f32
      %226 = vector.broadcast %cst_72 : f32 to vector<8x160xf32>
      %227 = arith.subf %225, %226 : vector<8x160xf32>
      %cst_73 = arith.constant 1.000000e-01 : f32
      %228 = vector.broadcast %cst_73 : f32 to vector<8x160xf32>
      %229 = arith.mulf %228, %227 : vector<8x160xf32>
      %230 = arith.addf %220, %229 : vector<8x160xf32>
      %231 = arith.truncf %230 : vector<8x160xf32> to vector<8x160xbf16>
      %c2_74 = arith.constant 2 : index
      %c0_75 = arith.constant 0 : index
      %c0_76 = arith.constant 0 : index
      %232 = vector.load %arg13[%c2_74, %c0_75, %c0_76] : memref<4x160x128xbf16, #tpu.memory_space<vmem>>, vector<1x160x128xbf16>
      %233 = vector.shape_cast %232 : vector<1x160x128xbf16> to vector<160x128xbf16>
      %cst_77 = arith.constant dense<0.000000e+00> : vector<8x128xf32>
      %234 = tpu.matmul %231, %233, %cst_77 {dimension_numbers = #tpu.dot_dimension_numbers<[1], [0], [0], [1], [0, 0, 1, 1], [], []>} : vector<8x160xbf16>, vector<160x128xbf16>, vector<8x128xf32> -> vector<8x128xf32>
      %c2_78 = arith.constant 2 : index
      %c0_79 = arith.constant 0 : index
      %235 = vector.load %arg14[%c2_78, %c0_79] : memref<4x128xf32, #tpu.memory_space<vmem>>, vector<1x128xf32>
      %236 = vector.broadcast %235 : vector<1x128xf32> to vector<8x128xf32>
      %237 = arith.addf %234, %236 : vector<8x128xf32>
      %cst_80 = arith.constant 0.000000e+00 : f32
      %238 = vector.broadcast %cst_80 : f32 to vector<8x128xf32>
      %239 = arith.maximumf %237, %238 : vector<8x128xf32>
      %cst_81 = arith.constant 0.000000e+00 : f32
      %240 = vector.broadcast %cst_81 : f32 to vector<8x128xf32>
      %241 = arith.minimumf %237, %240 : vector<8x128xf32>
      %cst_82 = arith.constant 1.000000e-01 : f32
      %242 = vector.broadcast %cst_82 : f32 to vector<8x128xf32>
      %243 = arith.divf %241, %242 : vector<8x128xf32>
      %244 = math.exp %243 : vector<8x128xf32>
      %cst_83 = arith.constant 1.000000e+00 : f32
      %245 = vector.broadcast %cst_83 : f32 to vector<8x128xf32>
      %246 = arith.subf %244, %245 : vector<8x128xf32>
      %cst_84 = arith.constant 1.000000e-01 : f32
      %247 = vector.broadcast %cst_84 : f32 to vector<8x128xf32>
      %248 = arith.mulf %247, %246 : vector<8x128xf32>
      %249 = arith.addf %239, %248 : vector<8x128xf32>
      %250 = arith.truncf %249 : vector<8x128xf32> to vector<8x128xbf16>
      %c2_85 = arith.constant 2 : index
      %c0_86 = arith.constant 0 : index
      %c0_87 = arith.constant 0 : index
      %251 = vector.load %arg15[%c2_85, %c0_86, %c0_87] : memref<4x128x96xbf16, #tpu.memory_space<vmem>>, vector<1x128x96xbf16>
      %252 = vector.shape_cast %251 : vector<1x128x96xbf16> to vector<128x96xbf16>
      %cst_88 = arith.constant dense<0.000000e+00> : vector<8x96xf32>
      %253 = tpu.matmul %250, %252, %cst_88 {dimension_numbers = #tpu.dot_dimension_numbers<[1], [0], [0], [1], [0, 0, 1, 1], [], []>} : vector<8x128xbf16>, vector<128x96xbf16>, vector<8x96xf32> -> vector<8x96xf32>
      %c2_89 = arith.constant 2 : index
      %c0_90 = arith.constant 0 : index
      %254 = vector.load %arg16[%c2_89, %c0_90] : memref<4x96xf32, #tpu.memory_space<vmem>>, vector<1x96xf32>
      %255 = vector.broadcast %254 : vector<1x96xf32> to vector<8x96xf32>
      %256 = arith.addf %253, %255 : vector<8x96xf32>
      %cst_91 = arith.constant 0.000000e+00 : f32
      %257 = vector.broadcast %cst_91 : f32 to vector<8x96xf32>
      %258 = arith.maximumf %256, %257 : vector<8x96xf32>
      %cst_92 = arith.constant 0.000000e+00 : f32
      %259 = vector.broadcast %cst_92 : f32 to vector<8x96xf32>
      %260 = arith.minimumf %256, %259 : vector<8x96xf32>
      %cst_93 = arith.constant 1.000000e-01 : f32
      %261 = vector.broadcast %cst_93 : f32 to vector<8x96xf32>
      %262 = arith.divf %260, %261 : vector<8x96xf32>
      %263 = math.exp %262 : vector<8x96xf32>
      %cst_94 = arith.constant 1.000000e+00 : f32
      %264 = vector.broadcast %cst_94 : f32 to vector<8x96xf32>
      %265 = arith.subf %263, %264 : vector<8x96xf32>
      %cst_95 = arith.constant 1.000000e-01 : f32
      %266 = vector.broadcast %cst_95 : f32 to vector<8x96xf32>
      %267 = arith.mulf %266, %265 : vector<8x96xf32>
      %268 = arith.addf %258, %267 : vector<8x96xf32>
      %269 = arith.truncf %268 : vector<8x96xf32> to vector<8x96xbf16>
      %c2_96 = arith.constant 2 : index
      %c0_97 = arith.constant 0 : index
      %c0_98 = arith.constant 0 : index
      %270 = vector.load %arg17[%c2_96, %c0_97, %c0_98] : memref<4x96x1xbf16, #tpu.memory_space<vmem>>, vector<1x96x1xbf16>
      %271 = vector.shape_cast %270 : vector<1x96x1xbf16> to vector<96x1xbf16>
      %cst_99 = arith.constant dense<0.000000e+00> : vector<8x1xf32>
      %272 = tpu.matmul %269, %271, %cst_99 {dimension_numbers = #tpu.dot_dimension_numbers<[1], [0], [0], [1], [0, 0, 1, 1], [], []>} : vector<8x96xbf16>, vector<96x1xbf16>, vector<8x1xf32> -> vector<8x1xf32>
      %c2_100 = arith.constant 2 : index
      %c0_101 = arith.constant 0 : index
      %273 = vector.load %arg18[%c2_100, %c0_101] : memref<4x1xf32, #tpu.memory_space<vmem>>, vector<1x1xf32>
      %274 = vector.broadcast %273 : vector<1x1xf32> to vector<8x1xf32>
      %275 = arith.addf %272, %274 : vector<8x1xf32>
      %c0_102 = arith.constant 0 : index
      %c0_103 = arith.constant 0 : index
      %276 = vector.load %arg20[%c0_102, %c0_103] : memref<8x1xf32, #tpu.memory_space<vmem>>, vector<8x1xf32>
      %277 = vector.extract_strided_slice %7 {offsets = [0, 2], sizes = [8, 1], strides = [1, 1]} : vector<8x4xf32> to vector<8x1xf32>
      %278 = arith.mulf %275, %277 : vector<8x1xf32>
      %279 = arith.addf %276, %278 : vector<8x1xf32>
      %c0_104 = arith.constant 0 : index
      %c0_105 = arith.constant 0 : index
      %280 = vector.load %arg20[%c0_104, %c0_105] : memref<8x1xf32, #tpu.memory_space<vmem>>, vector<8x1xf32>
      tpu.vector_store %arg20[%c0_104, %c0_105], %279 {strides = array<i32>} : memref<8x1xf32, #tpu.memory_space<vmem>>, vector<8x1xf32>,
    } else {
    }
    %204 = arith.index_cast %arg0 : i32 to index
    %c3 = arith.constant 3 : index
    %205 = memref.load %arg1[%204, %c3] : memref<2x4xi32, #tpu.memory_space<smem>>
    %c0_i32_56 = arith.constant 0 : i32
    %206 = arith.cmpi sgt, %205, %c0_i32_56 : i32
    %207 = arith.extui %206 : i1 to i32
    %c0_i32_57 = arith.constant 0 : i32
    %208 = arith.cmpi ne, %207, %c0_i32_57 : i32
    scf.if %208 {
      %c3_63 = arith.constant 3 : index
      %c0_64 = arith.constant 0 : index
      %c0_65 = arith.constant 0 : index
      %213 = vector.load %arg11[%c3_63, %c0_64, %c0_65] : memref<4x384x160xbf16, #tpu.memory_space<vmem>>, vector<1x384x160xbf16>
      %214 = vector.shape_cast %213 : vector<1x384x160xbf16> to vector<384x160xbf16>
      %cst_66 = arith.constant dense<0.000000e+00> : vector<8x160xf32>
      %215 = tpu.matmul %186, %214, %cst_66 {dimension_numbers = #tpu.dot_dimension_numbers<[1], [0], [0], [1], [0, 0, 1, 1], [], []>} : vector<8x384xbf16>, vector<384x160xbf16>, vector<8x160xf32> -> vector<8x160xf32>
      %c3_67 = arith.constant 3 : index
      %c0_68 = arith.constant 0 : index
      %216 = vector.load %arg12[%c3_67, %c0_68] : memref<4x160xf32, #tpu.memory_space<vmem>>, vector<1x160xf32>
      %217 = vector.broadcast %216 : vector<1x160xf32> to vector<8x160xf32>
      %218 = arith.addf %215, %217 : vector<8x160xf32>
      %cst_69 = arith.constant 0.000000e+00 : f32
      %219 = vector.broadcast %cst_69 : f32 to vector<8x160xf32>
      %220 = arith.maximumf %218, %219 : vector<8x160xf32>
      %cst_70 = arith.constant 0.000000e+00 : f32
      %221 = vector.broadcast %cst_70 : f32 to vector<8x160xf32>
      %222 = arith.minimumf %218, %221 : vector<8x160xf32>
      %cst_71 = arith.constant 1.000000e-01 : f32
      %223 = vector.broadcast %cst_71 : f32 to vector<8x160xf32>
      %224 = arith.divf %222, %223 : vector<8x160xf32>
      %225 = math.exp %224 : vector<8x160xf32>
      %cst_72 = arith.constant 1.000000e+00 : f32
      %226 = vector.broadcast %cst_72 : f32 to vector<8x160xf32>
      %227 = arith.subf %225, %226 : vector<8x160xf32>
      %cst_73 = arith.constant 1.000000e-01 : f32
      %228 = vector.broadcast %cst_73 : f32 to vector<8x160xf32>
      %229 = arith.mulf %228, %227 : vector<8x160xf32>
      %230 = arith.addf %220, %229 : vector<8x160xf32>
      %231 = arith.truncf %230 : vector<8x160xf32> to vector<8x160xbf16>
      %c3_74 = arith.constant 3 : index
      %c0_75 = arith.constant 0 : index
      %c0_76 = arith.constant 0 : index
      %232 = vector.load %arg13[%c3_74, %c0_75, %c0_76] : memref<4x160x128xbf16, #tpu.memory_space<vmem>>, vector<1x160x128xbf16>
      %233 = vector.shape_cast %232 : vector<1x160x128xbf16> to vector<160x128xbf16>
      %cst_77 = arith.constant dense<0.000000e+00> : vector<8x128xf32>
      %234 = tpu.matmul %231, %233, %cst_77 {dimension_numbers = #tpu.dot_dimension_numbers<[1], [0], [0], [1], [0, 0, 1, 1], [], []>} : vector<8x160xbf16>, vector<160x128xbf16>, vector<8x128xf32> -> vector<8x128xf32>
      %c3_78 = arith.constant 3 : index
      %c0_79 = arith.constant 0 : index
      %235 = vector.load %arg14[%c3_78, %c0_79] : memref<4x128xf32, #tpu.memory_space<vmem>>, vector<1x128xf32>
      %236 = vector.broadcast %235 : vector<1x128xf32> to vector<8x128xf32>
      %237 = arith.addf %234, %236 : vector<8x128xf32>
      %cst_80 = arith.constant 0.000000e+00 : f32
      %238 = vector.broadcast %cst_80 : f32 to vector<8x128xf32>
      %239 = arith.maximumf %237, %238 : vector<8x128xf32>
      %cst_81 = arith.constant 0.000000e+00 : f32
      %240 = vector.broadcast %cst_81 : f32 to vector<8x128xf32>
      %241 = arith.minimumf %237, %240 : vector<8x128xf32>
      %cst_82 = arith.constant 1.000000e-01 : f32
      %242 = vector.broadcast %cst_82 : f32 to vector<8x128xf32>
      %243 = arith.divf %241, %242 : vector<8x128xf32>
      %244 = math.exp %243 : vector<8x128xf32>
      %cst_83 = arith.constant 1.000000e+00 : f32
      %245 = vector.broadcast %cst_83 : f32 to vector<8x128xf32>
      %246 = arith.subf %244, %245 : vector<8x128xf32>
      %cst_84 = arith.constant 1.000000e-01 : f32
      %247 = vector.broadcast %cst_84 : f32 to vector<8x128xf32>
      %248 = arith.mulf %247, %246 : vector<8x128xf32>
      %249 = arith.addf %239, %248 : vector<8x128xf32>
      %250 = arith.truncf %249 : vector<8x128xf32> to vector<8x128xbf16>
      %c3_85 = arith.constant 3 : index
      %c0_86 = arith.constant 0 : index
      %c0_87 = arith.constant 0 : index
      %251 = vector.load %arg15[%c3_85, %c0_86, %c0_87] : memref<4x128x96xbf16, #tpu.memory_space<vmem>>, vector<1x128x96xbf16>
      %252 = vector.shape_cast %251 : vector<1x128x96xbf16> to vector<128x96xbf16>
      %cst_88 = arith.constant dense<0.000000e+00> : vector<8x96xf32>
      %253 = tpu.matmul %250, %252, %cst_88 {dimension_numbers = #tpu.dot_dimension_numbers<[1], [0], [0], [1], [0, 0, 1, 1], [], []>} : vector<8x128xbf16>, vector<128x96xbf16>, vector<8x96xf32> -> vector<8x96xf32>
      %c3_89 = arith.constant 3 : index
      %c0_90 = arith.constant 0 : index
      %254 = vector.load %arg16[%c3_89, %c0_90] : memref<4x96xf32, #tpu.memory_space<vmem>>, vector<1x96xf32>
      %255 = vector.broadcast %254 : vector<1x96xf32> to vector<8x96xf32>
      %256 = arith.addf %253, %255 : vector<8x96xf32>
      %cst_91 = arith.constant 0.000000e+00 : f32
      %257 = vector.broadcast %cst_91 : f32 to vector<8x96xf32>
      %258 = arith.maximumf %256, %257 : vector<8x96xf32>
      %cst_92 = arith.constant 0.000000e+00 : f32
      %259 = vector.broadcast %cst_92 : f32 to vector<8x96xf32>
      %260 = arith.minimumf %256, %259 : vector<8x96xf32>
      %cst_93 = arith.constant 1.000000e-01 : f32
      %261 = vector.broadcast %cst_93 : f32 to vector<8x96xf32>
      %262 = arith.divf %260, %261 : vector<8x96xf32>
      %263 = math.exp %262 : vector<8x96xf32>
      %cst_94 = arith.constant 1.000000e+00 : f32
      %264 = vector.broadcast %cst_94 : f32 to vector<8x96xf32>
      %265 = arith.subf %263, %264 : vector<8x96xf32>
      %cst_95 = arith.constant 1.000000e-01 : f32
      %266 = vector.broadcast %cst_95 : f32 to vector<8x96xf32>
      %267 = arith.mulf %266, %265 : vector<8x96xf32>
      %268 = arith.addf %258, %267 : vector<8x96xf32>
      %269 = arith.truncf %268 : vector<8x96xf32> to vector<8x96xbf16>
      %c3_96 = arith.constant 3 : index
      %c0_97 = arith.constant 0 : index
      %c0_98 = arith.constant 0 : index
      %270 = vector.load %arg17[%c3_96, %c0_97, %c0_98] : memref<4x96x1xbf16, #tpu.memory_space<vmem>>, vector<1x96x1xbf16>
      %271 = vector.shape_cast %270 : vector<1x96x1xbf16> to vector<96x1xbf16>
      %cst_99 = arith.constant dense<0.000000e+00> : vector<8x1xf32>
      %272 = tpu.matmul %269, %271, %cst_99 {dimension_numbers = #tpu.dot_dimension_numbers<[1], [0], [0], [1], [0, 0, 1, 1], [], []>} : vector<8x96xbf16>, vector<96x1xbf16>, vector<8x1xf32> -> vector<8x1xf32>
      %c3_100 = arith.constant 3 : index
      %c0_101 = arith.constant 0 : index
      %273 = vector.load %arg18[%c3_100, %c0_101] : memref<4x1xf32, #tpu.memory_space<vmem>>, vector<1x1xf32>
      %274 = vector.broadcast %273 : vector<1x1xf32> to vector<8x1xf32>
      %275 = arith.addf %272, %274 : vector<8x1xf32>
      %c0_102 = arith.constant 0 : index
      %c0_103 = arith.constant 0 : index
      %276 = vector.load %arg20[%c0_102, %c0_103] : memref<8x1xf32, #tpu.memory_space<vmem>>, vector<8x1xf32>
      %277 = vector.extract_strided_slice %7 {offsets = [0, 3], sizes = [8, 1], strides = [1, 1]} : vector<8x4xf32> to vector<8x1xf32>
      %278 = arith.mulf %275, %277 : vector<8x1xf32>
      %279 = arith.addf %276, %278 : vector<8x1xf32>
      %c0_104 = arith.constant 0 : index
      %c0_105 = arith.constant 0 : index
      %280 = vector.load %arg20[%c0_104, %c0_105] : memref<8x1xf32, #tpu.memory_space<vmem>>, vector<8x1xf32>
      tpu.vector_store %arg20[%c0_104, %c0_105], %279 {strides = array<i32>} : memref<8x1xf32, #tpu.memory_space<vmem>>, vector<8x1xf32>,
    } else {
    }
    %c0_58 = arith.constant 0 : index
    %c0_59 = arith.constant 0 : index
    %209 = vector.load %arg20[%c0_58, %c0_59] : memref<8x1xf32, #tpu.memory_space<vmem>>, vector<8x1xf32>
    %c0_60 = arith.constant 0 : index
    %c0_61 = arith.constant 0 : index
    %c0_62 = arith.constant 0 : index
    %210 = vector.load %arg19[%c0_60, %c0_61, %c0_62] : memref<1x8x1xf32, #tpu.memory_space<vmem>>, vector<1x8x1xf32>
    %211 = vector.shape_cast %210 : vector<1x8x1xf32> to vector<8x1xf32>
    %212 = vector.shape_cast %209 : vector<8x1xf32> to vector<1x8x1xf32>
    tpu.vector_store %arg19[%c0_60, %c0_61, %c0_62], %212 {strides = array<i32>} : memref<1x8x1xf32, #tpu.memory_space<vmem>>, vector<1x8x1xf32>,
    return
  }
  func.func @transform_0(%arg0: i32, %arg1: memref<2x4xi32, #tpu.memory_space<smem>>) -> (i32, i32, i32) {
    %c0_i32 = arith.constant 0 : i32
    %c0_i32_0 = arith.constant 0 : i32
    %c0_i32_1 = arith.constant 0 : i32
    return %arg0, %c0_i32, %c0_i32_0 : i32, i32, i32
  }
  func.func @transform_1(%arg0: i32, %arg1: memref<2x4xi32, #tpu.memory_space<smem>>) -> (i32, i32, i32) {
    %c0_i32 = arith.constant 0 : i32
    %c0_i32_0 = arith.constant 0 : i32
    %c0_i32_1 = arith.constant 0 : i32
    return %arg0, %c0_i32, %c0_i32_0 : i32, i32, i32
  }
  func.func @transform_2(%arg0: i32, %arg1: memref<2x4xi32, #tpu.memory_space<smem>>) -> (i32, i32, i32) {
    %c0_i32 = arith.constant 0 : i32
    %c0_i32_0 = arith.constant 0 : i32
    %c0_i32_1 = arith.constant 0 : i32
    return %arg0, %c0_i32, %c0_i32_0 : i32, i32, i32
  }
  func.func @transform_3(%arg0: i32, %arg1: memref<2x4xi32, #tpu.memory_space<smem>>) -> (i32, i32, i32) {
    %c0_i32 = arith.constant 0 : i32
    %c0_i32_0 = arith.constant 0 : i32
    %c0_i32_1 = arith.constant 0 : i32
    return %arg0, %c0_i32, %c0_i32_0 : i32, i32, i32
  }
  func.func @transform_4(%arg0: i32, %arg1: memref<2x4xi32, #tpu.memory_space<smem>>) -> (i32, i32, i32) {
    %c0_i32 = arith.constant 0 : i32
    %c0_i32_0 = arith.constant 0 : i32
    %c0_i32_1 = arith.constant 0 : i32
    return %arg0, %c0_i32, %c0_i32_0 : i32, i32, i32
  }
  func.func @transform_5(%arg0: i32, %arg1: memref<2x4xi32, #tpu.memory_space<smem>>) -> (i32, i32) {
    %c0_i32 = arith.constant 0 : i32
    %c0_i32_0 = arith.constant 0 : i32
    %c0_i32_1 = arith.constant 0 : i32
    return %c0_i32, %c0_i32_0 : i32, i32
  }
  func.func @transform_6(%arg0: i32, %arg1: memref<2x4xi32, #tpu.memory_space<smem>>) -> (i32, i32) {
    %c0_i32 = arith.constant 0 : i32
    %c0_i32_0 = arith.constant 0 : i32
    %c0_i32_1 = arith.constant 0 : i32
    return %c0_i32, %c0_i32_0 : i32, i32
  }
  func.func @transform_7(%arg0: i32, %arg1: memref<2x4xi32, #tpu.memory_space<smem>>) -> (i32, i32) {
    %c0_i32 = arith.constant 0 : i32
    %c0_i32_0 = arith.constant 0 : i32
    %c0_i32_1 = arith.constant 0 : i32
    return %c0_i32, %c0_i32_0 : i32, i32
  }
  func.func @transform_8(%arg0: i32, %arg1: memref<2x4xi32, #tpu.memory_space<smem>>) -> (i32, i32) {
    %c0_i32 = arith.constant 0 : i32
    %c0_i32_0 = arith.constant 0 : i32
    %c0_i32_1 = arith.constant 0 : i32
    return %c0_i32, %c0_i32_0 : i32, i32
  }
  func.func @transform_9(%arg0: i32, %arg1: memref<2x4xi32, #tpu.memory_space<smem>>) -> (i32, i32, i32) {
    %c0_i32 = arith.constant 0 : i32
    %c0_i32_0 = arith.constant 0 : i32
    %c0_i32_1 = arith.constant 0 : i32
    %c0_i32_2 = arith.constant 0 : i32
    return %c0_i32, %c0_i32_0, %c0_i32_1 : i32, i32, i32
  }
  func.func @transform_10(%arg0: i32, %arg1: memref<2x4xi32, #tpu.memory_space<smem>>) -> (i32, i32) {
    %c0_i32 = arith.constant 0 : i32
    %c0_i32_0 = arith.constant 0 : i32
    %c0_i32_1 = arith.constant 0 : i32
    return %c0_i32, %c0_i32_0 : i32, i32
  }
  func.func @transform_11(%arg0: i32, %arg1: memref<2x4xi32, #tpu.memory_space<smem>>) -> (i32, i32, i32) {
    %c0_i32 = arith.constant 0 : i32
    %c0_i32_0 = arith.constant 0 : i32
    %c0_i32_1 = arith.constant 0 : i32
    %c0_i32_2 = arith.constant 0 : i32
    return %c0_i32, %c0_i32_0, %c0_i32_1 : i32, i32, i32
  }
  func.func @transform_12(%arg0: i32, %arg1: memref<2x4xi32, #tpu.memory_space<smem>>) -> (i32, i32) {
    %c0_i32 = arith.constant 0 : i32
    %c0_i32_0 = arith.constant 0 : i32
    %c0_i32_1 = arith.constant 0 : i32
    return %c0_i32, %c0_i32_0 : i32, i32
  }
  func.func @transform_13(%arg0: i32, %arg1: memref<2x4xi32, #tpu.memory_space<smem>>) -> (i32, i32, i32) {
    %c0_i32 = arith.constant 0 : i32
    %c0_i32_0 = arith.constant 0 : i32
    %c0_i32_1 = arith.constant 0 : i32
    %c0_i32_2 = arith.constant 0 : i32
    return %c0_i32, %c0_i32_0, %c0_i32_1 : i32, i32, i32
  }
  func.func @transform_14(%arg0: i32, %arg1: memref<2x4xi32, #tpu.memory_space<smem>>) -> (i32, i32) {
    %c0_i32 = arith.constant 0 : i32
    %c0_i32_0 = arith.constant 0 : i32
    %c0_i32_1 = arith.constant 0 : i32
    return %c0_i32, %c0_i32_0 : i32, i32
  }
  func.func @transform_15(%arg0: i32, %arg1: memref<2x4xi32, #tpu.memory_space<smem>>) -> (i32, i32, i32) {
    %c0_i32 = arith.constant 0 : i32
    %c0_i32_0 = arith.constant 0 : i32
    %c0_i32_1 = arith.constant 0 : i32
    %c0_i32_2 = arith.constant 0 : i32
    return %c0_i32, %c0_i32_0, %c0_i32_1 : i32, i32, i32
  }
  func.func @transform_16(%arg0: i32, %arg1: memref<2x4xi32, #tpu.memory_space<smem>>) -> (i32, i32) {
    %c0_i32 = arith.constant 0 : i32
    %c0_i32_0 = arith.constant 0 : i32
    %c0_i32_1 = arith.constant 0 : i32
    return %c0_i32, %c0_i32_0 : i32, i32
  }
  func.func @transform_17(%arg0: i32, %arg1: memref<2x4xi32, #tpu.memory_space<smem>>) -> (i32, i32, i32) {
    %c0_i32 = arith.constant 0 : i32
    %c0_i32_0 = arith.constant 0 : i32
    %c0_i32_1 = arith.constant 0 : i32
    return %arg0, %c0_i32, %c0_i32_0 : i32, i32, i32
  }
}

</mosaic_0001>

<llo_original>
// kernel: mod_optimized_torchani_forward.1
$region0: #{mod_optimized_torchani_forward.1}
  #allocation0 [shape = 'u32[]', space=smem, size = 0x4, offset = 0x4, fixed_abs, tag = 'smem constant byte address 0x4 - core index']
  #allocation1 [shape = 'u32[144,128]{1,0:T(1,128)}', space=vmem, size = 0x12000, scoped, tag = 'internal scratch']
  #allocation2 [shape = 'f32[8,1]{1,0:T(8,128)}', space=vmem, size = 0x1000, scoped, tag = 'scratch operand']
  #allocation3 [shape = 's32[1]{0}', space=sflag, size = 0x4, scoped, tag = 'scoped memory for mod_optimized_torchani_forward.1']
  #allocation4 [shape = 'u8[1024]{0}', space=smem, size = 0x400, scoped, tag = 'prefetched SMEM operand 0']
  %s0 = inlined_call_operand.vmem [shape: s32[2,4], index: 0, kind: input, shape index: {}]
  %s1 = inlined_call_operand.vmem [shape: f32[2,3,8], index: 1, kind: input, shape index: {}]
  %s2 = inlined_call_operand.vmem [shape: f32[2,8,3], index: 2, kind: input, shape index: {}]
  %s3 = inlined_call_operand.vmem [shape: f32[2,4,8], index: 3, kind: input, shape index: {}]
  %s4 = inlined_call_operand.vmem [shape: f32[2,8,4], index: 4, kind: input, shape index: {}]
  %s5 = inlined_call_operand.vmem [shape: f32[2,10,64], index: 5, kind: input, shape index: {}]
  %s6 = inlined_call_operand.vmem [shape: f32[16,1], index: 6, kind: input, shape index: {}]
  %s7 = inlined_call_operand.vmem [shape: f32[8,1], index: 7, kind: input, shape index: {}]
  %s8 = inlined_call_operand.vmem [shape: f32[8,1], index: 8, kind: input, shape index: {}]
  %s9 = inlined_call_operand.vmem [shape: f32[4,1], index: 9, kind: input, shape index: {}]
  %s10 = inlined_call_operand.hbm [shape: bf16[4,384,160], index: 10, kind: input, shape index: {}]
  %s11 = inlined_call_operand.vmem [shape: f32[4,160], index: 11, kind: input, shape index: {}]
  %s12 = inlined_call_operand.vmem [shape: bf16[4,160,128], index: 12, kind: input, shape index: {}]
  %s13 = inlined_call_operand.vmem [shape: f32[4,128], index: 13, kind: input, shape index: {}]
  %s14 = inlined_call_operand.vmem [shape: bf16[4,128,96], index: 14, kind: input, shape index: {}]
  %s15 = inlined_call_operand.hbm [shape: f32[4,96], index: 15, kind: input, shape index: {}]
  %s16 = inlined_call_operand.hbm [shape: bf16[4,96,1], index: 16, kind: input, shape index: {}]
  %s17 = inlined_call_operand.hbm [shape: f32[4,1], index: 17, kind: input, shape index: {}]
  %s18 = inlined_call_operand.vmem [shape: f32[2,8,1], index: 18, kind: output, shape index: {}]
  %s19 = sld [smem:[#allocation0]]
  $region133: #{mod_optimized_torchani_forward.1} parent=0
    _
  %s21 = ssub.s32 1, %s19
  %s22 = scalar_select 0, %s21, %s19
  %s23 = sshll.u32 %s0, 4
  %s24 = int_to_ptr.vmem [resolvable:$true] %s23
  %26 = dma.vmem_to_smem %s24, 32, [#allocation4], [#allocation3]
  %27 = dma.done [#allocation3], 32
  %28 = sfence
  $region1: #{mod_optimized_torchani_forward.1} parent=0
    #allocation5 [shape = 'u8[786432]{0}', space=vmem, size = 0xc0000, scoped, tag = 'input window, operand 10, single buffered']
    #allocation6 [shape = 's32[2]{0}', space=sflag, size = 0x8, scoped, tag = 'scoped memory for mod_optimized_torchani_forward.1']
    #allocation7 [shape = 'u8[2048]{0}', space=vmem, size = 0x800, scoped, tag = 'input window, operand 15, single buffered']
    #allocation8 [shape = 's32[1]{0}', space=sflag, size = 0x4, scoped, tag = 'scoped memory for mod_optimized_torchani_forward.1']
    #allocation9 [shape = 'u8[98304]{0}', space=vmem, size = 0x18000, scoped, tag = 'input window, operand 16, single buffered']
    #allocation10 [shape = 'u8[2048]{0}', space=vmem, size = 0x800, scoped, tag = 'input window, operand 17, single buffered']
    #allocation11 [shape = 's32[1]{0}', space=sflag, size = 0x4, scoped, tag = 'scoped memory for mod_optimized_torchani_forward.1']
    %29 = vsyncpa [#allocation6], 0
    %30 = vsyncpa [#allocation8], 0
    %31 = vsyncpa [#allocation11], 0
    loop: start=0, step=1, limit=4
    $region2: #{mod_optimized_torchani_forward.1} parent=1 // loop_pre_header
      _
    $region3: #{mod_optimized_torchani_forward.1} parent=1 // loop_header
      %s33 = sphi 0, %s37
      %p34 = scmp.ge.s32.totalorder %s33, 4
      %s43 = sphi 0, %s45
      %s46 = sphi 0, %s43
      %s47 = sphi 0, %s46
      %s63 = sphi 0, %s47
      %s69 = sphi 0, %s71
      %s72 = sphi 0, %s69
      %s73 = sphi 0, %s72
      %s89 = sphi 0, %s73
      %s95 = sphi 0, %s97
      %s98 = sphi 0, %s95
      %s99 = sphi 0, %s98
      %s115 = sphi 0, %s99
      %s121 = sphi 0, %s123
      %s124 = sphi 0, %s121
      %s125 = sphi 0, %s124
      %s141 = sphi 0, %s125
      %s147 = sphi 0, %s149
      %s150 = sphi 0, %s147
      %s151 = sphi 0, %s150
      %s167 = sphi 0, %s151
      %s171 = sphi 0, %s171
      %s173 = sphi 0, %s171
      %s174 = sphi 0, %s173
      %s188 = sphi 0, %s174
      %s192 = sphi 0, %s192
      %s194 = sphi 0, %s192
      %s195 = sphi 0, %s194
      %s209 = sphi 0, %s195
      %s213 = sphi 0, %s213
      %s215 = sphi 0, %s213
      %s216 = sphi 0, %s215
      %s230 = sphi 0, %s216
      %s234 = sphi 0, %s234
      %s236 = sphi 0, %s234
      %s237 = sphi 0, %s236
      %s251 = sphi 0, %s237
      %s255 = sphi 0, %s255
      %s257 = sphi 0, %s255
      %s258 = sphi 0, %s257
      %s272 = sphi 0, %s258
      %s276 = sphi 0, %s276
      %s278 = sphi 0, %s276
      %s279 = sphi 0, %s278
      %s293 = sphi 0, %s279
      %s297 = sphi 0, %s297
      %s299 = sphi 0, %s297
      %s300 = sphi 0, %s299
      %s314 = sphi 0, %s300
      %s318 = sphi 0, %s318
      %s320 = sphi 0, %s318
      %s321 = sphi 0, %s320
      %s335 = sphi 0, %s321
      %s339 = sphi 0, %s339
      %s341 = sphi 0, %s339
      %s342 = sphi 0, %s341
      %s356 = sphi 0, %s342
      %s360 = sphi 0, %s360
      %s362 = sphi 0, %s360
      %s363 = sphi 0, %s362
      %s377 = sphi 0, %s363
      %s381 = sphi 0, %s381
      %s383 = sphi 0, %s381
      %s384 = sphi 0, %s383
      %s398 = sphi 0, %s384
      %s402 = sphi 0, %s402
      %s404 = sphi 0, %s402
      %s405 = sphi 0, %s404
      %s419 = sphi 0, %s405
      %s425 = sphi 0, %s427
      %s428 = sphi 0, %s425
      %s429 = sphi 0, %s428
      %s445 = sphi 0, %s429
    $region4: #{mod_optimized_torchani_forward.1} parent=1 // loop_header_branch
      %36 = sbr.rel (%p34) target = $region8
    $region5: #{mod_optimized_torchani_forward.1} parent=1 // loop_body
      %s38 = ssub.s32 %s33, 1
      %s39 = ssub.s32 %s33, 2
      %s40 = sadd.s32 %s33, 1
      %s41 = ssub.s32 %s33, %s40
      %p42 = scmp.eq.s32.totalorder %s41, 0
      %s44 = sadd.s32 %s43, 1
      %s45 = scalar_select %p42, %s43, %s44
      %p48 = pneg %p42
      %p49 = scmp.eq.s32.totalorder %s33, 1
      %p50 = por %p48, %p49
      %p51 = scmp.ne.s32.totalorder %s43, %s46
      %p52 = scmp.eq.s32.totalorder %s33, 0
      %p53 = por %p51, %p52
      %p54 = scmp.ne.s32.totalorder %s43, %s46
      %p55 = scmp.eq.s32.totalorder %s38, 1
      %p56 = por %p54, %p55
      %p57 = scmp.ne.s32.totalorder %s46, %s47
      %p58 = scmp.eq.s32.totalorder %s38, 0
      %p59 = por %p57, %p58
      %p60 = scmp.ne.s32.totalorder %s46, %s47
      %p61 = scmp.eq.s32.totalorder %s39, 1
      %p62 = por %p60, %p61
      %p64 = scmp.ne.s32.totalorder %s47, %s63
      %p65 = scmp.eq.s32.totalorder %s39, 0
      %p66 = por %p64, %p65
      %s67 = ssub.s32 %s33, %s40
      %p68 = scmp.eq.s32.totalorder %s67, 0
      %s70 = sadd.s32 %s69, 1
      %s71 = scalar_select %p68, %s69, %s70
      %p74 = pneg %p68
      %p75 = scmp.eq.s32.totalorder %s33, 1
      %p76 = por %p74, %p75
      %p77 = scmp.ne.s32.totalorder %s69, %s72
      %p78 = scmp.eq.s32.totalorder %s33, 0
      %p79 = por %p77, %p78
      %p80 = scmp.ne.s32.totalorder %s69, %s72
      %p81 = scmp.eq.s32.totalorder %s38, 1
      %p82 = por %p80, %p81
      %p83 = scmp.ne.s32.totalorder %s72, %s73
      %p84 = scmp.eq.s32.totalorder %s38, 0
      %p85 = por %p83, %p84
      %p86 = scmp.ne.s32.totalorder %s72, %s73
      %p87 = scmp.eq.s32.totalorder %s39, 1
      %p88 = por %p86, %p87
      %p90 = scmp.ne.s32.totalorder %s73, %s89
      %p91 = scmp.eq.s32.totalorder %s39, 0
      %p92 = por %p90, %p91
      %s93 = ssub.s32 %s33, %s40
      %p94 = scmp.eq.s32.totalorder %s93, 0
      %s96 = sadd.s32 %s95, 1
      %s97 = scalar_select %p94, %s95, %s96
      %p100 = pneg %p94
      %p101 = scmp.eq.s32.totalorder %s33, 1
      %p102 = por %p100, %p101
      %p103 = scmp.ne.s32.totalorder %s95, %s98
      %p104 = scmp.eq.s32.totalorder %s33, 0
      %p105 = por %p103, %p104
      %p106 = scmp.ne.s32.totalorder %s95, %s98
      %p107 = scmp.eq.s32.totalorder %s38, 1
      %p108 = por %p106, %p107
      %p109 = scmp.ne.s32.totalorder %s98, %s99
      %p110 = scmp.eq.s32.totalorder %s38, 0
      %p111 = por %p109, %p110
      %p112 = scmp.ne.s32.totalorder %s98, %s99
      %p113 = scmp.eq.s32.totalorder %s39, 1
      %p114 = por %p112, %p113
      %p116 = scmp.ne.s32.totalorder %s99, %s115
      %p117 = scmp.eq.s32.totalorder %s39, 0
      %p118 = por %p116, %p117
      %s119 = ssub.s32 %s33, %s40
      %p120 = scmp.eq.s32.totalorder %s119, 0
      %s122 = sadd.s32 %s121, 1
      %s123 = scalar_select %p120, %s121, %s122
      %p126 = pneg %p120
      %p127 = scmp.eq.s32.totalorder %s33, 1
      %p128 = por %p126, %p127
      %p129 = scmp.ne.s32.totalorder %s121, %s124
      %p130 = scmp.eq.s32.totalorder %s33, 0
      %p131 = por %p129, %p130
      %p132 = scmp.ne.s32.totalorder %s121, %s124
      %p133 = scmp.eq.s32.totalorder %s38, 1
      %p134 = por %p132, %p133
      %p135 = scmp.ne.s32.totalorder %s124, %s125
      %p136 = scmp.eq.s32.totalorder %s38, 0
      %p137 = por %p135, %p136
      %p138 = scmp.ne.s32.totalorder %s124, %s125
      %p139 = scmp.eq.s32.totalorder %s39, 1
      %p140 = por %p138, %p139
      %p142 = scmp.ne.s32.totalorder %s125, %s141
      %p143 = scmp.eq.s32.totalorder %s39, 0
      %p144 = por %p142, %p143
      %s145 = ssub.s32 %s33, %s40
      %p146 = scmp.eq.s32.totalorder %s145, 0
      %s148 = sadd.s32 %s147, 1
      %s149 = scalar_select %p146, %s147, %s148
      %p152 = pneg %p146
      %p153 = scmp.eq.s32.totalorder %s33, 1
      %p154 = por %p152, %p153
      %p155 = scmp.ne.s32.totalorder %s147, %s150
      %p156 = scmp.eq.s32.totalorder %s33, 0
      %p157 = por %p155, %p156
      %p158 = scmp.ne.s32.totalorder %s147, %s150
      %p159 = scmp.eq.s32.totalorder %s38, 1
      %p160 = por %p158, %p159
      %p161 = scmp.ne.s32.totalorder %s150, %s151
      %p162 = scmp.eq.s32.totalorder %s38, 0
      %p163 = por %p161, %p162
      %p164 = scmp.ne.s32.totalorder %s150, %s151
      %p165 = scmp.eq.s32.totalorder %s39, 1
      %p166 = por %p164, %p165
      %p168 = scmp.ne.s32.totalorder %s151, %s167
      %p169 = scmp.eq.s32.totalorder %s39, 0
      %p170 = por %p168, %p169
      %s172 = sadd.s32 %s171, 1
      %p175 = scmp.eq.s32.totalorder %s33, 1
      %p176 = scmp.ne.s32.totalorder %s171, %s173
      %p177 = scmp.eq.s32.totalorder %s33, 0
      %p178 = por %p176, %p177
      %p179 = scmp.ne.s32.totalorder %s171, %s173
      %p180 = scmp.eq.s32.totalorder %s38, 1
      %p181 = por %p179, %p180
      %p182 = scmp.ne.s32.totalorder %s173, %s174
      %p183 = scmp.eq.s32.totalorder %s38, 0
      %p184 = por %p182, %p183
      %p185 = scmp.ne.s32.totalorder %s173, %s174
      %p186 = scmp.eq.s32.totalorder %s39, 1
      %p187 = por %p185, %p186
      %p189 = scmp.ne.s32.totalorder %s174, %s188
      %p190 = scmp.eq.s32.totalorder %s39, 0
      %p191 = por %p189, %p190
      %s193 = sadd.s32 %s192, 1
      %p196 = scmp.eq.s32.totalorder %s33, 1
      %p197 = scmp.ne.s32.totalorder %s192, %s194
      %p198 = scmp.eq.s32.totalorder %s33, 0
      %p199 = por %p197, %p198
      %p200 = scmp.ne.s32.totalorder %s192, %s194
      %p201 = scmp.eq.s32.totalorder %s38, 1
      %p202 = por %p200, %p201
      %p203 = scmp.ne.s32.totalorder %s194, %s195
      %p204 = scmp.eq.s32.totalorder %s38, 0
      %p205 = por %p203, %p204
      %p206 = scmp.ne.s32.totalorder %s194, %s195
      %p207 = scmp.eq.s32.totalorder %s39, 1
      %p208 = por %p206, %p207
      %p210 = scmp.ne.s32.totalorder %s195, %s209
      %p211 = scmp.eq.s32.totalorder %s39, 0
      %p212 = por %p210, %p211
      %s214 = sadd.s32 %s213, 1
      %p217 = scmp.eq.s32.totalorder %s33, 1
      %p218 = scmp.ne.s32.totalorder %s213, %s215
      %p219 = scmp.eq.s32.totalorder %s33, 0
      %p220 = por %p218, %p219
      %p221 = scmp.ne.s32.totalorder %s213, %s215
      %p222 = scmp.eq.s32.totalorder %s38, 1
      %p223 = por %p221, %p222
      %p224 = scmp.ne.s32.totalorder %s215, %s216
      %p225 = scmp.eq.s32.totalorder %s38, 0
      %p226 = por %p224, %p225
      %p227 = scmp.ne.s32.totalorder %s215, %s216
      %p228 = scmp.eq.s32.totalorder %s39, 1
      %p229 = por %p227, %p228
      %p231 = scmp.ne.s32.totalorder %s216, %s230
      %p232 = scmp.eq.s32.totalorder %s39, 0
      %p233 = por %p231, %p232
      %s235 = sadd.s32 %s234, 1
      %p238 = scmp.eq.s32.totalorder %s33, 1
      %p239 = scmp.ne.s32.totalorder %s234, %s236
      %p240 = scmp.eq.s32.totalorder %s33, 0
      %p241 = por %p239, %p240
      %p242 = scmp.ne.s32.totalorder %s234, %s236
      %p243 = scmp.eq.s32.totalorder %s38, 1
      %p244 = por %p242, %p243
      %p245 = scmp.ne.s32.totalorder %s236, %s237
      %p246 = scmp.eq.s32.totalorder %s38, 0
      %p247 = por %p245, %p246
      %p248 = scmp.ne.s32.totalorder %s236, %s237
      %p249 = scmp.eq.s32.totalorder %s39, 1
      %p250 = por %p248, %p249
      %p252 = scmp.ne.s32.totalorder %s237, %s251
      %p253 = scmp.eq.s32.totalorder %s39, 0
      %p254 = por %p252, %p253
      %s256 = sadd.s32 %s255, 1
      %p259 = scmp.eq.s32.totalorder %s33, 1
      %p260 = scmp.ne.s32.totalorder %s255, %s257
      %p261 = scmp.eq.s32.totalorder %s33, 0
      %p262 = por %p260, %p261
      %p263 = scmp.ne.s32.totalorder %s255, %s257
      %p264 = scmp.eq.s32.totalorder %s38, 1
      %p265 = por %p263, %p264
      %p266 = scmp.ne.s32.totalorder %s257, %s258
      %p267 = scmp.eq.s32.totalorder %s38, 0
      %p268 = por %p266, %p267
      %p269 = scmp.ne.s32.totalorder %s257, %s258
      %p270 = scmp.eq.s32.totalorder %s39, 1
      %p271 = por %p269, %p270
      %p273 = scmp.ne.s32.totalorder %s258, %s272
      %p274 = scmp.eq.s32.totalorder %s39, 0
      %p275 = por %p273, %p274
      %s277 = sadd.s32 %s276, 1
      %p280 = scmp.eq.s32.totalorder %s33, 1
      %p281 = scmp.ne.s32.totalorder %s276, %s278
      %p282 = scmp.eq.s32.totalorder %s33, 0
      %p283 = por %p281, %p282
      %p284 = scmp.ne.s32.totalorder %s276, %s278
      %p285 = scmp.eq.s32.totalorder %s38, 1
      %p286 = por %p284, %p285
      %p287 = scmp.ne.s32.totalorder %s278, %s279
      %p288 = scmp.eq.s32.totalorder %s38, 0
      %p289 = por %p287, %p288
      %p290 = scmp.ne.s32.totalorder %s278, %s279
      %p291 = scmp.eq.s32.totalorder %s39, 1
      %p292 = por %p290, %p291
      %p294 = scmp.ne.s32.totalorder %s279, %s293
      %p295 = scmp.eq.s32.totalorder %s39, 0
      %p296 = por %p294, %p295
      %s298 = sadd.s32 %s297, 1
      %p301 = scmp.eq.s32.totalorder %s33, 1
      %p302 = scmp.ne.s32.totalorder %s297, %s299
      %p303 = scmp.eq.s32.totalorder %s33, 0
      %p304 = por %p302, %p303
      %p305 = scmp.ne.s32.totalorder %s297, %s299
      %p306 = scmp.eq.s32.totalorder %s38, 1
      %p307 = por %p305, %p306
      %p308 = scmp.ne.s32.totalorder %s299, %s300
      %p309 = scmp.eq.s32.totalorder %s38, 0
      %p310 = por %p308, %p309
      %p311 = scmp.ne.s32.totalorder %s299, %s300
      %p312 = scmp.eq.s32.totalorder %s39, 1
      %p313 = por %p311, %p312
      %p315 = scmp.ne.s32.totalorder %s300, %s314
      %p316 = scmp.eq.s32.totalorder %s39, 0
      %p317 = por %p315, %p316
      %s319 = sadd.s32 %s318, 1
      %p322 = scmp.eq.s32.totalorder %s33, 1
      %p323 = scmp.ne.s32.totalorder %s318, %s320
      %p324 = scmp.eq.s32.totalorder %s33, 0
      %p325 = por %p323, %p324
      %p326 = scmp.ne.s32.totalorder %s318, %s320
      %p327 = scmp.eq.s32.totalorder %s38, 1
      %p328 = por %p326, %p327
      %p329 = scmp.ne.s32.totalorder %s320, %s321
      %p330 = scmp.eq.s32.totalorder %s38, 0
      %p331 = por %p329, %p330
      %p332 = scmp.ne.s32.totalorder %s320, %s321
      %p333 = scmp.eq.s32.totalorder %s39, 1
      %p334 = por %p332, %p333
      %p336 = scmp.ne.s32.totalorder %s321, %s335
      %p337 = scmp.eq.s32.totalorder %s39, 0
      %p338 = por %p336, %p337
      %s340 = sadd.s32 %s339, 1
      %p343 = scmp.eq.s32.totalorder %s33, 1
      %p344 = scmp.ne.s32.totalorder %s339, %s341
      %p345 = scmp.eq.s32.totalorder %s33, 0
      %p346 = por %p344, %p345
      %p347 = scmp.ne.s32.totalorder %s339, %s341
      %p348 = scmp.eq.s32.totalorder %s38, 1
      %p349 = por %p347, %p348
      %p350 = scmp.ne.s32.totalorder %s341, %s342
      %p351 = scmp.eq.s32.totalorder %s38, 0
      %p352 = por %p350, %p351
      %p353 = scmp.ne.s32.totalorder %s341, %s342
      %p354 = scmp.eq.s32.totalorder %s39, 1
      %p355 = por %p353, %p354
      %p357 = scmp.ne.s32.totalorder %s342, %s356
      %p358 = scmp.eq.s32.totalorder %s39, 0
      %p359 = por %p357, %p358
      %s361 = sadd.s32 %s360, 1
      %p364 = scmp.eq.s32.totalorder %s33, 1
      %p365 = scmp.ne.s32.totalorder %s360, %s362
      %p366 = scmp.eq.s32.totalorder %s33, 0
      %p367 = por %p365, %p366
      %p368 = scmp.ne.s32.totalorder %s360, %s362
      %p369 = scmp.eq.s32.totalorder %s38, 1
      %p370 = por %p368, %p369
      %p371 = scmp.ne.s32.totalorder %s362, %s363
      %p372 = scmp.eq.s32.totalorder %s38, 0
      %p373 = por %p371, %p372
      %p374 = scmp.ne.s32.totalorder %s362, %s363
      %p375 = scmp.eq.s32.totalorder %s39, 1
      %p376 = por %p374, %p375
      %p378 = scmp.ne.s32.totalorder %s363, %s377
      %p379 = scmp.eq.s32.totalorder %s39, 0
      %p380 = por %p378, %p379
      %s382 = sadd.s32 %s381, 1
      %p385 = scmp.eq.s32.totalorder %s33, 1
      %p386 = scmp.ne.s32.totalorder %s381, %s383
      %p387 = scmp.eq.s32.totalorder %s33, 0
      %p388 = por %p386, %p387
      %p389 = scmp.ne.s32.totalorder %s381, %s383
      %p390 = scmp.eq.s32.totalorder %s38, 1
      %p391 = por %p389, %p390
      %p392 = scmp.ne.s32.totalorder %s383, %s384
      %p393 = scmp.eq.s32.totalorder %s38, 0
      %p394 = por %p392, %p393
      %p395 = scmp.ne.s32.totalorder %s383, %s384
      %p396 = scmp.eq.s32.totalorder %s39, 1
      %p397 = por %p395, %p396
      %p399 = scmp.ne.s32.totalorder %s384, %s398
      %p400 = scmp.eq.s32.totalorder %s39, 0
      %p401 = por %p399, %p400
      %s403 = sadd.s32 %s402, 1
      %p406 = scmp.eq.s32.totalorder %s33, 1
      %p407 = scmp.ne.s32.totalorder %s402, %s404
      %p408 = scmp.eq.s32.totalorder %s33, 0
      %p409 = por %p407, %p408
      %p410 = scmp.ne.s32.totalorder %s402, %s404
      %p411 = scmp.eq.s32.totalorder %s38, 1
      %p412 = por %p410, %p411
      %p413 = scmp.ne.s32.totalorder %s404, %s405
      %p414 = scmp.eq.s32.totalorder %s38, 0
      %p415 = por %p413, %p414
      %p416 = scmp.ne.s32.totalorder %s404, %s405
      %p417 = scmp.eq.s32.totalorder %s39, 1
      %p418 = por %p416, %p417
      %p420 = scmp.ne.s32.totalorder %s405, %s419
      %p421 = scmp.eq.s32.totalorder %s39, 0
      %p422 = por %p420, %p421
      %s423 = ssub.s32 %s33, %s40
      %p424 = scmp.eq.s32.totalorder %s423, 0
      %s426 = sadd.s32 %s425, 1
      %s427 = scalar_select %p424, %s425, %s426
      %p430 = pneg %p424
      %p431 = scmp.eq.s32.totalorder %s33, 1
      %p432 = por %p430, %p431
      %p433 = scmp.ne.s32.totalorder %s425, %s428
      %p434 = scmp.eq.s32.totalorder %s33, 0
      %p435 = por %p433, %p434
      %p436 = scmp.ne.s32.totalorder %s425, %s428
      %p437 = scmp.eq.s32.totalorder %s38, 1
      %p438 = por %p436, %p437
      %p439 = scmp.ne.s32.totalorder %s428, %s429
      %p440 = scmp.eq.s32.totalorder %s38, 0
      %p441 = por %p439, %p440
      %p442 = scmp.ne.s32.totalorder %s428, %s429
      %p443 = scmp.eq.s32.totalorder %s39, 1
      %p444 = por %p442, %p443
      %p446 = scmp.ne.s32.totalorder %s429, %s445
      %p447 = scmp.eq.s32.totalorder %s39, 0
      %p448 = por %p446, %p447
      %p449 = scmp.le.s32.totalorder 1, %s33
      %p450 = scmp.lt.s32.totalorder %s33, 3
      %p451 = pnand %p449, %p450
      %p452 = pneg %p451
      // Predicated region
      $region9: #{mod_optimized_torchani_forward.1} parent=5 // pred_check
        _
      $region10: #{mod_optimized_torchani_forward.1} parent=5 // pred_check_branch
        %454 = sbr.rel (%p451) target = $region12
      $region11: #{mod_optimized_torchani_forward.1} parent=5 // pred_region
        %s455 = ssub.s32 %s33, 1
        // Predicated region
        $region13: #{mod_optimized_torchani_forward.1} parent=11 // pred_check
          %p456 = pneg %p184
        $region14: #{mod_optimized_torchani_forward.1} parent=11 // pred_check_branch
          %458 = sbr.rel (%p456) target = $region16
        $region15: #{mod_optimized_torchani_forward.1} parent=11 // pred_region
          _
        $region16: #{mod_optimized_torchani_forward.1} parent=11 // pred_fallthru
          _
        // Predicated region
        $region17: #{mod_optimized_torchani_forward.1} parent=11 // pred_check
          %p459 = pneg %p205
        $region18: #{mod_optimized_torchani_forward.1} parent=11 // pred_check_branch
          %461 = sbr.rel (%p459) target = $region20
        $region19: #{mod_optimized_torchani_forward.1} parent=11 // pred_region
          _
        $region20: #{mod_optimized_torchani_forward.1} parent=11 // pred_fallthru
          _
        // Predicated region
        $region21: #{mod_optimized_torchani_forward.1} parent=11 // pred_check
          %p462 = pneg %p226
        $region22: #{mod_optimized_torchani_forward.1} parent=11 // pred_check_branch
          %464 = sbr.rel (%p462) target = $region24
        $region23: #{mod_optimized_torchani_forward.1} parent=11 // pred_region
          _
        $region24: #{mod_optimized_torchani_forward.1} parent=11 // pred_fallthru
          _
        // Predicated region
        $region25: #{mod_optimized_torchani_forward.1} parent=11 // pred_check
          %p465 = pneg %p247
        $region26: #{mod_optimized_torchani_forward.1} parent=11 // pred_check_branch
          %467 = sbr.rel (%p465) target = $region28
        $region27: #{mod_optimized_torchani_forward.1} parent=11 // pred_region
          _
        $region28: #{mod_optimized_torchani_forward.1} parent=11 // pred_fallthru
          _
        // Predicated region
        $region29: #{mod_optimized_torchani_forward.1} parent=11 // pred_check
          %p468 = pneg %p268
        $region30: #{mod_optimized_torchani_forward.1} parent=11 // pred_check_branch
          %470 = sbr.rel (%p468) target = $region32
        $region31: #{mod_optimized_torchani_forward.1} parent=11 // pred_region
          %s472 = ssub.s32 24576, 24576
          %473 = vsyncadd [#allocation6], %s472
          %s474 = sshll.u32 [#allocation5], 4
          %s475 = int_to_ptr.vmem [resolvable:$true] %s474
          %480 = dma.hbm_to_vmem [thread:$0]  %s10, 24576, %s475, [#allocation6], 128, 128, 8
        $region32: #{mod_optimized_torchani_forward.1} parent=11 // pred_fallthru
          _
        // Predicated region
        $region33: #{mod_optimized_torchani_forward.1} parent=11 // pred_check
          %p481 = pneg %p289
        $region34: #{mod_optimized_torchani_forward.1} parent=11 // pred_check_branch
          %483 = sbr.rel (%p481) target = $region36
        $region35: #{mod_optimized_torchani_forward.1} parent=11 // pred_region
          _
        $region36: #{mod_optimized_torchani_forward.1} parent=11 // pred_fallthru
          _
        // Predicated region
        $region37: #{mod_optimized_torchani_forward.1} parent=11 // pred_check
          %p484 = pneg %p310
        $region38: #{mod_optimized_torchani_forward.1} parent=11 // pred_check_branch
          %486 = sbr.rel (%p484) target = $region40
        $region39: #{mod_optimized_torchani_forward.1} parent=11 // pred_region
          _
        $region40: #{mod_optimized_torchani_forward.1} parent=11 // pred_fallthru
          _
        // Predicated region
        $region41: #{mod_optimized_torchani_forward.1} parent=11 // pred_check
          %p487 = pneg %p331
        $region42: #{mod_optimized_torchani_forward.1} parent=11 // pred_check_branch
          %489 = sbr.rel (%p487) target = $region44
        $region43: #{mod_optimized_torchani_forward.1} parent=11 // pred_region
          _
        $region44: #{mod_optimized_torchani_forward.1} parent=11 // pred_fallthru
          _
        // Predicated region
        $region45: #{mod_optimized_torchani_forward.1} parent=11 // pred_check
          %p490 = pneg %p352
        $region46: #{mod_optimized_torchani_forward.1} parent=11 // pred_check_branch
          %492 = sbr.rel (%p490) target = $region48
        $region47: #{mod_optimized_torchani_forward.1} parent=11 // pred_region
          _
        $region48: #{mod_optimized_torchani_forward.1} parent=11 // pred_fallthru
          _
        // Predicated region
        $region49: #{mod_optimized_torchani_forward.1} parent=11 // pred_check
          %p493 = pneg %p373
        $region50: #{mod_optimized_torchani_forward.1} parent=11 // pred_check_branch
          %495 = sbr.rel (%p493) target = $region52
        $region51: #{mod_optimized_torchani_forward.1} parent=11 // pred_region
          %s497 = ssub.s32 64, 64
          %498 = vsyncadd [#allocation8], %s497
          %s500 = sshll.u32 [#allocation7], 4
          %s501 = int_to_ptr.vmem [resolvable:$true] %s500
          %503 = dma.hbm_to_vmem [thread:$0]  %s15, 64, %s501, [#allocation8]
        $region52: #{mod_optimized_torchani_forward.1} parent=11 // pred_fallthru
          _
        // Predicated region
        $region53: #{mod_optimized_torchani_forward.1} parent=11 // pred_check
          %p504 = pneg %p394
        $region54: #{mod_optimized_torchani_forward.1} parent=11 // pred_check_branch
          %506 = sbr.rel (%p504) target = $region56
        $region55: #{mod_optimized_torchani_forward.1} parent=11 // pred_region
          %s508 = ssub.s32 3072, 3072
          %509 = vsyncadd [#allocation8], %s508
          %s510 = sshll.u32 [#allocation9], 4
          %s511 = int_to_ptr.vmem [resolvable:$true] %s510
          %516 = dma.hbm_to_vmem [thread:$0]  %s16, 3072, %s511, [#allocation8], 64, 64, 4
        $region56: #{mod_optimized_torchani_forward.1} parent=11 // pred_fallthru
          _
        // Predicated region
        $region57: #{mod_optimized_torchani_forward.1} parent=11 // pred_check
          %p517 = pneg %p415
        $region58: #{mod_optimized_torchani_forward.1} parent=11 // pred_check_branch
          %519 = sbr.rel (%p517) target = $region60
        $region59: #{mod_optimized_torchani_forward.1} parent=11 // pred_region
          %s521 = ssub.s32 64, 64
          %522 = vsyncadd [#allocation11], %s521
          %s524 = sshll.u32 [#allocation10], 4
          %s525 = int_to_ptr.vmem [resolvable:$true] %s524
          %527 = dma.hbm_to_vmem [thread:$0]  %s17, 64, %s525, [#allocation11]
        $region60: #{mod_optimized_torchani_forward.1} parent=11 // pred_fallthru
          _
      $region12: #{mod_optimized_torchani_forward.1} parent=5 // pred_fallthru
        _
      %p528 = scmp.lt.s32.totalorder %s33, 2
      // Predicated region
      $region61: #{mod_optimized_torchani_forward.1} parent=5 // pred_check
        %p529 = pneg %p528
      $region62: #{mod_optimized_torchani_forward.1} parent=5 // pred_check_branch
        %531 = sbr.rel (%p529) target = $region64
      $region63: #{mod_optimized_torchani_forward.1} parent=5 // pred_region
        // Predicated region
        $region65: #{mod_optimized_torchani_forward.1} parent=63 // pred_check
          %p532 = pneg %p53
        $region66: #{mod_optimized_torchani_forward.1} parent=63 // pred_check_branch
          %534 = sbr.rel (%p532) target = $region68
        $region67: #{mod_optimized_torchani_forward.1} parent=63 // pred_region
          %p535 = scmp.lt.s32.totalorder %s33, 1
          %s536 = scalar_select %p535, %s33, 1
          %s537 = smul.addr %s536, 4
          %s538 = scalar_lea.vmem %s1, %s537
        $region68: #{mod_optimized_torchani_forward.1} parent=63 // pred_fallthru
          _
        // Predicated region
        $region69: #{mod_optimized_torchani_forward.1} parent=63 // pred_check
          %p539 = pneg %p79
        $region70: #{mod_optimized_torchani_forward.1} parent=63 // pred_check_branch
          %541 = sbr.rel (%p539) target = $region72
        $region71: #{mod_optimized_torchani_forward.1} parent=63 // pred_region
          %p542 = scmp.lt.s32.totalorder %s33, 1
          %s543 = scalar_select %p542, %s33, 1
          %s544 = smul.addr %s543, 8
          %s545 = scalar_lea.vmem %s2, %s544
        $region72: #{mod_optimized_torchani_forward.1} parent=63 // pred_fallthru
          _
        // Predicated region
        $region73: #{mod_optimized_torchani_forward.1} parent=63 // pred_check
          %p546 = pneg %p105
        $region74: #{mod_optimized_torchani_forward.1} parent=63 // pred_check_branch
          %548 = sbr.rel (%p546) target = $region76
        $region75: #{mod_optimized_torchani_forward.1} parent=63 // pred_region
          %p549 = scmp.lt.s32.totalorder %s33, 1
          %s550 = scalar_select %p549, %s33, 1
          %s551 = smul.addr %s550, 4
          %s552 = scalar_lea.vmem %s3, %s551
        $region76: #{mod_optimized_torchani_forward.1} parent=63 // pred_fallthru
          _
        // Predicated region
        $region77: #{mod_optimized_torchani_forward.1} parent=63 // pred_check
          %p553 = pneg %p131
        $region78: #{mod_optimized_torchani_forward.1} parent=63 // pred_check_branch
          %555 = sbr.rel (%p553) target = $region80
        $region79: #{mod_optimized_torchani_forward.1} parent=63 // pred_region
          %p556 = scmp.lt.s32.totalorder %s33, 1
          %s557 = scalar_select %p556, %s33, 1
          %s558 = smul.addr %s557, 8
          %s559 = scalar_lea.vmem %s4, %s558
        $region80: #{mod_optimized_torchani_forward.1} parent=63 // pred_fallthru
          _
        // Predicated region
        $region81: #{mod_optimized_torchani_forward.1} parent=63 // pred_check
          %p560 = pneg %p157
        $region82: #{mod_optimized_torchani_forward.1} parent=63 // pred_check_branch
          %562 = sbr.rel (%p560) target = $region84
        $region83: #{mod_optimized_torchani_forward.1} parent=63 // pred_region
          %p563 = scmp.lt.s32.totalorder %s33, 1
          %s564 = scalar_select %p563, %s33, 1
          %s565 = smul.addr %s564, 2
          %s566 = smul.addr %s565, 8
          %s567 = scalar_lea.vmem %s5, %s566
        $region84: #{mod_optimized_torchani_forward.1} parent=63 // pred_fallthru
          _
      $region64: #{mod_optimized_torchani_forward.1} parent=5 // pred_fallthru
        _
      %p568 = scmp.le.s32.totalorder 1, %s33
      %p569 = scmp.lt.s32.totalorder %s33, 3
      %p570 = pnand %p568, %p569
      %p571 = pneg %p570
      // Predicated region
      $region85: #{mod_optimized_torchani_forward.1} parent=5 // pred_check
        _
      $region86: #{mod_optimized_torchani_forward.1} parent=5 // pred_check_branch
        %573 = sbr.rel (%p570) target = $region88
      $region87: #{mod_optimized_torchani_forward.1} parent=5 // pred_region
        %s574 = ssub.s32 %s33, 1
        // Predicated region
        $region89: #{mod_optimized_torchani_forward.1} parent=87 // pred_check
          %p575 = pneg %p268
        $region90: #{mod_optimized_torchani_forward.1} parent=87 // pred_check_branch
          %577 = sbr.rel (%p575) target = $region92
        $region91: #{mod_optimized_torchani_forward.1} parent=87 // pred_region
          %578 = dma.done [#allocation6], 24576
        $region92: #{mod_optimized_torchani_forward.1} parent=87 // pred_fallthru
          _
        // Predicated region
        $region93: #{mod_optimized_torchani_forward.1} parent=87 // pred_check
          %p579 = pneg %p373
        $region94: #{mod_optimized_torchani_forward.1} parent=87 // pred_check_branch
          %581 = sbr.rel (%p579) target = $region96
        $region95: #{mod_optimized_torchani_forward.1} parent=87 // pred_region
          %582 = dma.done [#allocation8], 64
        $region96: #{mod_optimized_torchani_forward.1} parent=87 // pred_fallthru
          _
        // Predicated region
        $region97: #{mod_optimized_torchani_forward.1} parent=87 // pred_check
          %p583 = pneg %p394
        $region98: #{mod_optimized_torchani_forward.1} parent=87 // pred_check_branch
          %585 = sbr.rel (%p583) target = $region100
        $region99: #{mod_optimized_torchani_forward.1} parent=87 // pred_region
          %586 = dma.done [#allocation8], 3072
        $region100: #{mod_optimized_torchani_forward.1} parent=87 // pred_fallthru
          _
        // Predicated region
        $region101: #{mod_optimized_torchani_forward.1} parent=87 // pred_check
          %p587 = pneg %p415
        $region102: #{mod_optimized_torchani_forward.1} parent=87 // pred_check_branch
          %589 = sbr.rel (%p587) target = $region104
        $region103: #{mod_optimized_torchani_forward.1} parent=87 // pred_region
          %590 = dma.done [#allocation11], 64
        $region104: #{mod_optimized_torchani_forward.1} parent=87 // pred_fallthru
          _
        %p591 = scmp.lt.s32.totalorder %s38, 1
        %s592 = scalar_select %p591, %s38, 1
        %s593 = smul.addr %s592, 4
        %s594 = scalar_lea.vmem %s1, %s593
        %p595 = pneg %p59
        %p596 = pneg %p56
        %p597 = scmp.lt.s32.totalorder %s38, 1
        %s598 = scalar_select %p597, %s38, 1
        %s599 = smul.addr %s598, 8
        %s600 = scalar_lea.vmem %s2, %s599
        %p601 = pneg %p85
        %p602 = pneg %p82
        %p603 = scmp.lt.s32.totalorder %s38, 1
        %s604 = scalar_select %p603, %s38, 1
        %s605 = smul.addr %s604, 4
        %s606 = scalar_lea.vmem %s3, %s605
        %p607 = pneg %p111
        %p608 = pneg %p108
        %p609 = scmp.lt.s32.totalorder %s38, 1
        %s610 = scalar_select %p609, %s38, 1
        %s611 = smul.addr %s610, 8
        %s612 = scalar_lea.vmem %s4, %s611
        %p613 = pneg %p137
        %p614 = pneg %p134
        %p615 = scmp.lt.s32.totalorder %s38, 1
        %s616 = scalar_select %p615, %s38, 1
        %s617 = smul.addr %s616, 2
        %s618 = smul.addr %s617, 8
        %s619 = scalar_lea.vmem %s5, %s618
        %p620 = pneg %p163
        %p621 = pneg %p160
        %p622 = pneg %p184
        %p623 = pneg %p181
        %p624 = pneg %p205
        %p625 = pneg %p202
        %p626 = pneg %p226
        %p627 = pneg %p223
        %p628 = pneg %p247
        %p629 = pneg %p244
        %p630 = pneg %p268
        %p631 = pneg %p265
        %p632 = pneg %p289
        %p633 = pneg %p286
        %p634 = pneg %p310
        %p635 = pneg %p307
        %p636 = pneg %p331
        %p637 = pneg %p328
        %p638 = pneg %p352
        %p639 = pneg %p349
        %p640 = pneg %p373
        %p641 = pneg %p370
        %p642 = pneg %p394
        %p643 = pneg %p391
        %p644 = pneg %p415
        %p645 = pneg %p412
        %p646 = pneg %p441
        %p647 = pneg %p438
        %p648 = scmp.lt.s32.totalorder %s38, 1
        %s649 = scalar_select %p648, %s38, 1
        %s650 = smul.addr %s649, 8
        %s651 = scalar_lea.vmem %s18, %s650
        %p652 = scmp.lt.s32.totalorder %s38, 1
        %s653 = scalar_select %p652, %s38, 1
        %s654 = smul.addr %s653, 4
        %s655 = scalar_lea.vmem %s1, %s654
        %p656 = scmp.lt.s32.totalorder %s38, 1
        %s657 = scalar_select %p656, %s38, 1
        %s658 = smul.addr %s657, 8
        %s659 = scalar_lea.vmem %s2, %s658
        %p660 = scmp.lt.s32.totalorder %s38, 1
        %s661 = scalar_select %p660, %s38, 1
        %s662 = smul.addr %s661, 4
        %s663 = scalar_lea.vmem %s3, %s662
        %p664 = scmp.lt.s32.totalorder %s38, 1
        %s665 = scalar_select %p664, %s38, 1
        %s666 = smul.addr %s665, 8
        %s667 = scalar_lea.vmem %s4, %s666
        %p668 = scmp.lt.s32.totalorder %s38, 1
        %s669 = scalar_select %p668, %s38, 1
        %s670 = smul.addr %s669, 2
        %s671 = smul.addr %s670, 8
        %s672 = scalar_lea.vmem %s5, %s671
        %p673 = scmp.lt.s32.totalorder %s38, 1
        %s674 = scalar_select %p673, %s38, 1
        %s675 = smul.addr %s674, 8
        %s676 = scalar_lea.vmem %s18, %s675
        %v678 = vld [vmem:[%s655] sm:$0x7]
        %v679 = vld [vmem:[%s659] sm:$0xff]
        %v680 = vld [vmem:[%s663] sm:$0xf]
        %v681 = vld [vmem:[%s667] sm:$0xff]
        %v682 = vld [vmem:[%s672] sm:$0xff]
        %v683 = vld [vmem:[%s672 + $0x8] sm:$0x3]
        %v684 = vld [vmem:[%s6] sm:$0xff]
        %v685 = vld [vmem:[%s6 + $0x8] sm:$0xff]
        %v686 = vld [vmem:[%s7] sm:$0xff]
        %v687 = vld [vmem:[%s8] sm:$0xff]
        %v688 = vld [vmem:[%s9] sm:$0xf]
        %690 = vset.pattern.permute.xlu0 0
        %691 = vperm.xlu0 %690, %v679
        %v692 = vpop.permute.xlu0 %691
        %v694 = vlaneseq
        %v695 = vshrl.u32 %v694, 7
        %v696 = vsub.s32 0, %v695
        %v697 = vrot.slane %v678, %v696
        %v698 = vsub.f32 %v692, %v697
        %699 = vset.pattern.permute.xlu0 1
        %700 = vperm.xlu0 %699, %v679
        %v701 = vpop.permute.xlu0 %700
        %v703 = vlaneseq
        %v704 = vshrl.u32 %v703, 7
        %v705 = vsub.s32 1, %v704
        %v706 = vrot.slane %v678, %v705
        %v707 = vsub.f32 %v701, %v706
        %708 = vset.pattern.permute.xlu0 2
        %709 = vperm.xlu0 %708, %v679
        %v710 = vpop.permute.xlu0 %709
        %v712 = vlaneseq
        %v713 = vshrl.u32 %v712, 7
        %v714 = vsub.s32 2, %v713
        %v715 = vrot.slane %v678, %v714
        %v716 = vsub.f32 %v710, %v715
        %v717 = vmul.f32 %v698, %v698
        %v718 = vmul.f32 %v707, %v707
        %v719 = vadd.f32 %v717, %v718
        %v720 = vmul.f32 %v716, %v716
        %v721 = vadd.f32 %v719, %v720
        %v722 = vadd.f32 %v721, 1e-12
        %v723 = vrsqrt.pop %v722
        %v724 = vmul.f32 %v722, %v723
        %vm725 = vcmp.eq.f32.partialorder %v722, inf
        %v726 = vsel %vm725, %v722, %v724
        %vm727 = vcmp.eq.f32.partialorder %v722, 0.0
        %v728 = vand.u32 %v722, 2147483648
        %v729 = vsel %vm727, %v728, %v726
        %v730 = vlaneseq
        %v731 = vshrl.u32 %v730, 7
        %v732 = vlaneseq
        %v733 = vand.u32 %v732, 127
        %vm734 = vcmp.ne.s32.totalorder %v731, %v733
        %v735 = vsel %vm734, 1, 0
        %v736 = vcvt.s32.f32 %v735
        %vm737 = vcmp.lt.f32.partialorder %v729, 5.2
        %v738 = vmul.f32 %v729, 3.1415927
        %v739 = vrcp.pop 5.2
        %v740 = vmul.f32 %v738, %v739
        %v741 = vand.u32 2147483647, %v740
        %vm742 = vcmp.le.f32.partialorder %v741, 0.7853982
        %vm743 = vcmp.lt.s32.totalorder %v740, 0
        %v744 = vand.u32 %v740, 2139095040
        %v745 = vshrl.u32 %v744, 23
        %v746 = vsub.s32 %v745, 127
        %v747 = vand.u32 2147483647, %v740
        %v748 = vand.u32 %v747, 8388607
        %v749 = vor.u32 %v748, 8388608
        %v750 = vsub.s32 0, %v749
        %v751 = vadd.s32 %v746, 1
        %vm752 = vcmp.gt.s32.totalorder %v751, 0
        %v753 = vsel %vm752, %v751, 0
        %v754 = vshrl.u32 %v753, 5
        %v755 = vand.u32 %v753, 31
        %v756 = vsub.s32 32, %v755
        %v757 = vshrl.u32 683565275, %v756
        %v758 = vshll.u32 683565275, %v755
        %v759 = vshrl.u32 2475754826, %v756
        %v760 = vor.u32 %v758, %v759
        %v761 = vshll.u32 2475754826, %v755
        %v762 = vshrl.u32 2131351028, %v756
        %v763 = vor.u32 %v761, %v762
        %v764 = vshll.u32 2131351028, %v755
        %v765 = vshrl.u32 2102212464, %v756
        %v766 = vor.u32 %v764, %v765
        %v767 = vshll.u32 2102212464, %v755
        %v768 = vshrl.u32 920167782, %v756
        %v769 = vor.u32 %v767, %v768
        %v770 = vshll.u32 920167782, %v755
        %v771 = vshrl.u32 1326507024, %v756
        %v772 = vor.u32 %v770, %v771
        %vm773 = vcmp.lt.s32.totalorder %v754, 1
        %vm774 = vcmp.lt.s32.totalorder %v754, 2
        %vm775 = vcmp.lt.s32.totalorder %v754, 3
        %vm776 = vcmp.lt.s32.totalorder %v754, 4
        %v777 = vsel %vm773, %v757, %v760
        %v778 = vsel %vm776, %v766, 2102212464
        %v779 = vsel %vm775, %v763, %v778
        %v780 = vsel %vm774, %v777, %v779
        %v781 = vsel %vm773, %v760, %v763
        %v782 = vsel %vm776, %v769, 920167782
        %v783 = vsel %vm775, %v766, %v782
        %v784 = vsel %vm774, %v781, %v783
        %v785 = vsel %vm773, %v763, %v766
        %v786 = vsel %vm776, %v772, 1326507024
        %v787 = vsel %vm775, %v769, %v786
        %v788 = vsel %vm774, %v785, %v787
        %v789 = vshll.u32 %v749, 8
        %v790 = vmul.u32.u64.compose %v789, %v788
        %v791 = vextract.low.u32 %v790
        %v792 = vextract.high.u32 %v790
        %v793 = vmul.u32.u64.compose %v789, %v784
        %v794 = vextract.low.u32 %v793
        %v795 = vextract.high.u32 %v793
        %v796 = vmul.u32 %v789, %v780
        %v797 = vadd.s32 %v792, %v794
        %vm798 = vc.u32 %v792, %v794
        %v799 = vadd.s32 %v795, 1
        %v800 = vsel %vm798, %v799, %v795
        %v801 = vadd.s32 %v796, %v800
        %v802 = vadd.s32 %v801, 536870912
        %v803 = vshrl.u32 %v802, 30
        %v804 = vshll.u32 %v803, 30
        %v805 = vsub.s32 %v801, %v804
        %vm806 = vcmp.lt.s32.totalorder %v805, 0
        %v807 = vsub.s32 0, %v805
        %v808 = vsel %vm806, %v807, %v805
        %v809 = vclz %v808
        %v810 = vsub.s32 %v809, 2
        %vm811 = vcmp.gt.s32.totalorder 0, %v810
        %v812 = vsel %vm811, 0, %v810
        %v813 = vsub.s32 32, %v812
        %v814 = vshll.u32 %v805, %v812
        %v815 = vshrl.u32 %v797, %v813
        %v816 = vor.u32 %v814, %v815
        %v817 = vsub.s32 4294967266, %v812
        %v818 = vadd.s32 %v817, 127
        %v819 = vshll.u32 %v818, 23
        %v820 = vor.u32 4788187, %v819
        %v821 = vand.u32 2147483647, %v820
        %v823 = vcvt.s32.f32 %v816
        %v824 = vmul.f32 %v823, %v821
        %v825 = vxor.u32 %v824, 2147483648
        %v826 = vsel %vm743, %v825, %v824
        %v827 = vsub.s32 4, %v803
        %v828 = vsel %vm743, %v827, %v803
        %v829 = vsel %vm742, %v740, %v826
        %v830 = vsel %vm742, 0, %v828
        %v831 = vcosq.f32.pop %v829
        %v832 = vsinq.f32.pop %v829
        %vm833 = vweird.f32 %v740
        %v834 = vand.u32 %v830, 3
        %vm835 = vcmp.lt.s32.totalorder %v834, 2
        %vm836 = vcmp.eq.s32.totalorder %v834, 0
        %v837 = vxor.u32 %v832, 2147483648
        %v838 = vsel %vm836, %v831, %v837
        %vm839 = vcmp.eq.s32.totalorder %v834, 2
        %v840 = vxor.u32 %v831, 2147483648
        %v841 = vsel %vm839, %v840, %v832
        %v842 = vsel %vm835, %v838, %v841
        %v843 = vsel %vm833, nan, %v842
        %v844 = vmul.f32 %v843, 0.5
        %v845 = vadd.f32 %v844, 0.5
        %v846 = vsel %vm737, %v845, 0.0
        %v847 = vmul.f32 %v846, %v736
        %vm848 = vcmp.lt.f32.partialorder %v729, 3.5
        %v849 = vrcp.pop 3.5
        %v850 = vmul.f32 %v738, %v849
        %v851 = vand.u32 2147483647, %v850
        %vm852 = vcmp.le.f32.partialorder %v851, 0.7853982
        %vm853 = vcmp.lt.s32.totalorder %v850, 0
        %v854 = vand.u32 %v850, 2139095040
        %v855 = vshrl.u32 %v854, 23
        %v856 = vsub.s32 %v855, 127
        %v857 = vand.u32 2147483647, %v850
        %v858 = vand.u32 %v857, 8388607
        %v859 = vor.u32 %v858, 8388608
        %v860 = vsub.s32 0, %v859
        %v861 = vadd.s32 %v856, 1
        %vm862 = vcmp.gt.s32.totalorder %v861, 0
        %v863 = vsel %vm862, %v861, 0
        %v864 = vshrl.u32 %v863, 5
        %v865 = vand.u32 %v863, 31
        %v866 = vsub.s32 32, %v865
        %v867 = vshrl.u32 683565275, %v866
        %v868 = vshll.u32 683565275, %v865
        %v869 = vshrl.u32 2475754826, %v866
        %v870 = vor.u32 %v868, %v869
        %v871 = vshll.u32 2475754826, %v865
        %v872 = vshrl.u32 2131351028, %v866
        %v873 = vor.u32 %v871, %v872
        %v874 = vshll.u32 2131351028, %v865
        %v875 = vshrl.u32 2102212464, %v866
        %v876 = vor.u32 %v874, %v875
        %v877 = vshll.u32 2102212464, %v865
        %v878 = vshrl.u32 920167782, %v866
        %v879 = vor.u32 %v877, %v878
        %v880 = vshll.u32 920167782, %v865
        %v881 = vshrl.u32 1326507024, %v866
        %v882 = vor.u32 %v880, %v881
        %vm883 = vcmp.lt.s32.totalorder %v864, 1
        %vm884 = vcmp.lt.s32.totalorder %v864, 2
        %vm885 = vcmp.lt.s32.totalorder %v864, 3
        %vm886 = vcmp.lt.s32.totalorder %v864, 4
        %v887 = vsel %vm883, %v867, %v870
        %v888 = vsel %vm886, %v876, 2102212464
        %v889 = vsel %vm885, %v873, %v888
        %v890 = vsel %vm884, %v887, %v889
        %v891 = vsel %vm883, %v870, %v873
        %v892 = vsel %vm886, %v879, 920167782
        %v893 = vsel %vm885, %v876, %v892
        %v894 = vsel %vm884, %v891, %v893
        %v895 = vsel %vm883, %v873, %v876
        %v896 = vsel %vm886, %v882, 1326507024
        %v897 = vsel %vm885, %v879, %v896
        %v898 = vsel %vm884, %v895, %v897
        %v899 = vshll.u32 %v859, 8
        %v900 = vmul.u32.u64.compose %v899, %v898
        %v901 = vextract.low.u32 %v900
        %v902 = vextract.high.u32 %v900
        %v903 = vmul.u32.u64.compose %v899, %v894
        %v904 = vextract.low.u32 %v903
        %v905 = vextract.high.u32 %v903
        %v906 = vmul.u32 %v899, %v890
        %v907 = vadd.s32 %v902, %v904
        %vm908 = vc.u32 %v902, %v904
        %v909 = vadd.s32 %v905, 1
        %v910 = vsel %vm908, %v909, %v905
        %v911 = vadd.s32 %v906, %v910
        %v912 = vadd.s32 %v911, 536870912
        %v913 = vshrl.u32 %v912, 30
        %v914 = vshll.u32 %v913, 30
        %v915 = vsub.s32 %v911, %v914
        %vm916 = vcmp.lt.s32.totalorder %v915, 0
        %v917 = vsub.s32 0, %v915
        %v918 = vsel %vm916, %v917, %v915
        %v919 = vclz %v918
        %v920 = vsub.s32 %v919, 2
        %vm921 = vcmp.gt.s32.totalorder 0, %v920
        %v922 = vsel %vm921, 0, %v920
        %v923 = vsub.s32 32, %v922
        %v924 = vshll.u32 %v915, %v922
        %v925 = vshrl.u32 %v907, %v923
        %v926 = vor.u32 %v924, %v925
        %v927 = vsub.s32 4294967266, %v922
        %v928 = vadd.s32 %v927, 127
        %v929 = vshll.u32 %v928, 23
        %v930 = vor.u32 4788187, %v929
        %v931 = vand.u32 2147483647, %v930
        %v933 = vcvt.s32.f32 %v926
        %v934 = vmul.f32 %v933, %v931
        %v935 = vxor.u32 %v934, 2147483648
        %v936 = vsel %vm853, %v935, %v934
        %v937 = vsub.s32 4, %v913
        %v938 = vsel %vm853, %v937, %v913
        %v939 = vsel %vm852, %v850, %v936
        %v940 = vsel %vm852, 0, %v938
        %v941 = vcosq.f32.pop %v939
        %v942 = vsinq.f32.pop %v939
        %vm943 = vweird.f32 %v850
        %v944 = vand.u32 %v940, 3
        %vm945 = vcmp.lt.s32.totalorder %v944, 2
        %vm946 = vcmp.eq.s32.totalorder %v944, 0
        %v947 = vxor.u32 %v942, 2147483648
        %v948 = vsel %vm946, %v941, %v947
        %vm949 = vcmp.eq.s32.totalorder %v944, 2
        %v950 = vxor.u32 %v941, 2147483648
        %v951 = vsel %vm949, %v950, %v942
        %v952 = vsel %vm945, %v948, %v951
        %v953 = vsel %vm943, nan, %v952
        %v954 = vmul.f32 %v953, 0.5
        %v955 = vadd.f32 %v954, 0.5
        %v956 = vsel %vm848, %v955, 0.0
        %v957 = vmul.f32 %v956, %v736
        %v959 = vcombine.high %v729, %v729
        %v961 = vunpack.c.l.s4 1966171168
        %v962 = vunpack.c.0.s8 %v961
        %v963 = vlaneseq
        %v964 = vshrl.u32 %v963, 7
        %v965 = vsub.s32 %v962, %v964
        %v966 = vrot.slane %v729, %v965
        %v968 = vunpack.c.l.s4 1966171168
        %v969 = vunpack.c.0.s8 %v968
        %v970 = vlaneseq
        %v971 = vshrl.u32 %v970, 7
        %v972 = vsub.s32 %v969, %v971
        %v973 = vrot.slane %v959, %v972
        %v974 = vcombine.high %v966, %v966
        %v975 = vcombine.high %v973, %v973
        %v977 = vunpack.c.l.s4 1966171168
        %v978 = vunpack.c.0.s8 %v977
        %v979 = vlaneseq
        %v980 = vshrl.u32 %v979, 7
        %v981 = vsub.s32 %v978, %v980
        %v982 = vrot.slane %v966, %v981
        %v984 = vunpack.c.l.s4 1966171168
        %v985 = vunpack.c.0.s8 %v984
        %v986 = vlaneseq
        %v987 = vshrl.u32 %v986, 7
        %v988 = vsub.s32 %v985, %v987
        %v989 = vrot.slane %v973, %v988
        %v991 = vunpack.c.l.s4 1966171168
        %v992 = vunpack.c.0.s8 %v991
        %v993 = vlaneseq
        %v994 = vshrl.u32 %v993, 7
        %v995 = vsub.s32 %v992, %v994
        %v996 = vrot.slane %v974, %v995
        %v998 = vunpack.c.l.s4 1966171168
        %v999 = vunpack.c.0.s8 %v998
        %v1000 = vlaneseq
        %v1001 = vshrl.u32 %v1000, 7
        %v1002 = vsub.s32 %v999, %v1001
        %v1003 = vrot.slane %v975, %v1002
        %v1004 = vcombine.high %v982, %v982
        %v1005 = vcombine.high %v989, %v989
        %v1006 = vcombine.high %v996, %v996
        %v1007 = vcombine.high %v1003, %v1003
        %v1008 = vlaneseq
        %v1009 = vshrl.u32 %v1008, 7
        %v1010 = vsub.s32 0, %v1009
        %v1011 = vrot.slane %v982, %v1010
        %v1012 = vlaneseq
        %v1013 = vshrl.u32 %v1012, 7
        %v1014 = vsub.s32 0, %v1013
        %v1015 = vrot.slane %v996, %v1014
        %v1016 = vlaneseq
        %v1017 = vshrl.u32 %v1016, 7
        %v1018 = vsub.s32 0, %v1017
        %v1019 = vrot.slane %v1004, %v1018
        %v1020 = vlaneseq
        %v1021 = vshrl.u32 %v1020, 7
        %v1022 = vsub.s32 0, %v1021
        %v1023 = vrot.slane %v1006, %v1022
        %v1024 = vlaneseq
        %v1025 = vshrl.u32 %v1024, 7
        %v1026 = vsub.s32 0, %v1025
        %v1027 = vrot.slane %v989, %v1026
        %v1028 = vlaneseq
        %v1029 = vshrl.u32 %v1028, 7
        %v1030 = vsub.s32 0, %v1029
        %v1031 = vrot.slane %v1003, %v1030
        %v1032 = vlaneseq
        %v1033 = vshrl.u32 %v1032, 7
        %v1034 = vsub.s32 0, %v1033
        %v1035 = vrot.slane %v1005, %v1034
        %v1036 = vlaneseq
        %v1037 = vshrl.u32 %v1036, 7
        %v1038 = vsub.s32 0, %v1037
        %v1039 = vrot.slane %v1007, %v1038
        %1049 = vset.pattern.permute.xlu0 0
        %1050 = vperm.xlu0 %1049, %v684
        %v1051 = vpop.permute.xlu0 %1050
        %1054 = vset.pattern.permute.xlu0 0
        %1055 = vperm.xlu0 %1054, %v685
        %v1056 = vpop.permute.xlu0 %1055
        %v1058 = vsub.f32 %v1011, %v1051
        %v1059 = vsub.f32 %v1011, %v1056
        %v1060 = vsub.f32 %v1015, %v1051
        %v1061 = vsub.f32 %v1015, %v1056
        %v1062 = vsub.f32 %v1019, %v1051
        %v1063 = vsub.f32 %v1019, %v1056
        %v1064 = vsub.f32 %v1023, %v1051
        %v1065 = vsub.f32 %v1023, %v1056
        %v1066 = vsub.f32 %v1027, %v1051
        %v1067 = vsub.f32 %v1027, %v1056
        %v1068 = vsub.f32 %v1031, %v1051
        %v1069 = vsub.f32 %v1031, %v1056
        %v1070 = vsub.f32 %v1035, %v1051
        %v1071 = vsub.f32 %v1035, %v1056
        %v1072 = vsub.f32 %v1039, %v1051
        %v1073 = vsub.f32 %v1039, %v1056
        %v1074 = vmul.f32 %v1058, %v1058
        %v1075 = vmul.f32 %v1059, %v1059
        %v1076 = vmul.f32 %v1060, %v1060
        %v1077 = vmul.f32 %v1061, %v1061
        %v1078 = vmul.f32 %v1062, %v1062
        %v1079 = vmul.f32 %v1063, %v1063
        %v1080 = vmul.f32 %v1064, %v1064
        %v1081 = vmul.f32 %v1065, %v1065
        %v1082 = vmul.f32 %v1066, %v1066
        %v1083 = vmul.f32 %v1067, %v1067
        %v1084 = vmul.f32 %v1068, %v1068
        %v1085 = vmul.f32 %v1069, %v1069
        %v1086 = vmul.f32 %v1070, %v1070
        %v1087 = vmul.f32 %v1071, %v1071
        %v1088 = vmul.f32 %v1072, %v1072
        %v1089 = vmul.f32 %v1073, %v1073
        %v1090 = vmul.f32 %v1074, -16.0
        %v1091 = vmul.f32 %v1075, -16.0
        %v1092 = vmul.f32 %v1076, -16.0
        %v1093 = vmul.f32 %v1077, -16.0
        %v1094 = vmul.f32 %v1078, -16.0
        %v1095 = vmul.f32 %v1079, -16.0
        %v1096 = vmul.f32 %v1080, -16.0
        %v1097 = vmul.f32 %v1081, -16.0
        %v1098 = vmul.f32 %v1082, -16.0
        %v1099 = vmul.f32 %v1083, -16.0
        %v1100 = vmul.f32 %v1084, -16.0
        %v1101 = vmul.f32 %v1085, -16.0
        %v1102 = vmul.f32 %v1086, -16.0
        %v1103 = vmul.f32 %v1087, -16.0
        %v1104 = vmul.f32 %v1088, -16.0
        %v1105 = vmul.f32 %v1089, -16.0
        %v1106 = vmul.f32 %v1090, 1.442695
        %v1107 = vpow.pop %v1106
        %v1108 = vmul.f32 %v1091, 1.442695
        %v1109 = vpow.pop %v1108
        %v1110 = vmul.f32 %v1092, 1.442695
        %v1111 = vpow.pop %v1110
        %v1112 = vmul.f32 %v1093, 1.442695
        %v1113 = vpow.pop %v1112
        %v1114 = vmul.f32 %v1094, 1.442695
        %v1115 = vpow.pop %v1114
        %v1116 = vmul.f32 %v1095, 1.442695
        %v1117 = vpow.pop %v1116
        %v1118 = vmul.f32 %v1096, 1.442695
        %v1119 = vpow.pop %v1118
        %v1120 = vmul.f32 %v1097, 1.442695
        %v1121 = vpow.pop %v1120
        %v1122 = vmul.f32 %v1098, 1.442695
        %v1123 = vpow.pop %v1122
        %v1124 = vmul.f32 %v1099, 1.442695
        %v1125 = vpow.pop %v1124
        %v1126 = vmul.f32 %v1100, 1.442695
        %v1127 = vpow.pop %v1126
        %v1128 = vmul.f32 %v1101, 1.442695
        %v1129 = vpow.pop %v1128
        %v1130 = vmul.f32 %v1102, 1.442695
        %v1131 = vpow.pop %v1130
        %v1132 = vmul.f32 %v1103, 1.442695
        %v1133 = vpow.pop %v1132
        %v1134 = vmul.f32 %v1104, 1.442695
        %v1135 = vpow.pop %v1134
        %v1136 = vmul.f32 %v1105, 1.442695
        %v1137 = vpow.pop %v1136
        %v1138 = vmul.f32 %v847, 0.25
        %v1140 = vcombine.high %v1138, %v1138
        %v1142 = vunpack.c.l.s4 1966171168
        %v1143 = vunpack.c.0.s8 %v1142
        %v1144 = vlaneseq
        %v1145 = vshrl.u32 %v1144, 7
        %v1146 = vsub.s32 %v1143, %v1145
        %v1147 = vrot.slane %v1138, %v1146
        %v1149 = vunpack.c.l.s4 1966171168
        %v1150 = vunpack.c.0.s8 %v1149
        %v1151 = vlaneseq
        %v1152 = vshrl.u32 %v1151, 7
        %v1153 = vsub.s32 %v1150, %v1152
        %v1154 = vrot.slane %v1140, %v1153
        %v1155 = vcombine.high %v1147, %v1147
        %v1156 = vcombine.high %v1154, %v1154
        %v1158 = vunpack.c.l.s4 1966171168
        %v1159 = vunpack.c.0.s8 %v1158
        %v1160 = vlaneseq
        %v1161 = vshrl.u32 %v1160, 7
        %v1162 = vsub.s32 %v1159, %v1161
        %v1163 = vrot.slane %v1147, %v1162
        %v1165 = vunpack.c.l.s4 1966171168
        %v1166 = vunpack.c.0.s8 %v1165
        %v1167 = vlaneseq
        %v1168 = vshrl.u32 %v1167, 7
        %v1169 = vsub.s32 %v1166, %v1168
        %v1170 = vrot.slane %v1154, %v1169
        %v1172 = vunpack.c.l.s4 1966171168
        %v1173 = vunpack.c.0.s8 %v1172
        %v1174 = vlaneseq
        %v1175 = vshrl.u32 %v1174, 7
        %v1176 = vsub.s32 %v1173, %v1175
        %v1177 = vrot.slane %v1155, %v1176
        %v1179 = vunpack.c.l.s4 1966171168
        %v1180 = vunpack.c.0.s8 %v1179
        %v1181 = vlaneseq
        %v1182 = vshrl.u32 %v1181, 7
        %v1183 = vsub.s32 %v1180, %v1182
        %v1184 = vrot.slane %v1156, %v1183
        %v1185 = vcombine.high %v1163, %v1163
        %v1186 = vcombine.high %v1170, %v1170
        %v1187 = vcombine.high %v1177, %v1177
        %v1188 = vcombine.high %v1184, %v1184
        %v1189 = vlaneseq
        %v1190 = vshrl.u32 %v1189, 7
        %v1191 = vsub.s32 0, %v1190
        %v1192 = vrot.slane %v1163, %v1191
        %v1193 = vlaneseq
        %v1194 = vshrl.u32 %v1193, 7
        %v1195 = vsub.s32 0, %v1194
        %v1196 = vrot.slane %v1177, %v1195
        %v1197 = vlaneseq
        %v1198 = vshrl.u32 %v1197, 7
        %v1199 = vsub.s32 0, %v1198
        %v1200 = vrot.slane %v1185, %v1199
        %v1201 = vlaneseq
        %v1202 = vshrl.u32 %v1201, 7
        %v1203 = vsub.s32 0, %v1202
        %v1204 = vrot.slane %v1187, %v1203
        %v1205 = vlaneseq
        %v1206 = vshrl.u32 %v1205, 7
        %v1207 = vsub.s32 0, %v1206
        %v1208 = vrot.slane %v1170, %v1207
        %v1209 = vlaneseq
        %v1210 = vshrl.u32 %v1209, 7
        %v1211 = vsub.s32 0, %v1210
        %v1212 = vrot.slane %v1184, %v1211
        %v1213 = vlaneseq
        %v1214 = vshrl.u32 %v1213, 7
        %v1215 = vsub.s32 0, %v1214
        %v1216 = vrot.slane %v1186, %v1215
        %v1217 = vlaneseq
        %v1218 = vshrl.u32 %v1217, 7
        %v1219 = vsub.s32 0, %v1218
        %v1220 = vrot.slane %v1188, %v1219
        %v1229 = vmul.f32 %v1107, %v1192
        %v1230 = vmul.f32 %v1109, %v1192
        %v1231 = vmul.f32 %v1111, %v1196
        %v1232 = vmul.f32 %v1113, %v1196
        %v1233 = vmul.f32 %v1115, %v1200
        %v1234 = vmul.f32 %v1117, %v1200
        %v1235 = vmul.f32 %v1119, %v1204
        %v1236 = vmul.f32 %v1121, %v1204
        %v1237 = vmul.f32 %v1123, %v1208
        %v1238 = vmul.f32 %v1125, %v1208
        %v1239 = vmul.f32 %v1127, %v1212
        %v1240 = vmul.f32 %v1129, %v1212
        %v1241 = vmul.f32 %v1131, %v1216
        %v1242 = vmul.f32 %v1133, %v1216
        %v1243 = vmul.f32 %v1135, %v1220
        %v1244 = vmul.f32 %v1137, %v1220
        %vm1245 = vcmask 64512
        %v1247 = vsel %vm1245, %v680, 0
        %v1250 = vsel %vm1245, %v1229, 0
        %v1253 = vsel %vm1245, %v1230, 0
        %1255 = vmatprep.subr.mxu0 0.0
        %1256 = vmatpush1.xpose.msra.mxu0 0.0
        %1257 = vmatprep.subr.mxu0 0.0
        %1258 = vmatpush1.xpose.msra.mxu0 0.0
        %1259 = vmatprep.subr.mxu0 0.0
        %1260 = vmatpush1.xpose.msra.mxu0 0.0
        %1261 = vmatprep.subr.mxu0 0.0
        %1262 = vmatpush1.xpose.msra.mxu0 0.0
        %1263 = vmatprep.subr.mxu0 0.0
        %1264 = vmatpush1.xpose.msra.mxu0 0.0
        %1265 = vmatprep.subr.mxu0 0.0
        %1266 = vmatpush1.xpose.msra.mxu0 0.0
        %1267 = vmatprep.subr.mxu0 0.0
        %1268 = vmatpush1.xpose.msra.mxu0 0.0
        %1269 = vmatprep.subr.mxu0 0.0
        %1270 = vmatpush1.xpose.msra.mxu0 0.0
        %1271 = vmatprep.subr.mxu0 0.0
        %1272 = vmatpush1.xpose.msra.mxu0 0.0
        %1273 = vmatprep.subr.mxu0 0.0
        %1274 = vmatpush1.xpose.msra.mxu0 0.0
        %1275 = vmatprep.subr.mxu0 0.0
        %1276 = vmatpush1.xpose.msra.mxu0 0.0
        %1277 = vmatprep.subr.mxu0 0.0
        %1278 = vmatpush1.xpose.msra.mxu0 0.0
        %1279 = vmatprep.subr.mxu0 0.0
        %1280 = vmatpush1.xpose.msra.mxu0 0.0
        %1281 = vmatprep.subr.mxu0 0.0
        %1282 = vmatpush1.xpose.msra.mxu0 0.0
        %1283 = vmatprep.subr.mxu0 0.0
        %1284 = vmatpush1.xpose.msra.mxu0 %v1253
        %1285 = vmatprep.subr.mxu0 0.0
        %1286 = vmatpush1.xpose.msra.mxu0 %v1250
        %1287 = vmatprep.subr.mxu0 0.0
        %1288 = vmatpush2.xpose.msra.mxu0 0.0
        %1289 = vmatprep.subr.mxu0 0.0
        %1290 = vmatpush2.xpose.msra.mxu0 0.0
        %1291 = vmatprep.subr.mxu0 0.0
        %1292 = vmatpush2.xpose.msra.mxu0 0.0
        %1293 = vmatprep.subr.mxu0 0.0
        %1294 = vmatpush2.xpose.msra.mxu0 0.0
        %1295 = vmatprep.subr.mxu0 0.0
        %1296 = vmatpush2.xpose.msra.mxu0 0.0
        %1297 = vmatprep.subr.mxu0 0.0
        %1298 = vmatpush2.xpose.msra.mxu0 0.0
        %1299 = vmatprep.subr.mxu0 0.0
        %1300 = vmatpush2.xpose.msra.mxu0 0.0
        %1301 = vmatprep.subr.mxu0 0.0
        %1302 = vmatpush2.xpose.msra.mxu0 0.0
        %1303 = vmatprep.subr.mxu0 0.0
        %1304 = vmatpush2.xpose.msra.mxu0 0.0
        %1305 = vmatprep.subr.mxu0 0.0
        %1306 = vmatpush2.xpose.msra.mxu0 0.0
        %1307 = vmatprep.subr.mxu0 0.0
        %1308 = vmatpush2.xpose.msra.mxu0 0.0
        %1309 = vmatprep.subr.mxu0 0.0
        %1310 = vmatpush2.xpose.msra.mxu0 0.0
        %1311 = vmatprep.subr.mxu0 0.0
        %1312 = vmatpush2.xpose.msra.mxu0 0.0
        %1313 = vmatprep.subr.mxu0 0.0
        %1314 = vmatpush2.xpose.msra.mxu0 0.0
        %1315 = vmatprep.subr.mxu0 0.0
        %1316 = vmatpush2.xpose.msra.mxu0 0.0
        %1317 = vmatprep.subr.mxu0 0.0
        %1318 = vmatpush2.xpose.msra.mxu0 0.0
        %1319 = vmatprep.mubr.f32.mxu0 0.0
        %1320 = vmatmul.mubr.f32.gmra.mxu0 %v1247
        %v1321 = vpop.f32.mrf.mxu0
        %v1322 = vadd.f32 0.0, %v1321
        %v1323 = vpop.f32.mrf.mxu0
        %1324 = vdwg.mxu0
        %v1326 = vsel %vm1245, %v1231, 0
        %v1329 = vsel %vm1245, %v1232, 0
        %1331 = vmatprep.subr.mxu0 0.0
        %1332 = vmatpush1.xpose.msra.mxu0 0.0
        %1333 = vmatprep.subr.mxu0 0.0
        %1334 = vmatpush1.xpose.msra.mxu0 0.0
        %1335 = vmatprep.subr.mxu0 0.0
        %1336 = vmatpush1.xpose.msra.mxu0 0.0
        %1337 = vmatprep.subr.mxu0 0.0
        %1338 = vmatpush1.xpose.msra.mxu0 0.0
        %1339 = vmatprep.subr.mxu0 0.0
        %1340 = vmatpush1.xpose.msra.mxu0 0.0
        %1341 = vmatprep.subr.mxu0 0.0
        %1342 = vmatpush1.xpose.msra.mxu0 0.0
        %1343 = vmatprep.subr.mxu0 0.0
        %1344 = vmatpush1.xpose.msra.mxu0 0.0
        %1345 = vmatprep.subr.mxu0 0.0
        %1346 = vmatpush1.xpose.msra.mxu0 0.0
        %1347 = vmatprep.subr.mxu0 0.0
        %1348 = vmatpush1.xpose.msra.mxu0 0.0
        %1349 = vmatprep.subr.mxu0 0.0
        %1350 = vmatpush1.xpose.msra.mxu0 0.0
        %1351 = vmatprep.subr.mxu0 0.0
        %1352 = vmatpush1.xpose.msra.mxu0 0.0
        %1353 = vmatprep.subr.mxu0 0.0
        %1354 = vmatpush1.xpose.msra.mxu0 0.0
        %1355 = vmatprep.subr.mxu0 0.0
        %1356 = vmatpush1.xpose.msra.mxu0 0.0
        %1357 = vmatprep.subr.mxu0 0.0
        %1358 = vmatpush1.xpose.msra.mxu0 0.0
        %1359 = vmatprep.subr.mxu0 0.0
        %1360 = vmatpush1.xpose.msra.mxu0 %v1329
        %1361 = vmatprep.subr.mxu0 0.0
        %1362 = vmatpush1.xpose.msra.mxu0 %v1326
        %1363 = vmatprep.subr.mxu0 0.0
        %1364 = vmatpush2.xpose.msra.mxu0 0.0
        %1365 = vmatprep.subr.mxu0 0.0
        %1366 = vmatpush2.xpose.msra.mxu0 0.0
        %1367 = vmatprep.subr.mxu0 0.0
        %1368 = vmatpush2.xpose.msra.mxu0 0.0
        %1369 = vmatprep.subr.mxu0 0.0
        %1370 = vmatpush2.xpose.msra.mxu0 0.0
        %1371 = vmatprep.subr.mxu0 0.0
        %1372 = vmatpush2.xpose.msra.mxu0 0.0
        %1373 = vmatprep.subr.mxu0 0.0
        %1374 = vmatpush2.xpose.msra.mxu0 0.0
        %1375 = vmatprep.subr.mxu0 0.0
        %1376 = vmatpush2.xpose.msra.mxu0 0.0
        %1377 = vmatprep.subr.mxu0 0.0
        %1378 = vmatpush2.xpose.msra.mxu0 0.0
        %1379 = vmatprep.subr.mxu0 0.0
        %1380 = vmatpush2.xpose.msra.mxu0 0.0
        %1381 = vmatprep.subr.mxu0 0.0
        %1382 = vmatpush2.xpose.msra.mxu0 0.0
        %1383 = vmatprep.subr.mxu0 0.0
        %1384 = vmatpush2.xpose.msra.mxu0 0.0
        %1385 = vmatprep.subr.mxu0 0.0
        %1386 = vmatpush2.xpose.msra.mxu0 0.0
        %1387 = vmatprep.subr.mxu0 0.0
        %1388 = vmatpush2.xpose.msra.mxu0 0.0
        %1389 = vmatprep.subr.mxu0 0.0
        %1390 = vmatpush2.xpose.msra.mxu0 0.0
        %1391 = vmatprep.subr.mxu0 0.0
        %1392 = vmatpush2.xpose.msra.mxu0 0.0
        %1393 = vmatprep.subr.mxu0 0.0
        %1394 = vmatpush2.xpose.msra.mxu0 0.0
        %1395 = vmatprep.mubr.f32.mxu0 0.0
        %1396 = vmatmul.mubr.f32.gmra.mxu0 %v1247
        %v1397 = vpop.f32.mrf.mxu0
        %v1398 = vadd.f32 0.0, %v1397
        %v1399 = vpop.f32.mrf.mxu0
        %1400 = vdwg.mxu0
        %v1402 = vsel %vm1245, %v1233, 0
        %v1405 = vsel %vm1245, %v1234, 0
        %1407 = vmatprep.subr.mxu0 0.0
        %1408 = vmatpush1.xpose.msra.mxu0 0.0
        %1409 = vmatprep.subr.mxu0 0.0
        %1410 = vmatpush1.xpose.msra.mxu0 0.0
        %1411 = vmatprep.subr.mxu0 0.0
        %1412 = vmatpush1.xpose.msra.mxu0 0.0
        %1413 = vmatprep.subr.mxu0 0.0
        %1414 = vmatpush1.xpose.msra.mxu0 0.0
        %1415 = vmatprep.subr.mxu0 0.0
        %1416 = vmatpush1.xpose.msra.mxu0 0.0
        %1417 = vmatprep.subr.mxu0 0.0
        %1418 = vmatpush1.xpose.msra.mxu0 0.0
        %1419 = vmatprep.subr.mxu0 0.0
        %1420 = vmatpush1.xpose.msra.mxu0 0.0
        %1421 = vmatprep.subr.mxu0 0.0
        %1422 = vmatpush1.xpose.msra.mxu0 0.0
        %1423 = vmatprep.subr.mxu0 0.0
        %1424 = vmatpush1.xpose.msra.mxu0 0.0
        %1425 = vmatprep.subr.mxu0 0.0
        %1426 = vmatpush1.xpose.msra.mxu0 0.0
        %1427 = vmatprep.subr.mxu0 0.0
        %1428 = vmatpush1.xpose.msra.mxu0 0.0
        %1429 = vmatprep.subr.mxu0 0.0
        %1430 = vmatpush1.xpose.msra.mxu0 0.0
        %1431 = vmatprep.subr.mxu0 0.0
        %1432 = vmatpush1.xpose.msra.mxu0 0.0
        %1433 = vmatprep.subr.mxu0 0.0
        %1434 = vmatpush1.xpose.msra.mxu0 0.0
        %1435 = vmatprep.subr.mxu0 0.0
        %1436 = vmatpush1.xpose.msra.mxu0 %v1405
        %1437 = vmatprep.subr.mxu0 0.0
        %1438 = vmatpush1.xpose.msra.mxu0 %v1402
        %1439 = vmatprep.subr.mxu0 0.0
        %1440 = vmatpush2.xpose.msra.mxu0 0.0
        %1441 = vmatprep.subr.mxu0 0.0
        %1442 = vmatpush2.xpose.msra.mxu0 0.0
        %1443 = vmatprep.subr.mxu0 0.0
        %1444 = vmatpush2.xpose.msra.mxu0 0.0
        %1445 = vmatprep.subr.mxu0 0.0
        %1446 = vmatpush2.xpose.msra.mxu0 0.0
        %1447 = vmatprep.subr.mxu0 0.0
        %1448 = vmatpush2.xpose.msra.mxu0 0.0
        %1449 = vmatprep.subr.mxu0 0.0
        %1450 = vmatpush2.xpose.msra.mxu0 0.0
        %1451 = vmatprep.subr.mxu0 0.0
        %1452 = vmatpush2.xpose.msra.mxu0 0.0
        %1453 = vmatprep.subr.mxu0 0.0
        %1454 = vmatpush2.xpose.msra.mxu0 0.0
        %1455 = vmatprep.subr.mxu0 0.0
        %1456 = vmatpush2.xpose.msra.mxu0 0.0
        %1457 = vmatprep.subr.mxu0 0.0
        %1458 = vmatpush2.xpose.msra.mxu0 0.0
        %1459 = vmatprep.subr.mxu0 0.0
        %1460 = vmatpush2.xpose.msra.mxu0 0.0
        %1461 = vmatprep.subr.mxu0 0.0
        %1462 = vmatpush2.xpose.msra.mxu0 0.0
        %1463 = vmatprep.subr.mxu0 0.0
        %1464 = vmatpush2.xpose.msra.mxu0 0.0
        %1465 = vmatprep.subr.mxu0 0.0
        %1466 = vmatpush2.xpose.msra.mxu0 0.0
        %1467 = vmatprep.subr.mxu0 0.0
        %1468 = vmatpush2.xpose.msra.mxu0 0.0
        %1469 = vmatprep.subr.mxu0 0.0
        %1470 = vmatpush2.xpose.msra.mxu0 0.0
        %1471 = vmatprep.mubr.f32.mxu0 0.0
        %1472 = vmatmul.mubr.f32.gmra.mxu0 %v1247
        %v1473 = vpop.f32.mrf.mxu0
        %v1474 = vadd.f32 0.0, %v1473
        %v1475 = vpop.f32.mrf.mxu0
        %1476 = vdwg.mxu0
        %v1478 = vsel %vm1245, %v1235, 0
        %v1481 = vsel %vm1245, %v1236, 0
        %1483 = vmatprep.subr.mxu0 0.0
        %1484 = vmatpush1.xpose.msra.mxu0 0.0
        %1485 = vmatprep.subr.mxu0 0.0
        %1486 = vmatpush1.xpose.msra.mxu0 0.0
        %1487 = vmatprep.subr.mxu0 0.0
        %1488 = vmatpush1.xpose.msra.mxu0 0.0
        %1489 = vmatprep.subr.mxu0 0.0
        %1490 = vmatpush1.xpose.msra.mxu0 0.0
        %1491 = vmatprep.subr.mxu0 0.0
        %1492 = vmatpush1.xpose.msra.mxu0 0.0
        %1493 = vmatprep.subr.mxu0 0.0
        %1494 = vmatpush1.xpose.msra.mxu0 0.0
        %1495 = vmatprep.subr.mxu0 0.0
        %1496 = vmatpush1.xpose.msra.mxu0 0.0
        %1497 = vmatprep.subr.mxu0 0.0
        %1498 = vmatpush1.xpose.msra.mxu0 0.0
        %1499 = vmatprep.subr.mxu0 0.0
        %1500 = vmatpush1.xpose.msra.mxu0 0.0
        %1501 = vmatprep.subr.mxu0 0.0
        %1502 = vmatpush1.xpose.msra.mxu0 0.0
        %1503 = vmatprep.subr.mxu0 0.0
        %1504 = vmatpush1.xpose.msra.mxu0 0.0
        %1505 = vmatprep.subr.mxu0 0.0
        %1506 = vmatpush1.xpose.msra.mxu0 0.0
        %1507 = vmatprep.subr.mxu0 0.0
        %1508 = vmatpush1.xpose.msra.mxu0 0.0
        %1509 = vmatprep.subr.mxu0 0.0
        %1510 = vmatpush1.xpose.msra.mxu0 0.0
        %1511 = vmatprep.subr.mxu0 0.0
        %1512 = vmatpush1.xpose.msra.mxu0 %v1481
        %1513 = vmatprep.subr.mxu0 0.0
        %1514 = vmatpush1.xpose.msra.mxu0 %v1478
        %1515 = vmatprep.subr.mxu0 0.0
        %1516 = vmatpush2.xpose.msra.mxu0 0.0
        %1517 = vmatprep.subr.mxu0 0.0
        %1518 = vmatpush2.xpose.msra.mxu0 0.0
        %1519 = vmatprep.subr.mxu0 0.0
        %1520 = vmatpush2.xpose.msra.mxu0 0.0
        %1521 = vmatprep.subr.mxu0 0.0
        %1522 = vmatpush2.xpose.msra.mxu0 0.0
        %1523 = vmatprep.subr.mxu0 0.0
        %1524 = vmatpush2.xpose.msra.mxu0 0.0
        %1525 = vmatprep.subr.mxu0 0.0
        %1526 = vmatpush2.xpose.msra.mxu0 0.0
        %1527 = vmatprep.subr.mxu0 0.0
        %1528 = vmatpush2.xpose.msra.mxu0 0.0
        %1529 = vmatprep.subr.mxu0 0.0
        %1530 = vmatpush2.xpose.msra.mxu0 0.0
        %1531 = vmatprep.subr.mxu0 0.0
        %1532 = vmatpush2.xpose.msra.mxu0 0.0
        %1533 = vmatprep.subr.mxu0 0.0
        %1534 = vmatpush2.xpose.msra.mxu0 0.0
        %1535 = vmatprep.subr.mxu0 0.0
        %1536 = vmatpush2.xpose.msra.mxu0 0.0
        %1537 = vmatprep.subr.mxu0 0.0
        %1538 = vmatpush2.xpose.msra.mxu0 0.0
        %1539 = vmatprep.subr.mxu0 0.0
        %1540 = vmatpush2.xpose.msra.mxu0 0.0
        %1541 = vmatprep.subr.mxu0 0.0
        %1542 = vmatpush2.xpose.msra.mxu0 0.0
        %1543 = vmatprep.subr.mxu0 0.0
        %1544 = vmatpush2.xpose.msra.mxu0 0.0
        %1545 = vmatprep.subr.mxu0 0.0
        %1546 = vmatpush2.xpose.msra.mxu0 0.0
        %1547 = vmatprep.mubr.f32.mxu0 0.0
        %1548 = vmatmul.mubr.f32.gmra.mxu0 %v1247
        %v1549 = vpop.f32.mrf.mxu0
        %v1550 = vadd.f32 0.0, %v1549
        %v1551 = vpop.f32.mrf.mxu0
        %1552 = vdwg.mxu0
        %v1554 = vsel %vm1245, %v1237, 0
        %v1557 = vsel %vm1245, %v1238, 0
        %1559 = vmatprep.subr.mxu0 0.0
        %1560 = vmatpush1.xpose.msra.mxu0 0.0
        %1561 = vmatprep.subr.mxu0 0.0
        %1562 = vmatpush1.xpose.msra.mxu0 0.0
        %1563 = vmatprep.subr.mxu0 0.0
        %1564 = vmatpush1.xpose.msra.mxu0 0.0
        %1565 = vmatprep.subr.mxu0 0.0
        %1566 = vmatpush1.xpose.msra.mxu0 0.0
        %1567 = vmatprep.subr.mxu0 0.0
        %1568 = vmatpush1.xpose.msra.mxu0 0.0
        %1569 = vmatprep.subr.mxu0 0.0
        %1570 = vmatpush1.xpose.msra.mxu0 0.0
        %1571 = vmatprep.subr.mxu0 0.0
        %1572 = vmatpush1.xpose.msra.mxu0 0.0
        %1573 = vmatprep.subr.mxu0 0.0
        %1574 = vmatpush1.xpose.msra.mxu0 0.0
        %1575 = vmatprep.subr.mxu0 0.0
        %1576 = vmatpush1.xpose.msra.mxu0 0.0
        %1577 = vmatprep.subr.mxu0 0.0
        %1578 = vmatpush1.xpose.msra.mxu0 0.0
        %1579 = vmatprep.subr.mxu0 0.0
        %1580 = vmatpush1.xpose.msra.mxu0 0.0
        %1581 = vmatprep.subr.mxu0 0.0
        %1582 = vmatpush1.xpose.msra.mxu0 0.0
        %1583 = vmatprep.subr.mxu0 0.0
        %1584 = vmatpush1.xpose.msra.mxu0 0.0
        %1585 = vmatprep.subr.mxu0 0.0
        %1586 = vmatpush1.xpose.msra.mxu0 0.0
        %1587 = vmatprep.subr.mxu0 0.0
        %1588 = vmatpush1.xpose.msra.mxu0 %v1557
        %1589 = vmatprep.subr.mxu0 0.0
        %1590 = vmatpush1.xpose.msra.mxu0 %v1554
        %1591 = vmatprep.subr.mxu0 0.0
        %1592 = vmatpush2.xpose.msra.mxu0 0.0
        %1593 = vmatprep.subr.mxu0 0.0
        %1594 = vmatpush2.xpose.msra.mxu0 0.0
        %1595 = vmatprep.subr.mxu0 0.0
        %1596 = vmatpush2.xpose.msra.mxu0 0.0
        %1597 = vmatprep.subr.mxu0 0.0
        %1598 = vmatpush2.xpose.msra.mxu0 0.0
        %1599 = vmatprep.subr.mxu0 0.0
        %1600 = vmatpush2.xpose.msra.mxu0 0.0
        %1601 = vmatprep.subr.mxu0 0.0
        %1602 = vmatpush2.xpose.msra.mxu0 0.0
        %1603 = vmatprep.subr.mxu0 0.0
        %1604 = vmatpush2.xpose.msra.mxu0 0.0
        %1605 = vmatprep.subr.mxu0 0.0
        %1606 = vmatpush2.xpose.msra.mxu0 0.0
        %1607 = vmatprep.subr.mxu0 0.0
        %1608 = vmatpush2.xpose.msra.mxu0 0.0
        %1609 = vmatprep.subr.mxu0 0.0
        %1610 = vmatpush2.xpose.msra.mxu0 0.0
        %1611 = vmatprep.subr.mxu0 0.0
        %1612 = vmatpush2.xpose.msra.mxu0 0.0
        %1613 = vmatprep.subr.mxu0 0.0
        %1614 = vmatpush2.xpose.msra.mxu0 0.0
        %1615 = vmatprep.subr.mxu0 0.0
        %1616 = vmatpush2.xpose.msra.mxu0 0.0
        %1617 = vmatprep.subr.mxu0 0.0
        %1618 = vmatpush2.xpose.msra.mxu0 0.0
        %1619 = vmatprep.subr.mxu0 0.0
        %1620 = vmatpush2.xpose.msra.mxu0 0.0
        %1621 = vmatprep.subr.mxu0 0.0
        %1622 = vmatpush2.xpose.msra.mxu0 0.0
        %1623 = vmatprep.mubr.f32.mxu0 0.0
        %1624 = vmatmul.mubr.f32.gmra.mxu0 %v1247
        %v1625 = vpop.f32.mrf.mxu0
        %v1626 = vadd.f32 0.0, %v1625
        %v1627 = vpop.f32.mrf.mxu0
        %1628 = vdwg.mxu0
        %v1630 = vsel %vm1245, %v1239, 0
        %v1633 = vsel %vm1245, %v1240, 0
        %1635 = vmatprep.subr.mxu0 0.0
        %1636 = vmatpush1.xpose.msra.mxu0 0.0
        %1637 = vmatprep.subr.mxu0 0.0
        %1638 = vmatpush1.xpose.msra.mxu0 0.0
        %1639 = vmatprep.subr.mxu0 0.0
        %1640 = vmatpush1.xpose.msra.mxu0 0.0
        %1641 = vmatprep.subr.mxu0 0.0
        %1642 = vmatpush1.xpose.msra.mxu0 0.0
        %1643 = vmatprep.subr.mxu0 0.0
        %1644 = vmatpush1.xpose.msra.mxu0 0.0
        %1645 = vmatprep.subr.mxu0 0.0
        %1646 = vmatpush1.xpose.msra.mxu0 0.0
        %1647 = vmatprep.subr.mxu0 0.0
        %1648 = vmatpush1.xpose.msra.mxu0 0.0
        %1649 = vmatprep.subr.mxu0 0.0
        %1650 = vmatpush1.xpose.msra.mxu0 0.0
        %1651 = vmatprep.subr.mxu0 0.0
        %1652 = vmatpush1.xpose.msra.mxu0 0.0
        %1653 = vmatprep.subr.mxu0 0.0
        %1654 = vmatpush1.xpose.msra.mxu0 0.0
        %1655 = vmatprep.subr.mxu0 0.0
        %1656 = vmatpush1.xpose.msra.mxu0 0.0
        %1657 = vmatprep.subr.mxu0 0.0
        %1658 = vmatpush1.xpose.msra.mxu0 0.0
        %1659 = vmatprep.subr.mxu0 0.0
        %1660 = vmatpush1.xpose.msra.mxu0 0.0
        %1661 = vmatprep.subr.mxu0 0.0
        %1662 = vmatpush1.xpose.msra.mxu0 0.0
        %1663 = vmatprep.subr.mxu0 0.0
        %1664 = vmatpush1.xpose.msra.mxu0 %v1633
        %1665 = vmatprep.subr.mxu0 0.0
        %1666 = vmatpush1.xpose.msra.mxu0 %v1630
        %1667 = vmatprep.subr.mxu0 0.0
        %1668 = vmatpush2.xpose.msra.mxu0 0.0
        %1669 = vmatprep.subr.mxu0 0.0
        %1670 = vmatpush2.xpose.msra.mxu0 0.0
        %1671 = vmatprep.subr.mxu0 0.0
        %1672 = vmatpush2.xpose.msra.mxu0 0.0
        %1673 = vmatprep.subr.mxu0 0.0
        %1674 = vmatpush2.xpose.msra.mxu0 0.0
        %1675 = vmatprep.subr.mxu0 0.0
        %1676 = vmatpush2.xpose.msra.mxu0 0.0
        %1677 = vmatprep.subr.mxu0 0.0
        %1678 = vmatpush2.xpose.msra.mxu0 0.0
        %1679 = vmatprep.subr.mxu0 0.0
        %1680 = vmatpush2.xpose.msra.mxu0 0.0
        %1681 = vmatprep.subr.mxu0 0.0
        %1682 = vmatpush2.xpose.msra.mxu0 0.0
        %1683 = vmatprep.subr.mxu0 0.0
        %1684 = vmatpush2.xpose.msra.mxu0 0.0
        %1685 = vmatprep.subr.mxu0 0.0
        %1686 = vmatpush2.xpose.msra.mxu0 0.0
        %1687 = vmatprep.subr.mxu0 0.0
        %1688 = vmatpush2.xpose.msra.mxu0 0.0
        %1689 = vmatprep.subr.mxu0 0.0
        %1690 = vmatpush2.xpose.msra.mxu0 0.0
        %1691 = vmatprep.subr.mxu0 0.0
        %1692 = vmatpush2.xpose.msra.mxu0 0.0
        %1693 = vmatprep.subr.mxu0 0.0
        %1694 = vmatpush2.xpose.msra.mxu0 0.0
        %1695 = vmatprep.subr.mxu0 0.0
        %1696 = vmatpush2.xpose.msra.mxu0 0.0
        %1697 = vmatprep.subr.mxu0 0.0
        %1698 = vmatpush2.xpose.msra.mxu0 0.0
        %1699 = vmatprep.mubr.f32.mxu0 0.0
        %1700 = vmatmul.mubr.f32.gmra.mxu0 %v1247
        %v1701 = vpop.f32.mrf.mxu0
        %v1702 = vadd.f32 0.0, %v1701
        %v1703 = vpop.f32.mrf.mxu0
        %1704 = vdwg.mxu0
        %v1706 = vsel %vm1245, %v1241, 0
        %v1709 = vsel %vm1245, %v1242, 0
        %1711 = vmatprep.subr.mxu0 0.0
        %1712 = vmatpush1.xpose.msra.mxu0 0.0
        %1713 = vmatprep.subr.mxu0 0.0
        %1714 = vmatpush1.xpose.msra.mxu0 0.0
        %1715 = vmatprep.subr.mxu0 0.0
        %1716 = vmatpush1.xpose.msra.mxu0 0.0
        %1717 = vmatprep.subr.mxu0 0.0
        %1718 = vmatpush1.xpose.msra.mxu0 0.0
        %1719 = vmatprep.subr.mxu0 0.0
        %1720 = vmatpush1.xpose.msra.mxu0 0.0
        %1721 = vmatprep.subr.mxu0 0.0
        %1722 = vmatpush1.xpose.msra.mxu0 0.0
        %1723 = vmatprep.subr.mxu0 0.0
        %1724 = vmatpush1.xpose.msra.mxu0 0.0
        %1725 = vmatprep.subr.mxu0 0.0
        %1726 = vmatpush1.xpose.msra.mxu0 0.0
        %1727 = vmatprep.subr.mxu0 0.0
        %1728 = vmatpush1.xpose.msra.mxu0 0.0
        %1729 = vmatprep.subr.mxu0 0.0
        %1730 = vmatpush1.xpose.msra.mxu0 0.0
        %1731 = vmatprep.subr.mxu0 0.0
        %1732 = vmatpush1.xpose.msra.mxu0 0.0
        %1733 = vmatprep.subr.mxu0 0.0
        %1734 = vmatpush1.xpose.msra.mxu0 0.0
        %1735 = vmatprep.subr.mxu0 0.0
        %1736 = vmatpush1.xpose.msra.mxu0 0.0
        %1737 = vmatprep.subr.mxu0 0.0
        %1738 = vmatpush1.xpose.msra.mxu0 0.0
        %1739 = vmatprep.subr.mxu0 0.0
        %1740 = vmatpush1.xpose.msra.mxu0 %v1709
        %1741 = vmatprep.subr.mxu0 0.0
        %1742 = vmatpush1.xpose.msra.mxu0 %v1706
        %1743 = vmatprep.subr.mxu0 0.0
        %1744 = vmatpush2.xpose.msra.mxu0 0.0
        %1745 = vmatprep.subr.mxu0 0.0
        %1746 = vmatpush2.xpose.msra.mxu0 0.0
        %1747 = vmatprep.subr.mxu0 0.0
        %1748 = vmatpush2.xpose.msra.mxu0 0.0
        %1749 = vmatprep.subr.mxu0 0.0
        %1750 = vmatpush2.xpose.msra.mxu0 0.0
        %1751 = vmatprep.subr.mxu0 0.0
        %1752 = vmatpush2.xpose.msra.mxu0 0.0
        %1753 = vmatprep.subr.mxu0 0.0
        %1754 = vmatpush2.xpose.msra.mxu0 0.0
        %1755 = vmatprep.subr.mxu0 0.0
        %1756 = vmatpush2.xpose.msra.mxu0 0.0
        %1757 = vmatprep.subr.mxu0 0.0
        %1758 = vmatpush2.xpose.msra.mxu0 0.0
        %1759 = vmatprep.subr.mxu0 0.0
        %1760 = vmatpush2.xpose.msra.mxu0 0.0
        %1761 = vmatprep.subr.mxu0 0.0
        %1762 = vmatpush2.xpose.msra.mxu0 0.0
        %1763 = vmatprep.subr.mxu0 0.0
        %1764 = vmatpush2.xpose.msra.mxu0 0.0
        %1765 = vmatprep.subr.mxu0 0.0
        %1766 = vmatpush2.xpose.msra.mxu0 0.0
        %1767 = vmatprep.subr.mxu0 0.0
        %1768 = vmatpush2.xpose.msra.mxu0 0.0
        %1769 = vmatprep.subr.mxu0 0.0
        %1770 = vmatpush2.xpose.msra.mxu0 0.0
        %1771 = vmatprep.subr.mxu0 0.0
        %1772 = vmatpush2.xpose.msra.mxu0 0.0
        %1773 = vmatprep.subr.mxu0 0.0
        %1774 = vmatpush2.xpose.msra.mxu0 0.0
        %1775 = vmatprep.mubr.f32.mxu0 0.0
        %1776 = vmatmul.mubr.f32.gmra.mxu0 %v1247
        %v1777 = vpop.f32.mrf.mxu0
        %v1778 = vadd.f32 0.0, %v1777
        %v1779 = vpop.f32.mrf.mxu0
        %1780 = vdwg.mxu0
        %v1782 = vsel %vm1245, %v1243, 0
        %v1785 = vsel %vm1245, %v1244, 0
        %1787 = vmatprep.subr.mxu0 0.0
        %1788 = vmatpush1.xpose.msra.mxu0 0.0
        %1789 = vmatprep.subr.mxu0 0.0
        %1790 = vmatpush1.xpose.msra.mxu0 0.0
        %1791 = vmatprep.subr.mxu0 0.0
        %1792 = vmatpush1.xpose.msra.mxu0 0.0
        %1793 = vmatprep.subr.mxu0 0.0
        %1794 = vmatpush1.xpose.msra.mxu0 0.0
        %1795 = vmatprep.subr.mxu0 0.0
        %1796 = vmatpush1.xpose.msra.mxu0 0.0
        %1797 = vmatprep.subr.mxu0 0.0
        %1798 = vmatpush1.xpose.msra.mxu0 0.0
        %1799 = vmatprep.subr.mxu0 0.0
        %1800 = vmatpush1.xpose.msra.mxu0 0.0
        %1801 = vmatprep.subr.mxu0 0.0
        %1802 = vmatpush1.xpose.msra.mxu0 0.0
        %1803 = vmatprep.subr.mxu0 0.0
        %1804 = vmatpush1.xpose.msra.mxu0 0.0
        %1805 = vmatprep.subr.mxu0 0.0
        %1806 = vmatpush1.xpose.msra.mxu0 0.0
        %1807 = vmatprep.subr.mxu0 0.0
        %1808 = vmatpush1.xpose.msra.mxu0 0.0
        %1809 = vmatprep.subr.mxu0 0.0
        %1810 = vmatpush1.xpose.msra.mxu0 0.0
        %1811 = vmatprep.subr.mxu0 0.0
        %1812 = vmatpush1.xpose.msra.mxu0 0.0
        %1813 = vmatprep.subr.mxu0 0.0
        %1814 = vmatpush1.xpose.msra.mxu0 0.0
        %1815 = vmatprep.subr.mxu0 0.0
        %1816 = vmatpush1.xpose.msra.mxu0 %v1785
        %1817 = vmatprep.subr.mxu0 0.0
        %1818 = vmatpush1.xpose.msra.mxu0 %v1782
        %1819 = vmatprep.subr.mxu0 0.0
        %1820 = vmatpush2.xpose.msra.mxu0 0.0
        %1821 = vmatprep.subr.mxu0 0.0
        %1822 = vmatpush2.xpose.msra.mxu0 0.0
        %1823 = vmatprep.subr.mxu0 0.0
        %1824 = vmatpush2.xpose.msra.mxu0 0.0
        %1825 = vmatprep.subr.mxu0 0.0
        %1826 = vmatpush2.xpose.msra.mxu0 0.0
        %1827 = vmatprep.subr.mxu0 0.0
        %1828 = vmatpush2.xpose.msra.mxu0 0.0
        %1829 = vmatprep.subr.mxu0 0.0
        %1830 = vmatpush2.xpose.msra.mxu0 0.0
        %1831 = vmatprep.subr.mxu0 0.0
        %1832 = vmatpush2.xpose.msra.mxu0 0.0
        %1833 = vmatprep.subr.mxu0 0.0
        %1834 = vmatpush2.xpose.msra.mxu0 0.0
        %1835 = vmatprep.subr.mxu0 0.0
        %1836 = vmatpush2.xpose.msra.mxu0 0.0
        %1837 = vmatprep.subr.mxu0 0.0
        %1838 = vmatpush2.xpose.msra.mxu0 0.0
        %1839 = vmatprep.subr.mxu0 0.0
        %1840 = vmatpush2.xpose.msra.mxu0 0.0
        %1841 = vmatprep.subr.mxu0 0.0
        %1842 = vmatpush2.xpose.msra.mxu0 0.0
        %1843 = vmatprep.subr.mxu0 0.0
        %1844 = vmatpush2.xpose.msra.mxu0 0.0
        %1845 = vmatprep.subr.mxu0 0.0
        %1846 = vmatpush2.xpose.msra.mxu0 0.0
        %1847 = vmatprep.subr.mxu0 0.0
        %1848 = vmatpush2.xpose.msra.mxu0 0.0
        %1849 = vmatprep.subr.mxu0 0.0
        %1850 = vmatpush2.xpose.msra.mxu0 0.0
        %1851 = vmatprep.mubr.f32.mxu0 0.0
        %1852 = vmatmul.mubr.f32.gmra.mxu0 %v1247
        %v1853 = vpop.f32.mrf.mxu0
        %v1854 = vadd.f32 0.0, %v1853
        %v1855 = vpop.f32.mrf.mxu0
        %1856 = vdwg.mxu0
        %v1857 = vcombine.low %v1322, %v1474
        %v1859 = vunpack.c.l.s4 1983009808
        %v1860 = vunpack.c.0.s8 %v1859
        %v1861 = vlaneseq
        %v1862 = vshrl.u32 %v1861, 7
        %v1863 = vsub.s32 %v1860, %v1862
        %v1864 = vrot.slane %v1857, %v1863
        %v1865 = vcombine.low %v1398, %v1550
        %v1867 = vunpack.c.l.s4 1983009808
        %v1868 = vunpack.c.0.s8 %v1867
        %v1869 = vlaneseq
        %v1870 = vshrl.u32 %v1869, 7
        %v1871 = vsub.s32 %v1868, %v1870
        %v1872 = vrot.slane %v1865, %v1871
        %v1873 = vcombine.low %v1626, %v1778
        %v1875 = vunpack.c.l.s4 1983009808
        %v1876 = vunpack.c.0.s8 %v1875
        %v1877 = vlaneseq
        %v1878 = vshrl.u32 %v1877, 7
        %v1879 = vsub.s32 %v1876, %v1878
        %v1880 = vrot.slane %v1873, %v1879
        %v1881 = vcombine.low %v1702, %v1854
        %v1883 = vunpack.c.l.s4 1983009808
        %v1884 = vunpack.c.0.s8 %v1883
        %v1885 = vlaneseq
        %v1886 = vshrl.u32 %v1885, 7
        %v1887 = vsub.s32 %v1884, %v1886
        %v1888 = vrot.slane %v1881, %v1887
        %v1889 = vcombine.low %v1864, %v1872
        %v1890 = vcombine.high %v1864, %v1872
        %v1892 = vunpack.c.l.s4 1934713408
        %v1893 = vunpack.c.0.s8 %v1892
        %v1894 = vlaneseq
        %v1895 = vshrl.u32 %v1894, 7
        %v1896 = vsub.s32 %v1893, %v1895
        %v1897 = vrot.slane %v1889, %v1896
        %v1899 = vunpack.c.l.s4 1934713408
        %v1900 = vunpack.c.0.s8 %v1899
        %v1901 = vlaneseq
        %v1902 = vshrl.u32 %v1901, 7
        %v1903 = vsub.s32 %v1900, %v1902
        %v1904 = vrot.slane %v1890, %v1903
        %v1905 = vcombine.low %v1880, %v1888
        %v1906 = vcombine.high %v1880, %v1888
        %v1908 = vunpack.c.l.s4 1934713408
        %v1909 = vunpack.c.0.s8 %v1908
        %v1910 = vlaneseq
        %v1911 = vshrl.u32 %v1910, 7
        %v1912 = vsub.s32 %v1909, %v1911
        %v1913 = vrot.slane %v1905, %v1912
        %v1915 = vunpack.c.l.s4 1934713408
        %v1916 = vunpack.c.0.s8 %v1915
        %v1917 = vlaneseq
        %v1918 = vshrl.u32 %v1917, 7
        %v1919 = vsub.s32 %v1916, %v1918
        %v1920 = vrot.slane %v1906, %v1919
        %v1921 = vcombine.low %v1897, %v1913
        %v1922 = vcombine.high %v1897, %v1913
        %v1923 = vcombine.low %v1904, %v1920
        %v1924 = vcombine.high %v1904, %v1920
        %1926 = vrot.lane.b32.xlu0 %v1922, 16
        %v1927 = vpop.permute.xlu0 %1926
        %1930 = vrot.lane.b32.xlu0 %v1923, 32
        %v1931 = vpop.permute.xlu0 %1930
        %1934 = vrot.lane.b32.xlu0 %v1924, 48
        %v1935 = vpop.permute.xlu0 %1934
        %vm1937 = vcmask 130048
        %v1938 = vsel %vm1937, %v1921, %v1927
        %vm1939 = vcmask 261120
        %v1940 = vsel %vm1939, %v1938, %v1931
        %vm1941 = vcmask 392192
        %v1942 = vsel %vm1941, %v1940, %v1935
        %v1943 = vlaneseq
        %v1944 = vshrl.u32 %v1943, 7
        %v1945 = vsub.s32 0, %v1944
        %v1946 = vrot.slane %v698, %v1945
        %1948 = vbcast.lane.b32.xlu0 %v1946, 256
        %v1949 = vpop.permute.xlu0 %1948
        %v1950 = vlaneseq
        %v1951 = vshrl.u32 %v1950, 7
        %v1952 = vsub.s32 1, %v1951
        %v1953 = vrot.slane %v698, %v1952
        %1955 = vbcast.lane.b32.xlu0 %v1953, 256
        %v1956 = vpop.permute.xlu0 %1955
        %v1957 = vlaneseq
        %v1958 = vshrl.u32 %v1957, 7
        %v1959 = vsub.s32 2, %v1958
        %v1960 = vrot.slane %v698, %v1959
        %1962 = vbcast.lane.b32.xlu0 %v1960, 256
        %v1963 = vpop.permute.xlu0 %1962
        %v1964 = vlaneseq
        %v1965 = vshrl.u32 %v1964, 7
        %v1966 = vsub.s32 3, %v1965
        %v1967 = vrot.slane %v698, %v1966
        %1969 = vbcast.lane.b32.xlu0 %v1967, 256
        %v1970 = vpop.permute.xlu0 %1969
        %v1971 = vlaneseq
        %v1972 = vshrl.u32 %v1971, 7
        %v1973 = vsub.s32 4, %v1972
        %v1974 = vrot.slane %v698, %v1973
        %1976 = vbcast.lane.b32.xlu0 %v1974, 256
        %v1977 = vpop.permute.xlu0 %1976
        %v1978 = vlaneseq
        %v1979 = vshrl.u32 %v1978, 7
        %v1980 = vsub.s32 5, %v1979
        %v1981 = vrot.slane %v698, %v1980
        %1983 = vbcast.lane.b32.xlu0 %v1981, 256
        %v1984 = vpop.permute.xlu0 %1983
        %v1985 = vlaneseq
        %v1986 = vshrl.u32 %v1985, 7
        %v1987 = vsub.s32 6, %v1986
        %v1988 = vrot.slane %v698, %v1987
        %1990 = vbcast.lane.b32.xlu0 %v1988, 256
        %v1991 = vpop.permute.xlu0 %1990
        %v1992 = vlaneseq
        %v1993 = vshrl.u32 %v1992, 7
        %v1994 = vsub.s32 7, %v1993
        %v1995 = vrot.slane %v698, %v1994
        %1997 = vbcast.lane.b32.xlu0 %v1995, 256
        %v1998 = vpop.permute.xlu0 %1997
        %v2000 = vcombine.high %v698, %v698
        %v2002 = vunpack.c.l.s4 1966171168
        %v2003 = vunpack.c.0.s8 %v2002
        %v2004 = vlaneseq
        %v2005 = vshrl.u32 %v2004, 7
        %v2006 = vsub.s32 %v2003, %v2005
        %v2007 = vrot.slane %v698, %v2006
        %v2009 = vunpack.c.l.s4 1966171168
        %v2010 = vunpack.c.0.s8 %v2009
        %v2011 = vlaneseq
        %v2012 = vshrl.u32 %v2011, 7
        %v2013 = vsub.s32 %v2010, %v2012
        %v2014 = vrot.slane %v2000, %v2013
        %v2015 = vcombine.high %v2007, %v2007
        %v2016 = vcombine.high %v2014, %v2014
        %v2018 = vunpack.c.l.s4 1966171168
        %v2019 = vunpack.c.0.s8 %v2018
        %v2020 = vlaneseq
        %v2021 = vshrl.u32 %v2020, 7
        %v2022 = vsub.s32 %v2019, %v2021
        %v2023 = vrot.slane %v2007, %v2022
        %v2025 = vunpack.c.l.s4 1966171168
        %v2026 = vunpack.c.0.s8 %v2025
        %v2027 = vlaneseq
        %v2028 = vshrl.u32 %v2027, 7
        %v2029 = vsub.s32 %v2026, %v2028
        %v2030 = vrot.slane %v2014, %v2029
        %v2032 = vunpack.c.l.s4 1966171168
        %v2033 = vunpack.c.0.s8 %v2032
        %v2034 = vlaneseq
        %v2035 = vshrl.u32 %v2034, 7
        %v2036 = vsub.s32 %v2033, %v2035
        %v2037 = vrot.slane %v2015, %v2036
        %v2039 = vunpack.c.l.s4 1966171168
        %v2040 = vunpack.c.0.s8 %v2039
        %v2041 = vlaneseq
        %v2042 = vshrl.u32 %v2041, 7
        %v2043 = vsub.s32 %v2040, %v2042
        %v2044 = vrot.slane %v2016, %v2043
        %v2045 = vcombine.high %v2023, %v2023
        %v2046 = vcombine.high %v2030, %v2030
        %v2047 = vcombine.high %v2037, %v2037
        %v2048 = vcombine.high %v2044, %v2044
        %v2049 = vlaneseq
        %v2050 = vshrl.u32 %v2049, 7
        %v2051 = vsub.s32 0, %v2050
        %v2052 = vrot.slane %v2023, %v2051
        %v2053 = vlaneseq
        %v2054 = vshrl.u32 %v2053, 7
        %v2055 = vsub.s32 0, %v2054
        %v2056 = vrot.slane %v2037, %v2055
        %v2057 = vlaneseq
        %v2058 = vshrl.u32 %v2057, 7
        %v2059 = vsub.s32 0, %v2058
        %v2060 = vrot.slane %v2045, %v2059
        %v2061 = vlaneseq
        %v2062 = vshrl.u32 %v2061, 7
        %v2063 = vsub.s32 0, %v2062
        %v2064 = vrot.slane %v2047, %v2063
        %v2065 = vlaneseq
        %v2066 = vshrl.u32 %v2065, 7
        %v2067 = vsub.s32 0, %v2066
        %v2068 = vrot.slane %v2030, %v2067
        %v2069 = vlaneseq
        %v2070 = vshrl.u32 %v2069, 7
        %v2071 = vsub.s32 0, %v2070
        %v2072 = vrot.slane %v2044, %v2071
        %v2073 = vlaneseq
        %v2074 = vshrl.u32 %v2073, 7
        %v2075 = vsub.s32 0, %v2074
        %v2076 = vrot.slane %v2046, %v2075
        %v2077 = vlaneseq
        %v2078 = vshrl.u32 %v2077, 7
        %v2079 = vsub.s32 0, %v2078
        %v2080 = vrot.slane %v2048, %v2079
        %v2089 = vmul.f32 %v1949, %v2052
        %v2090 = vmul.f32 %v1956, %v2056
        %v2091 = vmul.f32 %v1963, %v2060
        %v2092 = vmul.f32 %v1970, %v2064
        %v2093 = vmul.f32 %v1977, %v2068
        %v2094 = vmul.f32 %v1984, %v2072
        %v2095 = vmul.f32 %v1991, %v2076
        %v2096 = vmul.f32 %v1998, %v2080
        %v2097 = vlaneseq
        %v2098 = vshrl.u32 %v2097, 7
        %v2099 = vsub.s32 0, %v2098
        %v2100 = vrot.slane %v707, %v2099
        %2102 = vbcast.lane.b32.xlu0 %v2100, 256
        %v2103 = vpop.permute.xlu0 %2102
        %v2104 = vlaneseq
        %v2105 = vshrl.u32 %v2104, 7
        %v2106 = vsub.s32 1, %v2105
        %v2107 = vrot.slane %v707, %v2106
        %2109 = vbcast.lane.b32.xlu0 %v2107, 256
        %v2110 = vpop.permute.xlu0 %2109
        %v2111 = vlaneseq
        %v2112 = vshrl.u32 %v2111, 7
        %v2113 = vsub.s32 2, %v2112
        %v2114 = vrot.slane %v707, %v2113
        %2116 = vbcast.lane.b32.xlu0 %v2114, 256
        %v2117 = vpop.permute.xlu0 %2116
        %v2118 = vlaneseq
        %v2119 = vshrl.u32 %v2118, 7
        %v2120 = vsub.s32 3, %v2119
        %v2121 = vrot.slane %v707, %v2120
        %2123 = vbcast.lane.b32.xlu0 %v2121, 256
        %v2124 = vpop.permute.xlu0 %2123
        %v2125 = vlaneseq
        %v2126 = vshrl.u32 %v2125, 7
        %v2127 = vsub.s32 4, %v2126
        %v2128 = vrot.slane %v707, %v2127
        %2130 = vbcast.lane.b32.xlu0 %v2128, 256
        %v2131 = vpop.permute.xlu0 %2130
        %v2132 = vlaneseq
        %v2133 = vshrl.u32 %v2132, 7
        %v2134 = vsub.s32 5, %v2133
        %v2135 = vrot.slane %v707, %v2134
        %2137 = vbcast.lane.b32.xlu0 %v2135, 256
        %v2138 = vpop.permute.xlu0 %2137
        %v2139 = vlaneseq
        %v2140 = vshrl.u32 %v2139, 7
        %v2141 = vsub.s32 6, %v2140
        %v2142 = vrot.slane %v707, %v2141
        %2144 = vbcast.lane.b32.xlu0 %v2142, 256
        %v2145 = vpop.permute.xlu0 %2144
        %v2146 = vlaneseq
        %v2147 = vshrl.u32 %v2146, 7
        %v2148 = vsub.s32 7, %v2147
        %v2149 = vrot.slane %v707, %v2148
        %2151 = vbcast.lane.b32.xlu0 %v2149, 256
        %v2152 = vpop.permute.xlu0 %2151
        %v2154 = vcombine.high %v707, %v707
        %v2156 = vunpack.c.l.s4 1966171168
        %v2157 = vunpack.c.0.s8 %v2156
        %v2158 = vlaneseq
        %v2159 = vshrl.u32 %v2158, 7
        %v2160 = vsub.s32 %v2157, %v2159
        %v2161 = vrot.slane %v707, %v2160
        %v2163 = vunpack.c.l.s4 1966171168
        %v2164 = vunpack.c.0.s8 %v2163
        %v2165 = vlaneseq
        %v2166 = vshrl.u32 %v2165, 7
        %v2167 = vsub.s32 %v2164, %v2166
        %v2168 = vrot.slane %v2154, %v2167
        %v2169 = vcombine.high %v2161, %v2161
        %v2170 = vcombine.high %v2168, %v2168
        %v2172 = vunpack.c.l.s4 1966171168
        %v2173 = vunpack.c.0.s8 %v2172
        %v2174 = vlaneseq
        %v2175 = vshrl.u32 %v2174, 7
        %v2176 = vsub.s32 %v2173, %v2175
        %v2177 = vrot.slane %v2161, %v2176
        %v2179 = vunpack.c.l.s4 1966171168
        %v2180 = vunpack.c.0.s8 %v2179
        %v2181 = vlaneseq
        %v2182 = vshrl.u32 %v2181, 7
        %v2183 = vsub.s32 %v2180, %v2182
        %v2184 = vrot.slane %v2168, %v2183
        %v2186 = vunpack.c.l.s4 1966171168
        %v2187 = vunpack.c.0.s8 %v2186
        %v2188 = vlaneseq
        %v2189 = vshrl.u32 %v2188, 7
        %v2190 = vsub.s32 %v2187, %v2189
        %v2191 = vrot.slane %v2169, %v2190
        %v2193 = vunpack.c.l.s4 1966171168
        %v2194 = vunpack.c.0.s8 %v2193
        %v2195 = vlaneseq
        %v2196 = vshrl.u32 %v2195, 7
        %v2197 = vsub.s32 %v2194, %v2196
        %v2198 = vrot.slane %v2170, %v2197
        %v2199 = vcombine.high %v2177, %v2177
        %v2200 = vcombine.high %v2184, %v2184
        %v2201 = vcombine.high %v2191, %v2191
        %v2202 = vcombine.high %v2198, %v2198
        %v2203 = vlaneseq
        %v2204 = vshrl.u32 %v2203, 7
        %v2205 = vsub.s32 0, %v2204
        %v2206 = vrot.slane %v2177, %v2205
        %v2207 = vlaneseq
        %v2208 = vshrl.u32 %v2207, 7
        %v2209 = vsub.s32 0, %v2208
        %v2210 = vrot.slane %v2191, %v2209
        %v2211 = vlaneseq
        %v2212 = vshrl.u32 %v2211, 7
        %v2213 = vsub.s32 0, %v2212
        %v2214 = vrot.slane %v2199, %v2213
        %v2215 = vlaneseq
        %v2216 = vshrl.u32 %v2215, 7
        %v2217 = vsub.s32 0, %v2216
        %v2218 = vrot.slane %v2201, %v2217
        %v2219 = vlaneseq
        %v2220 = vshrl.u32 %v2219, 7
        %v2221 = vsub.s32 0, %v2220
        %v2222 = vrot.slane %v2184, %v2221
        %v2223 = vlaneseq
        %v2224 = vshrl.u32 %v2223, 7
        %v2225 = vsub.s32 0, %v2224
        %v2226 = vrot.slane %v2198, %v2225
        %v2227 = vlaneseq
        %v2228 = vshrl.u32 %v2227, 7
        %v2229 = vsub.s32 0, %v2228
        %v2230 = vrot.slane %v2200, %v2229
        %v2231 = vlaneseq
        %v2232 = vshrl.u32 %v2231, 7
        %v2233 = vsub.s32 0, %v2232
        %v2234 = vrot.slane %v2202, %v2233
        %v2243 = vmul.f32 %v2103, %v2206
        %v2244 = vmul.f32 %v2110, %v2210
        %v2245 = vmul.f32 %v2117, %v2214
        %v2246 = vmul.f32 %v2124, %v2218
        %v2247 = vmul.f32 %v2131, %v2222
        %v2248 = vmul.f32 %v2138, %v2226
        %v2249 = vmul.f32 %v2145, %v2230
        %v2250 = vmul.f32 %v2152, %v2234
        %v2251 = vadd.f32 %v2089, %v2243
        %v2252 = vadd.f32 %v2090, %v2244
        %v2253 = vadd.f32 %v2091, %v2245
        %v2254 = vadd.f32 %v2092, %v2246
        %v2255 = vadd.f32 %v2093, %v2247
        %v2256 = vadd.f32 %v2094, %v2248
        %v2257 = vadd.f32 %v2095, %v2249
        %v2258 = vadd.f32 %v2096, %v2250
        %v2259 = vlaneseq
        %v2260 = vshrl.u32 %v2259, 7
        %v2261 = vsub.s32 0, %v2260
        %v2262 = vrot.slane %v716, %v2261
        %2264 = vbcast.lane.b32.xlu0 %v2262, 256
        %v2265 = vpop.permute.xlu0 %2264
        %v2266 = vlaneseq
        %v2267 = vshrl.u32 %v2266, 7
        %v2268 = vsub.s32 1, %v2267
        %v2269 = vrot.slane %v716, %v2268
        %2271 = vbcast.lane.b32.xlu0 %v2269, 256
        %v2272 = vpop.permute.xlu0 %2271
        %v2273 = vlaneseq
        %v2274 = vshrl.u32 %v2273, 7
        %v2275 = vsub.s32 2, %v2274
        %v2276 = vrot.slane %v716, %v2275
        %2278 = vbcast.lane.b32.xlu0 %v2276, 256
        %v2279 = vpop.permute.xlu0 %2278
        %v2280 = vlaneseq
        %v2281 = vshrl.u32 %v2280, 7
        %v2282 = vsub.s32 3, %v2281
        %v2283 = vrot.slane %v716, %v2282
        %2285 = vbcast.lane.b32.xlu0 %v2283, 256
        %v2286 = vpop.permute.xlu0 %2285
        %v2287 = vlaneseq
        %v2288 = vshrl.u32 %v2287, 7
        %v2289 = vsub.s32 4, %v2288
        %v2290 = vrot.slane %v716, %v2289
        %2292 = vbcast.lane.b32.xlu0 %v2290, 256
        %v2293 = vpop.permute.xlu0 %2292
        %v2294 = vlaneseq
        %v2295 = vshrl.u32 %v2294, 7
        %v2296 = vsub.s32 5, %v2295
        %v2297 = vrot.slane %v716, %v2296
        %2299 = vbcast.lane.b32.xlu0 %v2297, 256
        %v2300 = vpop.permute.xlu0 %2299
        %v2301 = vlaneseq
        %v2302 = vshrl.u32 %v2301, 7
        %v2303 = vsub.s32 6, %v2302
        %v2304 = vrot.slane %v716, %v2303
        %2306 = vbcast.lane.b32.xlu0 %v2304, 256
        %v2307 = vpop.permute.xlu0 %2306
        %v2308 = vlaneseq
        %v2309 = vshrl.u32 %v2308, 7
        %v2310 = vsub.s32 7, %v2309
        %v2311 = vrot.slane %v716, %v2310
        %2313 = vbcast.lane.b32.xlu0 %v2311, 256
        %v2314 = vpop.permute.xlu0 %2313
        %v2316 = vcombine.high %v716, %v716
        %v2318 = vunpack.c.l.s4 1966171168
        %v2319 = vunpack.c.0.s8 %v2318
        %v2320 = vlaneseq
        %v2321 = vshrl.u32 %v2320, 7
        %v2322 = vsub.s32 %v2319, %v2321
        %v2323 = vrot.slane %v716, %v2322
        %v2325 = vunpack.c.l.s4 1966171168
        %v2326 = vunpack.c.0.s8 %v2325
        %v2327 = vlaneseq
        %v2328 = vshrl.u32 %v2327, 7
        %v2329 = vsub.s32 %v2326, %v2328
        %v2330 = vrot.slane %v2316, %v2329
        %v2331 = vcombine.high %v2323, %v2323
        %v2332 = vcombine.high %v2330, %v2330
        %v2334 = vunpack.c.l.s4 1966171168
        %v2335 = vunpack.c.0.s8 %v2334
        %v2336 = vlaneseq
        %v2337 = vshrl.u32 %v2336, 7
        %v2338 = vsub.s32 %v2335, %v2337
        %v2339 = vrot.slane %v2323, %v2338
        %v2341 = vunpack.c.l.s4 1966171168
        %v2342 = vunpack.c.0.s8 %v2341
        %v2343 = vlaneseq
        %v2344 = vshrl.u32 %v2343, 7
        %v2345 = vsub.s32 %v2342, %v2344
        %v2346 = vrot.slane %v2330, %v2345
        %v2348 = vunpack.c.l.s4 1966171168
        %v2349 = vunpack.c.0.s8 %v2348
        %v2350 = vlaneseq
        %v2351 = vshrl.u32 %v2350, 7
        %v2352 = vsub.s32 %v2349, %v2351
        %v2353 = vrot.slane %v2331, %v2352
        %v2355 = vunpack.c.l.s4 1966171168
        %v2356 = vunpack.c.0.s8 %v2355
        %v2357 = vlaneseq
        %v2358 = vshrl.u32 %v2357, 7
        %v2359 = vsub.s32 %v2356, %v2358
        %v2360 = vrot.slane %v2332, %v2359
        %v2361 = vcombine.high %v2339, %v2339
        %v2362 = vcombine.high %v2346, %v2346
        %v2363 = vcombine.high %v2353, %v2353
        %v2364 = vcombine.high %v2360, %v2360
        %v2365 = vlaneseq
        %v2366 = vshrl.u32 %v2365, 7
        %v2367 = vsub.s32 0, %v2366
        %v2368 = vrot.slane %v2339, %v2367
        %v2369 = vlaneseq
        %v2370 = vshrl.u32 %v2369, 7
        %v2371 = vsub.s32 0, %v2370
        %v2372 = vrot.slane %v2353, %v2371
        %v2373 = vlaneseq
        %v2374 = vshrl.u32 %v2373, 7
        %v2375 = vsub.s32 0, %v2374
        %v2376 = vrot.slane %v2361, %v2375
        %v2377 = vlaneseq
        %v2378 = vshrl.u32 %v2377, 7
        %v2379 = vsub.s32 0, %v2378
        %v2380 = vrot.slane %v2363, %v2379
        %v2381 = vlaneseq
        %v2382 = vshrl.u32 %v2381, 7
        %v2383 = vsub.s32 0, %v2382
        %v2384 = vrot.slane %v2346, %v2383
        %v2385 = vlaneseq
        %v2386 = vshrl.u32 %v2385, 7
        %v2387 = vsub.s32 0, %v2386
        %v2388 = vrot.slane %v2360, %v2387
        %v2389 = vlaneseq
        %v2390 = vshrl.u32 %v2389, 7
        %v2391 = vsub.s32 0, %v2390
        %v2392 = vrot.slane %v2362, %v2391
        %v2393 = vlaneseq
        %v2394 = vshrl.u32 %v2393, 7
        %v2395 = vsub.s32 0, %v2394
        %v2396 = vrot.slane %v2364, %v2395
        %v2405 = vmul.f32 %v2265, %v2368
        %v2406 = vmul.f32 %v2272, %v2372
        %v2407 = vmul.f32 %v2279, %v2376
        %v2408 = vmul.f32 %v2286, %v2380
        %v2409 = vmul.f32 %v2293, %v2384
        %v2410 = vmul.f32 %v2300, %v2388
        %v2411 = vmul.f32 %v2307, %v2392
        %v2412 = vmul.f32 %v2314, %v2396
        %v2413 = vadd.f32 %v2251, %v2405
        %v2414 = vadd.f32 %v2252, %v2406
        %v2415 = vadd.f32 %v2253, %v2407
        %v2416 = vadd.f32 %v2254, %v2408
        %v2417 = vadd.f32 %v2255, %v2409
        %v2418 = vadd.f32 %v2256, %v2410
        %v2419 = vadd.f32 %v2257, %v2411
        %v2420 = vadd.f32 %v2258, %v2412
        %v2421 = vlaneseq
        %v2422 = vshrl.u32 %v2421, 7
        %v2423 = vsub.s32 0, %v2422
        %v2424 = vrot.slane %v729, %v2423
        %2426 = vbcast.lane.b32.xlu0 %v2424, 256
        %v2427 = vpop.permute.xlu0 %2426
        %v2428 = vlaneseq
        %v2429 = vshrl.u32 %v2428, 7
        %v2430 = vsub.s32 1, %v2429
        %v2431 = vrot.slane %v729, %v2430
        %2433 = vbcast.lane.b32.xlu0 %v2431, 256
        %v2434 = vpop.permute.xlu0 %2433
        %v2435 = vlaneseq
        %v2436 = vshrl.u32 %v2435, 7
        %v2437 = vsub.s32 2, %v2436
        %v2438 = vrot.slane %v729, %v2437
        %2440 = vbcast.lane.b32.xlu0 %v2438, 256
        %v2441 = vpop.permute.xlu0 %2440
        %v2442 = vlaneseq
        %v2443 = vshrl.u32 %v2442, 7
        %v2444 = vsub.s32 3, %v2443
        %v2445 = vrot.slane %v729, %v2444
        %2447 = vbcast.lane.b32.xlu0 %v2445, 256
        %v2448 = vpop.permute.xlu0 %2447
        %v2449 = vlaneseq
        %v2450 = vshrl.u32 %v2449, 7
        %v2451 = vsub.s32 4, %v2450
        %v2452 = vrot.slane %v729, %v2451
        %2454 = vbcast.lane.b32.xlu0 %v2452, 256
        %v2455 = vpop.permute.xlu0 %2454
        %v2456 = vlaneseq
        %v2457 = vshrl.u32 %v2456, 7
        %v2458 = vsub.s32 5, %v2457
        %v2459 = vrot.slane %v729, %v2458
        %2461 = vbcast.lane.b32.xlu0 %v2459, 256
        %v2462 = vpop.permute.xlu0 %2461
        %v2463 = vlaneseq
        %v2464 = vshrl.u32 %v2463, 7
        %v2465 = vsub.s32 6, %v2464
        %v2466 = vrot.slane %v729, %v2465
        %2468 = vbcast.lane.b32.xlu0 %v2466, 256
        %v2469 = vpop.permute.xlu0 %2468
        %v2470 = vlaneseq
        %v2471 = vshrl.u32 %v2470, 7
        %v2472 = vsub.s32 7, %v2471
        %v2473 = vrot.slane %v729, %v2472
        %2475 = vbcast.lane.b32.xlu0 %v2473, 256
        %v2476 = vpop.permute.xlu0 %2475
        %v2477 = vmul.f32 %v2427, %v1011
        %v2478 = vmul.f32 %v2434, %v1015
        %v2479 = vmul.f32 %v2441, %v1019
        %v2480 = vmul.f32 %v2448, %v1023
        %v2481 = vmul.f32 %v2455, %v1027
        %v2482 = vmul.f32 %v2462, %v1031
        %v2483 = vmul.f32 %v2469, %v1035
        %v2484 = vmul.f32 %v2476, %v1039
        %v2485 = vadd.f32 %v2477, 1e-09
        %v2486 = vadd.f32 %v2478, 1e-09
        %v2487 = vadd.f32 %v2479, 1e-09
        %v2488 = vadd.f32 %v2480, 1e-09
        %v2489 = vadd.f32 %v2481, 1e-09
        %v2490 = vadd.f32 %v2482, 1e-09
        %v2491 = vadd.f32 %v2483, 1e-09
        %v2492 = vadd.f32 %v2484, 1e-09
        %v2493 = vrcp.pop %v2485
        %v2494 = vrcp.pop %v2486
        %v2495 = vrcp.pop %v2487
        %v2496 = vrcp.pop %v2488
        %v2497 = vrcp.pop %v2489
        %v2498 = vrcp.pop %v2490
        %v2499 = vrcp.pop %v2491
        %v2500 = vrcp.pop %v2492
        %v2501 = vmul.f32 %v2413, 0.95
        %v2502 = vmul.f32 %v2414, 0.95
        %v2503 = vmul.f32 %v2415, 0.95
        %v2504 = vmul.f32 %v2416, 0.95
        %v2505 = vmul.f32 %v2417, 0.95
        %v2506 = vmul.f32 %v2418, 0.95
        %v2507 = vmul.f32 %v2419, 0.95
        %v2508 = vmul.f32 %v2420, 0.95
        %v2509 = vmul.f32 %v2501, %v2493
        %v2510 = vmul.f32 %v2502, %v2494
        %v2511 = vmul.f32 %v2503, %v2495
        %v2512 = vmul.f32 %v2504, %v2496
        %v2513 = vmul.f32 %v2505, %v2497
        %v2514 = vmul.f32 %v2506, %v2498
        %v2515 = vmul.f32 %v2507, %v2499
        %v2516 = vmul.f32 %v2508, %v2500
        %v2517 = vmul.f32 %v2509, %v2509
        %v2518 = vmul.f32 %v2510, %v2510
        %v2519 = vmul.f32 %v2511, %v2511
        %v2520 = vmul.f32 %v2512, %v2512
        %v2521 = vmul.f32 %v2513, %v2513
        %v2522 = vmul.f32 %v2514, %v2514
        %v2523 = vmul.f32 %v2515, %v2515
        %v2524 = vmul.f32 %v2516, %v2516
        %v2525 = vsub.f32 1.0, %v2517
        %v2526 = vsub.f32 1.0, %v2518
        %v2527 = vsub.f32 1.0, %v2519
        %v2528 = vsub.f32 1.0, %v2520
        %v2529 = vsub.f32 1.0, %v2521
        %v2530 = vsub.f32 1.0, %v2522
        %v2531 = vsub.f32 1.0, %v2523
        %v2532 = vsub.f32 1.0, %v2524
        %v2533 = vmax.f32 %v2525, 0.0
        %v2534 = vmax.f32 %v2526, 0.0
        %v2535 = vmax.f32 %v2527, 0.0
        %v2536 = vmax.f32 %v2528, 0.0
        %v2537 = vmax.f32 %v2529, 0.0
        %v2538 = vmax.f32 %v2530, 0.0
        %v2539 = vmax.f32 %v2531, 0.0
        %v2540 = vmax.f32 %v2532, 0.0
        %v2541 = vrsqrt.pop %v2533
        %v2542 = vmul.f32 %v2533, %v2541
        %vm2543 = vcmp.eq.f32.partialorder %v2533, inf
        %v2544 = vsel %vm2543, %v2533, %v2542
        %vm2545 = vcmp.eq.f32.partialorder %v2533, 0.0
        %v2546 = vand.u32 %v2533, 2147483648
        %v2547 = vsel %vm2545, %v2546, %v2544
        %v2548 = vrsqrt.pop %v2534
        %v2549 = vmul.f32 %v2534, %v2548
        %vm2550 = vcmp.eq.f32.partialorder %v2534, inf
        %v2551 = vsel %vm2550, %v2534, %v2549
        %vm2552 = vcmp.eq.f32.partialorder %v2534, 0.0
        %v2553 = vand.u32 %v2534, 2147483648
        %v2554 = vsel %vm2552, %v2553, %v2551
        %v2555 = vrsqrt.pop %v2535
        %v2556 = vmul.f32 %v2535, %v2555
        %vm2557 = vcmp.eq.f32.partialorder %v2535, inf
        %v2558 = vsel %vm2557, %v2535, %v2556
        %vm2559 = vcmp.eq.f32.partialorder %v2535, 0.0
        %v2560 = vand.u32 %v2535, 2147483648
        %v2561 = vsel %vm2559, %v2560, %v2558
        %v2562 = vrsqrt.pop %v2536
        %v2563 = vmul.f32 %v2536, %v2562
        %vm2564 = vcmp.eq.f32.partialorder %v2536, inf
        %v2565 = vsel %vm2564, %v2536, %v2563
        %vm2566 = vcmp.eq.f32.partialorder %v2536, 0.0
        %v2567 = vand.u32 %v2536, 2147483648
        %v2568 = vsel %vm2566, %v2567, %v2565
        %v2569 = vrsqrt.pop %v2537
        %v2570 = vmul.f32 %v2537, %v2569
        %vm2571 = vcmp.eq.f32.partialorder %v2537, inf
        %v2572 = vsel %vm2571, %v2537, %v2570
        %vm2573 = vcmp.eq.f32.partialorder %v2537, 0.0
        %v2574 = vand.u32 %v2537, 2147483648
        %v2575 = vsel %vm2573, %v2574, %v2572
        %v2576 = vrsqrt.pop %v2538
        %v2577 = vmul.f32 %v2538, %v2576
        %vm2578 = vcmp.eq.f32.partialorder %v2538, inf
        %v2579 = vsel %vm2578, %v2538, %v2577
        %vm2580 = vcmp.eq.f32.partialorder %v2538, 0.0
        %v2581 = vand.u32 %v2538, 2147483648
        %v2582 = vsel %vm2580, %v2581, %v2579
        %v2583 = vrsqrt.pop %v2539
        %v2584 = vmul.f32 %v2539, %v2583
        %vm2585 = vcmp.eq.f32.partialorder %v2539, inf
        %v2586 = vsel %vm2585, %v2539, %v2584
        %vm2587 = vcmp.eq.f32.partialorder %v2539, 0.0
        %v2588 = vand.u32 %v2539, 2147483648
        %v2589 = vsel %vm2587, %v2588, %v2586
        %v2590 = vrsqrt.pop %v2540
        %v2591 = vmul.f32 %v2540, %v2590
        %vm2592 = vcmp.eq.f32.partialorder %v2540, inf
        %v2593 = vsel %vm2592, %v2540, %v2591
        %vm2594 = vcmp.eq.f32.partialorder %v2540, 0.0
        %v2595 = vand.u32 %v2540, 2147483648
        %v2596 = vsel %vm2594, %v2595, %v2593
        %v2597 = vadd.f32 %v2427, %v1011
        %v2598 = vadd.f32 %v2434, %v1015
        %v2599 = vadd.f32 %v2441, %v1019
        %v2600 = vadd.f32 %v2448, %v1023
        %v2601 = vadd.f32 %v2455, %v1027
        %v2602 = vadd.f32 %v2462, %v1031
        %v2603 = vadd.f32 %v2469, %v1035
        %v2604 = vadd.f32 %v2476, %v1039
        %v2605 = vmul.f32 %v2597, 0.5
        %v2606 = vmul.f32 %v2598, 0.5
        %v2607 = vmul.f32 %v2599, 0.5
        %v2608 = vmul.f32 %v2600, 0.5
        %v2609 = vmul.f32 %v2601, 0.5
        %v2610 = vmul.f32 %v2602, 0.5
        %v2611 = vmul.f32 %v2603, 0.5
        %v2612 = vmul.f32 %v2604, 0.5
        %v2613 = vlaneseq
        %v2614 = vshrl.u32 %v2613, 7
        %v2615 = vsub.s32 0, %v2614
        %v2616 = vrot.slane %v957, %v2615
        %2618 = vbcast.lane.b32.xlu0 %v2616, 256
        %v2619 = vpop.permute.xlu0 %2618
        %v2620 = vlaneseq
        %v2621 = vshrl.u32 %v2620, 7
        %v2622 = vsub.s32 1, %v2621
        %v2623 = vrot.slane %v957, %v2622
        %2625 = vbcast.lane.b32.xlu0 %v2623, 256
        %v2626 = vpop.permute.xlu0 %2625
        %v2627 = vlaneseq
        %v2628 = vshrl.u32 %v2627, 7
        %v2629 = vsub.s32 2, %v2628
        %v2630 = vrot.slane %v957, %v2629
        %2632 = vbcast.lane.b32.xlu0 %v2630, 256
        %v2633 = vpop.permute.xlu0 %2632
        %v2634 = vlaneseq
        %v2635 = vshrl.u32 %v2634, 7
        %v2636 = vsub.s32 3, %v2635
        %v2637 = vrot.slane %v957, %v2636
        %2639 = vbcast.lane.b32.xlu0 %v2637, 256
        %v2640 = vpop.permute.xlu0 %2639
        %v2641 = vlaneseq
        %v2642 = vshrl.u32 %v2641, 7
        %v2643 = vsub.s32 4, %v2642
        %v2644 = vrot.slane %v957, %v2643
        %2646 = vbcast.lane.b32.xlu0 %v2644, 256
        %v2647 = vpop.permute.xlu0 %2646
        %v2648 = vlaneseq
        %v2649 = vshrl.u32 %v2648, 7
        %v2650 = vsub.s32 5, %v2649
        %v2651 = vrot.slane %v957, %v2650
        %2653 = vbcast.lane.b32.xlu0 %v2651, 256
        %v2654 = vpop.permute.xlu0 %2653
        %v2655 = vlaneseq
        %v2656 = vshrl.u32 %v2655, 7
        %v2657 = vsub.s32 6, %v2656
        %v2658 = vrot.slane %v957, %v2657
        %2660 = vbcast.lane.b32.xlu0 %v2658, 256
        %v2661 = vpop.permute.xlu0 %2660
        %v2662 = vlaneseq
        %v2663 = vshrl.u32 %v2662, 7
        %v2664 = vsub.s32 7, %v2663
        %v2665 = vrot.slane %v957, %v2664
        %2667 = vbcast.lane.b32.xlu0 %v2665, 256
        %v2668 = vpop.permute.xlu0 %2667
        %v2670 = vcombine.high %v957, %v957
        %v2672 = vunpack.c.l.s4 1966171168
        %v2673 = vunpack.c.0.s8 %v2672
        %v2674 = vlaneseq
        %v2675 = vshrl.u32 %v2674, 7
        %v2676 = vsub.s32 %v2673, %v2675
        %v2677 = vrot.slane %v957, %v2676
        %v2679 = vunpack.c.l.s4 1966171168
        %v2680 = vunpack.c.0.s8 %v2679
        %v2681 = vlaneseq
        %v2682 = vshrl.u32 %v2681, 7
        %v2683 = vsub.s32 %v2680, %v2682
        %v2684 = vrot.slane %v2670, %v2683
        %v2685 = vcombine.high %v2677, %v2677
        %v2686 = vcombine.high %v2684, %v2684
        %v2688 = vunpack.c.l.s4 1966171168
        %v2689 = vunpack.c.0.s8 %v2688
        %v2690 = vlaneseq
        %v2691 = vshrl.u32 %v2690, 7
        %v2692 = vsub.s32 %v2689, %v2691
        %v2693 = vrot.slane %v2677, %v2692
        %v2695 = vunpack.c.l.s4 1966171168
        %v2696 = vunpack.c.0.s8 %v2695
        %v2697 = vlaneseq
        %v2698 = vshrl.u32 %v2697, 7
        %v2699 = vsub.s32 %v2696, %v2698
        %v2700 = vrot.slane %v2684, %v2699
        %v2702 = vunpack.c.l.s4 1966171168
        %v2703 = vunpack.c.0.s8 %v2702
        %v2704 = vlaneseq
        %v2705 = vshrl.u32 %v2704, 7
        %v2706 = vsub.s32 %v2703, %v2705
        %v2707 = vrot.slane %v2685, %v2706
        %v2709 = vunpack.c.l.s4 1966171168
        %v2710 = vunpack.c.0.s8 %v2709
        %v2711 = vlaneseq
        %v2712 = vshrl.u32 %v2711, 7
        %v2713 = vsub.s32 %v2710, %v2712
        %v2714 = vrot.slane %v2686, %v2713
        %v2715 = vcombine.high %v2693, %v2693
        %v2716 = vcombine.high %v2700, %v2700
        %v2717 = vcombine.high %v2707, %v2707
        %v2718 = vcombine.high %v2714, %v2714
        %v2719 = vlaneseq
        %v2720 = vshrl.u32 %v2719, 7
        %v2721 = vsub.s32 0, %v2720
        %v2722 = vrot.slane %v2693, %v2721
        %v2723 = vlaneseq
        %v2724 = vshrl.u32 %v2723, 7
        %v2725 = vsub.s32 0, %v2724
        %v2726 = vrot.slane %v2707, %v2725
        %v2727 = vlaneseq
        %v2728 = vshrl.u32 %v2727, 7
        %v2729 = vsub.s32 0, %v2728
        %v2730 = vrot.slane %v2715, %v2729
        %v2731 = vlaneseq
        %v2732 = vshrl.u32 %v2731, 7
        %v2733 = vsub.s32 0, %v2732
        %v2734 = vrot.slane %v2717, %v2733
        %v2735 = vlaneseq
        %v2736 = vshrl.u32 %v2735, 7
        %v2737 = vsub.s32 0, %v2736
        %v2738 = vrot.slane %v2700, %v2737
        %v2739 = vlaneseq
        %v2740 = vshrl.u32 %v2739, 7
        %v2741 = vsub.s32 0, %v2740
        %v2742 = vrot.slane %v2714, %v2741
        %v2743 = vlaneseq
        %v2744 = vshrl.u32 %v2743, 7
        %v2745 = vsub.s32 0, %v2744
        %v2746 = vrot.slane %v2716, %v2745
        %v2747 = vlaneseq
        %v2748 = vshrl.u32 %v2747, 7
        %v2749 = vsub.s32 0, %v2748
        %v2750 = vrot.slane %v2718, %v2749
        %v2759 = vmul.f32 %v2619, %v2722
        %v2760 = vmul.f32 %v2626, %v2726
        %v2761 = vmul.f32 %v2633, %v2730
        %v2762 = vmul.f32 %v2640, %v2734
        %v2763 = vmul.f32 %v2647, %v2738
        %v2764 = vmul.f32 %v2654, %v2742
        %v2765 = vmul.f32 %v2661, %v2746
        %v2766 = vmul.f32 %v2668, %v2750
        %v2767 = vmul.f32 %v2759, %v736
        %v2768 = vmul.f32 %v2760, %v736
        %v2769 = vmul.f32 %v2761, %v736
        %v2770 = vmul.f32 %v2762, %v736
        %v2771 = vmul.f32 %v2763, %v736
        %v2772 = vmul.f32 %v2764, %v736
        %v2773 = vmul.f32 %v2765, %v736
        %v2774 = vmul.f32 %v2766, %v736
        %v2775 = vcombine.low %v2767, %v2769
        %v2776 = vcombine.high %v2767, %v2769
        %v2778 = vunpack.c.l.s4 1983009808
        %v2779 = vunpack.c.0.s8 %v2778
        %v2780 = vlaneseq
        %v2781 = vshrl.u32 %v2780, 7
        %v2782 = vsub.s32 %v2779, %v2781
        %v2783 = vrot.slane %v2775, %v2782
        %v2785 = vunpack.c.l.s4 1983009808
        %v2786 = vunpack.c.0.s8 %v2785
        %v2787 = vlaneseq
        %v2788 = vshrl.u32 %v2787, 7
        %v2789 = vsub.s32 %v2786, %v2788
        %v2790 = vrot.slane %v2776, %v2789
        %v2791 = vcombine.low %v2768, %v2770
        %v2792 = vcombine.high %v2768, %v2770
        %v2794 = vunpack.c.l.s4 1983009808
        %v2795 = vunpack.c.0.s8 %v2794
        %v2796 = vlaneseq
        %v2797 = vshrl.u32 %v2796, 7
        %v2798 = vsub.s32 %v2795, %v2797
        %v2799 = vrot.slane %v2791, %v2798
        %v2801 = vunpack.c.l.s4 1983009808
        %v2802 = vunpack.c.0.s8 %v2801
        %v2803 = vlaneseq
        %v2804 = vshrl.u32 %v2803, 7
        %v2805 = vsub.s32 %v2802, %v2804
        %v2806 = vrot.slane %v2792, %v2805
        %v2807 = vcombine.low %v2771, %v2773
        %v2808 = vcombine.high %v2771, %v2773
        %v2810 = vunpack.c.l.s4 1983009808
        %v2811 = vunpack.c.0.s8 %v2810
        %v2812 = vlaneseq
        %v2813 = vshrl.u32 %v2812, 7
        %v2814 = vsub.s32 %v2811, %v2813
        %v2815 = vrot.slane %v2807, %v2814
        %v2817 = vunpack.c.l.s4 1983009808
        %v2818 = vunpack.c.0.s8 %v2817
        %v2819 = vlaneseq
        %v2820 = vshrl.u32 %v2819, 7
        %v2821 = vsub.s32 %v2818, %v2820
        %v2822 = vrot.slane %v2808, %v2821
        %v2823 = vcombine.low %v2772, %v2774
        %v2824 = vcombine.high %v2772, %v2774
        %v2826 = vunpack.c.l.s4 1983009808
        %v2827 = vunpack.c.0.s8 %v2826
        %v2828 = vlaneseq
        %v2829 = vshrl.u32 %v2828, 7
        %v2830 = vsub.s32 %v2827, %v2829
        %v2831 = vrot.slane %v2823, %v2830
        %v2833 = vunpack.c.l.s4 1983009808
        %v2834 = vunpack.c.0.s8 %v2833
        %v2835 = vlaneseq
        %v2836 = vshrl.u32 %v2835, 7
        %v2837 = vsub.s32 %v2834, %v2836
        %v2838 = vrot.slane %v2824, %v2837
        %v2839 = vcombine.low %v2783, %v2799
        %v2840 = vcombine.high %v2783, %v2799
        %v2842 = vunpack.c.l.s4 1934713408
        %v2843 = vunpack.c.0.s8 %v2842
        %v2844 = vlaneseq
        %v2845 = vshrl.u32 %v2844, 7
        %v2846 = vsub.s32 %v2843, %v2845
        %v2847 = vrot.slane %v2839, %v2846
        %v2849 = vunpack.c.l.s4 1934713408
        %v2850 = vunpack.c.0.s8 %v2849
        %v2851 = vlaneseq
        %v2852 = vshrl.u32 %v2851, 7
        %v2853 = vsub.s32 %v2850, %v2852
        %v2854 = vrot.slane %v2840, %v2853
        %v2855 = vcombine.low %v2790, %v2806
        %v2856 = vcombine.high %v2790, %v2806
        %v2858 = vunpack.c.l.s4 1934713408
        %v2859 = vunpack.c.0.s8 %v2858
        %v2860 = vlaneseq
        %v2861 = vshrl.u32 %v2860, 7
        %v2862 = vsub.s32 %v2859, %v2861
        %v2863 = vrot.slane %v2855, %v2862
        %v2865 = vunpack.c.l.s4 1934713408
        %v2866 = vunpack.c.0.s8 %v2865
        %v2867 = vlaneseq
        %v2868 = vshrl.u32 %v2867, 7
        %v2869 = vsub.s32 %v2866, %v2868
        %v2870 = vrot.slane %v2856, %v2869
        %v2871 = vcombine.low %v2815, %v2831
        %v2872 = vcombine.high %v2815, %v2831
        %v2874 = vunpack.c.l.s4 1934713408
        %v2875 = vunpack.c.0.s8 %v2874
        %v2876 = vlaneseq
        %v2877 = vshrl.u32 %v2876, 7
        %v2878 = vsub.s32 %v2875, %v2877
        %v2879 = vrot.slane %v2871, %v2878
        %v2881 = vunpack.c.l.s4 1934713408
        %v2882 = vunpack.c.0.s8 %v2881
        %v2883 = vlaneseq
        %v2884 = vshrl.u32 %v2883, 7
        %v2885 = vsub.s32 %v2882, %v2884
        %v2886 = vrot.slane %v2872, %v2885
        %v2887 = vcombine.low %v2822, %v2838
        %v2888 = vcombine.high %v2822, %v2838
        %v2890 = vunpack.c.l.s4 1934713408
        %v2891 = vunpack.c.0.s8 %v2890
        %v2892 = vlaneseq
        %v2893 = vshrl.u32 %v2892, 7
        %v2894 = vsub.s32 %v2891, %v2893
        %v2895 = vrot.slane %v2887, %v2894
        %v2897 = vunpack.c.l.s4 1934713408
        %v2898 = vunpack.c.0.s8 %v2897
        %v2899 = vlaneseq
        %v2900 = vshrl.u32 %v2899, 7
        %v2901 = vsub.s32 %v2898, %v2900
        %v2902 = vrot.slane %v2888, %v2901
        %v2903 = vcombine.low %v2847, %v2879
        %v2904 = vcombine.high %v2847, %v2879
        %v2905 = vcombine.low %v2854, %v2886
        %v2906 = vcombine.high %v2854, %v2886
        %v2907 = vcombine.low %v2863, %v2895
        %v2908 = vcombine.high %v2863, %v2895
        %v2909 = vcombine.low %v2870, %v2902
        %v2910 = vcombine.high %v2870, %v2902
        %2912 = vrot.lane.b32.xlu0 %v2904, 8
        %v2913 = vpop.permute.xlu0 %2912
        %2916 = vrot.lane.b32.xlu0 %v2905, 16
        %v2917 = vpop.permute.xlu0 %2916
        %2920 = vrot.lane.b32.xlu0 %v2906, 24
        %v2921 = vpop.permute.xlu0 %2920
        %2924 = vrot.lane.b32.xlu0 %v2907, 32
        %v2925 = vpop.permute.xlu0 %2924
        %2928 = vrot.lane.b32.xlu0 %v2908, 40
        %v2929 = vpop.permute.xlu0 %2928
        %2932 = vrot.lane.b32.xlu0 %v2909, 48
        %v2933 = vpop.permute.xlu0 %2932
        %2936 = vrot.lane.b32.xlu0 %v2910, 56
        %v2937 = vpop.permute.xlu0 %2936
        %v2939 = vsel %vm1245, %v2903, %v2913
        %v2940 = vsel %vm1937, %v2939, %v2917
        %vm2941 = vcmask 195584
        %v2942 = vsel %vm2941, %v2940, %v2921
        %v2943 = vsel %vm1939, %v2942, %v2925
        %vm2944 = vcmask 326656
        %v2945 = vsel %vm2944, %v2943, %v2929
        %v2946 = vsel %vm1941, %v2945, %v2933
        %vm2947 = vcmask 457728
        %v2948 = vsel %vm2947, %v2946, %v2937
        %v2949 = vcombine.high %v2509, 0.0
        %v2951 = vunpack.c.l.s4 1983009808
        %v2952 = vunpack.c.0.s8 %v2951
        %v2953 = vlaneseq
        %v2954 = vshrl.u32 %v2953, 7
        %v2955 = vsub.s32 %v2952, %v2954
        %v2956 = vrot.slane %v2509, %v2955
        %v2958 = vunpack.c.l.s4 1983009808
        %v2959 = vunpack.c.0.s8 %v2958
        %v2960 = vlaneseq
        %v2961 = vshrl.u32 %v2960, 7
        %v2962 = vsub.s32 %v2959, %v2961
        %v2963 = vrot.slane %v2949, %v2962
        %v2964 = vcombine.high %v2956, 0.0
        %v2966 = vunpack.c.l.s4 1934713408
        %v2967 = vunpack.c.0.s8 %v2966
        %v2968 = vlaneseq
        %v2969 = vshrl.u32 %v2968, 7
        %v2970 = vsub.s32 %v2967, %v2969
        %v2971 = vrot.slane %v2956, %v2970
        %v2973 = vunpack.c.l.s4 1934713408
        %v2974 = vunpack.c.0.s8 %v2973
        %v2975 = vlaneseq
        %v2976 = vshrl.u32 %v2975, 7
        %v2977 = vsub.s32 %v2974, %v2976
        %v2978 = vrot.slane %v2964, %v2977
        %v2979 = vcombine.high %v2963, 0.0
        %v2981 = vunpack.c.l.s4 1934713408
        %v2982 = vunpack.c.0.s8 %v2981
        %v2983 = vlaneseq
        %v2984 = vshrl.u32 %v2983, 7
        %v2985 = vsub.s32 %v2982, %v2984
        %v2986 = vrot.slane %v2963, %v2985
        %v2988 = vunpack.c.l.s4 1934713408
        %v2989 = vunpack.c.0.s8 %v2988
        %v2990 = vlaneseq
        %v2991 = vshrl.u32 %v2990, 7
        %v2992 = vsub.s32 %v2989, %v2991
        %v2993 = vrot.slane %v2979, %v2992
        %v2994 = vcombine.high %v2971, 0.0
        %v2995 = vcombine.high %v2978, 0.0
        %v2996 = vcombine.high %v2986, 0.0
        %v2997 = vcombine.high %v2993, 0.0
        %v2998 = vcombine.high %v2510, 0.0
        %v3000 = vunpack.c.l.s4 1983009808
        %v3001 = vunpack.c.0.s8 %v3000
        %v3002 = vlaneseq
        %v3003 = vshrl.u32 %v3002, 7
        %v3004 = vsub.s32 %v3001, %v3003
        %v3005 = vrot.slane %v2510, %v3004
        %v3007 = vunpack.c.l.s4 1983009808
        %v3008 = vunpack.c.0.s8 %v3007
        %v3009 = vlaneseq
        %v3010 = vshrl.u32 %v3009, 7
        %v3011 = vsub.s32 %v3008, %v3010
        %v3012 = vrot.slane %v2998, %v3011
        %v3013 = vcombine.high %v3005, 0.0
        %v3015 = vunpack.c.l.s4 1934713408
        %v3016 = vunpack.c.0.s8 %v3015
        %v3017 = vlaneseq
        %v3018 = vshrl.u32 %v3017, 7
        %v3019 = vsub.s32 %v3016, %v3018
        %v3020 = vrot.slane %v3005, %v3019
        %v3022 = vunpack.c.l.s4 1934713408
        %v3023 = vunpack.c.0.s8 %v3022
        %v3024 = vlaneseq
        %v3025 = vshrl.u32 %v3024, 7
        %v3026 = vsub.s32 %v3023, %v3025
        %v3027 = vrot.slane %v3013, %v3026
        %v3028 = vcombine.high %v3012, 0.0
        %v3030 = vunpack.c.l.s4 1934713408
        %v3031 = vunpack.c.0.s8 %v3030
        %v3032 = vlaneseq
        %v3033 = vshrl.u32 %v3032, 7
        %v3034 = vsub.s32 %v3031, %v3033
        %v3035 = vrot.slane %v3012, %v3034
        %v3037 = vunpack.c.l.s4 1934713408
        %v3038 = vunpack.c.0.s8 %v3037
        %v3039 = vlaneseq
        %v3040 = vshrl.u32 %v3039, 7
        %v3041 = vsub.s32 %v3038, %v3040
        %v3042 = vrot.slane %v3028, %v3041
        %v3043 = vcombine.high %v3020, 0.0
        %v3044 = vcombine.high %v3027, 0.0
        %v3045 = vcombine.high %v3035, 0.0
        %v3046 = vcombine.high %v3042, 0.0
        %v3047 = vcombine.high %v2511, 0.0
        %v3049 = vunpack.c.l.s4 1983009808
        %v3050 = vunpack.c.0.s8 %v3049
        %v3051 = vlaneseq
        %v3052 = vshrl.u32 %v3051, 7
        %v3053 = vsub.s32 %v3050, %v3052
        %v3054 = vrot.slane %v2511, %v3053
        %v3056 = vunpack.c.l.s4 1983009808
        %v3057 = vunpack.c.0.s8 %v3056
        %v3058 = vlaneseq
        %v3059 = vshrl.u32 %v3058, 7
        %v3060 = vsub.s32 %v3057, %v3059
        %v3061 = vrot.slane %v3047, %v3060
        %v3062 = vcombine.high %v3054, 0.0
        %v3064 = vunpack.c.l.s4 1934713408
        %v3065 = vunpack.c.0.s8 %v3064
        %v3066 = vlaneseq
        %v3067 = vshrl.u32 %v3066, 7
        %v3068 = vsub.s32 %v3065, %v3067
        %v3069 = vrot.slane %v3054, %v3068
        %v3071 = vunpack.c.l.s4 1934713408
        %v3072 = vunpack.c.0.s8 %v3071
        %v3073 = vlaneseq
        %v3074 = vshrl.u32 %v3073, 7
        %v3075 = vsub.s32 %v3072, %v3074
        %v3076 = vrot.slane %v3062, %v3075
        %v3077 = vcombine.high %v3061, 0.0
        %v3079 = vunpack.c.l.s4 1934713408
        %v3080 = vunpack.c.0.s8 %v3079
        %v3081 = vlaneseq
        %v3082 = vshrl.u32 %v3081, 7
        %v3083 = vsub.s32 %v3080, %v3082
        %v3084 = vrot.slane %v3061, %v3083
        %v3086 = vunpack.c.l.s4 1934713408
        %v3087 = vunpack.c.0.s8 %v3086
        %v3088 = vlaneseq
        %v3089 = vshrl.u32 %v3088, 7
        %v3090 = vsub.s32 %v3087, %v3089
        %v3091 = vrot.slane %v3077, %v3090
        %v3092 = vcombine.high %v3069, 0.0
        %v3093 = vcombine.high %v3076, 0.0
        %v3094 = vcombine.high %v3084, 0.0
        %v3095 = vcombine.high %v3091, 0.0
        %v3096 = vcombine.high %v2512, 0.0
        %v3098 = vunpack.c.l.s4 1983009808
        %v3099 = vunpack.c.0.s8 %v3098
        %v3100 = vlaneseq
        %v3101 = vshrl.u32 %v3100, 7
        %v3102 = vsub.s32 %v3099, %v3101
        %v3103 = vrot.slane %v2512, %v3102
        %v3105 = vunpack.c.l.s4 1983009808
        %v3106 = vunpack.c.0.s8 %v3105
        %v3107 = vlaneseq
        %v3108 = vshrl.u32 %v3107, 7
        %v3109 = vsub.s32 %v3106, %v3108
        %v3110 = vrot.slane %v3096, %v3109
        %v3111 = vcombine.high %v3103, 0.0
        %v3113 = vunpack.c.l.s4 1934713408
        %v3114 = vunpack.c.0.s8 %v3113
        %v3115 = vlaneseq
        %v3116 = vshrl.u32 %v3115, 7
        %v3117 = vsub.s32 %v3114, %v3116
        %v3118 = vrot.slane %v3103, %v3117
        %v3120 = vunpack.c.l.s4 1934713408
        %v3121 = vunpack.c.0.s8 %v3120
        %v3122 = vlaneseq
        %v3123 = vshrl.u32 %v3122, 7
        %v3124 = vsub.s32 %v3121, %v3123
        %v3125 = vrot.slane %v3111, %v3124
        %v3126 = vcombine.high %v3110, 0.0
        %v3128 = vunpack.c.l.s4 1934713408
        %v3129 = vunpack.c.0.s8 %v3128
        %v3130 = vlaneseq
        %v3131 = vshrl.u32 %v3130, 7
        %v3132 = vsub.s32 %v3129, %v3131
        %v3133 = vrot.slane %v3110, %v3132
        %v3135 = vunpack.c.l.s4 1934713408
        %v3136 = vunpack.c.0.s8 %v3135
        %v3137 = vlaneseq
        %v3138 = vshrl.u32 %v3137, 7
        %v3139 = vsub.s32 %v3136, %v3138
        %v3140 = vrot.slane %v3126, %v3139
        %v3141 = vcombine.high %v3118, 0.0
        %v3142 = vcombine.high %v3125, 0.0
        %v3143 = vcombine.high %v3133, 0.0
        %v3144 = vcombine.high %v3140, 0.0
        %v3145 = vcombine.high %v2513, 0.0
        %v3147 = vunpack.c.l.s4 1983009808
        %v3148 = vunpack.c.0.s8 %v3147
        %v3149 = vlaneseq
        %v3150 = vshrl.u32 %v3149, 7
        %v3151 = vsub.s32 %v3148, %v3150
        %v3152 = vrot.slane %v2513, %v3151
        %v3154 = vunpack.c.l.s4 1983009808
        %v3155 = vunpack.c.0.s8 %v3154
        %v3156 = vlaneseq
        %v3157 = vshrl.u32 %v3156, 7
        %v3158 = vsub.s32 %v3155, %v3157
        %v3159 = vrot.slane %v3145, %v3158
        %v3160 = vcombine.high %v3152, 0.0
        %v3162 = vunpack.c.l.s4 1934713408
        %v3163 = vunpack.c.0.s8 %v3162
        %v3164 = vlaneseq
        %v3165 = vshrl.u32 %v3164, 7
        %v3166 = vsub.s32 %v3163, %v3165
        %v3167 = vrot.slane %v3152, %v3166
        %v3169 = vunpack.c.l.s4 1934713408
        %v3170 = vunpack.c.0.s8 %v3169
        %v3171 = vlaneseq
        %v3172 = vshrl.u32 %v3171, 7
        %v3173 = vsub.s32 %v3170, %v3172
        %v3174 = vrot.slane %v3160, %v3173
        %v3175 = vcombine.high %v3159, 0.0
        %v3177 = vunpack.c.l.s4 1934713408
        %v3178 = vunpack.c.0.s8 %v3177
        %v3179 = vlaneseq
        %v3180 = vshrl.u32 %v3179, 7
        %v3181 = vsub.s32 %v3178, %v3180
        %v3182 = vrot.slane %v3159, %v3181
        %v3184 = vunpack.c.l.s4 1934713408
        %v3185 = vunpack.c.0.s8 %v3184
        %v3186 = vlaneseq
        %v3187 = vshrl.u32 %v3186, 7
        %v3188 = vsub.s32 %v3185, %v3187
        %v3189 = vrot.slane %v3175, %v3188
        %v3190 = vcombine.high %v3167, 0.0
        %v3191 = vcombine.high %v3174, 0.0
        %v3192 = vcombine.high %v3182, 0.0
        %v3193 = vcombine.high %v3189, 0.0
        %v3194 = vcombine.high %v2514, 0.0
        %v3196 = vunpack.c.l.s4 1983009808
        %v3197 = vunpack.c.0.s8 %v3196
        %v3198 = vlaneseq
        %v3199 = vshrl.u32 %v3198, 7
        %v3200 = vsub.s32 %v3197, %v3199
        %v3201 = vrot.slane %v2514, %v3200
        %v3203 = vunpack.c.l.s4 1983009808
        %v3204 = vunpack.c.0.s8 %v3203
        %v3205 = vlaneseq
        %v3206 = vshrl.u32 %v3205, 7
        %v3207 = vsub.s32 %v3204, %v3206
        %v3208 = vrot.slane %v3194, %v3207
        %v3209 = vcombine.high %v3201, 0.0
        %v3211 = vunpack.c.l.s4 1934713408
        %v3212 = vunpack.c.0.s8 %v3211
        %v3213 = vlaneseq
        %v3214 = vshrl.u32 %v3213, 7
        %v3215 = vsub.s32 %v3212, %v3214
        %v3216 = vrot.slane %v3201, %v3215
        %v3218 = vunpack.c.l.s4 1934713408
        %v3219 = vunpack.c.0.s8 %v3218
        %v3220 = vlaneseq
        %v3221 = vshrl.u32 %v3220, 7
        %v3222 = vsub.s32 %v3219, %v3221
        %v3223 = vrot.slane %v3209, %v3222
        %v3224 = vcombine.high %v3208, 0.0
        %v3226 = vunpack.c.l.s4 1934713408
        %v3227 = vunpack.c.0.s8 %v3226
        %v3228 = vlaneseq
        %v3229 = vshrl.u32 %v3228, 7
        %v3230 = vsub.s32 %v3227, %v3229
        %v3231 = vrot.slane %v3208, %v3230
        %v3233 = vunpack.c.l.s4 1934713408
        %v3234 = vunpack.c.0.s8 %v3233
        %v3235 = vlaneseq
        %v3236 = vshrl.u32 %v3235, 7
        %v3237 = vsub.s32 %v3234, %v3236
        %v3238 = vrot.slane %v3224, %v3237
        %v3239 = vcombine.high %v3216, 0.0
        %v3240 = vcombine.high %v3223, 0.0
        %v3241 = vcombine.high %v3231, 0.0
        %v3242 = vcombine.high %v3238, 0.0
        %v3243 = vcombine.high %v2515, 0.0
        %v3245 = vunpack.c.l.s4 1983009808
        %v3246 = vunpack.c.0.s8 %v3245
        %v3247 = vlaneseq
        %v3248 = vshrl.u32 %v3247, 7
        %v3249 = vsub.s32 %v3246, %v3248
        %v3250 = vrot.slane %v2515, %v3249
        %v3252 = vunpack.c.l.s4 1983009808
        %v3253 = vunpack.c.0.s8 %v3252
        %v3254 = vlaneseq
        %v3255 = vshrl.u32 %v3254, 7
        %v3256 = vsub.s32 %v3253, %v3255
        %v3257 = vrot.slane %v3243, %v3256
        %v3258 = vcombine.high %v3250, 0.0
        %v3260 = vunpack.c.l.s4 1934713408
        %v3261 = vunpack.c.0.s8 %v3260
        %v3262 = vlaneseq
        %v3263 = vshrl.u32 %v3262, 7
        %v3264 = vsub.s32 %v3261, %v3263
        %v3265 = vrot.slane %v3250, %v3264
        %v3267 = vunpack.c.l.s4 1934713408
        %v3268 = vunpack.c.0.s8 %v3267
        %v3269 = vlaneseq
        %v3270 = vshrl.u32 %v3269, 7
        %v3271 = vsub.s32 %v3268, %v3270
        %v3272 = vrot.slane %v3258, %v3271
        %v3273 = vcombine.high %v3257, 0.0
        %v3275 = vunpack.c.l.s4 1934713408
        %v3276 = vunpack.c.0.s8 %v3275
        %v3277 = vlaneseq
        %v3278 = vshrl.u32 %v3277, 7
        %v3279 = vsub.s32 %v3276, %v3278
        %v3280 = vrot.slane %v3257, %v3279
        %v3282 = vunpack.c.l.s4 1934713408
        %v3283 = vunpack.c.0.s8 %v3282
        %v3284 = vlaneseq
        %v3285 = vshrl.u32 %v3284, 7
        %v3286 = vsub.s32 %v3283, %v3285
        %v3287 = vrot.slane %v3273, %v3286
        %v3288 = vcombine.high %v3265, 0.0
        %v3289 = vcombine.high %v3272, 0.0
        %v3290 = vcombine.high %v3280, 0.0
        %v3291 = vcombine.high %v3287, 0.0
        %v3292 = vcombine.high %v2516, 0.0
        %v3294 = vunpack.c.l.s4 1983009808
        %v3295 = vunpack.c.0.s8 %v3294
        %v3296 = vlaneseq
        %v3297 = vshrl.u32 %v3296, 7
        %v3298 = vsub.s32 %v3295, %v3297
        %v3299 = vrot.slane %v2516, %v3298
        %v3301 = vunpack.c.l.s4 1983009808
        %v3302 = vunpack.c.0.s8 %v3301
        %v3303 = vlaneseq
        %v3304 = vshrl.u32 %v3303, 7
        %v3305 = vsub.s32 %v3302, %v3304
        %v3306 = vrot.slane %v3292, %v3305
        %v3307 = vcombine.high %v3299, 0.0
        %v3309 = vunpack.c.l.s4 1934713408
        %v3310 = vunpack.c.0.s8 %v3309
        %v3311 = vlaneseq
        %v3312 = vshrl.u32 %v3311, 7
        %v3313 = vsub.s32 %v3310, %v3312
        %v3314 = vrot.slane %v3299, %v3313
        %v3316 = vunpack.c.l.s4 1934713408
        %v3317 = vunpack.c.0.s8 %v3316
        %v3318 = vlaneseq
        %v3319 = vshrl.u32 %v3318, 7
        %v3320 = vsub.s32 %v3317, %v3319
        %v3321 = vrot.slane %v3307, %v3320
        %v3322 = vcombine.high %v3306, 0.0
        %v3324 = vunpack.c.l.s4 1934713408
        %v3325 = vunpack.c.0.s8 %v3324
        %v3326 = vlaneseq
        %v3327 = vshrl.u32 %v3326, 7
        %v3328 = vsub.s32 %v3325, %v3327
        %v3329 = vrot.slane %v3306, %v3328
        %v3331 = vunpack.c.l.s4 1934713408
        %v3332 = vunpack.c.0.s8 %v3331
        %v3333 = vlaneseq
        %v3334 = vshrl.u32 %v3333, 7
        %v3335 = vsub.s32 %v3332, %v3334
        %v3336 = vrot.slane %v3322, %v3335
        %v3337 = vcombine.high %v3314, 0.0
        %v3338 = vcombine.high %v3321, 0.0
        %v3339 = vcombine.high %v3329, 0.0
        %v3340 = vcombine.high %v3336, 0.0
        %3349 = vrot.lane.b32.xlu0 %v2994, 8
        %v3350 = vpop.permute.xlu0 %3349
        %3351 = vrot.lane.b32.xlu0 %v3043, 8
        %v3352 = vpop.permute.xlu0 %3351
        %3353 = vrot.lane.b32.xlu0 %v3092, 8
        %v3354 = vpop.permute.xlu0 %3353
        %3355 = vrot.lane.b32.xlu0 %v3141, 8
        %v3356 = vpop.permute.xlu0 %3355
        %3357 = vrot.lane.b32.xlu0 %v3190, 8
        %v3358 = vpop.permute.xlu0 %3357
        %3359 = vrot.lane.b32.xlu0 %v3239, 8
        %v3360 = vpop.permute.xlu0 %3359
        %3361 = vrot.lane.b32.xlu0 %v3288, 8
        %v3362 = vpop.permute.xlu0 %3361
        %3363 = vrot.lane.b32.xlu0 %v3337, 8
        %v3364 = vpop.permute.xlu0 %3363
        %3381 = vrot.lane.b32.xlu0 %v2978, 16
        %v3382 = vpop.permute.xlu0 %3381
        %3383 = vrot.lane.b32.xlu0 %v3027, 16
        %v3384 = vpop.permute.xlu0 %3383
        %3385 = vrot.lane.b32.xlu0 %v3076, 16
        %v3386 = vpop.permute.xlu0 %3385
        %3387 = vrot.lane.b32.xlu0 %v3125, 16
        %v3388 = vpop.permute.xlu0 %3387
        %3389 = vrot.lane.b32.xlu0 %v3174, 16
        %v3390 = vpop.permute.xlu0 %3389
        %3391 = vrot.lane.b32.xlu0 %v3223, 16
        %v3392 = vpop.permute.xlu0 %3391
        %3393 = vrot.lane.b32.xlu0 %v3272, 16
        %v3394 = vpop.permute.xlu0 %3393
        %3395 = vrot.lane.b32.xlu0 %v3321, 16
        %v3396 = vpop.permute.xlu0 %3395
        %3413 = vrot.lane.b32.xlu0 %v2995, 24
        %v3414 = vpop.permute.xlu0 %3413
        %3415 = vrot.lane.b32.xlu0 %v3044, 24
        %v3416 = vpop.permute.xlu0 %3415
        %3417 = vrot.lane.b32.xlu0 %v3093, 24
        %v3418 = vpop.permute.xlu0 %3417
        %3419 = vrot.lane.b32.xlu0 %v3142, 24
        %v3420 = vpop.permute.xlu0 %3419
        %3421 = vrot.lane.b32.xlu0 %v3191, 24
        %v3422 = vpop.permute.xlu0 %3421
        %3423 = vrot.lane.b32.xlu0 %v3240, 24
        %v3424 = vpop.permute.xlu0 %3423
        %3425 = vrot.lane.b32.xlu0 %v3289, 24
        %v3426 = vpop.permute.xlu0 %3425
        %3427 = vrot.lane.b32.xlu0 %v3338, 24
        %v3428 = vpop.permute.xlu0 %3427
        %3445 = vrot.lane.b32.xlu0 %v2986, 32
        %v3446 = vpop.permute.xlu0 %3445
        %3447 = vrot.lane.b32.xlu0 %v3035, 32
        %v3448 = vpop.permute.xlu0 %3447
        %3449 = vrot.lane.b32.xlu0 %v3084, 32
        %v3450 = vpop.permute.xlu0 %3449
        %3451 = vrot.lane.b32.xlu0 %v3133, 32
        %v3452 = vpop.permute.xlu0 %3451
        %3453 = vrot.lane.b32.xlu0 %v3182, 32
        %v3454 = vpop.permute.xlu0 %3453
        %3455 = vrot.lane.b32.xlu0 %v3231, 32
        %v3456 = vpop.permute.xlu0 %3455
        %3457 = vrot.lane.b32.xlu0 %v3280, 32
        %v3458 = vpop.permute.xlu0 %3457
        %3459 = vrot.lane.b32.xlu0 %v3329, 32
        %v3460 = vpop.permute.xlu0 %3459
        %3477 = vrot.lane.b32.xlu0 %v2996, 40
        %v3478 = vpop.permute.xlu0 %3477
        %3479 = vrot.lane.b32.xlu0 %v3045, 40
        %v3480 = vpop.permute.xlu0 %3479
        %3481 = vrot.lane.b32.xlu0 %v3094, 40
        %v3482 = vpop.permute.xlu0 %3481
        %3483 = vrot.lane.b32.xlu0 %v3143, 40
        %v3484 = vpop.permute.xlu0 %3483
        %3485 = vrot.lane.b32.xlu0 %v3192, 40
        %v3486 = vpop.permute.xlu0 %3485
        %3487 = vrot.lane.b32.xlu0 %v3241, 40
        %v3488 = vpop.permute.xlu0 %3487
        %3489 = vrot.lane.b32.xlu0 %v3290, 40
        %v3490 = vpop.permute.xlu0 %3489
        %3491 = vrot.lane.b32.xlu0 %v3339, 40
        %v3492 = vpop.permute.xlu0 %3491
        %3509 = vrot.lane.b32.xlu0 %v2993, 48
        %v3510 = vpop.permute.xlu0 %3509
        %3511 = vrot.lane.b32.xlu0 %v3042, 48
        %v3512 = vpop.permute.xlu0 %3511
        %3513 = vrot.lane.b32.xlu0 %v3091, 48
        %v3514 = vpop.permute.xlu0 %3513
        %3515 = vrot.lane.b32.xlu0 %v3140, 48
        %v3516 = vpop.permute.xlu0 %3515
        %3517 = vrot.lane.b32.xlu0 %v3189, 48
        %v3518 = vpop.permute.xlu0 %3517
        %3519 = vrot.lane.b32.xlu0 %v3238, 48
        %v3520 = vpop.permute.xlu0 %3519
        %3521 = vrot.lane.b32.xlu0 %v3287, 48
        %v3522 = vpop.permute.xlu0 %3521
        %3523 = vrot.lane.b32.xlu0 %v3336, 48
        %v3524 = vpop.permute.xlu0 %3523
        %3541 = vrot.lane.b32.xlu0 %v2997, 56
        %v3542 = vpop.permute.xlu0 %3541
        %3543 = vrot.lane.b32.xlu0 %v3046, 56
        %v3544 = vpop.permute.xlu0 %3543
        %3545 = vrot.lane.b32.xlu0 %v3095, 56
        %v3546 = vpop.permute.xlu0 %3545
        %3547 = vrot.lane.b32.xlu0 %v3144, 56
        %v3548 = vpop.permute.xlu0 %3547
        %3549 = vrot.lane.b32.xlu0 %v3193, 56
        %v3550 = vpop.permute.xlu0 %3549
        %3551 = vrot.lane.b32.xlu0 %v3242, 56
        %v3552 = vpop.permute.xlu0 %3551
        %3553 = vrot.lane.b32.xlu0 %v3291, 56
        %v3554 = vpop.permute.xlu0 %3553
        %3555 = vrot.lane.b32.xlu0 %v3340, 56
        %v3556 = vpop.permute.xlu0 %3555
        %v3565 = vsel %vm1245, %v2971, %v3350
        %v3566 = vsel %vm1245, %v3020, %v3352
        %v3567 = vsel %vm1245, %v3069, %v3354
        %v3568 = vsel %vm1245, %v3118, %v3356
        %v3569 = vsel %vm1245, %v3167, %v3358
        %v3570 = vsel %vm1245, %v3216, %v3360
        %v3571 = vsel %vm1245, %v3265, %v3362
        %v3572 = vsel %vm1245, %v3314, %v3364
        %v3573 = vsel %vm1937, %v3565, %v3382
        %v3574 = vsel %vm1937, %v3566, %v3384
        %v3575 = vsel %vm1937, %v3567, %v3386
        %v3576 = vsel %vm1937, %v3568, %v3388
        %v3577 = vsel %vm1937, %v3569, %v3390
        %v3578 = vsel %vm1937, %v3570, %v3392
        %v3579 = vsel %vm1937, %v3571, %v3394
        %v3580 = vsel %vm1937, %v3572, %v3396
        %v3581 = vsel %vm2941, %v3573, %v3414
        %v3582 = vsel %vm2941, %v3574, %v3416
        %v3583 = vsel %vm2941, %v3575, %v3418
        %v3584 = vsel %vm2941, %v3576, %v3420
        %v3585 = vsel %vm2941, %v3577, %v3422
        %v3586 = vsel %vm2941, %v3578, %v3424
        %v3587 = vsel %vm2941, %v3579, %v3426
        %v3588 = vsel %vm2941, %v3580, %v3428
        %v3589 = vsel %vm1939, %v3581, %v3446
        %v3590 = vsel %vm1939, %v3582, %v3448
        %v3591 = vsel %vm1939, %v3583, %v3450
        %v3592 = vsel %vm1939, %v3584, %v3452
        %v3593 = vsel %vm1939, %v3585, %v3454
        %v3594 = vsel %vm1939, %v3586, %v3456
        %v3595 = vsel %vm1939, %v3587, %v3458
        %v3596 = vsel %vm1939, %v3588, %v3460
        %v3597 = vsel %vm2944, %v3589, %v3478
        %v3598 = vsel %vm2944, %v3590, %v3480
        %v3599 = vsel %vm2944, %v3591, %v3482
        %v3600 = vsel %vm2944, %v3592, %v3484
        %v3601 = vsel %vm2944, %v3593, %v3486
        %v3602 = vsel %vm2944, %v3594, %v3488
        %v3603 = vsel %vm2944, %v3595, %v3490
        %v3604 = vsel %vm2944, %v3596, %v3492
        %v3605 = vsel %vm1941, %v3597, %v3510
        %v3606 = vsel %vm1941, %v3598, %v3512
        %v3607 = vsel %vm1941, %v3599, %v3514
        %v3608 = vsel %vm1941, %v3600, %v3516
        %v3609 = vsel %vm1941, %v3601, %v3518
        %v3610 = vsel %vm1941, %v3602, %v3520
        %v3611 = vsel %vm1941, %v3603, %v3522
        %v3612 = vsel %vm1941, %v3604, %v3524
        %v3613 = vsel %vm2947, %v3605, %v3542
        %v3614 = vsel %vm2947, %v3606, %v3544
        %v3615 = vsel %vm2947, %v3607, %v3546
        %v3616 = vsel %vm2947, %v3608, %v3548
        %v3617 = vsel %vm2947, %v3609, %v3550
        %v3618 = vsel %vm2947, %v3610, %v3552
        %v3619 = vsel %vm2947, %v3611, %v3554
        %v3620 = vsel %vm2947, %v3612, %v3556
        %v3621 = vlaneseq
        %v3622 = vshrl.u32 %v3621, 7
        %v3623 = vsub.s32 0, %v3622
        %v3624 = vrot.slane %v3613, %v3623
        %v3625 = vlaneseq
        %v3626 = vshrl.u32 %v3625, 7
        %v3627 = vsub.s32 0, %v3626
        %v3628 = vrot.slane %v3614, %v3627
        %v3629 = vlaneseq
        %v3630 = vshrl.u32 %v3629, 7
        %v3631 = vsub.s32 0, %v3630
        %v3632 = vrot.slane %v3615, %v3631
        %v3633 = vlaneseq
        %v3634 = vshrl.u32 %v3633, 7
        %v3635 = vsub.s32 0, %v3634
        %v3636 = vrot.slane %v3616, %v3635
        %v3637 = vlaneseq
        %v3638 = vshrl.u32 %v3637, 7
        %v3639 = vsub.s32 0, %v3638
        %v3640 = vrot.slane %v3617, %v3639
        %v3641 = vlaneseq
        %v3642 = vshrl.u32 %v3641, 7
        %v3643 = vsub.s32 0, %v3642
        %v3644 = vrot.slane %v3618, %v3643
        %v3645 = vlaneseq
        %v3646 = vshrl.u32 %v3645, 7
        %v3647 = vsub.s32 0, %v3646
        %v3648 = vrot.slane %v3619, %v3647
        %v3649 = vlaneseq
        %v3650 = vshrl.u32 %v3649, 7
        %v3651 = vsub.s32 0, %v3650
        %v3652 = vrot.slane %v3620, %v3651
        %3654 = vset.pattern.permute.xlu0 0
        %3655 = vperm.xlu0 %3654, %v686
        %v3656 = vpop.permute.xlu0 %3655
        %v3658 = vmul.f32 %v3624, %v3656
        %v3659 = vmul.f32 %v3628, %v3656
        %v3660 = vmul.f32 %v3632, %v3656
        %v3661 = vmul.f32 %v3636, %v3656
        %v3662 = vmul.f32 %v3640, %v3656
        %v3663 = vmul.f32 %v3644, %v3656
        %v3664 = vmul.f32 %v3648, %v3656
        %v3665 = vmul.f32 %v3652, %v3656
        %v3666 = vcombine.high %v2547, 0.0
        %v3668 = vunpack.c.l.s4 1983009808
        %v3669 = vunpack.c.0.s8 %v3668
        %v3670 = vlaneseq
        %v3671 = vshrl.u32 %v3670, 7
        %v3672 = vsub.s32 %v3669, %v3671
        %v3673 = vrot.slane %v2547, %v3672
        %v3675 = vunpack.c.l.s4 1983009808
        %v3676 = vunpack.c.0.s8 %v3675
        %v3677 = vlaneseq
        %v3678 = vshrl.u32 %v3677, 7
        %v3679 = vsub.s32 %v3676, %v3678
        %v3680 = vrot.slane %v3666, %v3679
        %v3681 = vcombine.high %v3673, 0.0
        %v3683 = vunpack.c.l.s4 1934713408
        %v3684 = vunpack.c.0.s8 %v3683
        %v3685 = vlaneseq
        %v3686 = vshrl.u32 %v3685, 7
        %v3687 = vsub.s32 %v3684, %v3686
        %v3688 = vrot.slane %v3673, %v3687
        %v3690 = vunpack.c.l.s4 1934713408
        %v3691 = vunpack.c.0.s8 %v3690
        %v3692 = vlaneseq
        %v3693 = vshrl.u32 %v3692, 7
        %v3694 = vsub.s32 %v3691, %v3693
        %v3695 = vrot.slane %v3681, %v3694
        %v3696 = vcombine.high %v3680, 0.0
        %v3698 = vunpack.c.l.s4 1934713408
        %v3699 = vunpack.c.0.s8 %v3698
        %v3700 = vlaneseq
        %v3701 = vshrl.u32 %v3700, 7
        %v3702 = vsub.s32 %v3699, %v3701
        %v3703 = vrot.slane %v3680, %v3702
        %v3705 = vunpack.c.l.s4 1934713408
        %v3706 = vunpack.c.0.s8 %v3705
        %v3707 = vlaneseq
        %v3708 = vshrl.u32 %v3707, 7
        %v3709 = vsub.s32 %v3706, %v3708
        %v3710 = vrot.slane %v3696, %v3709
        %v3711 = vcombine.high %v3688, 0.0
        %v3712 = vcombine.high %v3695, 0.0
        %v3713 = vcombine.high %v3703, 0.0
        %v3714 = vcombine.high %v3710, 0.0
        %v3715 = vcombine.high %v2554, 0.0
        %v3717 = vunpack.c.l.s4 1983009808
        %v3718 = vunpack.c.0.s8 %v3717
        %v3719 = vlaneseq
        %v3720 = vshrl.u32 %v3719, 7
        %v3721 = vsub.s32 %v3718, %v3720
        %v3722 = vrot.slane %v2554, %v3721
        %v3724 = vunpack.c.l.s4 1983009808
        %v3725 = vunpack.c.0.s8 %v3724
        %v3726 = vlaneseq
        %v3727 = vshrl.u32 %v3726, 7
        %v3728 = vsub.s32 %v3725, %v3727
        %v3729 = vrot.slane %v3715, %v3728
        %v3730 = vcombine.high %v3722, 0.0
        %v3732 = vunpack.c.l.s4 1934713408
        %v3733 = vunpack.c.0.s8 %v3732
        %v3734 = vlaneseq
        %v3735 = vshrl.u32 %v3734, 7
        %v3736 = vsub.s32 %v3733, %v3735
        %v3737 = vrot.slane %v3722, %v3736
        %v3739 = vunpack.c.l.s4 1934713408
        %v3740 = vunpack.c.0.s8 %v3739
        %v3741 = vlaneseq
        %v3742 = vshrl.u32 %v3741, 7
        %v3743 = vsub.s32 %v3740, %v3742
        %v3744 = vrot.slane %v3730, %v3743
        %v3745 = vcombine.high %v3729, 0.0
        %v3747 = vunpack.c.l.s4 1934713408
        %v3748 = vunpack.c.0.s8 %v3747
        %v3749 = vlaneseq
        %v3750 = vshrl.u32 %v3749, 7
        %v3751 = vsub.s32 %v3748, %v3750
        %v3752 = vrot.slane %v3729, %v3751
        %v3754 = vunpack.c.l.s4 1934713408
        %v3755 = vunpack.c.0.s8 %v3754
        %v3756 = vlaneseq
        %v3757 = vshrl.u32 %v3756, 7
        %v3758 = vsub.s32 %v3755, %v3757
        %v3759 = vrot.slane %v3745, %v3758
        %v3760 = vcombine.high %v3737, 0.0
        %v3761 = vcombine.high %v3744, 0.0
        %v3762 = vcombine.high %v3752, 0.0
        %v3763 = vcombine.high %v3759, 0.0
        %v3764 = vcombine.high %v2561, 0.0
        %v3766 = vunpack.c.l.s4 1983009808
        %v3767 = vunpack.c.0.s8 %v3766
        %v3768 = vlaneseq
        %v3769 = vshrl.u32 %v3768, 7
        %v3770 = vsub.s32 %v3767, %v3769
        %v3771 = vrot.slane %v2561, %v3770
        %v3773 = vunpack.c.l.s4 1983009808
        %v3774 = vunpack.c.0.s8 %v3773
        %v3775 = vlaneseq
        %v3776 = vshrl.u32 %v3775, 7
        %v3777 = vsub.s32 %v3774, %v3776
        %v3778 = vrot.slane %v3764, %v3777
        %v3779 = vcombine.high %v3771, 0.0
        %v3781 = vunpack.c.l.s4 1934713408
        %v3782 = vunpack.c.0.s8 %v3781
        %v3783 = vlaneseq
        %v3784 = vshrl.u32 %v3783, 7
        %v3785 = vsub.s32 %v3782, %v3784
        %v3786 = vrot.slane %v3771, %v3785
        %v3788 = vunpack.c.l.s4 1934713408
        %v3789 = vunpack.c.0.s8 %v3788
        %v3790 = vlaneseq
        %v3791 = vshrl.u32 %v3790, 7
        %v3792 = vsub.s32 %v3789, %v3791
        %v3793 = vrot.slane %v3779, %v3792
        %v3794 = vcombine.high %v3778, 0.0
        %v3796 = vunpack.c.l.s4 1934713408
        %v3797 = vunpack.c.0.s8 %v3796
        %v3798 = vlaneseq
        %v3799 = vshrl.u32 %v3798, 7
        %v3800 = vsub.s32 %v3797, %v3799
        %v3801 = vrot.slane %v3778, %v3800
        %v3803 = vunpack.c.l.s4 1934713408
        %v3804 = vunpack.c.0.s8 %v3803
        %v3805 = vlaneseq
        %v3806 = vshrl.u32 %v3805, 7
        %v3807 = vsub.s32 %v3804, %v3806
        %v3808 = vrot.slane %v3794, %v3807
        %v3809 = vcombine.high %v3786, 0.0
        %v3810 = vcombine.high %v3793, 0.0
        %v3811 = vcombine.high %v3801, 0.0
        %v3812 = vcombine.high %v3808, 0.0
        %v3813 = vcombine.high %v2568, 0.0
        %v3815 = vunpack.c.l.s4 1983009808
        %v3816 = vunpack.c.0.s8 %v3815
        %v3817 = vlaneseq
        %v3818 = vshrl.u32 %v3817, 7
        %v3819 = vsub.s32 %v3816, %v3818
        %v3820 = vrot.slane %v2568, %v3819
        %v3822 = vunpack.c.l.s4 1983009808
        %v3823 = vunpack.c.0.s8 %v3822
        %v3824 = vlaneseq
        %v3825 = vshrl.u32 %v3824, 7
        %v3826 = vsub.s32 %v3823, %v3825
        %v3827 = vrot.slane %v3813, %v3826
        %v3828 = vcombine.high %v3820, 0.0
        %v3830 = vunpack.c.l.s4 1934713408
        %v3831 = vunpack.c.0.s8 %v3830
        %v3832 = vlaneseq
        %v3833 = vshrl.u32 %v3832, 7
        %v3834 = vsub.s32 %v3831, %v3833
        %v3835 = vrot.slane %v3820, %v3834
        %v3837 = vunpack.c.l.s4 1934713408
        %v3838 = vunpack.c.0.s8 %v3837
        %v3839 = vlaneseq
        %v3840 = vshrl.u32 %v3839, 7
        %v3841 = vsub.s32 %v3838, %v3840
        %v3842 = vrot.slane %v3828, %v3841
        %v3843 = vcombine.high %v3827, 0.0
        %v3845 = vunpack.c.l.s4 1934713408
        %v3846 = vunpack.c.0.s8 %v3845
        %v3847 = vlaneseq
        %v3848 = vshrl.u32 %v3847, 7
        %v3849 = vsub.s32 %v3846, %v3848
        %v3850 = vrot.slane %v3827, %v3849
        %v3852 = vunpack.c.l.s4 1934713408
        %v3853 = vunpack.c.0.s8 %v3852
        %v3854 = vlaneseq
        %v3855 = vshrl.u32 %v3854, 7
        %v3856 = vsub.s32 %v3853, %v3855
        %v3857 = vrot.slane %v3843, %v3856
        %v3858 = vcombine.high %v3835, 0.0
        %v3859 = vcombine.high %v3842, 0.0
        %v3860 = vcombine.high %v3850, 0.0
        %v3861 = vcombine.high %v3857, 0.0
        %v3862 = vcombine.high %v2575, 0.0
        %v3864 = vunpack.c.l.s4 1983009808
        %v3865 = vunpack.c.0.s8 %v3864
        %v3866 = vlaneseq
        %v3867 = vshrl.u32 %v3866, 7
        %v3868 = vsub.s32 %v3865, %v3867
        %v3869 = vrot.slane %v2575, %v3868
        %v3871 = vunpack.c.l.s4 1983009808
        %v3872 = vunpack.c.0.s8 %v3871
        %v3873 = vlaneseq
        %v3874 = vshrl.u32 %v3873, 7
        %v3875 = vsub.s32 %v3872, %v3874
        %v3876 = vrot.slane %v3862, %v3875
        %v3877 = vcombine.high %v3869, 0.0
        %v3879 = vunpack.c.l.s4 1934713408
        %v3880 = vunpack.c.0.s8 %v3879
        %v3881 = vlaneseq
        %v3882 = vshrl.u32 %v3881, 7
        %v3883 = vsub.s32 %v3880, %v3882
        %v3884 = vrot.slane %v3869, %v3883
        %v3886 = vunpack.c.l.s4 1934713408
        %v3887 = vunpack.c.0.s8 %v3886
        %v3888 = vlaneseq
        %v3889 = vshrl.u32 %v3888, 7
        %v3890 = vsub.s32 %v3887, %v3889
        %v3891 = vrot.slane %v3877, %v3890
        %v3892 = vcombine.high %v3876, 0.0
        %v3894 = vunpack.c.l.s4 1934713408
        %v3895 = vunpack.c.0.s8 %v3894
        %v3896 = vlaneseq
        %v3897 = vshrl.u32 %v3896, 7
        %v3898 = vsub.s32 %v3895, %v3897
        %v3899 = vrot.slane %v3876, %v3898
        %v3901 = vunpack.c.l.s4 1934713408
        %v3902 = vunpack.c.0.s8 %v3901
        %v3903 = vlaneseq
        %v3904 = vshrl.u32 %v3903, 7
        %v3905 = vsub.s32 %v3902, %v3904
        %v3906 = vrot.slane %v3892, %v3905
        %v3907 = vcombine.high %v3884, 0.0
        %v3908 = vcombine.high %v3891, 0.0
        %v3909 = vcombine.high %v3899, 0.0
        %v3910 = vcombine.high %v3906, 0.0
        %v3911 = vcombine.high %v2582, 0.0
        %v3913 = vunpack.c.l.s4 1983009808
        %v3914 = vunpack.c.0.s8 %v3913
        %v3915 = vlaneseq
        %v3916 = vshrl.u32 %v3915, 7
        %v3917 = vsub.s32 %v3914, %v3916
        %v3918 = vrot.slane %v2582, %v3917
        %v3920 = vunpack.c.l.s4 1983009808
        %v3921 = vunpack.c.0.s8 %v3920
        %v3922 = vlaneseq
        %v3923 = vshrl.u32 %v3922, 7
        %v3924 = vsub.s32 %v3921, %v3923
        %v3925 = vrot.slane %v3911, %v3924
        %v3926 = vcombine.high %v3918, 0.0
        %v3928 = vunpack.c.l.s4 1934713408
        %v3929 = vunpack.c.0.s8 %v3928
        %v3930 = vlaneseq
        %v3931 = vshrl.u32 %v3930, 7
        %v3932 = vsub.s32 %v3929, %v3931
        %v3933 = vrot.slane %v3918, %v3932
        %v3935 = vunpack.c.l.s4 1934713408
        %v3936 = vunpack.c.0.s8 %v3935
        %v3937 = vlaneseq
        %v3938 = vshrl.u32 %v3937, 7
        %v3939 = vsub.s32 %v3936, %v3938
        %v3940 = vrot.slane %v3926, %v3939
        %v3941 = vcombine.high %v3925, 0.0
        %v3943 = vunpack.c.l.s4 1934713408
        %v3944 = vunpack.c.0.s8 %v3943
        %v3945 = vlaneseq
        %v3946 = vshrl.u32 %v3945, 7
        %v3947 = vsub.s32 %v3944, %v3946
        %v3948 = vrot.slane %v3925, %v3947
        %v3950 = vunpack.c.l.s4 1934713408
        %v3951 = vunpack.c.0.s8 %v3950
        %v3952 = vlaneseq
        %v3953 = vshrl.u32 %v3952, 7
        %v3954 = vsub.s32 %v3951, %v3953
        %v3955 = vrot.slane %v3941, %v3954
        %v3956 = vcombine.high %v3933, 0.0
        %v3957 = vcombine.high %v3940, 0.0
        %v3958 = vcombine.high %v3948, 0.0
        %v3959 = vcombine.high %v3955, 0.0
        %v3960 = vcombine.high %v2589, 0.0
        %v3962 = vunpack.c.l.s4 1983009808
        %v3963 = vunpack.c.0.s8 %v3962
        %v3964 = vlaneseq
        %v3965 = vshrl.u32 %v3964, 7
        %v3966 = vsub.s32 %v3963, %v3965
        %v3967 = vrot.slane %v2589, %v3966
        %v3969 = vunpack.c.l.s4 1983009808
        %v3970 = vunpack.c.0.s8 %v3969
        %v3971 = vlaneseq
        %v3972 = vshrl.u32 %v3971, 7
        %v3973 = vsub.s32 %v3970, %v3972
        %v3974 = vrot.slane %v3960, %v3973
        %v3975 = vcombine.high %v3967, 0.0
        %v3977 = vunpack.c.l.s4 1934713408
        %v3978 = vunpack.c.0.s8 %v3977
        %v3979 = vlaneseq
        %v3980 = vshrl.u32 %v3979, 7
        %v3981 = vsub.s32 %v3978, %v3980
        %v3982 = vrot.slane %v3967, %v3981
        %v3984 = vunpack.c.l.s4 1934713408
        %v3985 = vunpack.c.0.s8 %v3984
        %v3986 = vlaneseq
        %v3987 = vshrl.u32 %v3986, 7
        %v3988 = vsub.s32 %v3985, %v3987
        %v3989 = vrot.slane %v3975, %v3988
        %v3990 = vcombine.high %v3974, 0.0
        %v3992 = vunpack.c.l.s4 1934713408
        %v3993 = vunpack.c.0.s8 %v3992
        %v3994 = vlaneseq
        %v3995 = vshrl.u32 %v3994, 7
        %v3996 = vsub.s32 %v3993, %v3995
        %v3997 = vrot.slane %v3974, %v3996
        %v3999 = vunpack.c.l.s4 1934713408
        %v4000 = vunpack.c.0.s8 %v3999
        %v4001 = vlaneseq
        %v4002 = vshrl.u32 %v4001, 7
        %v4003 = vsub.s32 %v4000, %v4002
        %v4004 = vrot.slane %v3990, %v4003
        %v4005 = vcombine.high %v3982, 0.0
        %v4006 = vcombine.high %v3989, 0.0
        %v4007 = vcombine.high %v3997, 0.0
        %v4008 = vcombine.high %v4004, 0.0
        %v4009 = vcombine.high %v2596, 0.0
        %v4011 = vunpack.c.l.s4 1983009808
        %v4012 = vunpack.c.0.s8 %v4011
        %v4013 = vlaneseq
        %v4014 = vshrl.u32 %v4013, 7
        %v4015 = vsub.s32 %v4012, %v4014
        %v4016 = vrot.slane %v2596, %v4015
        %v4018 = vunpack.c.l.s4 1983009808
        %v4019 = vunpack.c.0.s8 %v4018
        %v4020 = vlaneseq
        %v4021 = vshrl.u32 %v4020, 7
        %v4022 = vsub.s32 %v4019, %v4021
        %v4023 = vrot.slane %v4009, %v4022
        %v4024 = vcombine.high %v4016, 0.0
        %v4026 = vunpack.c.l.s4 1934713408
        %v4027 = vunpack.c.0.s8 %v4026
        %v4028 = vlaneseq
        %v4029 = vshrl.u32 %v4028, 7
        %v4030 = vsub.s32 %v4027, %v4029
        %v4031 = vrot.slane %v4016, %v4030
        %v4033 = vunpack.c.l.s4 1934713408
        %v4034 = vunpack.c.0.s8 %v4033
        %v4035 = vlaneseq
        %v4036 = vshrl.u32 %v4035, 7
        %v4037 = vsub.s32 %v4034, %v4036
        %v4038 = vrot.slane %v4024, %v4037
        %v4039 = vcombine.high %v4023, 0.0
        %v4041 = vunpack.c.l.s4 1934713408
        %v4042 = vunpack.c.0.s8 %v4041
        %v4043 = vlaneseq
        %v4044 = vshrl.u32 %v4043, 7
        %v4045 = vsub.s32 %v4042, %v4044
        %v4046 = vrot.slane %v4023, %v4045
        %v4048 = vunpack.c.l.s4 1934713408
        %v4049 = vunpack.c.0.s8 %v4048
        %v4050 = vlaneseq
        %v4051 = vshrl.u32 %v4050, 7
        %v4052 = vsub.s32 %v4049, %v4051
        %v4053 = vrot.slane %v4039, %v4052
        %v4054 = vcombine.high %v4031, 0.0
        %v4055 = vcombine.high %v4038, 0.0
        %v4056 = vcombine.high %v4046, 0.0
        %v4057 = vcombine.high %v4053, 0.0
        %4066 = vrot.lane.b32.xlu0 %v3711, 8
        %v4067 = vpop.permute.xlu0 %4066
        %4068 = vrot.lane.b32.xlu0 %v3760, 8
        %v4069 = vpop.permute.xlu0 %4068
        %4070 = vrot.lane.b32.xlu0 %v3809, 8
        %v4071 = vpop.permute.xlu0 %4070
        %4072 = vrot.lane.b32.xlu0 %v3858, 8
        %v4073 = vpop.permute.xlu0 %4072
        %4074 = vrot.lane.b32.xlu0 %v3907, 8
        %v4075 = vpop.permute.xlu0 %4074
        %4076 = vrot.lane.b32.xlu0 %v3956, 8
        %v4077 = vpop.permute.xlu0 %4076
        %4078 = vrot.lane.b32.xlu0 %v4005, 8
        %v4079 = vpop.permute.xlu0 %4078
        %4080 = vrot.lane.b32.xlu0 %v4054, 8
        %v4081 = vpop.permute.xlu0 %4080
        %4098 = vrot.lane.b32.xlu0 %v3695, 16
        %v4099 = vpop.permute.xlu0 %4098
        %4100 = vrot.lane.b32.xlu0 %v3744, 16
        %v4101 = vpop.permute.xlu0 %4100
        %4102 = vrot.lane.b32.xlu0 %v3793, 16
        %v4103 = vpop.permute.xlu0 %4102
        %4104 = vrot.lane.b32.xlu0 %v3842, 16
        %v4105 = vpop.permute.xlu0 %4104
        %4106 = vrot.lane.b32.xlu0 %v3891, 16
        %v4107 = vpop.permute.xlu0 %4106
        %4108 = vrot.lane.b32.xlu0 %v3940, 16
        %v4109 = vpop.permute.xlu0 %4108
        %4110 = vrot.lane.b32.xlu0 %v3989, 16
        %v4111 = vpop.permute.xlu0 %4110
        %4112 = vrot.lane.b32.xlu0 %v4038, 16
        %v4113 = vpop.permute.xlu0 %4112
        %4130 = vrot.lane.b32.xlu0 %v3712, 24
        %v4131 = vpop.permute.xlu0 %4130
        %4132 = vrot.lane.b32.xlu0 %v3761, 24
        %v4133 = vpop.permute.xlu0 %4132
        %4134 = vrot.lane.b32.xlu0 %v3810, 24
        %v4135 = vpop.permute.xlu0 %4134
        %4136 = vrot.lane.b32.xlu0 %v3859, 24
        %v4137 = vpop.permute.xlu0 %4136
        %4138 = vrot.lane.b32.xlu0 %v3908, 24
        %v4139 = vpop.permute.xlu0 %4138
        %4140 = vrot.lane.b32.xlu0 %v3957, 24
        %v4141 = vpop.permute.xlu0 %4140
        %4142 = vrot.lane.b32.xlu0 %v4006, 24
        %v4143 = vpop.permute.xlu0 %4142
        %4144 = vrot.lane.b32.xlu0 %v4055, 24
        %v4145 = vpop.permute.xlu0 %4144
        %4162 = vrot.lane.b32.xlu0 %v3703, 32
        %v4163 = vpop.permute.xlu0 %4162
        %4164 = vrot.lane.b32.xlu0 %v3752, 32
        %v4165 = vpop.permute.xlu0 %4164
        %4166 = vrot.lane.b32.xlu0 %v3801, 32
        %v4167 = vpop.permute.xlu0 %4166
        %4168 = vrot.lane.b32.xlu0 %v3850, 32
        %v4169 = vpop.permute.xlu0 %4168
        %4170 = vrot.lane.b32.xlu0 %v3899, 32
        %v4171 = vpop.permute.xlu0 %4170
        %4172 = vrot.lane.b32.xlu0 %v3948, 32
        %v4173 = vpop.permute.xlu0 %4172
        %4174 = vrot.lane.b32.xlu0 %v3997, 32
        %v4175 = vpop.permute.xlu0 %4174
        %4176 = vrot.lane.b32.xlu0 %v4046, 32
        %v4177 = vpop.permute.xlu0 %4176
        %4194 = vrot.lane.b32.xlu0 %v3713, 40
        %v4195 = vpop.permute.xlu0 %4194
        %4196 = vrot.lane.b32.xlu0 %v3762, 40
        %v4197 = vpop.permute.xlu0 %4196
        %4198 = vrot.lane.b32.xlu0 %v3811, 40
        %v4199 = vpop.permute.xlu0 %4198
        %4200 = vrot.lane.b32.xlu0 %v3860, 40
        %v4201 = vpop.permute.xlu0 %4200
        %4202 = vrot.lane.b32.xlu0 %v3909, 40
        %v4203 = vpop.permute.xlu0 %4202
        %4204 = vrot.lane.b32.xlu0 %v3958, 40
        %v4205 = vpop.permute.xlu0 %4204
        %4206 = vrot.lane.b32.xlu0 %v4007, 40
        %v4207 = vpop.permute.xlu0 %4206
        %4208 = vrot.lane.b32.xlu0 %v4056, 40
        %v4209 = vpop.permute.xlu0 %4208
        %4226 = vrot.lane.b32.xlu0 %v3710, 48
        %v4227 = vpop.permute.xlu0 %4226
        %4228 = vrot.lane.b32.xlu0 %v3759, 48
        %v4229 = vpop.permute.xlu0 %4228
        %4230 = vrot.lane.b32.xlu0 %v3808, 48
        %v4231 = vpop.permute.xlu0 %4230
        %4232 = vrot.lane.b32.xlu0 %v3857, 48
        %v4233 = vpop.permute.xlu0 %4232
        %4234 = vrot.lane.b32.xlu0 %v3906, 48
        %v4235 = vpop.permute.xlu0 %4234
        %4236 = vrot.lane.b32.xlu0 %v3955, 48
        %v4237 = vpop.permute.xlu0 %4236
        %4238 = vrot.lane.b32.xlu0 %v4004, 48
        %v4239 = vpop.permute.xlu0 %4238
        %4240 = vrot.lane.b32.xlu0 %v4053, 48
        %v4241 = vpop.permute.xlu0 %4240
        %4258 = vrot.lane.b32.xlu0 %v3714, 56
        %v4259 = vpop.permute.xlu0 %4258
        %4260 = vrot.lane.b32.xlu0 %v3763, 56
        %v4261 = vpop.permute.xlu0 %4260
        %4262 = vrot.lane.b32.xlu0 %v3812, 56
        %v4263 = vpop.permute.xlu0 %4262
        %4264 = vrot.lane.b32.xlu0 %v3861, 56
        %v4265 = vpop.permute.xlu0 %4264
        %4266 = vrot.lane.b32.xlu0 %v3910, 56
        %v4267 = vpop.permute.xlu0 %4266
        %4268 = vrot.lane.b32.xlu0 %v3959, 56
        %v4269 = vpop.permute.xlu0 %4268
        %4270 = vrot.lane.b32.xlu0 %v4008, 56
        %v4271 = vpop.permute.xlu0 %4270
        %4272 = vrot.lane.b32.xlu0 %v4057, 56
        %v4273 = vpop.permute.xlu0 %4272
        %v4282 = vsel %vm1245, %v3688, %v4067
        %v4283 = vsel %vm1245, %v3737, %v4069
        %v4284 = vsel %vm1245, %v3786, %v4071
        %v4285 = vsel %vm1245, %v3835, %v4073
        %v4286 = vsel %vm1245, %v3884, %v4075
        %v4287 = vsel %vm1245, %v3933, %v4077
        %v4288 = vsel %vm1245, %v3982, %v4079
        %v4289 = vsel %vm1245, %v4031, %v4081
        %v4290 = vsel %vm1937, %v4282, %v4099
        %v4291 = vsel %vm1937, %v4283, %v4101
        %v4292 = vsel %vm1937, %v4284, %v4103
        %v4293 = vsel %vm1937, %v4285, %v4105
        %v4294 = vsel %vm1937, %v4286, %v4107
        %v4295 = vsel %vm1937, %v4287, %v4109
        %v4296 = vsel %vm1937, %v4288, %v4111
        %v4297 = vsel %vm1937, %v4289, %v4113
        %v4298 = vsel %vm2941, %v4290, %v4131
        %v4299 = vsel %vm2941, %v4291, %v4133
        %v4300 = vsel %vm2941, %v4292, %v4135
        %v4301 = vsel %vm2941, %v4293, %v4137
        %v4302 = vsel %vm2941, %v4294, %v4139
        %v4303 = vsel %vm2941, %v4295, %v4141
        %v4304 = vsel %vm2941, %v4296, %v4143
        %v4305 = vsel %vm2941, %v4297, %v4145
        %v4306 = vsel %vm1939, %v4298, %v4163
        %v4307 = vsel %vm1939, %v4299, %v4165
        %v4308 = vsel %vm1939, %v4300, %v4167
        %v4309 = vsel %vm1939, %v4301, %v4169
        %v4310 = vsel %vm1939, %v4302, %v4171
        %v4311 = vsel %vm1939, %v4303, %v4173
        %v4312 = vsel %vm1939, %v4304, %v4175
        %v4313 = vsel %vm1939, %v4305, %v4177
        %v4314 = vsel %vm2944, %v4306, %v4195
        %v4315 = vsel %vm2944, %v4307, %v4197
        %v4316 = vsel %vm2944, %v4308, %v4199
        %v4317 = vsel %vm2944, %v4309, %v4201
        %v4318 = vsel %vm2944, %v4310, %v4203
        %v4319 = vsel %vm2944, %v4311, %v4205
        %v4320 = vsel %vm2944, %v4312, %v4207
        %v4321 = vsel %vm2944, %v4313, %v4209
        %v4322 = vsel %vm1941, %v4314, %v4227
        %v4323 = vsel %vm1941, %v4315, %v4229
        %v4324 = vsel %vm1941, %v4316, %v4231
        %v4325 = vsel %vm1941, %v4317, %v4233
        %v4326 = vsel %vm1941, %v4318, %v4235
        %v4327 = vsel %vm1941, %v4319, %v4237
        %v4328 = vsel %vm1941, %v4320, %v4239
        %v4329 = vsel %vm1941, %v4321, %v4241
        %v4330 = vsel %vm2947, %v4322, %v4259
        %v4331 = vsel %vm2947, %v4323, %v4261
        %v4332 = vsel %vm2947, %v4324, %v4263
        %v4333 = vsel %vm2947, %v4325, %v4265
        %v4334 = vsel %vm2947, %v4326, %v4267
        %v4335 = vsel %vm2947, %v4327, %v4269
        %v4336 = vsel %vm2947, %v4328, %v4271
        %v4337 = vsel %vm2947, %v4329, %v4273
        %v4338 = vlaneseq
        %v4339 = vshrl.u32 %v4338, 7
        %v4340 = vsub.s32 0, %v4339
        %v4341 = vrot.slane %v4330, %v4340
        %v4342 = vlaneseq
        %v4343 = vshrl.u32 %v4342, 7
        %v4344 = vsub.s32 0, %v4343
        %v4345 = vrot.slane %v4331, %v4344
        %v4346 = vlaneseq
        %v4347 = vshrl.u32 %v4346, 7
        %v4348 = vsub.s32 0, %v4347
        %v4349 = vrot.slane %v4332, %v4348
        %v4350 = vlaneseq
        %v4351 = vshrl.u32 %v4350, 7
        %v4352 = vsub.s32 0, %v4351
        %v4353 = vrot.slane %v4333, %v4352
        %v4354 = vlaneseq
        %v4355 = vshrl.u32 %v4354, 7
        %v4356 = vsub.s32 0, %v4355
        %v4357 = vrot.slane %v4334, %v4356
        %v4358 = vlaneseq
        %v4359 = vshrl.u32 %v4358, 7
        %v4360 = vsub.s32 0, %v4359
        %v4361 = vrot.slane %v4335, %v4360
        %v4362 = vlaneseq
        %v4363 = vshrl.u32 %v4362, 7
        %v4364 = vsub.s32 0, %v4363
        %v4365 = vrot.slane %v4336, %v4364
        %v4366 = vlaneseq
        %v4367 = vshrl.u32 %v4366, 7
        %v4368 = vsub.s32 0, %v4367
        %v4369 = vrot.slane %v4337, %v4368
        %4371 = vset.pattern.permute.xlu0 0
        %4372 = vperm.xlu0 %4371, %v687
        %v4373 = vpop.permute.xlu0 %4372
        %v4375 = vmul.f32 %v4341, %v4373
        %v4376 = vmul.f32 %v4345, %v4373
        %v4377 = vmul.f32 %v4349, %v4373
        %v4378 = vmul.f32 %v4353, %v4373
        %v4379 = vmul.f32 %v4357, %v4373
        %v4380 = vmul.f32 %v4361, %v4373
        %v4381 = vmul.f32 %v4365, %v4373
        %v4382 = vmul.f32 %v4369, %v4373
        %v4383 = vadd.f32 %v3658, %v4375
        %v4384 = vadd.f32 %v3659, %v4376
        %v4385 = vadd.f32 %v3660, %v4377
        %v4386 = vadd.f32 %v3661, %v4378
        %v4387 = vadd.f32 %v3662, %v4379
        %v4388 = vadd.f32 %v3663, %v4380
        %v4389 = vadd.f32 %v3664, %v4381
        %v4390 = vadd.f32 %v3665, %v4382
        %v4391 = vadd.f32 %v4383, 1.0
        %v4392 = vadd.f32 %v4384, 1.0
        %v4393 = vadd.f32 %v4385, 1.0
        %v4394 = vadd.f32 %v4386, 1.0
        %v4395 = vadd.f32 %v4387, 1.0
        %v4396 = vadd.f32 %v4388, 1.0
        %v4397 = vadd.f32 %v4389, 1.0
        %v4398 = vadd.f32 %v4390, 1.0
        %v4399 = vmul.f32 %v4391, 0.5
        %v4400 = vmul.f32 %v4392, 0.5
        %v4401 = vmul.f32 %v4393, 0.5
        %v4402 = vmul.f32 %v4394, 0.5
        %v4403 = vmul.f32 %v4395, 0.5
        %v4404 = vmul.f32 %v4396, 0.5
        %v4405 = vmul.f32 %v4397, 0.5
        %v4406 = vmul.f32 %v4398, 0.5
        %v4407 = vmul.f32 %v4399, %v4399
        %v4408 = vmul.f32 %v4400, %v4400
        %v4409 = vmul.f32 %v4401, %v4401
        %v4410 = vmul.f32 %v4402, %v4402
        %v4411 = vmul.f32 %v4403, %v4403
        %v4412 = vmul.f32 %v4404, %v4404
        %v4413 = vmul.f32 %v4405, %v4405
        %v4414 = vmul.f32 %v4406, %v4406
        %v4415 = vmul.f32 %v4407, %v4407
        %v4416 = vmul.f32 %v4408, %v4408
        %v4417 = vmul.f32 %v4409, %v4409
        %v4418 = vmul.f32 %v4410, %v4410
        %v4419 = vmul.f32 %v4411, %v4411
        %v4420 = vmul.f32 %v4412, %v4412
        %v4421 = vmul.f32 %v4413, %v4413
        %v4422 = vmul.f32 %v4414, %v4414
        %v4423 = vmul.f32 %v4415, %v4415
        %v4424 = vmul.f32 %v4416, %v4416
        %v4425 = vmul.f32 %v4417, %v4417
        %v4426 = vmul.f32 %v4418, %v4418
        %v4427 = vmul.f32 %v4419, %v4419
        %v4428 = vmul.f32 %v4420, %v4420
        %v4429 = vmul.f32 %v4421, %v4421
        %v4430 = vmul.f32 %v4422, %v4422
        %v4431 = vmul.f32 %v4423, %v4423
        %v4432 = vmul.f32 %v4424, %v4424
        %v4433 = vmul.f32 %v4425, %v4425
        %v4434 = vmul.f32 %v4426, %v4426
        %v4435 = vmul.f32 %v4427, %v4427
        %v4436 = vmul.f32 %v4428, %v4428
        %v4437 = vmul.f32 %v4429, %v4429
        %v4438 = vmul.f32 %v4430, %v4430
        %v4439 = vmul.f32 %v4431, %v4431
        %v4440 = vmul.f32 %v4432, %v4432
        %v4441 = vmul.f32 %v4433, %v4433
        %v4442 = vmul.f32 %v4434, %v4434
        %v4443 = vmul.f32 %v4435, %v4435
        %v4444 = vmul.f32 %v4436, %v4436
        %v4445 = vmul.f32 %v4437, %v4437
        %v4446 = vmul.f32 %v4438, %v4438
        %v4447 = vcombine.high %v2605, 0.0
        %v4449 = vunpack.c.l.s4 1983009808
        %v4450 = vunpack.c.0.s8 %v4449
        %v4451 = vlaneseq
        %v4452 = vshrl.u32 %v4451, 7
        %v4453 = vsub.s32 %v4450, %v4452
        %v4454 = vrot.slane %v2605, %v4453
        %v4456 = vunpack.c.l.s4 1983009808
        %v4457 = vunpack.c.0.s8 %v4456
        %v4458 = vlaneseq
        %v4459 = vshrl.u32 %v4458, 7
        %v4460 = vsub.s32 %v4457, %v4459
        %v4461 = vrot.slane %v4447, %v4460
        %v4462 = vcombine.high %v4454, 0.0
        %v4464 = vunpack.c.l.s4 1934713408
        %v4465 = vunpack.c.0.s8 %v4464
        %v4466 = vlaneseq
        %v4467 = vshrl.u32 %v4466, 7
        %v4468 = vsub.s32 %v4465, %v4467
        %v4469 = vrot.slane %v4454, %v4468
        %v4471 = vunpack.c.l.s4 1934713408
        %v4472 = vunpack.c.0.s8 %v4471
        %v4473 = vlaneseq
        %v4474 = vshrl.u32 %v4473, 7
        %v4475 = vsub.s32 %v4472, %v4474
        %v4476 = vrot.slane %v4462, %v4475
        %v4477 = vcombine.high %v4461, 0.0
        %v4479 = vunpack.c.l.s4 1934713408
        %v4480 = vunpack.c.0.s8 %v4479
        %v4481 = vlaneseq
        %v4482 = vshrl.u32 %v4481, 7
        %v4483 = vsub.s32 %v4480, %v4482
        %v4484 = vrot.slane %v4461, %v4483
        %v4486 = vunpack.c.l.s4 1934713408
        %v4487 = vunpack.c.0.s8 %v4486
        %v4488 = vlaneseq
        %v4489 = vshrl.u32 %v4488, 7
        %v4490 = vsub.s32 %v4487, %v4489
        %v4491 = vrot.slane %v4477, %v4490
        %v4492 = vcombine.high %v4469, 0.0
        %v4493 = vcombine.high %v4476, 0.0
        %v4494 = vcombine.high %v4484, 0.0
        %v4495 = vcombine.high %v4491, 0.0
        %v4496 = vcombine.high %v2606, 0.0
        %v4498 = vunpack.c.l.s4 1983009808
        %v4499 = vunpack.c.0.s8 %v4498
        %v4500 = vlaneseq
        %v4501 = vshrl.u32 %v4500, 7
        %v4502 = vsub.s32 %v4499, %v4501
        %v4503 = vrot.slane %v2606, %v4502
        %v4505 = vunpack.c.l.s4 1983009808
        %v4506 = vunpack.c.0.s8 %v4505
        %v4507 = vlaneseq
        %v4508 = vshrl.u32 %v4507, 7
        %v4509 = vsub.s32 %v4506, %v4508
        %v4510 = vrot.slane %v4496, %v4509
        %v4511 = vcombine.high %v4503, 0.0
        %v4513 = vunpack.c.l.s4 1934713408
        %v4514 = vunpack.c.0.s8 %v4513
        %v4515 = vlaneseq
        %v4516 = vshrl.u32 %v4515, 7
        %v4517 = vsub.s32 %v4514, %v4516
        %v4518 = vrot.slane %v4503, %v4517
        %v4520 = vunpack.c.l.s4 1934713408
        %v4521 = vunpack.c.0.s8 %v4520
        %v4522 = vlaneseq
        %v4523 = vshrl.u32 %v4522, 7
        %v4524 = vsub.s32 %v4521, %v4523
        %v4525 = vrot.slane %v4511, %v4524
        %v4526 = vcombine.high %v4510, 0.0
        %v4528 = vunpack.c.l.s4 1934713408
        %v4529 = vunpack.c.0.s8 %v4528
        %v4530 = vlaneseq
        %v4531 = vshrl.u32 %v4530, 7
        %v4532 = vsub.s32 %v4529, %v4531
        %v4533 = vrot.slane %v4510, %v4532
        %v4535 = vunpack.c.l.s4 1934713408
        %v4536 = vunpack.c.0.s8 %v4535
        %v4537 = vlaneseq
        %v4538 = vshrl.u32 %v4537, 7
        %v4539 = vsub.s32 %v4536, %v4538
        %v4540 = vrot.slane %v4526, %v4539
        %v4541 = vcombine.high %v4518, 0.0
        %v4542 = vcombine.high %v4525, 0.0
        %v4543 = vcombine.high %v4533, 0.0
        %v4544 = vcombine.high %v4540, 0.0
        %v4545 = vcombine.high %v2607, 0.0
        %v4547 = vunpack.c.l.s4 1983009808
        %v4548 = vunpack.c.0.s8 %v4547
        %v4549 = vlaneseq
        %v4550 = vshrl.u32 %v4549, 7
        %v4551 = vsub.s32 %v4548, %v4550
        %v4552 = vrot.slane %v2607, %v4551
        %v4554 = vunpack.c.l.s4 1983009808
        %v4555 = vunpack.c.0.s8 %v4554
        %v4556 = vlaneseq
        %v4557 = vshrl.u32 %v4556, 7
        %v4558 = vsub.s32 %v4555, %v4557
        %v4559 = vrot.slane %v4545, %v4558
        %v4560 = vcombine.high %v4552, 0.0
        %v4562 = vunpack.c.l.s4 1934713408
        %v4563 = vunpack.c.0.s8 %v4562
        %v4564 = vlaneseq
        %v4565 = vshrl.u32 %v4564, 7
        %v4566 = vsub.s32 %v4563, %v4565
        %v4567 = vrot.slane %v4552, %v4566
        %v4569 = vunpack.c.l.s4 1934713408
        %v4570 = vunpack.c.0.s8 %v4569
        %v4571 = vlaneseq
        %v4572 = vshrl.u32 %v4571, 7
        %v4573 = vsub.s32 %v4570, %v4572
        %v4574 = vrot.slane %v4560, %v4573
        %v4575 = vcombine.high %v4559, 0.0
        %v4577 = vunpack.c.l.s4 1934713408
        %v4578 = vunpack.c.0.s8 %v4577
        %v4579 = vlaneseq
        %v4580 = vshrl.u32 %v4579, 7
        %v4581 = vsub.s32 %v4578, %v4580
        %v4582 = vrot.slane %v4559, %v4581
        %v4584 = vunpack.c.l.s4 1934713408
        %v4585 = vunpack.c.0.s8 %v4584
        %v4586 = vlaneseq
        %v4587 = vshrl.u32 %v4586, 7
        %v4588 = vsub.s32 %v4585, %v4587
        %v4589 = vrot.slane %v4575, %v4588
        %v4590 = vcombine.high %v4567, 0.0
        %v4591 = vcombine.high %v4574, 0.0
        %v4592 = vcombine.high %v4582, 0.0
        %v4593 = vcombine.high %v4589, 0.0
        %v4594 = vcombine.high %v2608, 0.0
        %v4596 = vunpack.c.l.s4 1983009808
        %v4597 = vunpack.c.0.s8 %v4596
        %v4598 = vlaneseq
        %v4599 = vshrl.u32 %v4598, 7
        %v4600 = vsub.s32 %v4597, %v4599
        %v4601 = vrot.slane %v2608, %v4600
        %v4603 = vunpack.c.l.s4 1983009808
        %v4604 = vunpack.c.0.s8 %v4603
        %v4605 = vlaneseq
        %v4606 = vshrl.u32 %v4605, 7
        %v4607 = vsub.s32 %v4604, %v4606
        %v4608 = vrot.slane %v4594, %v4607
        %v4609 = vcombine.high %v4601, 0.0
        %v4611 = vunpack.c.l.s4 1934713408
        %v4612 = vunpack.c.0.s8 %v4611
        %v4613 = vlaneseq
        %v4614 = vshrl.u32 %v4613, 7
        %v4615 = vsub.s32 %v4612, %v4614
        %v4616 = vrot.slane %v4601, %v4615
        %v4618 = vunpack.c.l.s4 1934713408
        %v4619 = vunpack.c.0.s8 %v4618
        %v4620 = vlaneseq
        %v4621 = vshrl.u32 %v4620, 7
        %v4622 = vsub.s32 %v4619, %v4621
        %v4623 = vrot.slane %v4609, %v4622
        %v4624 = vcombine.high %v4608, 0.0
        %v4626 = vunpack.c.l.s4 1934713408
        %v4627 = vunpack.c.0.s8 %v4626
        %v4628 = vlaneseq
        %v4629 = vshrl.u32 %v4628, 7
        %v4630 = vsub.s32 %v4627, %v4629
        %v4631 = vrot.slane %v4608, %v4630
        %v4633 = vunpack.c.l.s4 1934713408
        %v4634 = vunpack.c.0.s8 %v4633
        %v4635 = vlaneseq
        %v4636 = vshrl.u32 %v4635, 7
        %v4637 = vsub.s32 %v4634, %v4636
        %v4638 = vrot.slane %v4624, %v4637
        %v4639 = vcombine.high %v4616, 0.0
        %v4640 = vcombine.high %v4623, 0.0
        %v4641 = vcombine.high %v4631, 0.0
        %v4642 = vcombine.high %v4638, 0.0
        %v4643 = vcombine.high %v2609, 0.0
        %v4645 = vunpack.c.l.s4 1983009808
        %v4646 = vunpack.c.0.s8 %v4645
        %v4647 = vlaneseq
        %v4648 = vshrl.u32 %v4647, 7
        %v4649 = vsub.s32 %v4646, %v4648
        %v4650 = vrot.slane %v2609, %v4649
        %v4652 = vunpack.c.l.s4 1983009808
        %v4653 = vunpack.c.0.s8 %v4652
        %v4654 = vlaneseq
        %v4655 = vshrl.u32 %v4654, 7
        %v4656 = vsub.s32 %v4653, %v4655
        %v4657 = vrot.slane %v4643, %v4656
        %v4658 = vcombine.high %v4650, 0.0
        %v4660 = vunpack.c.l.s4 1934713408
        %v4661 = vunpack.c.0.s8 %v4660
        %v4662 = vlaneseq
        %v4663 = vshrl.u32 %v4662, 7
        %v4664 = vsub.s32 %v4661, %v4663
        %v4665 = vrot.slane %v4650, %v4664
        %v4667 = vunpack.c.l.s4 1934713408
        %v4668 = vunpack.c.0.s8 %v4667
        %v4669 = vlaneseq
        %v4670 = vshrl.u32 %v4669, 7
        %v4671 = vsub.s32 %v4668, %v4670
        %v4672 = vrot.slane %v4658, %v4671
        %v4673 = vcombine.high %v4657, 0.0
        %v4675 = vunpack.c.l.s4 1934713408
        %v4676 = vunpack.c.0.s8 %v4675
        %v4677 = vlaneseq
        %v4678 = vshrl.u32 %v4677, 7
        %v4679 = vsub.s32 %v4676, %v4678
        %v4680 = vrot.slane %v4657, %v4679
        %v4682 = vunpack.c.l.s4 1934713408
        %v4683 = vunpack.c.0.s8 %v4682
        %v4684 = vlaneseq
        %v4685 = vshrl.u32 %v4684, 7
        %v4686 = vsub.s32 %v4683, %v4685
        %v4687 = vrot.slane %v4673, %v4686
        %v4688 = vcombine.high %v4665, 0.0
        %v4689 = vcombine.high %v4672, 0.0
        %v4690 = vcombine.high %v4680, 0.0
        %v4691 = vcombine.high %v4687, 0.0
        %v4692 = vcombine.high %v2610, 0.0
        %v4694 = vunpack.c.l.s4 1983009808
        %v4695 = vunpack.c.0.s8 %v4694
        %v4696 = vlaneseq
        %v4697 = vshrl.u32 %v4696, 7
        %v4698 = vsub.s32 %v4695, %v4697
        %v4699 = vrot.slane %v2610, %v4698
        %v4701 = vunpack.c.l.s4 1983009808
        %v4702 = vunpack.c.0.s8 %v4701
        %v4703 = vlaneseq
        %v4704 = vshrl.u32 %v4703, 7
        %v4705 = vsub.s32 %v4702, %v4704
        %v4706 = vrot.slane %v4692, %v4705
        %v4707 = vcombine.high %v4699, 0.0
        %v4709 = vunpack.c.l.s4 1934713408
        %v4710 = vunpack.c.0.s8 %v4709
        %v4711 = vlaneseq
        %v4712 = vshrl.u32 %v4711, 7
        %v4713 = vsub.s32 %v4710, %v4712
        %v4714 = vrot.slane %v4699, %v4713
        %v4716 = vunpack.c.l.s4 1934713408
        %v4717 = vunpack.c.0.s8 %v4716
        %v4718 = vlaneseq
        %v4719 = vshrl.u32 %v4718, 7
        %v4720 = vsub.s32 %v4717, %v4719
        %v4721 = vrot.slane %v4707, %v4720
        %v4722 = vcombine.high %v4706, 0.0
        %v4724 = vunpack.c.l.s4 1934713408
        %v4725 = vunpack.c.0.s8 %v4724
        %v4726 = vlaneseq
        %v4727 = vshrl.u32 %v4726, 7
        %v4728 = vsub.s32 %v4725, %v4727
        %v4729 = vrot.slane %v4706, %v4728
        %v4731 = vunpack.c.l.s4 1934713408
        %v4732 = vunpack.c.0.s8 %v4731
        %v4733 = vlaneseq
        %v4734 = vshrl.u32 %v4733, 7
        %v4735 = vsub.s32 %v4732, %v4734
        %v4736 = vrot.slane %v4722, %v4735
        %v4737 = vcombine.high %v4714, 0.0
        %v4738 = vcombine.high %v4721, 0.0
        %v4739 = vcombine.high %v4729, 0.0
        %v4740 = vcombine.high %v4736, 0.0
        %v4741 = vcombine.high %v2611, 0.0
        %v4743 = vunpack.c.l.s4 1983009808
        %v4744 = vunpack.c.0.s8 %v4743
        %v4745 = vlaneseq
        %v4746 = vshrl.u32 %v4745, 7
        %v4747 = vsub.s32 %v4744, %v4746
        %v4748 = vrot.slane %v2611, %v4747
        %v4750 = vunpack.c.l.s4 1983009808
        %v4751 = vunpack.c.0.s8 %v4750
        %v4752 = vlaneseq
        %v4753 = vshrl.u32 %v4752, 7
        %v4754 = vsub.s32 %v4751, %v4753
        %v4755 = vrot.slane %v4741, %v4754
        %v4756 = vcombine.high %v4748, 0.0
        %v4758 = vunpack.c.l.s4 1934713408
        %v4759 = vunpack.c.0.s8 %v4758
        %v4760 = vlaneseq
        %v4761 = vshrl.u32 %v4760, 7
        %v4762 = vsub.s32 %v4759, %v4761
        %v4763 = vrot.slane %v4748, %v4762
        %v4765 = vunpack.c.l.s4 1934713408
        %v4766 = vunpack.c.0.s8 %v4765
        %v4767 = vlaneseq
        %v4768 = vshrl.u32 %v4767, 7
        %v4769 = vsub.s32 %v4766, %v4768
        %v4770 = vrot.slane %v4756, %v4769
        %v4771 = vcombine.high %v4755, 0.0
        %v4773 = vunpack.c.l.s4 1934713408
        %v4774 = vunpack.c.0.s8 %v4773
        %v4775 = vlaneseq
        %v4776 = vshrl.u32 %v4775, 7
        %v4777 = vsub.s32 %v4774, %v4776
        %v4778 = vrot.slane %v4755, %v4777
        %v4780 = vunpack.c.l.s4 1934713408
        %v4781 = vunpack.c.0.s8 %v4780
        %v4782 = vlaneseq
        %v4783 = vshrl.u32 %v4782, 7
        %v4784 = vsub.s32 %v4781, %v4783
        %v4785 = vrot.slane %v4771, %v4784
        %v4786 = vcombine.high %v4763, 0.0
        %v4787 = vcombine.high %v4770, 0.0
        %v4788 = vcombine.high %v4778, 0.0
        %v4789 = vcombine.high %v4785, 0.0
        %v4790 = vcombine.high %v2612, 0.0
        %v4792 = vunpack.c.l.s4 1983009808
        %v4793 = vunpack.c.0.s8 %v4792
        %v4794 = vlaneseq
        %v4795 = vshrl.u32 %v4794, 7
        %v4796 = vsub.s32 %v4793, %v4795
        %v4797 = vrot.slane %v2612, %v4796
        %v4799 = vunpack.c.l.s4 1983009808
        %v4800 = vunpack.c.0.s8 %v4799
        %v4801 = vlaneseq
        %v4802 = vshrl.u32 %v4801, 7
        %v4803 = vsub.s32 %v4800, %v4802
        %v4804 = vrot.slane %v4790, %v4803
        %v4805 = vcombine.high %v4797, 0.0
        %v4807 = vunpack.c.l.s4 1934713408
        %v4808 = vunpack.c.0.s8 %v4807
        %v4809 = vlaneseq
        %v4810 = vshrl.u32 %v4809, 7
        %v4811 = vsub.s32 %v4808, %v4810
        %v4812 = vrot.slane %v4797, %v4811
        %v4814 = vunpack.c.l.s4 1934713408
        %v4815 = vunpack.c.0.s8 %v4814
        %v4816 = vlaneseq
        %v4817 = vshrl.u32 %v4816, 7
        %v4818 = vsub.s32 %v4815, %v4817
        %v4819 = vrot.slane %v4805, %v4818
        %v4820 = vcombine.high %v4804, 0.0
        %v4822 = vunpack.c.l.s4 1934713408
        %v4823 = vunpack.c.0.s8 %v4822
        %v4824 = vlaneseq
        %v4825 = vshrl.u32 %v4824, 7
        %v4826 = vsub.s32 %v4823, %v4825
        %v4827 = vrot.slane %v4804, %v4826
        %v4829 = vunpack.c.l.s4 1934713408
        %v4830 = vunpack.c.0.s8 %v4829
        %v4831 = vlaneseq
        %v4832 = vshrl.u32 %v4831, 7
        %v4833 = vsub.s32 %v4830, %v4832
        %v4834 = vrot.slane %v4820, %v4833
        %v4835 = vcombine.high %v4812, 0.0
        %v4836 = vcombine.high %v4819, 0.0
        %v4837 = vcombine.high %v4827, 0.0
        %v4838 = vcombine.high %v4834, 0.0
        %4847 = vrot.lane.b32.xlu0 %v4492, 8
        %v4848 = vpop.permute.xlu0 %4847
        %4849 = vrot.lane.b32.xlu0 %v4541, 8
        %v4850 = vpop.permute.xlu0 %4849
        %4851 = vrot.lane.b32.xlu0 %v4590, 8
        %v4852 = vpop.permute.xlu0 %4851
        %4853 = vrot.lane.b32.xlu0 %v4639, 8
        %v4854 = vpop.permute.xlu0 %4853
        %4855 = vrot.lane.b32.xlu0 %v4688, 8
        %v4856 = vpop.permute.xlu0 %4855
        %4857 = vrot.lane.b32.xlu0 %v4737, 8
        %v4858 = vpop.permute.xlu0 %4857
        %4859 = vrot.lane.b32.xlu0 %v4786, 8
        %v4860 = vpop.permute.xlu0 %4859
        %4861 = vrot.lane.b32.xlu0 %v4835, 8
        %v4862 = vpop.permute.xlu0 %4861
        %4879 = vrot.lane.b32.xlu0 %v4476, 16
        %v4880 = vpop.permute.xlu0 %4879
        %4881 = vrot.lane.b32.xlu0 %v4525, 16
        %v4882 = vpop.permute.xlu0 %4881
        %4883 = vrot.lane.b32.xlu0 %v4574, 16
        %v4884 = vpop.permute.xlu0 %4883
        %4885 = vrot.lane.b32.xlu0 %v4623, 16
        %v4886 = vpop.permute.xlu0 %4885
        %4887 = vrot.lane.b32.xlu0 %v4672, 16
        %v4888 = vpop.permute.xlu0 %4887
        %4889 = vrot.lane.b32.xlu0 %v4721, 16
        %v4890 = vpop.permute.xlu0 %4889
        %4891 = vrot.lane.b32.xlu0 %v4770, 16
        %v4892 = vpop.permute.xlu0 %4891
        %4893 = vrot.lane.b32.xlu0 %v4819, 16
        %v4894 = vpop.permute.xlu0 %4893
        %4911 = vrot.lane.b32.xlu0 %v4493, 24
        %v4912 = vpop.permute.xlu0 %4911
        %4913 = vrot.lane.b32.xlu0 %v4542, 24
        %v4914 = vpop.permute.xlu0 %4913
        %4915 = vrot.lane.b32.xlu0 %v4591, 24
        %v4916 = vpop.permute.xlu0 %4915
        %4917 = vrot.lane.b32.xlu0 %v4640, 24
        %v4918 = vpop.permute.xlu0 %4917
        %4919 = vrot.lane.b32.xlu0 %v4689, 24
        %v4920 = vpop.permute.xlu0 %4919
        %4921 = vrot.lane.b32.xlu0 %v4738, 24
        %v4922 = vpop.permute.xlu0 %4921
        %4923 = vrot.lane.b32.xlu0 %v4787, 24
        %v4924 = vpop.permute.xlu0 %4923
        %4925 = vrot.lane.b32.xlu0 %v4836, 24
        %v4926 = vpop.permute.xlu0 %4925
        %4943 = vrot.lane.b32.xlu0 %v4484, 32
        %v4944 = vpop.permute.xlu0 %4943
        %4945 = vrot.lane.b32.xlu0 %v4533, 32
        %v4946 = vpop.permute.xlu0 %4945
        %4947 = vrot.lane.b32.xlu0 %v4582, 32
        %v4948 = vpop.permute.xlu0 %4947
        %4949 = vrot.lane.b32.xlu0 %v4631, 32
        %v4950 = vpop.permute.xlu0 %4949
        %4951 = vrot.lane.b32.xlu0 %v4680, 32
        %v4952 = vpop.permute.xlu0 %4951
        %4953 = vrot.lane.b32.xlu0 %v4729, 32
        %v4954 = vpop.permute.xlu0 %4953
        %4955 = vrot.lane.b32.xlu0 %v4778, 32
        %v4956 = vpop.permute.xlu0 %4955
        %4957 = vrot.lane.b32.xlu0 %v4827, 32
        %v4958 = vpop.permute.xlu0 %4957
        %4975 = vrot.lane.b32.xlu0 %v4494, 40
        %v4976 = vpop.permute.xlu0 %4975
        %4977 = vrot.lane.b32.xlu0 %v4543, 40
        %v4978 = vpop.permute.xlu0 %4977
        %4979 = vrot.lane.b32.xlu0 %v4592, 40
        %v4980 = vpop.permute.xlu0 %4979
        %4981 = vrot.lane.b32.xlu0 %v4641, 40
        %v4982 = vpop.permute.xlu0 %4981
        %4983 = vrot.lane.b32.xlu0 %v4690, 40
        %v4984 = vpop.permute.xlu0 %4983
        %4985 = vrot.lane.b32.xlu0 %v4739, 40
        %v4986 = vpop.permute.xlu0 %4985
        %4987 = vrot.lane.b32.xlu0 %v4788, 40
        %v4988 = vpop.permute.xlu0 %4987
        %4989 = vrot.lane.b32.xlu0 %v4837, 40
        %v4990 = vpop.permute.xlu0 %4989
        %5007 = vrot.lane.b32.xlu0 %v4491, 48
        %v5008 = vpop.permute.xlu0 %5007
        %5009 = vrot.lane.b32.xlu0 %v4540, 48
        %v5010 = vpop.permute.xlu0 %5009
        %5011 = vrot.lane.b32.xlu0 %v4589, 48
        %v5012 = vpop.permute.xlu0 %5011
        %5013 = vrot.lane.b32.xlu0 %v4638, 48
        %v5014 = vpop.permute.xlu0 %5013
        %5015 = vrot.lane.b32.xlu0 %v4687, 48
        %v5016 = vpop.permute.xlu0 %5015
        %5017 = vrot.lane.b32.xlu0 %v4736, 48
        %v5018 = vpop.permute.xlu0 %5017
        %5019 = vrot.lane.b32.xlu0 %v4785, 48
        %v5020 = vpop.permute.xlu0 %5019
        %5021 = vrot.lane.b32.xlu0 %v4834, 48
        %v5022 = vpop.permute.xlu0 %5021
        %5039 = vrot.lane.b32.xlu0 %v4495, 56
        %v5040 = vpop.permute.xlu0 %5039
        %5041 = vrot.lane.b32.xlu0 %v4544, 56
        %v5042 = vpop.permute.xlu0 %5041
        %5043 = vrot.lane.b32.xlu0 %v4593, 56
        %v5044 = vpop.permute.xlu0 %5043
        %5045 = vrot.lane.b32.xlu0 %v4642, 56
        %v5046 = vpop.permute.xlu0 %5045
        %5047 = vrot.lane.b32.xlu0 %v4691, 56
        %v5048 = vpop.permute.xlu0 %5047
        %5049 = vrot.lane.b32.xlu0 %v4740, 56
        %v5050 = vpop.permute.xlu0 %5049
        %5051 = vrot.lane.b32.xlu0 %v4789, 56
        %v5052 = vpop.permute.xlu0 %5051
        %5053 = vrot.lane.b32.xlu0 %v4838, 56
        %v5054 = vpop.permute.xlu0 %5053
        %v5063 = vsel %vm1245, %v4469, %v4848
        %v5064 = vsel %vm1245, %v4518, %v4850
        %v5065 = vsel %vm1245, %v4567, %v4852
        %v5066 = vsel %vm1245, %v4616, %v4854
        %v5067 = vsel %vm1245, %v4665, %v4856
        %v5068 = vsel %vm1245, %v4714, %v4858
        %v5069 = vsel %vm1245, %v4763, %v4860
        %v5070 = vsel %vm1245, %v4812, %v4862
        %v5071 = vsel %vm1937, %v5063, %v4880
        %v5072 = vsel %vm1937, %v5064, %v4882
        %v5073 = vsel %vm1937, %v5065, %v4884
        %v5074 = vsel %vm1937, %v5066, %v4886
        %v5075 = vsel %vm1937, %v5067, %v4888
        %v5076 = vsel %vm1937, %v5068, %v4890
        %v5077 = vsel %vm1937, %v5069, %v4892
        %v5078 = vsel %vm1937, %v5070, %v4894
        %v5079 = vsel %vm2941, %v5071, %v4912
        %v5080 = vsel %vm2941, %v5072, %v4914
        %v5081 = vsel %vm2941, %v5073, %v4916
        %v5082 = vsel %vm2941, %v5074, %v4918
        %v5083 = vsel %vm2941, %v5075, %v4920
        %v5084 = vsel %vm2941, %v5076, %v4922
        %v5085 = vsel %vm2941, %v5077, %v4924
        %v5086 = vsel %vm2941, %v5078, %v4926
        %v5087 = vsel %vm1939, %v5079, %v4944
        %v5088 = vsel %vm1939, %v5080, %v4946
        %v5089 = vsel %vm1939, %v5081, %v4948
        %v5090 = vsel %vm1939, %v5082, %v4950
        %v5091 = vsel %vm1939, %v5083, %v4952
        %v5092 = vsel %vm1939, %v5084, %v4954
        %v5093 = vsel %vm1939, %v5085, %v4956
        %v5094 = vsel %vm1939, %v5086, %v4958
        %v5095 = vsel %vm2944, %v5087, %v4976
        %v5096 = vsel %vm2944, %v5088, %v4978
        %v5097 = vsel %vm2944, %v5089, %v4980
        %v5098 = vsel %vm2944, %v5090, %v4982
        %v5099 = vsel %vm2944, %v5091, %v4984
        %v5100 = vsel %vm2944, %v5092, %v4986
        %v5101 = vsel %vm2944, %v5093, %v4988
        %v5102 = vsel %vm2944, %v5094, %v4990
        %v5103 = vsel %vm1941, %v5095, %v5008
        %v5104 = vsel %vm1941, %v5096, %v5010
        %v5105 = vsel %vm1941, %v5097, %v5012
        %v5106 = vsel %vm1941, %v5098, %v5014
        %v5107 = vsel %vm1941, %v5099, %v5016
        %v5108 = vsel %vm1941, %v5100, %v5018
        %v5109 = vsel %vm1941, %v5101, %v5020
        %v5110 = vsel %vm1941, %v5102, %v5022
        %v5111 = vsel %vm2947, %v5103, %v5040
        %v5112 = vsel %vm2947, %v5104, %v5042
        %v5113 = vsel %vm2947, %v5105, %v5044
        %v5114 = vsel %vm2947, %v5106, %v5046
        %v5115 = vsel %vm2947, %v5107, %v5048
        %v5116 = vsel %vm2947, %v5108, %v5050
        %v5117 = vsel %vm2947, %v5109, %v5052
        %v5118 = vsel %vm2947, %v5110, %v5054
        %v5119 = vlaneseq
        %v5120 = vshrl.u32 %v5119, 7
        %v5121 = vsub.s32 0, %v5120
        %v5122 = vrot.slane %v5111, %v5121
        %v5123 = vlaneseq
        %v5124 = vshrl.u32 %v5123, 7
        %v5125 = vsub.s32 0, %v5124
        %v5126 = vrot.slane %v5112, %v5125
        %v5127 = vlaneseq
        %v5128 = vshrl.u32 %v5127, 7
        %v5129 = vsub.s32 0, %v5128
        %v5130 = vrot.slane %v5113, %v5129
        %v5131 = vlaneseq
        %v5132 = vshrl.u32 %v5131, 7
        %v5133 = vsub.s32 0, %v5132
        %v5134 = vrot.slane %v5114, %v5133
        %v5135 = vlaneseq
        %v5136 = vshrl.u32 %v5135, 7
        %v5137 = vsub.s32 0, %v5136
        %v5138 = vrot.slane %v5115, %v5137
        %v5139 = vlaneseq
        %v5140 = vshrl.u32 %v5139, 7
        %v5141 = vsub.s32 0, %v5140
        %v5142 = vrot.slane %v5116, %v5141
        %v5143 = vlaneseq
        %v5144 = vshrl.u32 %v5143, 7
        %v5145 = vsub.s32 0, %v5144
        %v5146 = vrot.slane %v5117, %v5145
        %v5147 = vlaneseq
        %v5148 = vshrl.u32 %v5147, 7
        %v5149 = vsub.s32 0, %v5148
        %v5150 = vrot.slane %v5118, %v5149
        %5152 = vset.pattern.permute.xlu0 0
        %5153 = vperm.xlu0 %5152, %v688
        %v5154 = vpop.permute.xlu0 %5153
        %v5156 = vsub.f32 %v5122, %v5154
        %v5157 = vsub.f32 %v5126, %v5154
        %v5158 = vsub.f32 %v5130, %v5154
        %v5159 = vsub.f32 %v5134, %v5154
        %v5160 = vsub.f32 %v5138, %v5154
        %v5161 = vsub.f32 %v5142, %v5154
        %v5162 = vsub.f32 %v5146, %v5154
        %v5163 = vsub.f32 %v5150, %v5154
        %v5164 = vmul.f32 %v5156, %v5156
        %v5165 = vmul.f32 %v5157, %v5157
        %v5166 = vmul.f32 %v5158, %v5158
        %v5167 = vmul.f32 %v5159, %v5159
        %v5168 = vmul.f32 %v5160, %v5160
        %v5169 = vmul.f32 %v5161, %v5161
        %v5170 = vmul.f32 %v5162, %v5162
        %v5171 = vmul.f32 %v5163, %v5163
        %v5172 = vmul.f32 %v5164, -8.0
        %v5173 = vmul.f32 %v5165, -8.0
        %v5174 = vmul.f32 %v5166, -8.0
        %v5175 = vmul.f32 %v5167, -8.0
        %v5176 = vmul.f32 %v5168, -8.0
        %v5177 = vmul.f32 %v5169, -8.0
        %v5178 = vmul.f32 %v5170, -8.0
        %v5179 = vmul.f32 %v5171, -8.0
        %v5180 = vmul.f32 %v5172, 1.442695
        %v5181 = vpow.pop %v5180
        %v5182 = vmul.f32 %v5173, 1.442695
        %v5183 = vpow.pop %v5182
        %v5184 = vmul.f32 %v5174, 1.442695
        %v5185 = vpow.pop %v5184
        %v5186 = vmul.f32 %v5175, 1.442695
        %v5187 = vpow.pop %v5186
        %v5188 = vmul.f32 %v5176, 1.442695
        %v5189 = vpow.pop %v5188
        %v5190 = vmul.f32 %v5177, 1.442695
        %v5191 = vpow.pop %v5190
        %v5192 = vmul.f32 %v5178, 1.442695
        %v5193 = vpow.pop %v5192
        %v5194 = vmul.f32 %v5179, 1.442695
        %v5195 = vpow.pop %v5194
        %v5196 = vmul.f32 %v2948, 2.0
        %v5198 = vcombine.high %v5196, %v5196
        %v5200 = vunpack.c.l.s4 1966171168
        %v5201 = vunpack.c.0.s8 %v5200
        %v5202 = vlaneseq
        %v5203 = vshrl.u32 %v5202, 7
        %v5204 = vsub.s32 %v5201, %v5203
        %v5205 = vrot.slane %v5196, %v5204
        %v5207 = vunpack.c.l.s4 1966171168
        %v5208 = vunpack.c.0.s8 %v5207
        %v5209 = vlaneseq
        %v5210 = vshrl.u32 %v5209, 7
        %v5211 = vsub.s32 %v5208, %v5210
        %v5212 = vrot.slane %v5198, %v5211
        %v5213 = vcombine.high %v5205, %v5205
        %v5214 = vcombine.high %v5212, %v5212
        %v5216 = vunpack.c.l.s4 1966171168
        %v5217 = vunpack.c.0.s8 %v5216
        %v5218 = vlaneseq
        %v5219 = vshrl.u32 %v5218, 7
        %v5220 = vsub.s32 %v5217, %v5219
        %v5221 = vrot.slane %v5205, %v5220
        %v5223 = vunpack.c.l.s4 1966171168
        %v5224 = vunpack.c.0.s8 %v5223
        %v5225 = vlaneseq
        %v5226 = vshrl.u32 %v5225, 7
        %v5227 = vsub.s32 %v5224, %v5226
        %v5228 = vrot.slane %v5212, %v5227
        %v5230 = vunpack.c.l.s4 1966171168
        %v5231 = vunpack.c.0.s8 %v5230
        %v5232 = vlaneseq
        %v5233 = vshrl.u32 %v5232, 7
        %v5234 = vsub.s32 %v5231, %v5233
        %v5235 = vrot.slane %v5213, %v5234
        %v5237 = vunpack.c.l.s4 1966171168
        %v5238 = vunpack.c.0.s8 %v5237
        %v5239 = vlaneseq
        %v5240 = vshrl.u32 %v5239, 7
        %v5241 = vsub.s32 %v5238, %v5240
        %v5242 = vrot.slane %v5214, %v5241
        %v5243 = vcombine.high %v5221, %v5221
        %v5244 = vcombine.high %v5228, %v5228
        %v5245 = vcombine.high %v5235, %v5235
        %v5246 = vcombine.high %v5242, %v5242
        %v5247 = vlaneseq
        %v5248 = vshrl.u32 %v5247, 7
        %v5249 = vsub.s32 0, %v5248
        %v5250 = vrot.slane %v5221, %v5249
        %v5251 = vlaneseq
        %v5252 = vshrl.u32 %v5251, 7
        %v5253 = vsub.s32 0, %v5252
        %v5254 = vrot.slane %v5235, %v5253
        %v5255 = vlaneseq
        %v5256 = vshrl.u32 %v5255, 7
        %v5257 = vsub.s32 0, %v5256
        %v5258 = vrot.slane %v5243, %v5257
        %v5259 = vlaneseq
        %v5260 = vshrl.u32 %v5259, 7
        %v5261 = vsub.s32 0, %v5260
        %v5262 = vrot.slane %v5245, %v5261
        %v5263 = vlaneseq
        %v5264 = vshrl.u32 %v5263, 7
        %v5265 = vsub.s32 0, %v5264
        %v5266 = vrot.slane %v5228, %v5265
        %v5267 = vlaneseq
        %v5268 = vshrl.u32 %v5267, 7
        %v5269 = vsub.s32 0, %v5268
        %v5270 = vrot.slane %v5242, %v5269
        %v5271 = vlaneseq
        %v5272 = vshrl.u32 %v5271, 7
        %v5273 = vsub.s32 0, %v5272
        %v5274 = vrot.slane %v5244, %v5273
        %v5275 = vlaneseq
        %v5276 = vshrl.u32 %v5275, 7
        %v5277 = vsub.s32 0, %v5276
        %v5278 = vrot.slane %v5246, %v5277
        %v5287 = vmul.f32 %v5181, %v5250
        %v5288 = vmul.f32 %v5183, %v5254
        %v5289 = vmul.f32 %v5185, %v5258
        %v5290 = vmul.f32 %v5187, %v5262
        %v5291 = vmul.f32 %v5189, %v5266
        %v5292 = vmul.f32 %v5191, %v5270
        %v5293 = vmul.f32 %v5193, %v5274
        %v5294 = vmul.f32 %v5195, %v5278
        %v5304 = vunpack.c.l.s4 1966171168
        %v5305 = vunpack.c.0.s8 %v5304
        %v5306 = vlaneseq
        %v5307 = vshrl.u32 %v5306, 7
        %v5308 = vsub.s32 %v5305, %v5307
        %v5309 = vrot.slane %v5287, %v5308
        %v5310 = vcombine.high %v5309, %v5309
        %v5312 = vunpack.c.l.s4 1966171168
        %v5313 = vunpack.c.0.s8 %v5312
        %v5314 = vlaneseq
        %v5315 = vshrl.u32 %v5314, 7
        %v5316 = vsub.s32 %v5313, %v5315
        %v5317 = vrot.slane %v5309, %v5316
        %v5319 = vunpack.c.l.s4 1966171168
        %v5320 = vunpack.c.0.s8 %v5319
        %v5321 = vlaneseq
        %v5322 = vshrl.u32 %v5321, 7
        %v5323 = vsub.s32 %v5320, %v5322
        %v5324 = vrot.slane %v5310, %v5323
        %v5325 = vcombine.high %v5317, %v5317
        %v5326 = vcombine.high %v5324, %v5324
        %v5328 = vunpack.c.l.s4 1966171168
        %v5329 = vunpack.c.0.s8 %v5328
        %v5330 = vlaneseq
        %v5331 = vshrl.u32 %v5330, 7
        %v5332 = vsub.s32 %v5329, %v5331
        %v5333 = vrot.slane %v5288, %v5332
        %v5334 = vcombine.high %v5333, %v5333
        %v5336 = vunpack.c.l.s4 1966171168
        %v5337 = vunpack.c.0.s8 %v5336
        %v5338 = vlaneseq
        %v5339 = vshrl.u32 %v5338, 7
        %v5340 = vsub.s32 %v5337, %v5339
        %v5341 = vrot.slane %v5333, %v5340
        %v5343 = vunpack.c.l.s4 1966171168
        %v5344 = vunpack.c.0.s8 %v5343
        %v5345 = vlaneseq
        %v5346 = vshrl.u32 %v5345, 7
        %v5347 = vsub.s32 %v5344, %v5346
        %v5348 = vrot.slane %v5334, %v5347
        %v5349 = vcombine.high %v5341, %v5341
        %v5350 = vcombine.high %v5348, %v5348
        %v5352 = vunpack.c.l.s4 1966171168
        %v5353 = vunpack.c.0.s8 %v5352
        %v5354 = vlaneseq
        %v5355 = vshrl.u32 %v5354, 7
        %v5356 = vsub.s32 %v5353, %v5355
        %v5357 = vrot.slane %v5289, %v5356
        %v5358 = vcombine.high %v5357, %v5357
        %v5360 = vunpack.c.l.s4 1966171168
        %v5361 = vunpack.c.0.s8 %v5360
        %v5362 = vlaneseq
        %v5363 = vshrl.u32 %v5362, 7
        %v5364 = vsub.s32 %v5361, %v5363
        %v5365 = vrot.slane %v5357, %v5364
        %v5367 = vunpack.c.l.s4 1966171168
        %v5368 = vunpack.c.0.s8 %v5367
        %v5369 = vlaneseq
        %v5370 = vshrl.u32 %v5369, 7
        %v5371 = vsub.s32 %v5368, %v5370
        %v5372 = vrot.slane %v5358, %v5371
        %v5373 = vcombine.high %v5365, %v5365
        %v5374 = vcombine.high %v5372, %v5372
        %v5376 = vunpack.c.l.s4 1966171168
        %v5377 = vunpack.c.0.s8 %v5376
        %v5378 = vlaneseq
        %v5379 = vshrl.u32 %v5378, 7
        %v5380 = vsub.s32 %v5377, %v5379
        %v5381 = vrot.slane %v5290, %v5380
        %v5382 = vcombine.high %v5381, %v5381
        %v5384 = vunpack.c.l.s4 1966171168
        %v5385 = vunpack.c.0.s8 %v5384
        %v5386 = vlaneseq
        %v5387 = vshrl.u32 %v5386, 7
        %v5388 = vsub.s32 %v5385, %v5387
        %v5389 = vrot.slane %v5381, %v5388
        %v5391 = vunpack.c.l.s4 1966171168
        %v5392 = vunpack.c.0.s8 %v5391
        %v5393 = vlaneseq
        %v5394 = vshrl.u32 %v5393, 7
        %v5395 = vsub.s32 %v5392, %v5394
        %v5396 = vrot.slane %v5382, %v5395
        %v5397 = vcombine.high %v5389, %v5389
        %v5398 = vcombine.high %v5396, %v5396
        %v5400 = vunpack.c.l.s4 1966171168
        %v5401 = vunpack.c.0.s8 %v5400
        %v5402 = vlaneseq
        %v5403 = vshrl.u32 %v5402, 7
        %v5404 = vsub.s32 %v5401, %v5403
        %v5405 = vrot.slane %v5291, %v5404
        %v5406 = vcombine.high %v5405, %v5405
        %v5408 = vunpack.c.l.s4 1966171168
        %v5409 = vunpack.c.0.s8 %v5408
        %v5410 = vlaneseq
        %v5411 = vshrl.u32 %v5410, 7
        %v5412 = vsub.s32 %v5409, %v5411
        %v5413 = vrot.slane %v5405, %v5412
        %v5415 = vunpack.c.l.s4 1966171168
        %v5416 = vunpack.c.0.s8 %v5415
        %v5417 = vlaneseq
        %v5418 = vshrl.u32 %v5417, 7
        %v5419 = vsub.s32 %v5416, %v5418
        %v5420 = vrot.slane %v5406, %v5419
        %v5421 = vcombine.high %v5413, %v5413
        %v5422 = vcombine.high %v5420, %v5420
        %v5424 = vunpack.c.l.s4 1966171168
        %v5425 = vunpack.c.0.s8 %v5424
        %v5426 = vlaneseq
        %v5427 = vshrl.u32 %v5426, 7
        %v5428 = vsub.s32 %v5425, %v5427
        %v5429 = vrot.slane %v5292, %v5428
        %v5430 = vcombine.high %v5429, %v5429
        %v5432 = vunpack.c.l.s4 1966171168
        %v5433 = vunpack.c.0.s8 %v5432
        %v5434 = vlaneseq
        %v5435 = vshrl.u32 %v5434, 7
        %v5436 = vsub.s32 %v5433, %v5435
        %v5437 = vrot.slane %v5429, %v5436
        %v5439 = vunpack.c.l.s4 1966171168
        %v5440 = vunpack.c.0.s8 %v5439
        %v5441 = vlaneseq
        %v5442 = vshrl.u32 %v5441, 7
        %v5443 = vsub.s32 %v5440, %v5442
        %v5444 = vrot.slane %v5430, %v5443
        %v5445 = vcombine.high %v5437, %v5437
        %v5446 = vcombine.high %v5444, %v5444
        %v5448 = vunpack.c.l.s4 1966171168
        %v5449 = vunpack.c.0.s8 %v5448
        %v5450 = vlaneseq
        %v5451 = vshrl.u32 %v5450, 7
        %v5452 = vsub.s32 %v5449, %v5451
        %v5453 = vrot.slane %v5293, %v5452
        %v5454 = vcombine.high %v5453, %v5453
        %v5456 = vunpack.c.l.s4 1966171168
        %v5457 = vunpack.c.0.s8 %v5456
        %v5458 = vlaneseq
        %v5459 = vshrl.u32 %v5458, 7
        %v5460 = vsub.s32 %v5457, %v5459
        %v5461 = vrot.slane %v5453, %v5460
        %v5463 = vunpack.c.l.s4 1966171168
        %v5464 = vunpack.c.0.s8 %v5463
        %v5465 = vlaneseq
        %v5466 = vshrl.u32 %v5465, 7
        %v5467 = vsub.s32 %v5464, %v5466
        %v5468 = vrot.slane %v5454, %v5467
        %v5469 = vcombine.high %v5461, %v5461
        %v5470 = vcombine.high %v5468, %v5468
        %v5472 = vunpack.c.l.s4 1966171168
        %v5473 = vunpack.c.0.s8 %v5472
        %v5474 = vlaneseq
        %v5475 = vshrl.u32 %v5474, 7
        %v5476 = vsub.s32 %v5473, %v5475
        %v5477 = vrot.slane %v5294, %v5476
        %v5478 = vcombine.high %v5477, %v5477
        %v5480 = vunpack.c.l.s4 1966171168
        %v5481 = vunpack.c.0.s8 %v5480
        %v5482 = vlaneseq
        %v5483 = vshrl.u32 %v5482, 7
        %v5484 = vsub.s32 %v5481, %v5483
        %v5485 = vrot.slane %v5477, %v5484
        %v5487 = vunpack.c.l.s4 1966171168
        %v5488 = vunpack.c.0.s8 %v5487
        %v5489 = vlaneseq
        %v5490 = vshrl.u32 %v5489, 7
        %v5491 = vsub.s32 %v5488, %v5490
        %v5492 = vrot.slane %v5478, %v5491
        %v5493 = vcombine.high %v5485, %v5485
        %v5494 = vcombine.high %v5492, %v5492
        %v5495 = vlaneseq
        %v5496 = vshrl.u32 %v5495, 7
        %v5497 = vsub.s32 0, %v5496
        %v5498 = vrot.slane %v5317, %v5497
        %v5499 = vlaneseq
        %v5500 = vshrl.u32 %v5499, 7
        %v5501 = vsub.s32 0, %v5500
        %v5502 = vrot.slane %v5324, %v5501
        %v5503 = vlaneseq
        %v5504 = vshrl.u32 %v5503, 7
        %v5505 = vsub.s32 0, %v5504
        %v5506 = vrot.slane %v5325, %v5505
        %v5507 = vlaneseq
        %v5508 = vshrl.u32 %v5507, 7
        %v5509 = vsub.s32 0, %v5508
        %v5510 = vrot.slane %v5326, %v5509
        %v5511 = vlaneseq
        %v5512 = vshrl.u32 %v5511, 7
        %v5513 = vsub.s32 0, %v5512
        %v5514 = vrot.slane %v5341, %v5513
        %v5515 = vlaneseq
        %v5516 = vshrl.u32 %v5515, 7
        %v5517 = vsub.s32 0, %v5516
        %v5518 = vrot.slane %v5348, %v5517
        %v5519 = vlaneseq
        %v5520 = vshrl.u32 %v5519, 7
        %v5521 = vsub.s32 0, %v5520
        %v5522 = vrot.slane %v5349, %v5521
        %v5523 = vlaneseq
        %v5524 = vshrl.u32 %v5523, 7
        %v5525 = vsub.s32 0, %v5524
        %v5526 = vrot.slane %v5350, %v5525
        %v5527 = vlaneseq
        %v5528 = vshrl.u32 %v5527, 7
        %v5529 = vsub.s32 0, %v5528
        %v5530 = vrot.slane %v5365, %v5529
        %v5531 = vlaneseq
        %v5532 = vshrl.u32 %v5531, 7
        %v5533 = vsub.s32 0, %v5532
        %v5534 = vrot.slane %v5372, %v5533
        %v5535 = vlaneseq
        %v5536 = vshrl.u32 %v5535, 7
        %v5537 = vsub.s32 0, %v5536
        %v5538 = vrot.slane %v5373, %v5537
        %v5539 = vlaneseq
        %v5540 = vshrl.u32 %v5539, 7
        %v5541 = vsub.s32 0, %v5540
        %v5542 = vrot.slane %v5374, %v5541
        %v5543 = vlaneseq
        %v5544 = vshrl.u32 %v5543, 7
        %v5545 = vsub.s32 0, %v5544
        %v5546 = vrot.slane %v5389, %v5545
        %v5547 = vlaneseq
        %v5548 = vshrl.u32 %v5547, 7
        %v5549 = vsub.s32 0, %v5548
        %v5550 = vrot.slane %v5396, %v5549
        %v5551 = vlaneseq
        %v5552 = vshrl.u32 %v5551, 7
        %v5553 = vsub.s32 0, %v5552
        %v5554 = vrot.slane %v5397, %v5553
        %v5555 = vlaneseq
        %v5556 = vshrl.u32 %v5555, 7
        %v5557 = vsub.s32 0, %v5556
        %v5558 = vrot.slane %v5398, %v5557
        %v5559 = vlaneseq
        %v5560 = vshrl.u32 %v5559, 7
        %v5561 = vsub.s32 0, %v5560
        %v5562 = vrot.slane %v5413, %v5561
        %v5563 = vlaneseq
        %v5564 = vshrl.u32 %v5563, 7
        %v5565 = vsub.s32 0, %v5564
        %v5566 = vrot.slane %v5420, %v5565
        %v5567 = vlaneseq
        %v5568 = vshrl.u32 %v5567, 7
        %v5569 = vsub.s32 0, %v5568
        %v5570 = vrot.slane %v5421, %v5569
        %v5571 = vlaneseq
        %v5572 = vshrl.u32 %v5571, 7
        %v5573 = vsub.s32 0, %v5572
        %v5574 = vrot.slane %v5422, %v5573
        %v5575 = vlaneseq
        %v5576 = vshrl.u32 %v5575, 7
        %v5577 = vsub.s32 0, %v5576
        %v5578 = vrot.slane %v5437, %v5577
        %v5579 = vlaneseq
        %v5580 = vshrl.u32 %v5579, 7
        %v5581 = vsub.s32 0, %v5580
        %v5582 = vrot.slane %v5444, %v5581
        %v5583 = vlaneseq
        %v5584 = vshrl.u32 %v5583, 7
        %v5585 = vsub.s32 0, %v5584
        %v5586 = vrot.slane %v5445, %v5585
        %v5587 = vlaneseq
        %v5588 = vshrl.u32 %v5587, 7
        %v5589 = vsub.s32 0, %v5588
        %v5590 = vrot.slane %v5446, %v5589
        %v5591 = vlaneseq
        %v5592 = vshrl.u32 %v5591, 7
        %v5593 = vsub.s32 0, %v5592
        %v5594 = vrot.slane %v5461, %v5593
        %v5595 = vlaneseq
        %v5596 = vshrl.u32 %v5595, 7
        %v5597 = vsub.s32 0, %v5596
        %v5598 = vrot.slane %v5468, %v5597
        %v5599 = vlaneseq
        %v5600 = vshrl.u32 %v5599, 7
        %v5601 = vsub.s32 0, %v5600
        %v5602 = vrot.slane %v5469, %v5601
        %v5603 = vlaneseq
        %v5604 = vshrl.u32 %v5603, 7
        %v5605 = vsub.s32 0, %v5604
        %v5606 = vrot.slane %v5470, %v5605
        %v5607 = vlaneseq
        %v5608 = vshrl.u32 %v5607, 7
        %v5609 = vsub.s32 0, %v5608
        %v5610 = vrot.slane %v5485, %v5609
        %v5611 = vlaneseq
        %v5612 = vshrl.u32 %v5611, 7
        %v5613 = vsub.s32 0, %v5612
        %v5614 = vrot.slane %v5492, %v5613
        %v5615 = vlaneseq
        %v5616 = vshrl.u32 %v5615, 7
        %v5617 = vsub.s32 0, %v5616
        %v5618 = vrot.slane %v5493, %v5617
        %v5619 = vlaneseq
        %v5620 = vshrl.u32 %v5619, 7
        %v5621 = vsub.s32 0, %v5620
        %v5622 = vrot.slane %v5494, %v5621
        %v5655 = vmul.f32 %v5498, %v4439
        %v5656 = vmul.f32 %v5502, %v4439
        %v5657 = vmul.f32 %v5506, %v4439
        %v5658 = vmul.f32 %v5510, %v4439
        %v5659 = vmul.f32 %v5514, %v4440
        %v5660 = vmul.f32 %v5518, %v4440
        %v5661 = vmul.f32 %v5522, %v4440
        %v5662 = vmul.f32 %v5526, %v4440
        %v5663 = vmul.f32 %v5530, %v4441
        %v5664 = vmul.f32 %v5534, %v4441
        %v5665 = vmul.f32 %v5538, %v4441
        %v5666 = vmul.f32 %v5542, %v4441
        %v5667 = vmul.f32 %v5546, %v4442
        %v5668 = vmul.f32 %v5550, %v4442
        %v5669 = vmul.f32 %v5554, %v4442
        %v5670 = vmul.f32 %v5558, %v4442
        %v5671 = vmul.f32 %v5562, %v4443
        %v5672 = vmul.f32 %v5566, %v4443
        %v5673 = vmul.f32 %v5570, %v4443
        %v5674 = vmul.f32 %v5574, %v4443
        %v5675 = vmul.f32 %v5578, %v4444
        %v5676 = vmul.f32 %v5582, %v4444
        %v5677 = vmul.f32 %v5586, %v4444
        %v5678 = vmul.f32 %v5590, %v4444
        %v5679 = vmul.f32 %v5594, %v4445
        %v5680 = vmul.f32 %v5598, %v4445
        %v5681 = vmul.f32 %v5602, %v4445
        %v5682 = vmul.f32 %v5606, %v4445
        %v5683 = vmul.f32 %v5610, %v4446
        %v5684 = vmul.f32 %v5614, %v4446
        %v5685 = vmul.f32 %v5618, %v4446
        %v5686 = vmul.f32 %v5622, %v4446
        %vm5687 = vcmask 523264
        %v5689 = vsel %vm5687, %v682, 0
        %v5692 = vsel %vm5687, %v683, 0
        %v5695 = vsel %vm5687, %v5655, 0
        %v5698 = vsel %vm5687, %v5656, 0
        %v5701 = vsel %vm5687, %v5657, 0
        %v5704 = vsel %vm5687, %v5658, 0
        %5706 = vmatprep.subr.mxu0 0.0
        %5707 = vmatpush1.xpose.msra.mxu0 0.0
        %5708 = vmatprep.subr.mxu0 0.0
        %5709 = vmatpush1.xpose.msra.mxu0 0.0
        %5710 = vmatprep.subr.mxu0 0.0
        %5711 = vmatpush1.xpose.msra.mxu0 0.0
        %5712 = vmatprep.subr.mxu0 0.0
        %5713 = vmatpush1.xpose.msra.mxu0 0.0
        %5714 = vmatprep.subr.mxu0 0.0
        %5715 = vmatpush1.xpose.msra.mxu0 0.0
        %5716 = vmatprep.subr.mxu0 0.0
        %5717 = vmatpush1.xpose.msra.mxu0 0.0
        %5718 = vmatprep.subr.mxu0 0.0
        %5719 = vmatpush1.xpose.msra.mxu0 0.0
        %5720 = vmatprep.subr.mxu0 0.0
        %5721 = vmatpush1.xpose.msra.mxu0 0.0
        %5722 = vmatprep.subr.mxu0 0.0
        %5723 = vmatpush1.xpose.msra.mxu0 0.0
        %5724 = vmatprep.subr.mxu0 0.0
        %5725 = vmatpush1.xpose.msra.mxu0 0.0
        %5726 = vmatprep.subr.mxu0 0.0
        %5727 = vmatpush1.xpose.msra.mxu0 0.0
        %5728 = vmatprep.subr.mxu0 0.0
        %5729 = vmatpush1.xpose.msra.mxu0 0.0
        %5730 = vmatprep.subr.mxu0 0.0
        %5731 = vmatpush1.xpose.msra.mxu0 %v5704
        %5732 = vmatprep.subr.mxu0 0.0
        %5733 = vmatpush1.xpose.msra.mxu0 %v5701
        %5734 = vmatprep.subr.mxu0 0.0
        %5735 = vmatpush1.xpose.msra.mxu0 %v5698
        %5736 = vmatprep.subr.mxu0 0.0
        %5737 = vmatpush1.xpose.msra.mxu0 %v5695
        %5738 = vmatprep.subr.mxu0 0.0
        %5739 = vmatpush2.xpose.msra.mxu0 0.0
        %5740 = vmatprep.subr.mxu0 0.0
        %5741 = vmatpush2.xpose.msra.mxu0 0.0
        %5742 = vmatprep.subr.mxu0 0.0
        %5743 = vmatpush2.xpose.msra.mxu0 0.0
        %5744 = vmatprep.subr.mxu0 0.0
        %5745 = vmatpush2.xpose.msra.mxu0 0.0
        %5746 = vmatprep.subr.mxu0 0.0
        %5747 = vmatpush2.xpose.msra.mxu0 0.0
        %5748 = vmatprep.subr.mxu0 0.0
        %5749 = vmatpush2.xpose.msra.mxu0 0.0
        %5750 = vmatprep.subr.mxu0 0.0
        %5751 = vmatpush2.xpose.msra.mxu0 0.0
        %5752 = vmatprep.subr.mxu0 0.0
        %5753 = vmatpush2.xpose.msra.mxu0 0.0
        %5754 = vmatprep.subr.mxu0 0.0
        %5755 = vmatpush2.xpose.msra.mxu0 0.0
        %5756 = vmatprep.subr.mxu0 0.0
        %5757 = vmatpush2.xpose.msra.mxu0 0.0
        %5758 = vmatprep.subr.mxu0 0.0
        %5759 = vmatpush2.xpose.msra.mxu0 0.0
        %5760 = vmatprep.subr.mxu0 0.0
        %5761 = vmatpush2.xpose.msra.mxu0 0.0
        %5762 = vmatprep.subr.mxu0 0.0
        %5763 = vmatpush2.xpose.msra.mxu0 0.0
        %5764 = vmatprep.subr.mxu0 0.0
        %5765 = vmatpush2.xpose.msra.mxu0 0.0
        %5766 = vmatprep.subr.mxu0 0.0
        %5767 = vmatpush2.xpose.msra.mxu0 0.0
        %5768 = vmatprep.subr.mxu0 0.0
        %5769 = vmatpush2.xpose.msra.mxu0 0.0
        %5770 = vmatprep.mubr.f32.mxu0 0.0
        %5771 = vmatmul.mubr.f32.gmra.mxu0 %v5689
        %v5772 = vpop.f32.mrf.mxu0
        %v5773 = vadd.f32 0.0, %v5772
        %v5774 = vpop.f32.mrf.mxu0
        %5775 = vmatprep.mubr.f32.mxu0 0.0
        %5776 = vmatmul.mubr.f32.gmra.mxu0 %v5692
        %v5777 = vpop.f32.mrf.mxu0
        %v5778 = vadd.f32 0.0, %v5777
        %v5779 = vpop.f32.mrf.mxu0
        %5780 = vdwg.mxu0
        %v5782 = vsel %vm5687, %v5659, 0
        %v5785 = vsel %vm5687, %v5660, 0
        %v5788 = vsel %vm5687, %v5661, 0
        %v5791 = vsel %vm5687, %v5662, 0
        %5793 = vmatprep.subr.mxu0 0.0
        %5794 = vmatpush1.xpose.msra.mxu0 0.0
        %5795 = vmatprep.subr.mxu0 0.0
        %5796 = vmatpush1.xpose.msra.mxu0 0.0
        %5797 = vmatprep.subr.mxu0 0.0
        %5798 = vmatpush1.xpose.msra.mxu0 0.0
        %5799 = vmatprep.subr.mxu0 0.0
        %5800 = vmatpush1.xpose.msra.mxu0 0.0
        %5801 = vmatprep.subr.mxu0 0.0
        %5802 = vmatpush1.xpose.msra.mxu0 0.0
        %5803 = vmatprep.subr.mxu0 0.0
        %5804 = vmatpush1.xpose.msra.mxu0 0.0
        %5805 = vmatprep.subr.mxu0 0.0
        %5806 = vmatpush1.xpose.msra.mxu0 0.0
        %5807 = vmatprep.subr.mxu0 0.0
        %5808 = vmatpush1.xpose.msra.mxu0 0.0
        %5809 = vmatprep.subr.mxu0 0.0
        %5810 = vmatpush1.xpose.msra.mxu0 0.0
        %5811 = vmatprep.subr.mxu0 0.0
        %5812 = vmatpush1.xpose.msra.mxu0 0.0
        %5813 = vmatprep.subr.mxu0 0.0
        %5814 = vmatpush1.xpose.msra.mxu0 0.0
        %5815 = vmatprep.subr.mxu0 0.0
        %5816 = vmatpush1.xpose.msra.mxu0 0.0
        %5817 = vmatprep.subr.mxu0 0.0
        %5818 = vmatpush1.xpose.msra.mxu0 %v5791
        %5819 = vmatprep.subr.mxu0 0.0
        %5820 = vmatpush1.xpose.msra.mxu0 %v5788
        %5821 = vmatprep.subr.mxu0 0.0
        %5822 = vmatpush1.xpose.msra.mxu0 %v5785
        %5823 = vmatprep.subr.mxu0 0.0
        %5824 = vmatpush1.xpose.msra.mxu0 %v5782
        %5825 = vmatprep.subr.mxu0 0.0
        %5826 = vmatpush2.xpose.msra.mxu0 0.0
        %5827 = vmatprep.subr.mxu0 0.0
        %5828 = vmatpush2.xpose.msra.mxu0 0.0
        %5829 = vmatprep.subr.mxu0 0.0
        %5830 = vmatpush2.xpose.msra.mxu0 0.0
        %5831 = vmatprep.subr.mxu0 0.0
        %5832 = vmatpush2.xpose.msra.mxu0 0.0
        %5833 = vmatprep.subr.mxu0 0.0
        %5834 = vmatpush2.xpose.msra.mxu0 0.0
        %5835 = vmatprep.subr.mxu0 0.0
        %5836 = vmatpush2.xpose.msra.mxu0 0.0
        %5837 = vmatprep.subr.mxu0 0.0
        %5838 = vmatpush2.xpose.msra.mxu0 0.0
        %5839 = vmatprep.subr.mxu0 0.0
        %5840 = vmatpush2.xpose.msra.mxu0 0.0
        %5841 = vmatprep.subr.mxu0 0.0
        %5842 = vmatpush2.xpose.msra.mxu0 0.0
        %5843 = vmatprep.subr.mxu0 0.0
        %5844 = vmatpush2.xpose.msra.mxu0 0.0
        %5845 = vmatprep.subr.mxu0 0.0
        %5846 = vmatpush2.xpose.msra.mxu0 0.0
        %5847 = vmatprep.subr.mxu0 0.0
        %5848 = vmatpush2.xpose.msra.mxu0 0.0
        %5849 = vmatprep.subr.mxu0 0.0
        %5850 = vmatpush2.xpose.msra.mxu0 0.0
        %5851 = vmatprep.subr.mxu0 0.0
        %5852 = vmatpush2.xpose.msra.mxu0 0.0
        %5853 = vmatprep.subr.mxu0 0.0
        %5854 = vmatpush2.xpose.msra.mxu0 0.0
        %5855 = vmatprep.subr.mxu0 0.0
        %5856 = vmatpush2.xpose.msra.mxu0 0.0
        %5857 = vmatprep.mubr.f32.mxu0 0.0
        %5858 = vmatmul.mubr.f32.gmra.mxu0 %v5689
        %v5859 = vpop.f32.mrf.mxu0
        %v5860 = vadd.f32 0.0, %v5859
        %v5861 = vpop.f32.mrf.mxu0
        %5862 = vmatprep.mubr.f32.mxu0 0.0
        %5863 = vmatmul.mubr.f32.gmra.mxu0 %v5692
        %v5864 = vpop.f32.mrf.mxu0
        %v5865 = vadd.f32 0.0, %v5864
        %v5866 = vpop.f32.mrf.mxu0
        %5867 = vdwg.mxu0
        %v5869 = vsel %vm5687, %v5663, 0
        %v5872 = vsel %vm5687, %v5664, 0
        %v5875 = vsel %vm5687, %v5665, 0
        %v5878 = vsel %vm5687, %v5666, 0
        %5880 = vmatprep.subr.mxu0 0.0
        %5881 = vmatpush1.xpose.msra.mxu0 0.0
        %5882 = vmatprep.subr.mxu0 0.0
        %5883 = vmatpush1.xpose.msra.mxu0 0.0
        %5884 = vmatprep.subr.mxu0 0.0
        %5885 = vmatpush1.xpose.msra.mxu0 0.0
        %5886 = vmatprep.subr.mxu0 0.0
        %5887 = vmatpush1.xpose.msra.mxu0 0.0
        %5888 = vmatprep.subr.mxu0 0.0
        %5889 = vmatpush1.xpose.msra.mxu0 0.0
        %5890 = vmatprep.subr.mxu0 0.0
        %5891 = vmatpush1.xpose.msra.mxu0 0.0
        %5892 = vmatprep.subr.mxu0 0.0
        %5893 = vmatpush1.xpose.msra.mxu0 0.0
        %5894 = vmatprep.subr.mxu0 0.0
        %5895 = vmatpush1.xpose.msra.mxu0 0.0
        %5896 = vmatprep.subr.mxu0 0.0
        %5897 = vmatpush1.xpose.msra.mxu0 0.0
        %5898 = vmatprep.subr.mxu0 0.0
        %5899 = vmatpush1.xpose.msra.mxu0 0.0
        %5900 = vmatprep.subr.mxu0 0.0
        %5901 = vmatpush1.xpose.msra.mxu0 0.0
        %5902 = vmatprep.subr.mxu0 0.0
        %5903 = vmatpush1.xpose.msra.mxu0 0.0
        %5904 = vmatprep.subr.mxu0 0.0
        %5905 = vmatpush1.xpose.msra.mxu0 %v5878
        %5906 = vmatprep.subr.mxu0 0.0
        %5907 = vmatpush1.xpose.msra.mxu0 %v5875
        %5908 = vmatprep.subr.mxu0 0.0
        %5909 = vmatpush1.xpose.msra.mxu0 %v5872
        %5910 = vmatprep.subr.mxu0 0.0
        %5911 = vmatpush1.xpose.msra.mxu0 %v5869
        %5912 = vmatprep.subr.mxu0 0.0
        %5913 = vmatpush2.xpose.msra.mxu0 0.0
        %5914 = vmatprep.subr.mxu0 0.0
        %5915 = vmatpush2.xpose.msra.mxu0 0.0
        %5916 = vmatprep.subr.mxu0 0.0
        %5917 = vmatpush2.xpose.msra.mxu0 0.0
        %5918 = vmatprep.subr.mxu0 0.0
        %5919 = vmatpush2.xpose.msra.mxu0 0.0
        %5920 = vmatprep.subr.mxu0 0.0
        %5921 = vmatpush2.xpose.msra.mxu0 0.0
        %5922 = vmatprep.subr.mxu0 0.0
        %5923 = vmatpush2.xpose.msra.mxu0 0.0
        %5924 = vmatprep.subr.mxu0 0.0
        %5925 = vmatpush2.xpose.msra.mxu0 0.0
        %5926 = vmatprep.subr.mxu0 0.0
        %5927 = vmatpush2.xpose.msra.mxu0 0.0
        %5928 = vmatprep.subr.mxu0 0.0
        %5929 = vmatpush2.xpose.msra.mxu0 0.0
        %5930 = vmatprep.subr.mxu0 0.0
        %5931 = vmatpush2.xpose.msra.mxu0 0.0
        %5932 = vmatprep.subr.mxu0 0.0
        %5933 = vmatpush2.xpose.msra.mxu0 0.0
        %5934 = vmatprep.subr.mxu0 0.0
        %5935 = vmatpush2.xpose.msra.mxu0 0.0
        %5936 = vmatprep.subr.mxu0 0.0
        %5937 = vmatpush2.xpose.msra.mxu0 0.0
        %5938 = vmatprep.subr.mxu0 0.0
        %5939 = vmatpush2.xpose.msra.mxu0 0.0
        %5940 = vmatprep.subr.mxu0 0.0
        %5941 = vmatpush2.xpose.msra.mxu0 0.0
        %5942 = vmatprep.subr.mxu0 0.0
        %5943 = vmatpush2.xpose.msra.mxu0 0.0
        %5944 = vmatprep.mubr.f32.mxu0 0.0
        %5945 = vmatmul.mubr.f32.gmra.mxu0 %v5689
        %v5946 = vpop.f32.mrf.mxu0
        %v5947 = vadd.f32 0.0, %v5946
        %v5948 = vpop.f32.mrf.mxu0
        %5949 = vmatprep.mubr.f32.mxu0 0.0
        %5950 = vmatmul.mubr.f32.gmra.mxu0 %v5692
        %v5951 = vpop.f32.mrf.mxu0
        %v5952 = vadd.f32 0.0, %v5951
        %v5953 = vpop.f32.mrf.mxu0
        %5954 = vdwg.mxu0
        %v5956 = vsel %vm5687, %v5667, 0
        %v5959 = vsel %vm5687, %v5668, 0
        %v5962 = vsel %vm5687, %v5669, 0
        %v5965 = vsel %vm5687, %v5670, 0
        %5967 = vmatprep.subr.mxu0 0.0
        %5968 = vmatpush1.xpose.msra.mxu0 0.0
        %5969 = vmatprep.subr.mxu0 0.0
        %5970 = vmatpush1.xpose.msra.mxu0 0.0
        %5971 = vmatprep.subr.mxu0 0.0
        %5972 = vmatpush1.xpose.msra.mxu0 0.0
        %5973 = vmatprep.subr.mxu0 0.0
        %5974 = vmatpush1.xpose.msra.mxu0 0.0
        %5975 = vmatprep.subr.mxu0 0.0
        %5976 = vmatpush1.xpose.msra.mxu0 0.0
        %5977 = vmatprep.subr.mxu0 0.0
        %5978 = vmatpush1.xpose.msra.mxu0 0.0
        %5979 = vmatprep.subr.mxu0 0.0
        %5980 = vmatpush1.xpose.msra.mxu0 0.0
        %5981 = vmatprep.subr.mxu0 0.0
        %5982 = vmatpush1.xpose.msra.mxu0 0.0
        %5983 = vmatprep.subr.mxu0 0.0
        %5984 = vmatpush1.xpose.msra.mxu0 0.0
        %5985 = vmatprep.subr.mxu0 0.0
        %5986 = vmatpush1.xpose.msra.mxu0 0.0
        %5987 = vmatprep.subr.mxu0 0.0
        %5988 = vmatpush1.xpose.msra.mxu0 0.0
        %5989 = vmatprep.subr.mxu0 0.0
        %5990 = vmatpush1.xpose.msra.mxu0 0.0
        %5991 = vmatprep.subr.mxu0 0.0
        %5992 = vmatpush1.xpose.msra.mxu0 %v5965
        %5993 = vmatprep.subr.mxu0 0.0
        %5994 = vmatpush1.xpose.msra.mxu0 %v5962
        %5995 = vmatprep.subr.mxu0 0.0
        %5996 = vmatpush1.xpose.msra.mxu0 %v5959
        %5997 = vmatprep.subr.mxu0 0.0
        %5998 = vmatpush1.xpose.msra.mxu0 %v5956
        %5999 = vmatprep.subr.mxu0 0.0
        %6000 = vmatpush2.xpose.msra.mxu0 0.0
        %6001 = vmatprep.subr.mxu0 0.0
        %6002 = vmatpush2.xpose.msra.mxu0 0.0
        %6003 = vmatprep.subr.mxu0 0.0
        %6004 = vmatpush2.xpose.msra.mxu0 0.0
        %6005 = vmatprep.subr.mxu0 0.0
        %6006 = vmatpush2.xpose.msra.mxu0 0.0
        %6007 = vmatprep.subr.mxu0 0.0
        %6008 = vmatpush2.xpose.msra.mxu0 0.0
        %6009 = vmatprep.subr.mxu0 0.0
        %6010 = vmatpush2.xpose.msra.mxu0 0.0
        %6011 = vmatprep.subr.mxu0 0.0
        %6012 = vmatpush2.xpose.msra.mxu0 0.0
        %6013 = vmatprep.subr.mxu0 0.0
        %6014 = vmatpush2.xpose.msra.mxu0 0.0
        %6015 = vmatprep.subr.mxu0 0.0
        %6016 = vmatpush2.xpose.msra.mxu0 0.0
        %6017 = vmatprep.subr.mxu0 0.0
        %6018 = vmatpush2.xpose.msra.mxu0 0.0
        %6019 = vmatprep.subr.mxu0 0.0
        %6020 = vmatpush2.xpose.msra.mxu0 0.0
        %6021 = vmatprep.subr.mxu0 0.0
        %6022 = vmatpush2.xpose.msra.mxu0 0.0
        %6023 = vmatprep.subr.mxu0 0.0
        %6024 = vmatpush2.xpose.msra.mxu0 0.0
        %6025 = vmatprep.subr.mxu0 0.0
        %6026 = vmatpush2.xpose.msra.mxu0 0.0
        %6027 = vmatprep.subr.mxu0 0.0
        %6028 = vmatpush2.xpose.msra.mxu0 0.0
        %6029 = vmatprep.subr.mxu0 0.0
        %6030 = vmatpush2.xpose.msra.mxu0 0.0
        %6031 = vmatprep.mubr.f32.mxu0 0.0
        %6032 = vmatmul.mubr.f32.gmra.mxu0 %v5689
        %v6033 = vpop.f32.mrf.mxu0
        %v6034 = vadd.f32 0.0, %v6033
        %v6035 = vpop.f32.mrf.mxu0
        %6036 = vmatprep.mubr.f32.mxu0 0.0
        %6037 = vmatmul.mubr.f32.gmra.mxu0 %v5692
        %v6038 = vpop.f32.mrf.mxu0
        %v6039 = vadd.f32 0.0, %v6038
        %v6040 = vpop.f32.mrf.mxu0
        %6041 = vdwg.mxu0
        %v6043 = vsel %vm5687, %v5671, 0
        %v6046 = vsel %vm5687, %v5672, 0
        %v6049 = vsel %vm5687, %v5673, 0
        %v6052 = vsel %vm5687, %v5674, 0
        %6054 = vmatprep.subr.mxu0 0.0
        %6055 = vmatpush1.xpose.msra.mxu0 0.0
        %6056 = vmatprep.subr.mxu0 0.0
        %6057 = vmatpush1.xpose.msra.mxu0 0.0
        %6058 = vmatprep.subr.mxu0 0.0
        %6059 = vmatpush1.xpose.msra.mxu0 0.0
        %6060 = vmatprep.subr.mxu0 0.0
        %6061 = vmatpush1.xpose.msra.mxu0 0.0
        %6062 = vmatprep.subr.mxu0 0.0
        %6063 = vmatpush1.xpose.msra.mxu0 0.0
        %6064 = vmatprep.subr.mxu0 0.0
        %6065 = vmatpush1.xpose.msra.mxu0 0.0
        %6066 = vmatprep.subr.mxu0 0.0
        %6067 = vmatpush1.xpose.msra.mxu0 0.0
        %6068 = vmatprep.subr.mxu0 0.0
        %6069 = vmatpush1.xpose.msra.mxu0 0.0
        %6070 = vmatprep.subr.mxu0 0.0
        %6071 = vmatpush1.xpose.msra.mxu0 0.0
        %6072 = vmatprep.subr.mxu0 0.0
        %6073 = vmatpush1.xpose.msra.mxu0 0.0
        %6074 = vmatprep.subr.mxu0 0.0
        %6075 = vmatpush1.xpose.msra.mxu0 0.0
        %6076 = vmatprep.subr.mxu0 0.0
        %6077 = vmatpush1.xpose.msra.mxu0 0.0
        %6078 = vmatprep.subr.mxu0 0.0
        %6079 = vmatpush1.xpose.msra.mxu0 %v6052
        %6080 = vmatprep.subr.mxu0 0.0
        %6081 = vmatpush1.xpose.msra.mxu0 %v6049
        %6082 = vmatprep.subr.mxu0 0.0
        %6083 = vmatpush1.xpose.msra.mxu0 %v6046
        %6084 = vmatprep.subr.mxu0 0.0
        %6085 = vmatpush1.xpose.msra.mxu0 %v6043
        %6086 = vmatprep.subr.mxu0 0.0
        %6087 = vmatpush2.xpose.msra.mxu0 0.0
        %6088 = vmatprep.subr.mxu0 0.0
        %6089 = vmatpush2.xpose.msra.mxu0 0.0
        %6090 = vmatprep.subr.mxu0 0.0
        %6091 = vmatpush2.xpose.msra.mxu0 0.0
        %6092 = vmatprep.subr.mxu0 0.0
        %6093 = vmatpush2.xpose.msra.mxu0 0.0
        %6094 = vmatprep.subr.mxu0 0.0
        %6095 = vmatpush2.xpose.msra.mxu0 0.0
        %6096 = vmatprep.subr.mxu0 0.0
        %6097 = vmatpush2.xpose.msra.mxu0 0.0
        %6098 = vmatprep.subr.mxu0 0.0
        %6099 = vmatpush2.xpose.msra.mxu0 0.0
        %6100 = vmatprep.subr.mxu0 0.0
        %6101 = vmatpush2.xpose.msra.mxu0 0.0
        %6102 = vmatprep.subr.mxu0 0.0
        %6103 = vmatpush2.xpose.msra.mxu0 0.0
        %6104 = vmatprep.subr.mxu0 0.0
        %6105 = vmatpush2.xpose.msra.mxu0 0.0
        %6106 = vmatprep.subr.mxu0 0.0
        %6107 = vmatpush2.xpose.msra.mxu0 0.0
        %6108 = vmatprep.subr.mxu0 0.0
        %6109 = vmatpush2.xpose.msra.mxu0 0.0
        %6110 = vmatprep.subr.mxu0 0.0
        %6111 = vmatpush2.xpose.msra.mxu0 0.0
        %6112 = vmatprep.subr.mxu0 0.0
        %6113 = vmatpush2.xpose.msra.mxu0 0.0
        %6114 = vmatprep.subr.mxu0 0.0
        %6115 = vmatpush2.xpose.msra.mxu0 0.0
        %6116 = vmatprep.subr.mxu0 0.0
        %6117 = vmatpush2.xpose.msra.mxu0 0.0
        %6118 = vmatprep.mubr.f32.mxu0 0.0
        %6119 = vmatmul.mubr.f32.gmra.mxu0 %v5689
        %v6120 = vpop.f32.mrf.mxu0
        %v6121 = vadd.f32 0.0, %v6120
        %v6122 = vpop.f32.mrf.mxu0
        %6123 = vmatprep.mubr.f32.mxu0 0.0
        %6124 = vmatmul.mubr.f32.gmra.mxu0 %v5692
        %v6125 = vpop.f32.mrf.mxu0
        %v6126 = vadd.f32 0.0, %v6125
        %v6127 = vpop.f32.mrf.mxu0
        %6128 = vdwg.mxu0
        %v6130 = vsel %vm5687, %v5675, 0
        %v6133 = vsel %vm5687, %v5676, 0
        %v6136 = vsel %vm5687, %v5677, 0
        %v6139 = vsel %vm5687, %v5678, 0
        %6141 = vmatprep.subr.mxu0 0.0
        %6142 = vmatpush1.xpose.msra.mxu0 0.0
        %6143 = vmatprep.subr.mxu0 0.0
        %6144 = vmatpush1.xpose.msra.mxu0 0.0
        %6145 = vmatprep.subr.mxu0 0.0
        %6146 = vmatpush1.xpose.msra.mxu0 0.0
        %6147 = vmatprep.subr.mxu0 0.0
        %6148 = vmatpush1.xpose.msra.mxu0 0.0
        %6149 = vmatprep.subr.mxu0 0.0
        %6150 = vmatpush1.xpose.msra.mxu0 0.0
        %6151 = vmatprep.subr.mxu0 0.0
        %6152 = vmatpush1.xpose.msra.mxu0 0.0
        %6153 = vmatprep.subr.mxu0 0.0
        %6154 = vmatpush1.xpose.msra.mxu0 0.0
        %6155 = vmatprep.subr.mxu0 0.0
        %6156 = vmatpush1.xpose.msra.mxu0 0.0
        %6157 = vmatprep.subr.mxu0 0.0
        %6158 = vmatpush1.xpose.msra.mxu0 0.0
        %6159 = vmatprep.subr.mxu0 0.0
        %6160 = vmatpush1.xpose.msra.mxu0 0.0
        %6161 = vmatprep.subr.mxu0 0.0
        %6162 = vmatpush1.xpose.msra.mxu0 0.0
        %6163 = vmatprep.subr.mxu0 0.0
        %6164 = vmatpush1.xpose.msra.mxu0 0.0
        %6165 = vmatprep.subr.mxu0 0.0
        %6166 = vmatpush1.xpose.msra.mxu0 %v6139
        %6167 = vmatprep.subr.mxu0 0.0
        %6168 = vmatpush1.xpose.msra.mxu0 %v6136
        %6169 = vmatprep.subr.mxu0 0.0
        %6170 = vmatpush1.xpose.msra.mxu0 %v6133
        %6171 = vmatprep.subr.mxu0 0.0
        %6172 = vmatpush1.xpose.msra.mxu0 %v6130
        %6173 = vmatprep.subr.mxu0 0.0
        %6174 = vmatpush2.xpose.msra.mxu0 0.0
        %6175 = vmatprep.subr.mxu0 0.0
        %6176 = vmatpush2.xpose.msra.mxu0 0.0
        %6177 = vmatprep.subr.mxu0 0.0
        %6178 = vmatpush2.xpose.msra.mxu0 0.0
        %6179 = vmatprep.subr.mxu0 0.0
        %6180 = vmatpush2.xpose.msra.mxu0 0.0
        %6181 = vmatprep.subr.mxu0 0.0
        %6182 = vmatpush2.xpose.msra.mxu0 0.0
        %6183 = vmatprep.subr.mxu0 0.0
        %6184 = vmatpush2.xpose.msra.mxu0 0.0
        %6185 = vmatprep.subr.mxu0 0.0
        %6186 = vmatpush2.xpose.msra.mxu0 0.0
        %6187 = vmatprep.subr.mxu0 0.0
        %6188 = vmatpush2.xpose.msra.mxu0 0.0
        %6189 = vmatprep.subr.mxu0 0.0
        %6190 = vmatpush2.xpose.msra.mxu0 0.0
        %6191 = vmatprep.subr.mxu0 0.0
        %6192 = vmatpush2.xpose.msra.mxu0 0.0
        %6193 = vmatprep.subr.mxu0 0.0
        %6194 = vmatpush2.xpose.msra.mxu0 0.0
        %6195 = vmatprep.subr.mxu0 0.0
        %6196 = vmatpush2.xpose.msra.mxu0 0.0
        %6197 = vmatprep.subr.mxu0 0.0
        %6198 = vmatpush2.xpose.msra.mxu0 0.0
        %6199 = vmatprep.subr.mxu0 0.0
        %6200 = vmatpush2.xpose.msra.mxu0 0.0
        %6201 = vmatprep.subr.mxu0 0.0
        %6202 = vmatpush2.xpose.msra.mxu0 0.0
        %6203 = vmatprep.subr.mxu0 0.0
        %6204 = vmatpush2.xpose.msra.mxu0 0.0
        %6205 = vmatprep.mubr.f32.mxu0 0.0
        %6206 = vmatmul.mubr.f32.gmra.mxu0 %v5689
        %v6207 = vpop.f32.mrf.mxu0
        %v6208 = vadd.f32 0.0, %v6207
        %v6209 = vpop.f32.mrf.mxu0
        %6210 = vmatprep.mubr.f32.mxu0 0.0
        %6211 = vmatmul.mubr.f32.gmra.mxu0 %v5692
        %v6212 = vpop.f32.mrf.mxu0
        %v6213 = vadd.f32 0.0, %v6212
        %v6214 = vpop.f32.mrf.mxu0
        %6215 = vdwg.mxu0
        %v6217 = vsel %vm5687, %v5679, 0
        %v6220 = vsel %vm5687, %v5680, 0
        %v6223 = vsel %vm5687, %v5681, 0
        %v6226 = vsel %vm5687, %v5682, 0
        %6228 = vmatprep.subr.mxu0 0.0
        %6229 = vmatpush1.xpose.msra.mxu0 0.0
        %6230 = vmatprep.subr.mxu0 0.0
        %6231 = vmatpush1.xpose.msra.mxu0 0.0
        %6232 = vmatprep.subr.mxu0 0.0
        %6233 = vmatpush1.xpose.msra.mxu0 0.0
        %6234 = vmatprep.subr.mxu0 0.0
        %6235 = vmatpush1.xpose.msra.mxu0 0.0
        %6236 = vmatprep.subr.mxu0 0.0
        %6237 = vmatpush1.xpose.msra.mxu0 0.0
        %6238 = vmatprep.subr.mxu0 0.0
        %6239 = vmatpush1.xpose.msra.mxu0 0.0
        %6240 = vmatprep.subr.mxu0 0.0
        %6241 = vmatpush1.xpose.msra.mxu0 0.0
        %6242 = vmatprep.subr.mxu0 0.0
        %6243 = vmatpush1.xpose.msra.mxu0 0.0
        %6244 = vmatprep.subr.mxu0 0.0
        %6245 = vmatpush1.xpose.msra.mxu0 0.0
        %6246 = vmatprep.subr.mxu0 0.0
        %6247 = vmatpush1.xpose.msra.mxu0 0.0
        %6248 = vmatprep.subr.mxu0 0.0
        %6249 = vmatpush1.xpose.msra.mxu0 0.0
        %6250 = vmatprep.subr.mxu0 0.0
        %6251 = vmatpush1.xpose.msra.mxu0 0.0
        %6252 = vmatprep.subr.mxu0 0.0
        %6253 = vmatpush1.xpose.msra.mxu0 %v6226
        %6254 = vmatprep.subr.mxu0 0.0
        %6255 = vmatpush1.xpose.msra.mxu0 %v6223
        %6256 = vmatprep.subr.mxu0 0.0
        %6257 = vmatpush1.xpose.msra.mxu0 %v6220
        %6258 = vmatprep.subr.mxu0 0.0
        %6259 = vmatpush1.xpose.msra.mxu0 %v6217
        %6260 = vmatprep.subr.mxu0 0.0
        %6261 = vmatpush2.xpose.msra.mxu0 0.0
        %6262 = vmatprep.subr.mxu0 0.0
        %6263 = vmatpush2.xpose.msra.mxu0 0.0
        %6264 = vmatprep.subr.mxu0 0.0
        %6265 = vmatpush2.xpose.msra.mxu0 0.0
        %6266 = vmatprep.subr.mxu0 0.0
        %6267 = vmatpush2.xpose.msra.mxu0 0.0
        %6268 = vmatprep.subr.mxu0 0.0
        %6269 = vmatpush2.xpose.msra.mxu0 0.0
        %6270 = vmatprep.subr.mxu0 0.0
        %6271 = vmatpush2.xpose.msra.mxu0 0.0
        %6272 = vmatprep.subr.mxu0 0.0
        %6273 = vmatpush2.xpose.msra.mxu0 0.0
        %6274 = vmatprep.subr.mxu0 0.0
        %6275 = vmatpush2.xpose.msra.mxu0 0.0
        %6276 = vmatprep.subr.mxu0 0.0
        %6277 = vmatpush2.xpose.msra.mxu0 0.0
        %6278 = vmatprep.subr.mxu0 0.0
        %6279 = vmatpush2.xpose.msra.mxu0 0.0
        %6280 = vmatprep.subr.mxu0 0.0
        %6281 = vmatpush2.xpose.msra.mxu0 0.0
        %6282 = vmatprep.subr.mxu0 0.0
        %6283 = vmatpush2.xpose.msra.mxu0 0.0
        %6284 = vmatprep.subr.mxu0 0.0
        %6285 = vmatpush2.xpose.msra.mxu0 0.0
        %6286 = vmatprep.subr.mxu0 0.0
        %6287 = vmatpush2.xpose.msra.mxu0 0.0
        %6288 = vmatprep.subr.mxu0 0.0
        %6289 = vmatpush2.xpose.msra.mxu0 0.0
        %6290 = vmatprep.subr.mxu0 0.0
        %6291 = vmatpush2.xpose.msra.mxu0 0.0
        %6292 = vmatprep.mubr.f32.mxu0 0.0
        %6293 = vmatmul.mubr.f32.gmra.mxu0 %v5689
        %v6294 = vpop.f32.mrf.mxu0
        %v6295 = vadd.f32 0.0, %v6294
        %v6296 = vpop.f32.mrf.mxu0
        %6297 = vmatprep.mubr.f32.mxu0 0.0
        %6298 = vmatmul.mubr.f32.gmra.mxu0 %v5692
        %v6299 = vpop.f32.mrf.mxu0
        %v6300 = vadd.f32 0.0, %v6299
        %v6301 = vpop.f32.mrf.mxu0
        %6302 = vdwg.mxu0
        %v6304 = vsel %vm5687, %v5683, 0
        %v6307 = vsel %vm5687, %v5684, 0
        %v6310 = vsel %vm5687, %v5685, 0
        %v6313 = vsel %vm5687, %v5686, 0
        %6315 = vmatprep.subr.mxu0 0.0
        %6316 = vmatpush1.xpose.msra.mxu0 0.0
        %6317 = vmatprep.subr.mxu0 0.0
        %6318 = vmatpush1.xpose.msra.mxu0 0.0
        %6319 = vmatprep.subr.mxu0 0.0
        %6320 = vmatpush1.xpose.msra.mxu0 0.0
        %6321 = vmatprep.subr.mxu0 0.0
        %6322 = vmatpush1.xpose.msra.mxu0 0.0
        %6323 = vmatprep.subr.mxu0 0.0
        %6324 = vmatpush1.xpose.msra.mxu0 0.0
        %6325 = vmatprep.subr.mxu0 0.0
        %6326 = vmatpush1.xpose.msra.mxu0 0.0
        %6327 = vmatprep.subr.mxu0 0.0
        %6328 = vmatpush1.xpose.msra.mxu0 0.0
        %6329 = vmatprep.subr.mxu0 0.0
        %6330 = vmatpush1.xpose.msra.mxu0 0.0
        %6331 = vmatprep.subr.mxu0 0.0
        %6332 = vmatpush1.xpose.msra.mxu0 0.0
        %6333 = vmatprep.subr.mxu0 0.0
        %6334 = vmatpush1.xpose.msra.mxu0 0.0
        %6335 = vmatprep.subr.mxu0 0.0
        %6336 = vmatpush1.xpose.msra.mxu0 0.0
        %6337 = vmatprep.subr.mxu0 0.0
        %6338 = vmatpush1.xpose.msra.mxu0 0.0
        %6339 = vmatprep.subr.mxu0 0.0
        %6340 = vmatpush1.xpose.msra.mxu0 %v6313
        %6341 = vmatprep.subr.mxu0 0.0
        %6342 = vmatpush1.xpose.msra.mxu0 %v6310
        %6343 = vmatprep.subr.mxu0 0.0
        %6344 = vmatpush1.xpose.msra.mxu0 %v6307
        %6345 = vmatprep.subr.mxu0 0.0
        %6346 = vmatpush1.xpose.msra.mxu0 %v6304
        %6347 = vmatprep.subr.mxu0 0.0
        %6348 = vmatpush2.xpose.msra.mxu0 0.0
        %6349 = vmatprep.subr.mxu0 0.0
        %6350 = vmatpush2.xpose.msra.mxu0 0.0
        %6351 = vmatprep.subr.mxu0 0.0
        %6352 = vmatpush2.xpose.msra.mxu0 0.0
        %6353 = vmatprep.subr.mxu0 0.0
        %6354 = vmatpush2.xpose.msra.mxu0 0.0
        %6355 = vmatprep.subr.mxu0 0.0
        %6356 = vmatpush2.xpose.msra.mxu0 0.0
        %6357 = vmatprep.subr.mxu0 0.0
        %6358 = vmatpush2.xpose.msra.mxu0 0.0
        %6359 = vmatprep.subr.mxu0 0.0
        %6360 = vmatpush2.xpose.msra.mxu0 0.0
        %6361 = vmatprep.subr.mxu0 0.0
        %6362 = vmatpush2.xpose.msra.mxu0 0.0
        %6363 = vmatprep.subr.mxu0 0.0
        %6364 = vmatpush2.xpose.msra.mxu0 0.0
        %6365 = vmatprep.subr.mxu0 0.0
        %6366 = vmatpush2.xpose.msra.mxu0 0.0
        %6367 = vmatprep.subr.mxu0 0.0
        %6368 = vmatpush2.xpose.msra.mxu0 0.0
        %6369 = vmatprep.subr.mxu0 0.0
        %6370 = vmatpush2.xpose.msra.mxu0 0.0
        %6371 = vmatprep.subr.mxu0 0.0
        %6372 = vmatpush2.xpose.msra.mxu0 0.0
        %6373 = vmatprep.subr.mxu0 0.0
        %6374 = vmatpush2.xpose.msra.mxu0 0.0
        %6375 = vmatprep.subr.mxu0 0.0
        %6376 = vmatpush2.xpose.msra.mxu0 0.0
        %6377 = vmatprep.subr.mxu0 0.0
        %6378 = vmatpush2.xpose.msra.mxu0 0.0
        %6379 = vmatprep.mubr.f32.mxu0 0.0
        %6380 = vmatmul.mubr.f32.gmra.mxu0 %v5689
        %v6381 = vpop.f32.mrf.mxu0
        %v6382 = vadd.f32 0.0, %v6381
        %v6383 = vpop.f32.mrf.mxu0
        %6384 = vmatprep.mubr.f32.mxu0 0.0
        %6385 = vmatmul.mubr.f32.gmra.mxu0 %v5692
        %v6386 = vpop.f32.mrf.mxu0
        %v6387 = vadd.f32 0.0, %v6386
        %v6388 = vpop.f32.mrf.mxu0
        %6389 = vdwg.mxu0
        %v6390 = vcombine.low %v5773, %v5947
        %v6391 = vcombine.high %v5773, %v5947
        %v6393 = vunpack.c.l.s4 1983009808
        %v6394 = vunpack.c.0.s8 %v6393
        %v6395 = vlaneseq
        %v6396 = vshrl.u32 %v6395, 7
        %v6397 = vsub.s32 %v6394, %v6396
        %v6398 = vrot.slane %v6390, %v6397
        %v6400 = vunpack.c.l.s4 1983009808
        %v6401 = vunpack.c.0.s8 %v6400
        %v6402 = vlaneseq
        %v6403 = vshrl.u32 %v6402, 7
        %v6404 = vsub.s32 %v6401, %v6403
        %v6405 = vrot.slane %v6391, %v6404
        %v6406 = vcombine.low %v5860, %v6034
        %v6407 = vcombine.high %v5860, %v6034
        %v6409 = vunpack.c.l.s4 1983009808
        %v6410 = vunpack.c.0.s8 %v6409
        %v6411 = vlaneseq
        %v6412 = vshrl.u32 %v6411, 7
        %v6413 = vsub.s32 %v6410, %v6412
        %v6414 = vrot.slane %v6406, %v6413
        %v6416 = vunpack.c.l.s4 1983009808
        %v6417 = vunpack.c.0.s8 %v6416
        %v6418 = vlaneseq
        %v6419 = vshrl.u32 %v6418, 7
        %v6420 = vsub.s32 %v6417, %v6419
        %v6421 = vrot.slane %v6407, %v6420
        %v6422 = vcombine.low %v6121, %v6295
        %v6423 = vcombine.high %v6121, %v6295
        %v6425 = vunpack.c.l.s4 1983009808
        %v6426 = vunpack.c.0.s8 %v6425
        %v6427 = vlaneseq
        %v6428 = vshrl.u32 %v6427, 7
        %v6429 = vsub.s32 %v6426, %v6428
        %v6430 = vrot.slane %v6422, %v6429
        %v6432 = vunpack.c.l.s4 1983009808
        %v6433 = vunpack.c.0.s8 %v6432
        %v6434 = vlaneseq
        %v6435 = vshrl.u32 %v6434, 7
        %v6436 = vsub.s32 %v6433, %v6435
        %v6437 = vrot.slane %v6423, %v6436
        %v6438 = vcombine.low %v6208, %v6382
        %v6439 = vcombine.high %v6208, %v6382
        %v6441 = vunpack.c.l.s4 1983009808
        %v6442 = vunpack.c.0.s8 %v6441
        %v6443 = vlaneseq
        %v6444 = vshrl.u32 %v6443, 7
        %v6445 = vsub.s32 %v6442, %v6444
        %v6446 = vrot.slane %v6438, %v6445
        %v6448 = vunpack.c.l.s4 1983009808
        %v6449 = vunpack.c.0.s8 %v6448
        %v6450 = vlaneseq
        %v6451 = vshrl.u32 %v6450, 7
        %v6452 = vsub.s32 %v6449, %v6451
        %v6453 = vrot.slane %v6439, %v6452
        %v6454 = vcombine.low %v6398, %v6414
        %v6455 = vcombine.high %v6398, %v6414
        %v6457 = vunpack.c.l.s4 1934713408
        %v6458 = vunpack.c.0.s8 %v6457
        %v6459 = vlaneseq
        %v6460 = vshrl.u32 %v6459, 7
        %v6461 = vsub.s32 %v6458, %v6460
        %v6462 = vrot.slane %v6454, %v6461
        %v6464 = vunpack.c.l.s4 1934713408
        %v6465 = vunpack.c.0.s8 %v6464
        %v6466 = vlaneseq
        %v6467 = vshrl.u32 %v6466, 7
        %v6468 = vsub.s32 %v6465, %v6467
        %v6469 = vrot.slane %v6455, %v6468
        %v6470 = vcombine.low %v6405, %v6421
        %v6471 = vcombine.high %v6405, %v6421
        %v6473 = vunpack.c.l.s4 1934713408
        %v6474 = vunpack.c.0.s8 %v6473
        %v6475 = vlaneseq
        %v6476 = vshrl.u32 %v6475, 7
        %v6477 = vsub.s32 %v6474, %v6476
        %v6478 = vrot.slane %v6470, %v6477
        %v6480 = vunpack.c.l.s4 1934713408
        %v6481 = vunpack.c.0.s8 %v6480
        %v6482 = vlaneseq
        %v6483 = vshrl.u32 %v6482, 7
        %v6484 = vsub.s32 %v6481, %v6483
        %v6485 = vrot.slane %v6471, %v6484
        %v6486 = vcombine.low %v6430, %v6446
        %v6487 = vcombine.high %v6430, %v6446
        %v6489 = vunpack.c.l.s4 1934713408
        %v6490 = vunpack.c.0.s8 %v6489
        %v6491 = vlaneseq
        %v6492 = vshrl.u32 %v6491, 7
        %v6493 = vsub.s32 %v6490, %v6492
        %v6494 = vrot.slane %v6486, %v6493
        %v6496 = vunpack.c.l.s4 1934713408
        %v6497 = vunpack.c.0.s8 %v6496
        %v6498 = vlaneseq
        %v6499 = vshrl.u32 %v6498, 7
        %v6500 = vsub.s32 %v6497, %v6499
        %v6501 = vrot.slane %v6487, %v6500
        %v6502 = vcombine.low %v6437, %v6453
        %v6503 = vcombine.high %v6437, %v6453
        %v6505 = vunpack.c.l.s4 1934713408
        %v6506 = vunpack.c.0.s8 %v6505
        %v6507 = vlaneseq
        %v6508 = vshrl.u32 %v6507, 7
        %v6509 = vsub.s32 %v6506, %v6508
        %v6510 = vrot.slane %v6502, %v6509
        %v6512 = vunpack.c.l.s4 1934713408
        %v6513 = vunpack.c.0.s8 %v6512
        %v6514 = vlaneseq
        %v6515 = vshrl.u32 %v6514, 7
        %v6516 = vsub.s32 %v6513, %v6515
        %v6517 = vrot.slane %v6503, %v6516
        %v6518 = vcombine.low %v6462, %v6494
        %v6519 = vcombine.high %v6462, %v6494
        %v6520 = vcombine.low %v6469, %v6501
        %v6521 = vcombine.high %v6469, %v6501
        %v6522 = vcombine.low %v6478, %v6510
        %v6523 = vcombine.high %v6478, %v6510
        %v6524 = vcombine.low %v6485, %v6517
        %v6525 = vcombine.high %v6485, %v6517
        %v6526 = vcombine.low %v5778, %v5952
        %v6528 = vunpack.c.l.s4 1983009808
        %v6529 = vunpack.c.0.s8 %v6528
        %v6530 = vlaneseq
        %v6531 = vshrl.u32 %v6530, 7
        %v6532 = vsub.s32 %v6529, %v6531
        %v6533 = vrot.slane %v6526, %v6532
        %v6534 = vcombine.low %v5865, %v6039
        %v6536 = vunpack.c.l.s4 1983009808
        %v6537 = vunpack.c.0.s8 %v6536
        %v6538 = vlaneseq
        %v6539 = vshrl.u32 %v6538, 7
        %v6540 = vsub.s32 %v6537, %v6539
        %v6541 = vrot.slane %v6534, %v6540
        %v6542 = vcombine.low %v6126, %v6300
        %v6544 = vunpack.c.l.s4 1983009808
        %v6545 = vunpack.c.0.s8 %v6544
        %v6546 = vlaneseq
        %v6547 = vshrl.u32 %v6546, 7
        %v6548 = vsub.s32 %v6545, %v6547
        %v6549 = vrot.slane %v6542, %v6548
        %v6550 = vcombine.low %v6213, %v6387
        %v6552 = vunpack.c.l.s4 1983009808
        %v6553 = vunpack.c.0.s8 %v6552
        %v6554 = vlaneseq
        %v6555 = vshrl.u32 %v6554, 7
        %v6556 = vsub.s32 %v6553, %v6555
        %v6557 = vrot.slane %v6550, %v6556
        %v6558 = vcombine.low %v6533, %v6541
        %v6560 = vunpack.c.l.s4 1934713408
        %v6561 = vunpack.c.0.s8 %v6560
        %v6562 = vlaneseq
        %v6563 = vshrl.u32 %v6562, 7
        %v6564 = vsub.s32 %v6561, %v6563
        %v6565 = vrot.slane %v6558, %v6564
        %v6566 = vcombine.low %v6549, %v6557
        %v6568 = vunpack.c.l.s4 1934713408
        %v6569 = vunpack.c.0.s8 %v6568
        %v6570 = vlaneseq
        %v6571 = vshrl.u32 %v6570, 7
        %v6572 = vsub.s32 %v6569, %v6571
        %v6573 = vrot.slane %v6566, %v6572
        %v6574 = vcombine.low %v6565, %v6573
        %v6575 = vcombine.high %v6565, %v6573
        %6577 = vrot.lane.b32.xlu0 %v6519, 32
        %v6578 = vpop.permute.xlu0 %6577
        %6581 = vrot.lane.b32.xlu0 %v6520, 64
        %v6582 = vpop.permute.xlu0 %6581
        %6585 = vrot.lane.b32.xlu0 %v6521, 96
        %v6586 = vpop.permute.xlu0 %6585
        %6589 = vrot.lane.b32.xlu0 %v6523, 32
        %v6590 = vpop.permute.xlu0 %6589
        %6593 = vrot.lane.b32.xlu0 %v6524, 64
        %v6594 = vpop.permute.xlu0 %6593
        %6597 = vrot.lane.b32.xlu0 %v6525, 96
        %v6598 = vpop.permute.xlu0 %6597
        %6601 = vrot.lane.b32.xlu0 %v6575, 32
        %v6602 = vpop.permute.xlu0 %6601
        %v6604 = vsel %vm1939, %v6518, %v6578
        %v6605 = vsel %vm5687, %v6604, %v6582
        %vm6606 = vcmask 785408
        %v6607 = vsel %vm6606, %v6605, %v6586
        %v6608 = vsel %vm1939, %v6522, %v6590
        %v6609 = vsel %vm5687, %v6608, %v6594
        %v6610 = vsel %vm6606, %v6609, %v6598
        %v6611 = vsel %vm1939, %v6574, %v6602
        %6615 = vrot.lane.b32.xlu0 %v6607, 64
        %v6616 = vpop.permute.xlu0 %6615
        %6617 = vrot.lane.b32.xlu0 %v6610, 64
        %v6618 = vpop.permute.xlu0 %6617
        %6619 = vrot.lane.b32.xlu0 %v6611, 64
        %v6620 = vpop.permute.xlu0 %6619
        %v6621 = vsel %vm5687, %v6616, %v6618
        %v6622 = vsel %vm5687, %v6618, %v6620
        %v6626 = vsel %vm5687, %v1942, %v6616
        %v6627 = vpack.c.bf16 %v6626, %v6626
        %v6628 = vpack.c.bf16 %v6621, %v6621
        %v6629 = vpack.c.bf16 %v6622, %v6622
        %vm6630 = vcmask 7168
        %6631 = vst.msk [vmem:[#allocation2] sm:$0xff] %vm6630, 0.0
        %s6632 = smul.u32 %s38, 128
        %s6633 = sld [smem:[#allocation4 + %s6632]]
        %p6634 = scmp.gt.s32.totalorder %s6633, 0
        // Predicated region
        $region105: #{mod_optimized_torchani_forward.1} parent=87 // pred_check
          %p6635 = pneg %p6634
        $region106: #{mod_optimized_torchani_forward.1} parent=87 // pred_check_branch
          %6637 = sbr.rel (%p6635) target = $region108
        $region107: #{mod_optimized_torchani_forward.1} parent=87 // pred_region
          %v6638 = vld [vmem:[#allocation5] sm:$0xff]
          %v6639 = vld [vmem:[#allocation5 + $0x8] sm:$0xff]
          %v6640 = vld [vmem:[#allocation5 + $0x10] sm:$0xff]
          %v6641 = vld [vmem:[#allocation5 + $0x18] sm:$0xff]
          %v6642 = vld [vmem:[#allocation5 + $0x20] sm:$0xff]
          %v6643 = vld [vmem:[#allocation5 + $0x28] sm:$0xff]
          %v6644 = vld [vmem:[#allocation5 + $0x30] sm:$0xff]
          %v6645 = vld [vmem:[#allocation5 + $0x38] sm:$0xff]
          %v6646 = vld [vmem:[#allocation5 + $0x40] sm:$0xff]
          %v6647 = vld [vmem:[#allocation5 + $0x48] sm:$0xff]
          %v6648 = vld [vmem:[#allocation5 + $0x50] sm:$0xff]
          %v6649 = vld [vmem:[#allocation5 + $0x58] sm:$0xff]
          %v6650 = vld [vmem:[#allocation5 + $0x60] sm:$0xff]
          %v6651 = vld [vmem:[#allocation5 + $0x68] sm:$0xff]
          %v6652 = vld [vmem:[#allocation5 + $0x70] sm:$0xff]
          %v6653 = vld [vmem:[#allocation5 + $0x78] sm:$0xff]
          %v6654 = vld [vmem:[#allocation5 + $0x80] sm:$0xff]
          %v6655 = vld [vmem:[#allocation5 + $0x88] sm:$0xff]
          %v6656 = vld [vmem:[#allocation5 + $0x90] sm:$0xff]
          %v6657 = vld [vmem:[#allocation5 + $0x98] sm:$0xff]
          %v6658 = vld [vmem:[#allocation5 + $0xa0] sm:$0xff]
          %v6659 = vld [vmem:[#allocation5 + $0xa8] sm:$0xff]
          %v6660 = vld [vmem:[#allocation5 + $0xb0] sm:$0xff]
          %v6661 = vld [vmem:[#allocation5 + $0xb8] sm:$0xff]
          %v6662 = vld [vmem:[#allocation5 + $0xc0] sm:$0xff]
          %v6663 = vld [vmem:[#allocation5 + $0xc8] sm:$0xff]
          %v6664 = vld [vmem:[#allocation5 + $0xd0] sm:$0xff]
          %v6665 = vld [vmem:[#allocation5 + $0xd8] sm:$0xff]
          %v6666 = vld [vmem:[#allocation5 + $0xe0] sm:$0xff]
          %v6667 = vld [vmem:[#allocation5 + $0xe8] sm:$0xff]
          %v6668 = vld [vmem:[#allocation5 + $0xf0] sm:$0xff]
          %v6669 = vld [vmem:[#allocation5 + $0xf8] sm:$0xff]
          %v6670 = vld [vmem:[#allocation5 + $0x100] sm:$0xff]
          %v6671 = vld [vmem:[#allocation5 + $0x108] sm:$0xff]
          %v6672 = vld [vmem:[#allocation5 + $0x110] sm:$0xff]
          %v6673 = vld [vmem:[#allocation5 + $0x118] sm:$0xff]
          %v6674 = vld [vmem:[#allocation5 + $0x120] sm:$0xff]
          %v6675 = vld [vmem:[#allocation5 + $0x128] sm:$0xff]
          %v6676 = vld [vmem:[#allocation5 + $0x130] sm:$0xff]
          %v6677 = vld [vmem:[#allocation5 + $0x138] sm:$0xff]
          %v6678 = vld [vmem:[#allocation5 + $0x140] sm:$0xff]
          %v6679 = vld [vmem:[#allocation5 + $0x148] sm:$0xff]
          %v6680 = vld [vmem:[#allocation5 + $0x150] sm:$0xff]
          %v6681 = vld [vmem:[#allocation5 + $0x158] sm:$0xff]
          %v6682 = vld [vmem:[#allocation5 + $0x160] sm:$0xff]
          %v6683 = vld [vmem:[#allocation5 + $0x168] sm:$0xff]
          %v6684 = vld [vmem:[#allocation5 + $0x170] sm:$0xff]
          %v6685 = vld [vmem:[#allocation5 + $0x178] sm:$0xff]
          %v6686 = vld [vmem:[%s11] ss:$4 sm:$0x3]
          %v6688 = vlaneseq
          %v6689 = vshrl.u32 %v6688, 7
          %v6690 = vsub.s32 0, %v6689
          %v6691 = vrot.slane %v6686, %v6690
          %v6692 = vlaneseq
          %v6693 = vshrl.u32 %v6692, 7
          %v6694 = vsub.s32 1, %v6693
          %v6695 = vrot.slane %v6686, %v6694
          %v6746 = vunpack.c.l.b16 %v6638
          %v6747 = vunpack.c.h.b16 %v6638
          %v6748 = vunpack.c.l.b16 %v6639
          %v6749 = vunpack.c.h.b16 %v6639
          %v6750 = vunpack.c.l.b16 %v6640
          %v6751 = vunpack.c.h.b16 %v6640
          %v6752 = vunpack.c.l.b16 %v6641
          %v6753 = vunpack.c.h.b16 %v6641
          %v6754 = vunpack.c.l.b16 %v6642
          %v6755 = vunpack.c.h.b16 %v6642
          %v6756 = vunpack.c.l.b16 %v6643
          %v6757 = vunpack.c.h.b16 %v6643
          %v6758 = vunpack.c.l.b16 %v6644
          %v6759 = vunpack.c.h.b16 %v6644
          %v6760 = vunpack.c.l.b16 %v6645
          %v6761 = vunpack.c.h.b16 %v6645
          %v6762 = vunpack.c.l.b16 %v6646
          %v6763 = vunpack.c.h.b16 %v6646
          %v6764 = vunpack.c.l.b16 %v6647
          %v6765 = vunpack.c.h.b16 %v6647
          %v6766 = vunpack.c.l.b16 %v6648
          %v6767 = vunpack.c.h.b16 %v6648
          %v6768 = vunpack.c.l.b16 %v6649
          %v6769 = vunpack.c.h.b16 %v6649
          %v6770 = vunpack.c.l.b16 %v6650
          %v6771 = vunpack.c.h.b16 %v6650
          %v6772 = vunpack.c.l.b16 %v6651
          %v6773 = vunpack.c.h.b16 %v6651
          %v6774 = vunpack.c.l.b16 %v6652
          %v6775 = vunpack.c.h.b16 %v6652
          %v6776 = vunpack.c.l.b16 %v6653
          %v6777 = vunpack.c.h.b16 %v6653
          %v6778 = vunpack.c.l.b16 %v6654
          %v6779 = vunpack.c.h.b16 %v6654
          %v6780 = vunpack.c.l.b16 %v6655
          %v6781 = vunpack.c.h.b16 %v6655
          %v6782 = vunpack.c.l.b16 %v6656
          %v6783 = vunpack.c.h.b16 %v6656
          %v6784 = vunpack.c.l.b16 %v6657
          %v6785 = vunpack.c.h.b16 %v6657
          %v6786 = vunpack.c.l.b16 %v6658
          %v6787 = vunpack.c.h.b16 %v6658
          %v6788 = vunpack.c.l.b16 %v6659
          %v6789 = vunpack.c.h.b16 %v6659
          %v6790 = vunpack.c.l.b16 %v6660
          %v6791 = vunpack.c.h.b16 %v6660
          %v6792 = vunpack.c.l.b16 %v6661
          %v6793 = vunpack.c.h.b16 %v6661
          %v6794 = vunpack.c.l.b16 %v6662
          %v6795 = vunpack.c.h.b16 %v6662
          %v6796 = vunpack.c.l.b16 %v6663
          %v6797 = vunpack.c.h.b16 %v6663
          %v6798 = vunpack.c.l.b16 %v6664
          %v6799 = vunpack.c.h.b16 %v6664
          %v6800 = vunpack.c.l.b16 %v6665
          %v6801 = vunpack.c.h.b16 %v6665
          %v6802 = vunpack.c.l.b16 %v6666
          %v6803 = vunpack.c.h.b16 %v6666
          %v6804 = vunpack.c.l.b16 %v6667
          %v6805 = vunpack.c.h.b16 %v6667
          %v6806 = vunpack.c.l.b16 %v6668
          %v6807 = vunpack.c.h.b16 %v6668
          %v6808 = vunpack.c.l.b16 %v6669
          %v6809 = vunpack.c.h.b16 %v6669
          %v6810 = vunpack.c.l.b16 %v6670
          %v6811 = vunpack.c.h.b16 %v6670
          %v6812 = vunpack.c.l.b16 %v6671
          %v6813 = vunpack.c.h.b16 %v6671
          %v6814 = vunpack.c.l.b16 %v6672
          %v6815 = vunpack.c.h.b16 %v6672
          %v6816 = vunpack.c.l.b16 %v6673
          %v6817 = vunpack.c.h.b16 %v6673
          %v6818 = vunpack.c.l.b16 %v6674
          %v6819 = vunpack.c.h.b16 %v6674
          %v6820 = vunpack.c.l.b16 %v6675
          %v6821 = vunpack.c.h.b16 %v6675
          %v6822 = vunpack.c.l.b16 %v6676
          %v6823 = vunpack.c.h.b16 %v6676
          %v6824 = vunpack.c.l.b16 %v6677
          %v6825 = vunpack.c.h.b16 %v6677
          %v6826 = vunpack.c.l.b16 %v6678
          %v6827 = vunpack.c.h.b16 %v6678
          %v6828 = vunpack.c.l.b16 %v6679
          %v6829 = vunpack.c.h.b16 %v6679
          %v6830 = vunpack.c.l.b16 %v6680
          %v6831 = vunpack.c.h.b16 %v6680
          %v6832 = vunpack.c.l.b16 %v6681
          %v6833 = vunpack.c.h.b16 %v6681
          %v6834 = vunpack.c.l.b16 %v6682
          %v6835 = vunpack.c.h.b16 %v6682
          %v6836 = vunpack.c.l.b16 %v6683
          %v6837 = vunpack.c.h.b16 %v6683
          %v6838 = vunpack.c.l.b16 %v6684
          %v6839 = vunpack.c.h.b16 %v6684
          %v6840 = vunpack.c.l.b16 %v6685
          %v6841 = vunpack.c.h.b16 %v6685
          %v6842 = vpack.c.b16 %v6748, %v6746
          %v6843 = vpack.c.b16 %v6749, %v6747
          %v6844 = vpack.c.b16 %v6752, %v6750
          %v6845 = vpack.c.b16 %v6753, %v6751
          %v6846 = vpack.c.b16 %v6756, %v6754
          %v6847 = vpack.c.b16 %v6757, %v6755
          %v6848 = vpack.c.b16 %v6760, %v6758
          %v6849 = vpack.c.b16 %v6761, %v6759
          %v6850 = vpack.c.b16 %v6764, %v6762
          %v6851 = vpack.c.b16 %v6765, %v6763
          %v6852 = vpack.c.b16 %v6768, %v6766
          %v6853 = vpack.c.b16 %v6769, %v6767
          %v6854 = vpack.c.b16 %v6772, %v6770
          %v6855 = vpack.c.b16 %v6773, %v6771
          %v6856 = vpack.c.b16 %v6776, %v6774
          %v6857 = vpack.c.b16 %v6777, %v6775
          %v6858 = vpack.c.b16 %v6780, %v6778
          %v6859 = vpack.c.b16 %v6781, %v6779
          %v6860 = vpack.c.b16 %v6784, %v6782
          %v6861 = vpack.c.b16 %v6785, %v6783
          %v6862 = vpack.c.b16 %v6788, %v6786
          %v6863 = vpack.c.b16 %v6789, %v6787
          %v6864 = vpack.c.b16 %v6792, %v6790
          %v6865 = vpack.c.b16 %v6793, %v6791
          %v6866 = vpack.c.b16 %v6796, %v6794
          %v6867 = vpack.c.b16 %v6797, %v6795
          %v6868 = vpack.c.b16 %v6800, %v6798
          %v6869 = vpack.c.b16 %v6801, %v6799
          %v6870 = vpack.c.b16 %v6804, %v6802
          %v6871 = vpack.c.b16 %v6805, %v6803
          %v6872 = vpack.c.b16 %v6808, %v6806
          %v6873 = vpack.c.b16 %v6809, %v6807
          %v6874 = vpack.c.b16 %v6812, %v6810
          %v6875 = vpack.c.b16 %v6813, %v6811
          %v6876 = vpack.c.b16 %v6816, %v6814
          %v6877 = vpack.c.b16 %v6817, %v6815
          %v6878 = vpack.c.b16 %v6820, %v6818
          %v6879 = vpack.c.b16 %v6821, %v6819
          %v6880 = vpack.c.b16 %v6824, %v6822
          %v6881 = vpack.c.b16 %v6825, %v6823
          %v6882 = vpack.c.b16 %v6828, %v6826
          %v6883 = vpack.c.b16 %v6829, %v6827
          %v6884 = vpack.c.b16 %v6832, %v6830
          %v6885 = vpack.c.b16 %v6833, %v6831
          %v6886 = vpack.c.b16 %v6836, %v6834
          %v6887 = vpack.c.b16 %v6837, %v6835
          %v6888 = vpack.c.b16 %v6840, %v6838
          %v6889 = vpack.c.b16 %v6841, %v6839
          %6938 = vmatprep.subr.bf16.mxu0 %v6857
          %6939 = vmatpush1.bf16.msra.mxu0 %v6856
          %6940 = vmatprep.subr.bf16.mxu0 %v6855
          %6941 = vmatpush1.bf16.msra.mxu0 %v6854
          %6942 = vmatprep.subr.bf16.mxu0 %v6853
          %6943 = vmatpush1.bf16.msra.mxu0 %v6852
          %6944 = vmatprep.subr.bf16.mxu0 %v6851
          %6945 = vmatpush1.bf16.msra.mxu0 %v6850
          %6946 = vmatprep.subr.bf16.mxu0 %v6849
          %6947 = vmatpush1.bf16.msra.mxu0 %v6848
          %6948 = vmatprep.subr.bf16.mxu0 %v6847
          %6949 = vmatpush1.bf16.msra.mxu0 %v6846
          %6950 = vmatprep.subr.bf16.mxu0 %v6845
          %6951 = vmatpush1.bf16.msra.mxu0 %v6844
          %6952 = vmatprep.subr.bf16.mxu0 %v6843
          %6953 = vmatpush1.bf16.msra.mxu0 %v6842
          %6954 = vmatprep.subr.bf16.mxu0 %v6873
          %6955 = vmatpush2.bf16.msra.mxu0 %v6872
          %6956 = vmatprep.subr.bf16.mxu0 %v6871
          %6957 = vmatpush2.bf16.msra.mxu0 %v6870
          %6958 = vmatprep.subr.bf16.mxu0 %v6869
          %6959 = vmatpush2.bf16.msra.mxu0 %v6868
          %6960 = vmatprep.subr.bf16.mxu0 %v6867
          %6961 = vmatpush2.bf16.msra.mxu0 %v6866
          %6962 = vmatprep.subr.bf16.mxu0 %v6865
          %6963 = vmatpush2.bf16.msra.mxu0 %v6864
          %6964 = vmatprep.subr.bf16.mxu0 %v6863
          %6965 = vmatpush2.bf16.msra.mxu0 %v6862
          %6966 = vmatprep.subr.bf16.mxu0 %v6861
          %6967 = vmatpush2.bf16.msra.mxu0 %v6860
          %6968 = vmatprep.subr.bf16.mxu0 %v6859
          %6969 = vmatpush2.bf16.msra.mxu0 %v6858
          %6970 = vmatprep.mubr.bf16.mxu0 %v6628
          %6971 = vmatmul.mubr.bf16.gmra.mxu0 %v6627
          %v6972 = vpop.f32.mrf.mxu0
          %v6973 = vadd.f32 %v6691, %v6972
          %v6974 = vpop.f32.mrf.mxu0
          %v6975 = vadd.f32 %v6695, %v6974
          %v6976 = vpop.f32.mrf.mxu0
          %v6977 = vpop.f32.mrf.mxu0
          %6978 = vdwg.mxu0
          %6979 = vmatprep.subr.bf16.mxu0 %v6889
          %6980 = vmatpush1.bf16.msra.mxu0 %v6888
          %6981 = vmatprep.subr.bf16.mxu0 %v6887
          %6982 = vmatpush1.bf16.msra.mxu0 %v6886
          %6983 = vmatprep.subr.bf16.mxu0 %v6885
          %6984 = vmatpush1.bf16.msra.mxu0 %v6884
          %6985 = vmatprep.subr.bf16.mxu0 %v6883
          %6986 = vmatpush1.bf16.msra.mxu0 %v6882
          %6987 = vmatprep.subr.bf16.mxu0 %v6881
          %6988 = vmatpush1.bf16.msra.mxu0 %v6880
          %6989 = vmatprep.subr.bf16.mxu0 %v6879
          %6990 = vmatpush1.bf16.msra.mxu0 %v6878
          %6991 = vmatprep.subr.bf16.mxu0 %v6877
          %6992 = vmatpush1.bf16.msra.mxu0 %v6876
          %6993 = vmatprep.subr.bf16.mxu0 %v6875
          %6994 = vmatpush1.bf16.msra.mxu0 %v6874
          %6995 = vmatprep.subr.bf16.mxu0 0
          %6996 = vmatpush2.bf16.msra.mxu0 0
          %6997 = vmatprep.subr.bf16.mxu0 0
          %6998 = vmatpush2.bf16.msra.mxu0 0
          %6999 = vmatprep.subr.bf16.mxu0 0
          %7000 = vmatpush2.bf16.msra.mxu0 0
          %7001 = vmatprep.subr.bf16.mxu0 0
          %7002 = vmatpush2.bf16.msra.mxu0 0
          %7003 = vmatprep.subr.bf16.mxu0 0
          %7004 = vmatpush2.bf16.msra.mxu0 0
          %7005 = vmatprep.subr.bf16.mxu0 0
          %7006 = vmatpush2.bf16.msra.mxu0 0
          %7007 = vmatprep.subr.bf16.mxu0 0
          %7008 = vmatpush2.bf16.msra.mxu0 0
          %7009 = vmatprep.subr.bf16.mxu0 0
          %7010 = vmatpush2.bf16.msra.mxu0 0
          %7011 = vmatprep.mubr.bf16.mxu0 0
          %7012 = vmatmul.mubr.bf16.gmra.mxu0 %v6629
          %v7013 = vpop.f32.mrf.mxu0
          %v7014 = vadd.f32 %v6973, %v7013
          %v7015 = vpop.f32.mrf.mxu0
          %v7016 = vadd.f32 %v6975, %v7015
          %v7017 = vpop.f32.mrf.mxu0
          %v7018 = vpop.f32.mrf.mxu0
          %7019 = vdwg.mxu0
          %v7020 = vmax.f32 %v7014, 0.0
          %v7021 = vmax.f32 %v7016, 0.0
          %v7022 = vmin.f32 %v7014, 0.0
          %v7023 = vmin.f32 %v7016, 0.0
          %v7024 = vrcp.pop 0.1
          %v7025 = vmul.f32 %v7022, %v7024
          %v7026 = vmul.f32 %v7023, %v7024
          %v7027 = vmul.f32 %v7025, 1.442695
          %v7028 = vpow.pop %v7027
          %v7029 = vmul.f32 %v7026, 1.442695
          %v7030 = vpow.pop %v7029
          %v7031 = vsub.f32 %v7028, 1.0
          %v7032 = vsub.f32 %v7030, 1.0
          %v7033 = vmul.f32 %v7031, 0.1
          %v7034 = vmul.f32 %v7032, 0.1
          %v7035 = vadd.f32 %v7020, %v7033
          %v7036 = vadd.f32 %v7021, %v7034
          %v7037 = vpack.c.bf16 %v7035, %v7035
          %v7038 = vpack.c.bf16 %v7036, %v7036
          %v7039 = vld [vmem:[%s12] sm:$0xf]
          %v7040 = vld [vmem:[%s12 + $0x4] sm:$0xf]
          %v7041 = vld [vmem:[%s12 + $0x8] sm:$0xf]
          %v7042 = vld [vmem:[%s12 + $0xc] sm:$0xf]
          %v7043 = vld [vmem:[%s12 + $0x10] sm:$0xf]
          %v7044 = vld [vmem:[%s12 + $0x14] sm:$0xf]
          %v7045 = vld [vmem:[%s12 + $0x18] sm:$0xf]
          %v7046 = vld [vmem:[%s12 + $0x1c] sm:$0xf]
          %v7047 = vld [vmem:[%s12 + $0x20] sm:$0xf]
          %v7048 = vld [vmem:[%s12 + $0x24] sm:$0xf]
          %v7049 = vld [vmem:[%s12 + $0x28] sm:$0xf]
          %v7050 = vld [vmem:[%s12 + $0x2c] sm:$0xf]
          %v7051 = vld [vmem:[%s12 + $0x30] sm:$0xf]
          %v7052 = vld [vmem:[%s12 + $0x34] sm:$0xf]
          %v7053 = vld [vmem:[%s12 + $0x38] sm:$0xf]
          %v7054 = vld [vmem:[%s12 + $0x3c] sm:$0xf]
          %v7055 = vld [vmem:[%s12 + $0x40] sm:$0xf]
          %v7056 = vld [vmem:[%s12 + $0x44] sm:$0xf]
          %v7057 = vld [vmem:[%s12 + $0x48] sm:$0xf]
          %v7058 = vld [vmem:[%s12 + $0x4c] sm:$0xf]
          %v7059 = vld [vmem:[%s13] sm:$0x1]
          %v7060 = vlaneseq
          %v7061 = vshrl.u32 %v7060, 7
          %v7062 = vsub.s32 0, %v7061
          %v7063 = vrot.slane %v7059, %v7062
          %v7084 = vunpack.c.l.b16 %v7039
          %v7085 = vunpack.c.l.b16 %v7040
          %v7086 = vunpack.c.l.b16 %v7041
          %v7087 = vunpack.c.l.b16 %v7042
          %v7088 = vunpack.c.l.b16 %v7043
          %v7089 = vunpack.c.l.b16 %v7044
          %v7090 = vunpack.c.l.b16 %v7045
          %v7091 = vunpack.c.l.b16 %v7046
          %v7092 = vunpack.c.l.b16 %v7047
          %v7093 = vunpack.c.l.b16 %v7048
          %v7094 = vunpack.c.l.b16 %v7049
          %v7095 = vunpack.c.l.b16 %v7050
          %v7096 = vunpack.c.l.b16 %v7051
          %v7097 = vunpack.c.l.b16 %v7052
          %v7098 = vunpack.c.l.b16 %v7053
          %v7099 = vunpack.c.l.b16 %v7054
          %v7100 = vunpack.c.l.b16 %v7055
          %v7101 = vunpack.c.l.b16 %v7056
          %v7102 = vunpack.c.l.b16 %v7057
          %v7103 = vunpack.c.l.b16 %v7058
          %v7104 = vpack.c.b16 %v7085, %v7084
          %v7105 = vpack.c.b16 %v7087, %v7086
          %v7106 = vpack.c.b16 %v7089, %v7088
          %v7107 = vpack.c.b16 %v7091, %v7090
          %v7108 = vpack.c.b16 %v7093, %v7092
          %v7109 = vpack.c.b16 %v7095, %v7094
          %v7110 = vpack.c.b16 %v7097, %v7096
          %v7111 = vpack.c.b16 %v7099, %v7098
          %v7112 = vpack.c.b16 %v7101, %v7100
          %v7113 = vpack.c.b16 %v7103, %v7102
          %v7125 = vsel %vm1939, %v7038, 0
          %7127 = vmatprep.subr.bf16.mxu0 0
          %7128 = vmatpush1.bf16.msra.mxu0 %v7111
          %7129 = vmatprep.subr.bf16.mxu0 0
          %7130 = vmatpush1.bf16.msra.mxu0 %v7110
          %7131 = vmatprep.subr.bf16.mxu0 0
          %7132 = vmatpush1.bf16.msra.mxu0 %v7109
          %7133 = vmatprep.subr.bf16.mxu0 0
          %7134 = vmatpush1.bf16.msra.mxu0 %v7108
          %7135 = vmatprep.subr.bf16.mxu0 0
          %7136 = vmatpush1.bf16.msra.mxu0 %v7107
          %7137 = vmatprep.subr.bf16.mxu0 0
          %7138 = vmatpush1.bf16.msra.mxu0 %v7106
          %7139 = vmatprep.subr.bf16.mxu0 0
          %7140 = vmatpush1.bf16.msra.mxu0 %v7105
          %7141 = vmatprep.subr.bf16.mxu0 0
          %7142 = vmatpush1.bf16.msra.mxu0 %v7104
          %7143 = vmatprep.subr.bf16.mxu0 0
          %7144 = vmatpush2.bf16.msra.mxu0 0
          %7145 = vmatprep.subr.bf16.mxu0 0
          %7146 = vmatpush2.bf16.msra.mxu0 0
          %7147 = vmatprep.subr.bf16.mxu0 0
          %7148 = vmatpush2.bf16.msra.mxu0 0
          %7149 = vmatprep.subr.bf16.mxu0 0
          %7150 = vmatpush2.bf16.msra.mxu0 0
          %7151 = vmatprep.subr.bf16.mxu0 0
          %7152 = vmatpush2.bf16.msra.mxu0 0
          %7153 = vmatprep.subr.bf16.mxu0 0
          %7154 = vmatpush2.bf16.msra.mxu0 0
          %7155 = vmatprep.subr.bf16.mxu0 0
          %7156 = vmatpush2.bf16.msra.mxu0 %v7113
          %7157 = vmatprep.subr.bf16.mxu0 0
          %7158 = vmatpush2.bf16.msra.mxu0 %v7112
          %7159 = vmatprep.mubr.bf16.mxu0 %v7125
          %7160 = vmatmul.mubr.bf16.gmra.mxu0 %v7037
          %v7161 = vpop.f32.mrf.mxu0
          %v7162 = vadd.f32 %v7063, %v7161
          %v7163 = vpop.f32.mrf.mxu0
          %v7164 = vpop.f32.mrf.mxu0
          %v7165 = vpop.f32.mrf.mxu0
          %7166 = vdwg.mxu0
          %v7167 = vmax.f32 %v7162, 0.0
          %v7168 = vmin.f32 %v7162, 0.0
          %v7169 = vmul.f32 %v7168, %v7024
          %v7170 = vmul.f32 %v7169, 1.442695
          %v7171 = vpow.pop %v7170
          %v7172 = vsub.f32 %v7171, 1.0
          %v7173 = vmul.f32 %v7172, 0.1
          %v7174 = vadd.f32 %v7167, %v7173
          %v7175 = vpack.c.bf16 %v7174, %v7174
          %v7176 = vld [vmem:[%s14] sm:$0xf]
          %v7177 = vld [vmem:[%s14 + $0x4] sm:$0xf]
          %v7178 = vld [vmem:[%s14 + $0x8] sm:$0xf]
          %v7179 = vld [vmem:[%s14 + $0xc] sm:$0xf]
          %v7180 = vld [vmem:[%s14 + $0x10] sm:$0xf]
          %v7181 = vld [vmem:[%s14 + $0x14] sm:$0xf]
          %v7182 = vld [vmem:[%s14 + $0x18] sm:$0xf]
          %v7183 = vld [vmem:[%s14 + $0x1c] sm:$0xf]
          %v7184 = vld [vmem:[%s14 + $0x20] sm:$0xf]
          %v7185 = vld [vmem:[%s14 + $0x24] sm:$0xf]
          %v7186 = vld [vmem:[%s14 + $0x28] sm:$0xf]
          %v7187 = vld [vmem:[%s14 + $0x2c] sm:$0xf]
          %v7188 = vld [vmem:[%s14 + $0x30] sm:$0xf]
          %v7189 = vld [vmem:[%s14 + $0x34] sm:$0xf]
          %v7190 = vld [vmem:[%s14 + $0x38] sm:$0xf]
          %v7191 = vld [vmem:[%s14 + $0x3c] sm:$0xf]
          %v7192 = vld [vmem:[#allocation7] sm:$0x1]
          %v7193 = vlaneseq
          %v7194 = vshrl.u32 %v7193, 7
          %v7195 = vsub.s32 0, %v7194
          %v7196 = vrot.slane %v7192, %v7195
          %v7213 = vunpack.c.l.b16 %v7176
          %v7214 = vunpack.c.l.b16 %v7177
          %v7215 = vunpack.c.l.b16 %v7178
          %v7216 = vunpack.c.l.b16 %v7179
          %v7217 = vunpack.c.l.b16 %v7180
          %v7218 = vunpack.c.l.b16 %v7181
          %v7219 = vunpack.c.l.b16 %v7182
          %v7220 = vunpack.c.l.b16 %v7183
          %v7221 = vunpack.c.l.b16 %v7184
          %v7222 = vunpack.c.l.b16 %v7185
          %v7223 = vunpack.c.l.b16 %v7186
          %v7224 = vunpack.c.l.b16 %v7187
          %v7225 = vunpack.c.l.b16 %v7188
          %v7226 = vunpack.c.l.b16 %v7189
          %v7227 = vunpack.c.l.b16 %v7190
          %v7228 = vunpack.c.l.b16 %v7191
          %v7229 = vpack.c.b16 %v7214, %v7213
          %v7230 = vpack.c.b16 %v7216, %v7215
          %v7231 = vpack.c.b16 %v7218, %v7217
          %v7232 = vpack.c.b16 %v7220, %v7219
          %v7233 = vpack.c.b16 %v7222, %v7221
          %v7234 = vpack.c.b16 %v7224, %v7223
          %v7235 = vpack.c.b16 %v7226, %v7225
          %v7236 = vpack.c.b16 %v7228, %v7227
          %7245 = vmatprep.subr.bf16.mxu0 0
          %7246 = vmatpush1.bf16.msra.mxu0 %v7236
          %7247 = vmatprep.subr.bf16.mxu0 0
          %7248 = vmatpush1.bf16.msra.mxu0 %v7235
          %7249 = vmatprep.subr.bf16.mxu0 0
          %7250 = vmatpush1.bf16.msra.mxu0 %v7234
          %7251 = vmatprep.subr.bf16.mxu0 0
          %7252 = vmatpush1.bf16.msra.mxu0 %v7233
          %7253 = vmatprep.subr.bf16.mxu0 0
          %7254 = vmatpush1.bf16.msra.mxu0 %v7232
          %7255 = vmatprep.subr.bf16.mxu0 0
          %7256 = vmatpush1.bf16.msra.mxu0 %v7231
          %7257 = vmatprep.subr.bf16.mxu0 0
          %7258 = vmatpush1.bf16.msra.mxu0 %v7230
          %7259 = vmatprep.subr.bf16.mxu0 0
          %7260 = vmatpush1.bf16.msra.mxu0 %v7229
          %7261 = vmatprep.subr.bf16.mxu0 0
          %7262 = vmatpush2.bf16.msra.mxu0 0
          %7263 = vmatprep.subr.bf16.mxu0 0
          %7264 = vmatpush2.bf16.msra.mxu0 0
          %7265 = vmatprep.subr.bf16.mxu0 0
          %7266 = vmatpush2.bf16.msra.mxu0 0
          %7267 = vmatprep.subr.bf16.mxu0 0
          %7268 = vmatpush2.bf16.msra.mxu0 0
          %7269 = vmatprep.subr.bf16.mxu0 0
          %7270 = vmatpush2.bf16.msra.mxu0 0
          %7271 = vmatprep.subr.bf16.mxu0 0
          %7272 = vmatpush2.bf16.msra.mxu0 0
          %7273 = vmatprep.subr.bf16.mxu0 0
          %7274 = vmatpush2.bf16.msra.mxu0 0
          %7275 = vmatprep.subr.bf16.mxu0 0
          %7276 = vmatpush2.bf16.msra.mxu0 0
          %7277 = vmatprep.mubr.bf16.mxu0 0
          %7278 = vmatmul.mubr.bf16.gmra.mxu0 %v7175
          %v7279 = vpop.f32.mrf.mxu0
          %v7280 = vadd.f32 %v7196, %v7279
          %v7281 = vpop.f32.mrf.mxu0
          %v7282 = vpop.f32.mrf.mxu0
          %v7283 = vpop.f32.mrf.mxu0
          %7284 = vdwg.mxu0
          %v7285 = vmax.f32 %v7280, 0.0
          %v7286 = vmin.f32 %v7280, 0.0
          %v7287 = vmul.f32 %v7286, %v7024
          %v7288 = vmul.f32 %v7287, 1.442695
          %v7289 = vpow.pop %v7288
          %v7290 = vsub.f32 %v7289, 1.0
          %v7291 = vmul.f32 %v7290, 0.1
          %v7292 = vadd.f32 %v7285, %v7291
          %v7293 = vpack.c.bf16 %v7292, %v7292
          %v7294 = vld [vmem:[#allocation9] sm:$0xf]
          %v7295 = vld [vmem:[#allocation9 + $0x4] sm:$0xf]
          %v7296 = vld [vmem:[#allocation9 + $0x8] sm:$0xf]
          %v7297 = vld [vmem:[#allocation9 + $0xc] sm:$0xf]
          %v7298 = vld [vmem:[#allocation9 + $0x10] sm:$0xf]
          %v7299 = vld [vmem:[#allocation9 + $0x14] sm:$0xf]
          %v7300 = vld [vmem:[#allocation9 + $0x18] sm:$0xf]
          %v7301 = vld [vmem:[#allocation9 + $0x1c] sm:$0xf]
          %v7302 = vld [vmem:[#allocation9 + $0x20] sm:$0xf]
          %v7303 = vld [vmem:[#allocation9 + $0x24] sm:$0xf]
          %v7304 = vld [vmem:[#allocation9 + $0x28] sm:$0xf]
          %v7305 = vld [vmem:[#allocation9 + $0x2c] sm:$0xf]
          %v7306 = vld [vmem:[#allocation10] sm:$0x1]
          %v7307 = vlaneseq
          %v7308 = vshrl.u32 %v7307, 7
          %v7309 = vsub.s32 0, %v7308
          %v7310 = vrot.slane %v7306, %v7309
          %v7323 = vunpack.c.l.b16 %v7294
          %v7324 = vunpack.c.l.b16 %v7295
          %v7325 = vunpack.c.l.b16 %v7296
          %v7326 = vunpack.c.l.b16 %v7297
          %v7327 = vunpack.c.l.b16 %v7298
          %v7328 = vunpack.c.l.b16 %v7299
          %v7329 = vunpack.c.l.b16 %v7300
          %v7330 = vunpack.c.l.b16 %v7301
          %v7331 = vunpack.c.l.b16 %v7302
          %v7332 = vunpack.c.l.b16 %v7303
          %v7333 = vunpack.c.l.b16 %v7304
          %v7334 = vunpack.c.l.b16 %v7305
          %v7335 = vpack.c.b16 %v7324, %v7323
          %v7336 = vpack.c.b16 %v7326, %v7325
          %v7337 = vpack.c.b16 %v7328, %v7327
          %v7338 = vpack.c.b16 %v7330, %v7329
          %v7339 = vpack.c.b16 %v7332, %v7331
          %v7340 = vpack.c.b16 %v7334, %v7333
          %v7348 = vsel %vm6606, %v7293, 0
          %7350 = vmatprep.subr.bf16.mxu0 0
          %7351 = vmatpush1.bf16.msra.mxu0 0
          %7352 = vmatprep.subr.bf16.mxu0 0
          %7353 = vmatpush1.bf16.msra.mxu0 0
          %7354 = vmatprep.subr.bf16.mxu0 0
          %7355 = vmatpush1.bf16.msra.mxu0 %v7340
          %7356 = vmatprep.subr.bf16.mxu0 0
          %7357 = vmatpush1.bf16.msra.mxu0 %v7339
          %7358 = vmatprep.subr.bf16.mxu0 0
          %7359 = vmatpush1.bf16.msra.mxu0 %v7338
          %7360 = vmatprep.subr.bf16.mxu0 0
          %7361 = vmatpush1.bf16.msra.mxu0 %v7337
          %7362 = vmatprep.subr.bf16.mxu0 0
          %7363 = vmatpush1.bf16.msra.mxu0 %v7336
          %7364 = vmatprep.subr.bf16.mxu0 0
          %7365 = vmatpush1.bf16.msra.mxu0 %v7335
          %7366 = vmatprep.subr.bf16.mxu0 0
          %7367 = vmatpush2.bf16.msra.mxu0 0
          %7368 = vmatprep.subr.bf16.mxu0 0
          %7369 = vmatpush2.bf16.msra.mxu0 0
          %7370 = vmatprep.subr.bf16.mxu0 0
          %7371 = vmatpush2.bf16.msra.mxu0 0
          %7372 = vmatprep.subr.bf16.mxu0 0
          %7373 = vmatpush2.bf16.msra.mxu0 0
          %7374 = vmatprep.subr.bf16.mxu0 0
          %7375 = vmatpush2.bf16.msra.mxu0 0
          %7376 = vmatprep.subr.bf16.mxu0 0
          %7377 = vmatpush2.bf16.msra.mxu0 0
          %7378 = vmatprep.subr.bf16.mxu0 0
          %7379 = vmatpush2.bf16.msra.mxu0 0
          %7380 = vmatprep.subr.bf16.mxu0 0
          %7381 = vmatpush2.bf16.msra.mxu0 0
          %7382 = vmatprep.mubr.bf16.mxu0 0
          %7383 = vmatmul.mubr.bf16.gmra.mxu0 %v7348
          %v7384 = vpop.f32.mrf.mxu0
          %v7385 = vadd.f32 %v7310, %v7384
          %v7386 = vpop.f32.mrf.mxu0
          %v7387 = vpop.f32.mrf.mxu0
          %v7388 = vpop.f32.mrf.mxu0
          %7389 = vdwg.mxu0
          %v7390 = vld [vmem:[#allocation2] sm:$0xff]
          %v7391 = vmul.f32 %v7385, %v681
          %v7392 = vadd.f32 %v7390, %v7391
          %7393 = vst.msk [vmem:[#allocation2] sm:$0xff] %vm6630, %v7392
        $region108: #{mod_optimized_torchani_forward.1} parent=87 // pred_fallthru
          _
        %s7394 = sadd.s32 %s6632, 1
        %s7395 = sld [smem:[#allocation4 + %s7394]]
        %p7396 = scmp.gt.s32.totalorder %s7395, 0
        // Predicated region
        $region109: #{mod_optimized_torchani_forward.1} parent=87 // pred_check
          %p7397 = pneg %p7396
        $region110: #{mod_optimized_torchani_forward.1} parent=87 // pred_check_branch
          %7399 = sbr.rel (%p7397) target = $region112
        $region111: #{mod_optimized_torchani_forward.1} parent=87 // pred_region
          %s7400 = scalar_lea.vmem [#allocation5], 384
          %v7401 = vld [vmem:[%s7400] sm:$0xff]
          %v7402 = vld [vmem:[%s7400 + $0x8] sm:$0xff]
          %v7403 = vld [vmem:[%s7400 + $0x10] sm:$0xff]
          %v7404 = vld [vmem:[%s7400 + $0x18] sm:$0xff]
          %v7405 = vld [vmem:[%s7400 + $0x20] sm:$0xff]
          %v7406 = vld [vmem:[%s7400 + $0x28] sm:$0xff]
          %v7407 = vld [vmem:[%s7400 + $0x30] sm:$0xff]
          %v7408 = vld [vmem:[%s7400 + $0x38] sm:$0xff]
          %v7409 = vld [vmem:[%s7400 + $0x40] sm:$0xff]
          %v7410 = vld [vmem:[%s7400 + $0x48] sm:$0xff]
          %v7411 = vld [vmem:[%s7400 + $0x50] sm:$0xff]
          %v7412 = vld [vmem:[%s7400 + $0x58] sm:$0xff]
          %v7413 = vld [vmem:[%s7400 + $0x60] sm:$0xff]
          %v7414 = vld [vmem:[%s7400 + $0x68] sm:$0xff]
          %v7415 = vld [vmem:[%s7400 + $0x70] sm:$0xff]
          %v7416 = vld [vmem:[%s7400 + $0x78] sm:$0xff]
          %v7417 = vld [vmem:[%s7400 + $0x80] sm:$0xff]
          %v7418 = vld [vmem:[%s7400 + $0x88] sm:$0xff]
          %v7419 = vld [vmem:[%s7400 + $0x90] sm:$0xff]
          %v7420 = vld [vmem:[%s7400 + $0x98] sm:$0xff]
          %v7421 = vld [vmem:[%s7400 + $0xa0] sm:$0xff]
          %v7422 = vld [vmem:[%s7400 + $0xa8] sm:$0xff]
          %v7423 = vld [vmem:[%s7400 + $0xb0] sm:$0xff]
          %v7424 = vld [vmem:[%s7400 + $0xb8] sm:$0xff]
          %v7425 = vld [vmem:[%s7400 + $0xc0] sm:$0xff]
          %v7426 = vld [vmem:[%s7400 + $0xc8] sm:$0xff]
          %v7427 = vld [vmem:[%s7400 + $0xd0] sm:$0xff]
          %v7428 = vld [vmem:[%s7400 + $0xd8] sm:$0xff]
          %v7429 = vld [vmem:[%s7400 + $0xe0] sm:$0xff]
          %v7430 = vld [vmem:[%s7400 + $0xe8] sm:$0xff]
          %v7431 = vld [vmem:[%s7400 + $0xf0] sm:$0xff]
          %v7432 = vld [vmem:[%s7400 + $0xf8] sm:$0xff]
          %v7433 = vld [vmem:[%s7400 + $0x100] sm:$0xff]
          %v7434 = vld [vmem:[%s7400 + $0x108] sm:$0xff]
          %v7435 = vld [vmem:[%s7400 + $0x110] sm:$0xff]
          %v7436 = vld [vmem:[%s7400 + $0x118] sm:$0xff]
          %v7437 = vld [vmem:[%s7400 + $0x120] sm:$0xff]
          %v7438 = vld [vmem:[%s7400 + $0x128] sm:$0xff]
          %v7439 = vld [vmem:[%s7400 + $0x130] sm:$0xff]
          %v7440 = vld [vmem:[%s7400 + $0x138] sm:$0xff]
          %v7441 = vld [vmem:[%s7400 + $0x140] sm:$0xff]
          %v7442 = vld [vmem:[%s7400 + $0x148] sm:$0xff]
          %v7443 = vld [vmem:[%s7400 + $0x150] sm:$0xff]
          %v7444 = vld [vmem:[%s7400 + $0x158] sm:$0xff]
          %v7445 = vld [vmem:[%s7400 + $0x160] sm:$0xff]
          %v7446 = vld [vmem:[%s7400 + $0x168] sm:$0xff]
          %v7447 = vld [vmem:[%s7400 + $0x170] sm:$0xff]
          %v7448 = vld [vmem:[%s7400 + $0x178] sm:$0xff]
          %s7449 = scalar_lea.vmem %s11, 1
          %v7450 = vld [vmem:[%s7449] ss:$4 sm:$0x3]
          %v7452 = vlaneseq
          %v7453 = vshrl.u32 %v7452, 7
          %v7454 = vsub.s32 0, %v7453
          %v7455 = vrot.slane %v7450, %v7454
          %v7456 = vlaneseq
          %v7457 = vshrl.u32 %v7456, 7
          %v7458 = vsub.s32 1, %v7457
          %v7459 = vrot.slane %v7450, %v7458
          %v7510 = vunpack.c.l.b16 %v7401
          %v7511 = vunpack.c.h.b16 %v7401
          %v7512 = vunpack.c.l.b16 %v7402
          %v7513 = vunpack.c.h.b16 %v7402
          %v7514 = vunpack.c.l.b16 %v7403
          %v7515 = vunpack.c.h.b16 %v7403
          %v7516 = vunpack.c.l.b16 %v7404
          %v7517 = vunpack.c.h.b16 %v7404
          %v7518 = vunpack.c.l.b16 %v7405
          %v7519 = vunpack.c.h.b16 %v7405
          %v7520 = vunpack.c.l.b16 %v7406
          %v7521 = vunpack.c.h.b16 %v7406
          %v7522 = vunpack.c.l.b16 %v7407
          %v7523 = vunpack.c.h.b16 %v7407
          %v7524 = vunpack.c.l.b16 %v7408
          %v7525 = vunpack.c.h.b16 %v7408
          %v7526 = vunpack.c.l.b16 %v7409
          %v7527 = vunpack.c.h.b16 %v7409
          %v7528 = vunpack.c.l.b16 %v7410
          %v7529 = vunpack.c.h.b16 %v7410
          %v7530 = vunpack.c.l.b16 %v7411
          %v7531 = vunpack.c.h.b16 %v7411
          %v7532 = vunpack.c.l.b16 %v7412
          %v7533 = vunpack.c.h.b16 %v7412
          %v7534 = vunpack.c.l.b16 %v7413
          %v7535 = vunpack.c.h.b16 %v7413
          %v7536 = vunpack.c.l.b16 %v7414
          %v7537 = vunpack.c.h.b16 %v7414
          %v7538 = vunpack.c.l.b16 %v7415
          %v7539 = vunpack.c.h.b16 %v7415
          %v7540 = vunpack.c.l.b16 %v7416
          %v7541 = vunpack.c.h.b16 %v7416
          %v7542 = vunpack.c.l.b16 %v7417
          %v7543 = vunpack.c.h.b16 %v7417
          %v7544 = vunpack.c.l.b16 %v7418
          %v7545 = vunpack.c.h.b16 %v7418
          %v7546 = vunpack.c.l.b16 %v7419
          %v7547 = vunpack.c.h.b16 %v7419
          %v7548 = vunpack.c.l.b16 %v7420
          %v7549 = vunpack.c.h.b16 %v7420
          %v7550 = vunpack.c.l.b16 %v7421
          %v7551 = vunpack.c.h.b16 %v7421
          %v7552 = vunpack.c.l.b16 %v7422
          %v7553 = vunpack.c.h.b16 %v7422
          %v7554 = vunpack.c.l.b16 %v7423
          %v7555 = vunpack.c.h.b16 %v7423
          %v7556 = vunpack.c.l.b16 %v7424
          %v7557 = vunpack.c.h.b16 %v7424
          %v7558 = vunpack.c.l.b16 %v7425
          %v7559 = vunpack.c.h.b16 %v7425
          %v7560 = vunpack.c.l.b16 %v7426
          %v7561 = vunpack.c.h.b16 %v7426
          %v7562 = vunpack.c.l.b16 %v7427
          %v7563 = vunpack.c.h.b16 %v7427
          %v7564 = vunpack.c.l.b16 %v7428
          %v7565 = vunpack.c.h.b16 %v7428
          %v7566 = vunpack.c.l.b16 %v7429
          %v7567 = vunpack.c.h.b16 %v7429
          %v7568 = vunpack.c.l.b16 %v7430
          %v7569 = vunpack.c.h.b16 %v7430
          %v7570 = vunpack.c.l.b16 %v7431
          %v7571 = vunpack.c.h.b16 %v7431
          %v7572 = vunpack.c.l.b16 %v7432
          %v7573 = vunpack.c.h.b16 %v7432
          %v7574 = vunpack.c.l.b16 %v7433
          %v7575 = vunpack.c.h.b16 %v7433
          %v7576 = vunpack.c.l.b16 %v7434
          %v7577 = vunpack.c.h.b16 %v7434
          %v7578 = vunpack.c.l.b16 %v7435
          %v7579 = vunpack.c.h.b16 %v7435
          %v7580 = vunpack.c.l.b16 %v7436
          %v7581 = vunpack.c.h.b16 %v7436
          %v7582 = vunpack.c.l.b16 %v7437
          %v7583 = vunpack.c.h.b16 %v7437
          %v7584 = vunpack.c.l.b16 %v7438
          %v7585 = vunpack.c.h.b16 %v7438
          %v7586 = vunpack.c.l.b16 %v7439
          %v7587 = vunpack.c.h.b16 %v7439
          %v7588 = vunpack.c.l.b16 %v7440
          %v7589 = vunpack.c.h.b16 %v7440
          %v7590 = vunpack.c.l.b16 %v7441
          %v7591 = vunpack.c.h.b16 %v7441
          %v7592 = vunpack.c.l.b16 %v7442
          %v7593 = vunpack.c.h.b16 %v7442
          %v7594 = vunpack.c.l.b16 %v7443
          %v7595 = vunpack.c.h.b16 %v7443
          %v7596 = vunpack.c.l.b16 %v7444
          %v7597 = vunpack.c.h.b16 %v7444
          %v7598 = vunpack.c.l.b16 %v7445
          %v7599 = vunpack.c.h.b16 %v7445
          %v7600 = vunpack.c.l.b16 %v7446
          %v7601 = vunpack.c.h.b16 %v7446
          %v7602 = vunpack.c.l.b16 %v7447
          %v7603 = vunpack.c.h.b16 %v7447
          %v7604 = vunpack.c.l.b16 %v7448
          %v7605 = vunpack.c.h.b16 %v7448
          %v7606 = vpack.c.b16 %v7512, %v7510
          %v7607 = vpack.c.b16 %v7513, %v7511
          %v7608 = vpack.c.b16 %v7516, %v7514
          %v7609 = vpack.c.b16 %v7517, %v7515
          %v7610 = vpack.c.b16 %v7520, %v7518
          %v7611 = vpack.c.b16 %v7521, %v7519
          %v7612 = vpack.c.b16 %v7524, %v7522
          %v7613 = vpack.c.b16 %v7525, %v7523
          %v7614 = vpack.c.b16 %v7528, %v7526
          %v7615 = vpack.c.b16 %v7529, %v7527
          %v7616 = vpack.c.b16 %v7532, %v7530
          %v7617 = vpack.c.b16 %v7533, %v7531
          %v7618 = vpack.c.b16 %v7536, %v7534
          %v7619 = vpack.c.b16 %v7537, %v7535
          %v7620 = vpack.c.b16 %v7540, %v7538
          %v7621 = vpack.c.b16 %v7541, %v7539
          %v7622 = vpack.c.b16 %v7544, %v7542
          %v7623 = vpack.c.b16 %v7545, %v7543
          %v7624 = vpack.c.b16 %v7548, %v7546
          %v7625 = vpack.c.b16 %v7549, %v7547
          %v7626 = vpack.c.b16 %v7552, %v7550
          %v7627 = vpack.c.b16 %v7553, %v7551
          %v7628 = vpack.c.b16 %v7556, %v7554
          %v7629 = vpack.c.b16 %v7557, %v7555
          %v7630 = vpack.c.b16 %v7560, %v7558
          %v7631 = vpack.c.b16 %v7561, %v7559
          %v7632 = vpack.c.b16 %v7564, %v7562
          %v7633 = vpack.c.b16 %v7565, %v7563
          %v7634 = vpack.c.b16 %v7568, %v7566
          %v7635 = vpack.c.b16 %v7569, %v7567
          %v7636 = vpack.c.b16 %v7572, %v7570
          %v7637 = vpack.c.b16 %v7573, %v7571
          %v7638 = vpack.c.b16 %v7576, %v7574
          %v7639 = vpack.c.b16 %v7577, %v7575
          %v7640 = vpack.c.b16 %v7580, %v7578
          %v7641 = vpack.c.b16 %v7581, %v7579
          %v7642 = vpack.c.b16 %v7584, %v7582
          %v7643 = vpack.c.b16 %v7585, %v7583
          %v7644 = vpack.c.b16 %v7588, %v7586
          %v7645 = vpack.c.b16 %v7589, %v7587
          %v7646 = vpack.c.b16 %v7592, %v7590
          %v7647 = vpack.c.b16 %v7593, %v7591
          %v7648 = vpack.c.b16 %v7596, %v7594
          %v7649 = vpack.c.b16 %v7597, %v7595
          %v7650 = vpack.c.b16 %v7600, %v7598
          %v7651 = vpack.c.b16 %v7601, %v7599
          %v7652 = vpack.c.b16 %v7604, %v7602
          %v7653 = vpack.c.b16 %v7605, %v7603
          %7702 = vmatprep.subr.bf16.mxu0 %v7621
          %7703 = vmatpush1.bf16.msra.mxu0 %v7620
          %7704 = vmatprep.subr.bf16.mxu0 %v7619
          %7705 = vmatpush1.bf16.msra.mxu0 %v7618
          %7706 = vmatprep.subr.bf16.mxu0 %v7617
          %7707 = vmatpush1.bf16.msra.mxu0 %v7616
          %7708 = vmatprep.subr.bf16.mxu0 %v7615
          %7709 = vmatpush1.bf16.msra.mxu0 %v7614
          %7710 = vmatprep.subr.bf16.mxu0 %v7613
          %7711 = vmatpush1.bf16.msra.mxu0 %v7612
          %7712 = vmatprep.subr.bf16.mxu0 %v7611
          %7713 = vmatpush1.bf16.msra.mxu0 %v7610
          %7714 = vmatprep.subr.bf16.mxu0 %v7609
          %7715 = vmatpush1.bf16.msra.mxu0 %v7608
          %7716 = vmatprep.subr.bf16.mxu0 %v7607
          %7717 = vmatpush1.bf16.msra.mxu0 %v7606
          %7718 = vmatprep.subr.bf16.mxu0 %v7637
          %7719 = vmatpush2.bf16.msra.mxu0 %v7636
          %7720 = vmatprep.subr.bf16.mxu0 %v7635
          %7721 = vmatpush2.bf16.msra.mxu0 %v7634
          %7722 = vmatprep.subr.bf16.mxu0 %v7633
          %7723 = vmatpush2.bf16.msra.mxu0 %v7632
          %7724 = vmatprep.subr.bf16.mxu0 %v7631
          %7725 = vmatpush2.bf16.msra.mxu0 %v7630
          %7726 = vmatprep.subr.bf16.mxu0 %v7629
          %7727 = vmatpush2.bf16.msra.mxu0 %v7628
          %7728 = vmatprep.subr.bf16.mxu0 %v7627
          %7729 = vmatpush2.bf16.msra.mxu0 %v7626
          %7730 = vmatprep.subr.bf16.mxu0 %v7625
          %7731 = vmatpush2.bf16.msra.mxu0 %v7624
          %7732 = vmatprep.subr.bf16.mxu0 %v7623
          %7733 = vmatpush2.bf16.msra.mxu0 %v7622
          %7734 = vmatprep.mubr.bf16.mxu0 %v6628
          %7735 = vmatmul.mubr.bf16.gmra.mxu0 %v6627
          %v7736 = vpop.f32.mrf.mxu0
          %v7737 = vadd.f32 %v7455, %v7736
          %v7738 = vpop.f32.mrf.mxu0
          %v7739 = vadd.f32 %v7459, %v7738
          %v7740 = vpop.f32.mrf.mxu0
          %v7741 = vpop.f32.mrf.mxu0
          %7742 = vdwg.mxu0
          %7743 = vmatprep.subr.bf16.mxu0 %v7653
          %7744 = vmatpush1.bf16.msra.mxu0 %v7652
          %7745 = vmatprep.subr.bf16.mxu0 %v7651
          %7746 = vmatpush1.bf16.msra.mxu0 %v7650
          %7747 = vmatprep.subr.bf16.mxu0 %v7649
          %7748 = vmatpush1.bf16.msra.mxu0 %v7648
          %7749 = vmatprep.subr.bf16.mxu0 %v7647
          %7750 = vmatpush1.bf16.msra.mxu0 %v7646
          %7751 = vmatprep.subr.bf16.mxu0 %v7645
          %7752 = vmatpush1.bf16.msra.mxu0 %v7644
          %7753 = vmatprep.subr.bf16.mxu0 %v7643
          %7754 = vmatpush1.bf16.msra.mxu0 %v7642
          %7755 = vmatprep.subr.bf16.mxu0 %v7641
          %7756 = vmatpush1.bf16.msra.mxu0 %v7640
          %7757 = vmatprep.subr.bf16.mxu0 %v7639
          %7758 = vmatpush1.bf16.msra.mxu0 %v7638
          %7759 = vmatprep.subr.bf16.mxu0 0
          %7760 = vmatpush2.bf16.msra.mxu0 0
          %7761 = vmatprep.subr.bf16.mxu0 0
          %7762 = vmatpush2.bf16.msra.mxu0 0
          %7763 = vmatprep.subr.bf16.mxu0 0
          %7764 = vmatpush2.bf16.msra.mxu0 0
          %7765 = vmatprep.subr.bf16.mxu0 0
          %7766 = vmatpush2.bf16.msra.mxu0 0
          %7767 = vmatprep.subr.bf16.mxu0 0
          %7768 = vmatpush2.bf16.msra.mxu0 0
          %7769 = vmatprep.subr.bf16.mxu0 0
          %7770 = vmatpush2.bf16.msra.mxu0 0
          %7771 = vmatprep.subr.bf16.mxu0 0
          %7772 = vmatpush2.bf16.msra.mxu0 0
          %7773 = vmatprep.subr.bf16.mxu0 0
          %7774 = vmatpush2.bf16.msra.mxu0 0
          %7775 = vmatprep.mubr.bf16.mxu0 0
          %7776 = vmatmul.mubr.bf16.gmra.mxu0 %v6629
          %v7777 = vpop.f32.mrf.mxu0
          %v7778 = vadd.f32 %v7737, %v7777
          %v7779 = vpop.f32.mrf.mxu0
          %v7780 = vadd.f32 %v7739, %v7779
          %v7781 = vpop.f32.mrf.mxu0
          %v7782 = vpop.f32.mrf.mxu0
          %7783 = vdwg.mxu0
          %v7784 = vmax.f32 %v7778, 0.0
          %v7785 = vmax.f32 %v7780, 0.0
          %v7786 = vmin.f32 %v7778, 0.0
          %v7787 = vmin.f32 %v7780, 0.0
          %v7788 = vrcp.pop 0.1
          %v7789 = vmul.f32 %v7786, %v7788
          %v7790 = vmul.f32 %v7787, %v7788
          %v7791 = vmul.f32 %v7789, 1.442695
          %v7792 = vpow.pop %v7791
          %v7793 = vmul.f32 %v7790, 1.442695
          %v7794 = vpow.pop %v7793
          %v7795 = vsub.f32 %v7792, 1.0
          %v7796 = vsub.f32 %v7794, 1.0
          %v7797 = vmul.f32 %v7795, 0.1
          %v7798 = vmul.f32 %v7796, 0.1
          %v7799 = vadd.f32 %v7784, %v7797
          %v7800 = vadd.f32 %v7785, %v7798
          %v7801 = vpack.c.bf16 %v7799, %v7799
          %v7802 = vpack.c.bf16 %v7800, %v7800
          %s7803 = scalar_lea.vmem %s12, 80
          %v7804 = vld [vmem:[%s7803] sm:$0xf]
          %v7805 = vld [vmem:[%s7803 + $0x4] sm:$0xf]
          %v7806 = vld [vmem:[%s7803 + $0x8] sm:$0xf]
          %v7807 = vld [vmem:[%s7803 + $0xc] sm:$0xf]
          %v7808 = vld [vmem:[%s7803 + $0x10] sm:$0xf]
          %v7809 = vld [vmem:[%s7803 + $0x14] sm:$0xf]
          %v7810 = vld [vmem:[%s7803 + $0x18] sm:$0xf]
          %v7811 = vld [vmem:[%s7803 + $0x1c] sm:$0xf]
          %v7812 = vld [vmem:[%s7803 + $0x20] sm:$0xf]
          %v7813 = vld [vmem:[%s7803 + $0x24] sm:$0xf]
          %v7814 = vld [vmem:[%s7803 + $0x28] sm:$0xf]
          %v7815 = vld [vmem:[%s7803 + $0x2c] sm:$0xf]
          %v7816 = vld [vmem:[%s7803 + $0x30] sm:$0xf]
          %v7817 = vld [vmem:[%s7803 + $0x34] sm:$0xf]
          %v7818 = vld [vmem:[%s7803 + $0x38] sm:$0xf]
          %v7819 = vld [vmem:[%s7803 + $0x3c] sm:$0xf]
          %v7820 = vld [vmem:[%s7803 + $0x40] sm:$0xf]
          %v7821 = vld [vmem:[%s7803 + $0x44] sm:$0xf]
          %v7822 = vld [vmem:[%s7803 + $0x48] sm:$0xf]
          %v7823 = vld [vmem:[%s7803 + $0x4c] sm:$0xf]
          %v7824 = vld [vmem:[%s13 + $0x1] sm:$0x1]
          %v7825 = vlaneseq
          %v7826 = vshrl.u32 %v7825, 7
          %v7827 = vsub.s32 0, %v7826
          %v7828 = vrot.slane %v7824, %v7827
          %v7849 = vunpack.c.l.b16 %v7804
          %v7850 = vunpack.c.l.b16 %v7805
          %v7851 = vunpack.c.l.b16 %v7806
          %v7852 = vunpack.c.l.b16 %v7807
          %v7853 = vunpack.c.l.b16 %v7808
          %v7854 = vunpack.c.l.b16 %v7809
          %v7855 = vunpack.c.l.b16 %v7810
          %v7856 = vunpack.c.l.b16 %v7811
          %v7857 = vunpack.c.l.b16 %v7812
          %v7858 = vunpack.c.l.b16 %v7813
          %v7859 = vunpack.c.l.b16 %v7814
          %v7860 = vunpack.c.l.b16 %v7815
          %v7861 = vunpack.c.l.b16 %v7816
          %v7862 = vunpack.c.l.b16 %v7817
          %v7863 = vunpack.c.l.b16 %v7818
          %v7864 = vunpack.c.l.b16 %v7819
          %v7865 = vunpack.c.l.b16 %v7820
          %v7866 = vunpack.c.l.b16 %v7821
          %v7867 = vunpack.c.l.b16 %v7822
          %v7868 = vunpack.c.l.b16 %v7823
          %v7869 = vpack.c.b16 %v7850, %v7849
          %v7870 = vpack.c.b16 %v7852, %v7851
          %v7871 = vpack.c.b16 %v7854, %v7853
          %v7872 = vpack.c.b16 %v7856, %v7855
          %v7873 = vpack.c.b16 %v7858, %v7857
          %v7874 = vpack.c.b16 %v7860, %v7859
          %v7875 = vpack.c.b16 %v7862, %v7861
          %v7876 = vpack.c.b16 %v7864, %v7863
          %v7877 = vpack.c.b16 %v7866, %v7865
          %v7878 = vpack.c.b16 %v7868, %v7867
          %v7890 = vsel %vm1939, %v7802, 0
          %7892 = vmatprep.subr.bf16.mxu0 0
          %7893 = vmatpush1.bf16.msra.mxu0 %v7876
          %7894 = vmatprep.subr.bf16.mxu0 0
          %7895 = vmatpush1.bf16.msra.mxu0 %v7875
          %7896 = vmatprep.subr.bf16.mxu0 0
          %7897 = vmatpush1.bf16.msra.mxu0 %v7874
          %7898 = vmatprep.subr.bf16.mxu0 0
          %7899 = vmatpush1.bf16.msra.mxu0 %v7873
          %7900 = vmatprep.subr.bf16.mxu0 0
          %7901 = vmatpush1.bf16.msra.mxu0 %v7872
          %7902 = vmatprep.subr.bf16.mxu0 0
          %7903 = vmatpush1.bf16.msra.mxu0 %v7871
          %7904 = vmatprep.subr.bf16.mxu0 0
          %7905 = vmatpush1.bf16.msra.mxu0 %v7870
          %7906 = vmatprep.subr.bf16.mxu0 0
          %7907 = vmatpush1.bf16.msra.mxu0 %v7869
          %7908 = vmatprep.subr.bf16.mxu0 0
          %7909 = vmatpush2.bf16.msra.mxu0 0
          %7910 = vmatprep.subr.bf16.mxu0 0
          %7911 = vmatpush2.bf16.msra.mxu0 0
          %7912 = vmatprep.subr.bf16.mxu0 0
          %7913 = vmatpush2.bf16.msra.mxu0 0
          %7914 = vmatprep.subr.bf16.mxu0 0
          %7915 = vmatpush2.bf16.msra.mxu0 0
          %7916 = vmatprep.subr.bf16.mxu0 0
          %7917 = vmatpush2.bf16.msra.mxu0 0
          %7918 = vmatprep.subr.bf16.mxu0 0
          %7919 = vmatpush2.bf16.msra.mxu0 0
          %7920 = vmatprep.subr.bf16.mxu0 0
          %7921 = vmatpush2.bf16.msra.mxu0 %v7878
          %7922 = vmatprep.subr.bf16.mxu0 0
          %7923 = vmatpush2.bf16.msra.mxu0 %v7877
          %7924 = vmatprep.mubr.bf16.mxu0 %v7890
          %7925 = vmatmul.mubr.bf16.gmra.mxu0 %v7801
          %v7926 = vpop.f32.mrf.mxu0
          %v7927 = vadd.f32 %v7828, %v7926
          %v7928 = vpop.f32.mrf.mxu0
          %v7929 = vpop.f32.mrf.mxu0
          %v7930 = vpop.f32.mrf.mxu0
          %7931 = vdwg.mxu0
          %v7932 = vmax.f32 %v7927, 0.0
          %v7933 = vmin.f32 %v7927, 0.0
          %v7934 = vmul.f32 %v7933, %v7788
          %v7935 = vmul.f32 %v7934, 1.442695
          %v7936 = vpow.pop %v7935
          %v7937 = vsub.f32 %v7936, 1.0
          %v7938 = vmul.f32 %v7937, 0.1
          %v7939 = vadd.f32 %v7932, %v7938
          %v7940 = vpack.c.bf16 %v7939, %v7939
          %s7941 = scalar_lea.vmem %s14, 64
          %v7942 = vld [vmem:[%s7941] sm:$0xf]
          %v7943 = vld [vmem:[%s7941 + $0x4] sm:$0xf]
          %v7944 = vld [vmem:[%s7941 + $0x8] sm:$0xf]
          %v7945 = vld [vmem:[%s7941 + $0xc] sm:$0xf]
          %v7946 = vld [vmem:[%s7941 + $0x10] sm:$0xf]
          %v7947 = vld [vmem:[%s7941 + $0x14] sm:$0xf]
          %v7948 = vld [vmem:[%s7941 + $0x18] sm:$0xf]
          %v7949 = vld [vmem:[%s7941 + $0x1c] sm:$0xf]
          %v7950 = vld [vmem:[%s7941 + $0x20] sm:$0xf]
          %v7951 = vld [vmem:[%s7941 + $0x24] sm:$0xf]
          %v7952 = vld [vmem:[%s7941 + $0x28] sm:$0xf]
          %v7953 = vld [vmem:[%s7941 + $0x2c] sm:$0xf]
          %v7954 = vld [vmem:[%s7941 + $0x30] sm:$0xf]
          %v7955 = vld [vmem:[%s7941 + $0x34] sm:$0xf]
          %v7956 = vld [vmem:[%s7941 + $0x38] sm:$0xf]
          %v7957 = vld [vmem:[%s7941 + $0x3c] sm:$0xf]
          %v7958 = vld [vmem:[#allocation7 + $0x1] sm:$0x1]
          %v7959 = vlaneseq
          %v7960 = vshrl.u32 %v7959, 7
          %v7961 = vsub.s32 0, %v7960
          %v7962 = vrot.slane %v7958, %v7961
          %v7979 = vunpack.c.l.b16 %v7942
          %v7980 = vunpack.c.l.b16 %v7943
          %v7981 = vunpack.c.l.b16 %v7944
          %v7982 = vunpack.c.l.b16 %v7945
          %v7983 = vunpack.c.l.b16 %v7946
          %v7984 = vunpack.c.l.b16 %v7947
          %v7985 = vunpack.c.l.b16 %v7948
          %v7986 = vunpack.c.l.b16 %v7949
          %v7987 = vunpack.c.l.b16 %v7950
          %v7988 = vunpack.c.l.b16 %v7951
          %v7989 = vunpack.c.l.b16 %v7952
          %v7990 = vunpack.c.l.b16 %v7953
          %v7991 = vunpack.c.l.b16 %v7954
          %v7992 = vunpack.c.l.b16 %v7955
          %v7993 = vunpack.c.l.b16 %v7956
          %v7994 = vunpack.c.l.b16 %v7957
          %v7995 = vpack.c.b16 %v7980, %v7979
          %v7996 = vpack.c.b16 %v7982, %v7981
          %v7997 = vpack.c.b16 %v7984, %v7983
          %v7998 = vpack.c.b16 %v7986, %v7985
          %v7999 = vpack.c.b16 %v7988, %v7987
          %v8000 = vpack.c.b16 %v7990, %v7989
          %v8001 = vpack.c.b16 %v7992, %v7991
          %v8002 = vpack.c.b16 %v7994, %v7993
          %8011 = vmatprep.subr.bf16.mxu0 0
          %8012 = vmatpush1.bf16.msra.mxu0 %v8002
          %8013 = vmatprep.subr.bf16.mxu0 0
          %8014 = vmatpush1.bf16.msra.mxu0 %v8001
          %8015 = vmatprep.subr.bf16.mxu0 0
          %8016 = vmatpush1.bf16.msra.mxu0 %v8000
          %8017 = vmatprep.subr.bf16.mxu0 0
          %8018 = vmatpush1.bf16.msra.mxu0 %v7999
          %8019 = vmatprep.subr.bf16.mxu0 0
          %8020 = vmatpush1.bf16.msra.mxu0 %v7998
          %8021 = vmatprep.subr.bf16.mxu0 0
          %8022 = vmatpush1.bf16.msra.mxu0 %v7997
          %8023 = vmatprep.subr.bf16.mxu0 0
          %8024 = vmatpush1.bf16.msra.mxu0 %v7996
          %8025 = vmatprep.subr.bf16.mxu0 0
          %8026 = vmatpush1.bf16.msra.mxu0 %v7995
          %8027 = vmatprep.subr.bf16.mxu0 0
          %8028 = vmatpush2.bf16.msra.mxu0 0
          %8029 = vmatprep.subr.bf16.mxu0 0
          %8030 = vmatpush2.bf16.msra.mxu0 0
          %8031 = vmatprep.subr.bf16.mxu0 0
          %8032 = vmatpush2.bf16.msra.mxu0 0
          %8033 = vmatprep.subr.bf16.mxu0 0
          %8034 = vmatpush2.bf16.msra.mxu0 0
          %8035 = vmatprep.subr.bf16.mxu0 0
          %8036 = vmatpush2.bf16.msra.mxu0 0
          %8037 = vmatprep.subr.bf16.mxu0 0
          %8038 = vmatpush2.bf16.msra.mxu0 0
          %8039 = vmatprep.subr.bf16.mxu0 0
          %8040 = vmatpush2.bf16.msra.mxu0 0
          %8041 = vmatprep.subr.bf16.mxu0 0
          %8042 = vmatpush2.bf16.msra.mxu0 0
          %8043 = vmatprep.mubr.bf16.mxu0 0
          %8044 = vmatmul.mubr.bf16.gmra.mxu0 %v7940
          %v8045 = vpop.f32.mrf.mxu0
          %v8046 = vadd.f32 %v7962, %v8045
          %v8047 = vpop.f32.mrf.mxu0
          %v8048 = vpop.f32.mrf.mxu0
          %v8049 = vpop.f32.mrf.mxu0
          %8050 = vdwg.mxu0
          %v8051 = vmax.f32 %v8046, 0.0
          %v8052 = vmin.f32 %v8046, 0.0
          %v8053 = vmul.f32 %v8052, %v7788
          %v8054 = vmul.f32 %v8053, 1.442695
          %v8055 = vpow.pop %v8054
          %v8056 = vsub.f32 %v8055, 1.0
          %v8057 = vmul.f32 %v8056, 0.1
          %v8058 = vadd.f32 %v8051, %v8057
          %v8059 = vpack.c.bf16 %v8058, %v8058
          %s8060 = scalar_lea.vmem [#allocation9], 48
          %v8061 = vld [vmem:[%s8060] sm:$0xf]
          %v8062 = vld [vmem:[%s8060 + $0x4] sm:$0xf]
          %v8063 = vld [vmem:[%s8060 + $0x8] sm:$0xf]
          %v8064 = vld [vmem:[%s8060 + $0xc] sm:$0xf]
          %v8065 = vld [vmem:[%s8060 + $0x10] sm:$0xf]
          %v8066 = vld [vmem:[%s8060 + $0x14] sm:$0xf]
          %v8067 = vld [vmem:[%s8060 + $0x18] sm:$0xf]
          %v8068 = vld [vmem:[%s8060 + $0x1c] sm:$0xf]
          %v8069 = vld [vmem:[%s8060 + $0x20] sm:$0xf]
          %v8070 = vld [vmem:[%s8060 + $0x24] sm:$0xf]
          %v8071 = vld [vmem:[%s8060 + $0x28] sm:$0xf]
          %v8072 = vld [vmem:[%s8060 + $0x2c] sm:$0xf]
          %v8073 = vld [vmem:[#allocation10 + $0x1] sm:$0x1]
          %v8074 = vlaneseq
          %v8075 = vshrl.u32 %v8074, 7
          %v8076 = vsub.s32 0, %v8075
          %v8077 = vrot.slane %v8073, %v8076
          %v8090 = vunpack.c.l.b16 %v8061
          %v8091 = vunpack.c.l.b16 %v8062
          %v8092 = vunpack.c.l.b16 %v8063
          %v8093 = vunpack.c.l.b16 %v8064
          %v8094 = vunpack.c.l.b16 %v8065
          %v8095 = vunpack.c.l.b16 %v8066
          %v8096 = vunpack.c.l.b16 %v8067
          %v8097 = vunpack.c.l.b16 %v8068
          %v8098 = vunpack.c.l.b16 %v8069
          %v8099 = vunpack.c.l.b16 %v8070
          %v8100 = vunpack.c.l.b16 %v8071
          %v8101 = vunpack.c.l.b16 %v8072
          %v8102 = vpack.c.b16 %v8091, %v8090
          %v8103 = vpack.c.b16 %v8093, %v8092
          %v8104 = vpack.c.b16 %v8095, %v8094
          %v8105 = vpack.c.b16 %v8097, %v8096
          %v8106 = vpack.c.b16 %v8099, %v8098
          %v8107 = vpack.c.b16 %v8101, %v8100
          %v8115 = vsel %vm6606, %v8059, 0
          %8117 = vmatprep.subr.bf16.mxu0 0
          %8118 = vmatpush1.bf16.msra.mxu0 0
          %8119 = vmatprep.subr.bf16.mxu0 0
          %8120 = vmatpush1.bf16.msra.mxu0 0
          %8121 = vmatprep.subr.bf16.mxu0 0
          %8122 = vmatpush1.bf16.msra.mxu0 %v8107
          %8123 = vmatprep.subr.bf16.mxu0 0
          %8124 = vmatpush1.bf16.msra.mxu0 %v8106
          %8125 = vmatprep.subr.bf16.mxu0 0
          %8126 = vmatpush1.bf16.msra.mxu0 %v8105
          %8127 = vmatprep.subr.bf16.mxu0 0
          %8128 = vmatpush1.bf16.msra.mxu0 %v8104
          %8129 = vmatprep.subr.bf16.mxu0 0
          %8130 = vmatpush1.bf16.msra.mxu0 %v8103
          %8131 = vmatprep.subr.bf16.mxu0 0
          %8132 = vmatpush1.bf16.msra.mxu0 %v8102
          %8133 = vmatprep.subr.bf16.mxu0 0
          %8134 = vmatpush2.bf16.msra.mxu0 0
          %8135 = vmatprep.subr.bf16.mxu0 0
          %8136 = vmatpush2.bf16.msra.mxu0 0
          %8137 = vmatprep.subr.bf16.mxu0 0
          %8138 = vmatpush2.bf16.msra.mxu0 0
          %8139 = vmatprep.subr.bf16.mxu0 0
          %8140 = vmatpush2.bf16.msra.mxu0 0
          %8141 = vmatprep.subr.bf16.mxu0 0
          %8142 = vmatpush2.bf16.msra.mxu0 0
          %8143 = vmatprep.subr.bf16.mxu0 0
          %8144 = vmatpush2.bf16.msra.mxu0 0
          %8145 = vmatprep.subr.bf16.mxu0 0
          %8146 = vmatpush2.bf16.msra.mxu0 0
          %8147 = vmatprep.subr.bf16.mxu0 0
          %8148 = vmatpush2.bf16.msra.mxu0 0
          %8149 = vmatprep.mubr.bf16.mxu0 0
          %8150 = vmatmul.mubr.bf16.gmra.mxu0 %v8115
          %v8151 = vpop.f32.mrf.mxu0
          %v8152 = vadd.f32 %v8077, %v8151
          %v8153 = vpop.f32.mrf.mxu0
          %v8154 = vpop.f32.mrf.mxu0
          %v8155 = vpop.f32.mrf.mxu0
          %8156 = vdwg.mxu0
          %v8157 = vld [vmem:[#allocation2] sm:$0xff]
          %8159 = vrot.lane.b32.xlu0 %v681, 127
          %v8160 = vpop.permute.xlu0 %8159
          %v8162 = vmul.f32 %v8152, %v8160
          %v8163 = vadd.f32 %v8157, %v8162
          %8164 = vst.msk [vmem:[#allocation2] sm:$0xff] %vm6630, %v8163
        $region112: #{mod_optimized_torchani_forward.1} parent=87 // pred_fallthru
          _
        %s8165 = sadd.s32 %s6632, 2
        %s8166 = sld [smem:[#allocation4 + %s8165]]
        %p8167 = scmp.gt.s32.totalorder %s8166, 0
        // Predicated region
        $region113: #{mod_optimized_torchani_forward.1} parent=87 // pred_check
          %p8168 = pneg %p8167
        $region114: #{mod_optimized_torchani_forward.1} parent=87 // pred_check_branch
          %8170 = sbr.rel (%p8168) target = $region116
        $region115: #{mod_optimized_torchani_forward.1} parent=87 // pred_region
          %s8171 = scalar_lea.vmem [#allocation5], 768
          %v8172 = vld [vmem:[%s8171] sm:$0xff]
          %v8173 = vld [vmem:[%s8171 + $0x8] sm:$0xff]
          %v8174 = vld [vmem:[%s8171 + $0x10] sm:$0xff]
          %v8175 = vld [vmem:[%s8171 + $0x18] sm:$0xff]
          %v8176 = vld [vmem:[%s8171 + $0x20] sm:$0xff]
          %v8177 = vld [vmem:[%s8171 + $0x28] sm:$0xff]
          %v8178 = vld [vmem:[%s8171 + $0x30] sm:$0xff]
          %v8179 = vld [vmem:[%s8171 + $0x38] sm:$0xff]
          %v8180 = vld [vmem:[%s8171 + $0x40] sm:$0xff]
          %v8181 = vld [vmem:[%s8171 + $0x48] sm:$0xff]
          %v8182 = vld [vmem:[%s8171 + $0x50] sm:$0xff]
          %v8183 = vld [vmem:[%s8171 + $0x58] sm:$0xff]
          %v8184 = vld [vmem:[%s8171 + $0x60] sm:$0xff]
          %v8185 = vld [vmem:[%s8171 + $0x68] sm:$0xff]
          %v8186 = vld [vmem:[%s8171 + $0x70] sm:$0xff]
          %v8187 = vld [vmem:[%s8171 + $0x78] sm:$0xff]
          %v8188 = vld [vmem:[%s8171 + $0x80] sm:$0xff]
          %v8189 = vld [vmem:[%s8171 + $0x88] sm:$0xff]
          %v8190 = vld [vmem:[%s8171 + $0x90] sm:$0xff]
          %v8191 = vld [vmem:[%s8171 + $0x98] sm:$0xff]
          %v8192 = vld [vmem:[%s8171 + $0xa0] sm:$0xff]
          %v8193 = vld [vmem:[%s8171 + $0xa8] sm:$0xff]
          %v8194 = vld [vmem:[%s8171 + $0xb0] sm:$0xff]
          %v8195 = vld [vmem:[%s8171 + $0xb8] sm:$0xff]
          %v8196 = vld [vmem:[%s8171 + $0xc0] sm:$0xff]
          %v8197 = vld [vmem:[%s8171 + $0xc8] sm:$0xff]
          %v8198 = vld [vmem:[%s8171 + $0xd0] sm:$0xff]
          %v8199 = vld [vmem:[%s8171 + $0xd8] sm:$0xff]
          %v8200 = vld [vmem:[%s8171 + $0xe0] sm:$0xff]
          %v8201 = vld [vmem:[%s8171 + $0xe8] sm:$0xff]
          %v8202 = vld [vmem:[%s8171 + $0xf0] sm:$0xff]
          %v8203 = vld [vmem:[%s8171 + $0xf8] sm:$0xff]
          %v8204 = vld [vmem:[%s8171 + $0x100] sm:$0xff]
          %v8205 = vld [vmem:[%s8171 + $0x108] sm:$0xff]
          %v8206 = vld [vmem:[%s8171 + $0x110] sm:$0xff]
          %v8207 = vld [vmem:[%s8171 + $0x118] sm:$0xff]
          %v8208 = vld [vmem:[%s8171 + $0x120] sm:$0xff]
          %v8209 = vld [vmem:[%s8171 + $0x128] sm:$0xff]
          %v8210 = vld [vmem:[%s8171 + $0x130] sm:$0xff]
          %v8211 = vld [vmem:[%s8171 + $0x138] sm:$0xff]
          %v8212 = vld [vmem:[%s8171 + $0x140] sm:$0xff]
          %v8213 = vld [vmem:[%s8171 + $0x148] sm:$0xff]
          %v8214 = vld [vmem:[%s8171 + $0x150] sm:$0xff]
          %v8215 = vld [vmem:[%s8171 + $0x158] sm:$0xff]
          %v8216 = vld [vmem:[%s8171 + $0x160] sm:$0xff]
          %v8217 = vld [vmem:[%s8171 + $0x168] sm:$0xff]
          %v8218 = vld [vmem:[%s8171 + $0x170] sm:$0xff]
          %v8219 = vld [vmem:[%s8171 + $0x178] sm:$0xff]
          %s8220 = scalar_lea.vmem %s11, 2
          %v8221 = vld [vmem:[%s8220] ss:$4 sm:$0x3]
          %v8223 = vlaneseq
          %v8224 = vshrl.u32 %v8223, 7
          %v8225 = vsub.s32 0, %v8224
          %v8226 = vrot.slane %v8221, %v8225
          %v8227 = vlaneseq
          %v8228 = vshrl.u32 %v8227, 7
          %v8229 = vsub.s32 1, %v8228
          %v8230 = vrot.slane %v8221, %v8229
          %v8281 = vunpack.c.l.b16 %v8172
          %v8282 = vunpack.c.h.b16 %v8172
          %v8283 = vunpack.c.l.b16 %v8173
          %v8284 = vunpack.c.h.b16 %v8173
          %v8285 = vunpack.c.l.b16 %v8174
          %v8286 = vunpack.c.h.b16 %v8174
          %v8287 = vunpack.c.l.b16 %v8175
          %v8288 = vunpack.c.h.b16 %v8175
          %v8289 = vunpack.c.l.b16 %v8176
          %v8290 = vunpack.c.h.b16 %v8176
          %v8291 = vunpack.c.l.b16 %v8177
          %v8292 = vunpack.c.h.b16 %v8177
          %v8293 = vunpack.c.l.b16 %v8178
          %v8294 = vunpack.c.h.b16 %v8178
          %v8295 = vunpack.c.l.b16 %v8179
          %v8296 = vunpack.c.h.b16 %v8179
          %v8297 = vunpack.c.l.b16 %v8180
          %v8298 = vunpack.c.h.b16 %v8180
          %v8299 = vunpack.c.l.b16 %v8181
          %v8300 = vunpack.c.h.b16 %v8181
          %v8301 = vunpack.c.l.b16 %v8182
          %v8302 = vunpack.c.h.b16 %v8182
          %v8303 = vunpack.c.l.b16 %v8183
          %v8304 = vunpack.c.h.b16 %v8183
          %v8305 = vunpack.c.l.b16 %v8184
          %v8306 = vunpack.c.h.b16 %v8184
          %v8307 = vunpack.c.l.b16 %v8185
          %v8308 = vunpack.c.h.b16 %v8185
          %v8309 = vunpack.c.l.b16 %v8186
          %v8310 = vunpack.c.h.b16 %v8186
          %v8311 = vunpack.c.l.b16 %v8187
          %v8312 = vunpack.c.h.b16 %v8187
          %v8313 = vunpack.c.l.b16 %v8188
          %v8314 = vunpack.c.h.b16 %v8188
          %v8315 = vunpack.c.l.b16 %v8189
          %v8316 = vunpack.c.h.b16 %v8189
          %v8317 = vunpack.c.l.b16 %v8190
          %v8318 = vunpack.c.h.b16 %v8190
          %v8319 = vunpack.c.l.b16 %v8191
          %v8320 = vunpack.c.h.b16 %v8191
          %v8321 = vunpack.c.l.b16 %v8192
          %v8322 = vunpack.c.h.b16 %v8192
          %v8323 = vunpack.c.l.b16 %v8193
          %v8324 = vunpack.c.h.b16 %v8193
          %v8325 = vunpack.c.l.b16 %v8194
          %v8326 = vunpack.c.h.b16 %v8194
          %v8327 = vunpack.c.l.b16 %v8195
          %v8328 = vunpack.c.h.b16 %v8195
          %v8329 = vunpack.c.l.b16 %v8196
          %v8330 = vunpack.c.h.b16 %v8196
          %v8331 = vunpack.c.l.b16 %v8197
          %v8332 = vunpack.c.h.b16 %v8197
          %v8333 = vunpack.c.l.b16 %v8198
          %v8334 = vunpack.c.h.b16 %v8198
          %v8335 = vunpack.c.l.b16 %v8199
          %v8336 = vunpack.c.h.b16 %v8199
          %v8337 = vunpack.c.l.b16 %v8200
          %v8338 = vunpack.c.h.b16 %v8200
          %v8339 = vunpack.c.l.b16 %v8201
          %v8340 = vunpack.c.h.b16 %v8201
          %v8341 = vunpack.c.l.b16 %v8202
          %v8342 = vunpack.c.h.b16 %v8202
          %v8343 = vunpack.c.l.b16 %v8203
          %v8344 = vunpack.c.h.b16 %v8203
          %v8345 = vunpack.c.l.b16 %v8204
          %v8346 = vunpack.c.h.b16 %v8204
          %v8347 = vunpack.c.l.b16 %v8205
          %v8348 = vunpack.c.h.b16 %v8205
          %v8349 = vunpack.c.l.b16 %v8206
          %v8350 = vunpack.c.h.b16 %v8206
          %v8351 = vunpack.c.l.b16 %v8207
          %v8352 = vunpack.c.h.b16 %v8207
          %v8353 = vunpack.c.l.b16 %v8208
          %v8354 = vunpack.c.h.b16 %v8208
          %v8355 = vunpack.c.l.b16 %v8209
          %v8356 = vunpack.c.h.b16 %v8209
          %v8357 = vunpack.c.l.b16 %v8210
          %v8358 = vunpack.c.h.b16 %v8210
          %v8359 = vunpack.c.l.b16 %v8211
          %v8360 = vunpack.c.h.b16 %v8211
          %v8361 = vunpack.c.l.b16 %v8212
          %v8362 = vunpack.c.h.b16 %v8212
          %v8363 = vunpack.c.l.b16 %v8213
          %v8364 = vunpack.c.h.b16 %v8213
          %v8365 = vunpack.c.l.b16 %v8214
          %v8366 = vunpack.c.h.b16 %v8214
          %v8367 = vunpack.c.l.b16 %v8215
          %v8368 = vunpack.c.h.b16 %v8215
          %v8369 = vunpack.c.l.b16 %v8216
          %v8370 = vunpack.c.h.b16 %v8216
          %v8371 = vunpack.c.l.b16 %v8217
          %v8372 = vunpack.c.h.b16 %v8217
          %v8373 = vunpack.c.l.b16 %v8218
          %v8374 = vunpack.c.h.b16 %v8218
          %v8375 = vunpack.c.l.b16 %v8219
          %v8376 = vunpack.c.h.b16 %v8219
          %v8377 = vpack.c.b16 %v8283, %v8281
          %v8378 = vpack.c.b16 %v8284, %v8282
          %v8379 = vpack.c.b16 %v8287, %v8285
          %v8380 = vpack.c.b16 %v8288, %v8286
          %v8381 = vpack.c.b16 %v8291, %v8289
          %v8382 = vpack.c.b16 %v8292, %v8290
          %v8383 = vpack.c.b16 %v8295, %v8293
          %v8384 = vpack.c.b16 %v8296, %v8294
          %v8385 = vpack.c.b16 %v8299, %v8297
          %v8386 = vpack.c.b16 %v8300, %v8298
          %v8387 = vpack.c.b16 %v8303, %v8301
          %v8388 = vpack.c.b16 %v8304, %v8302
          %v8389 = vpack.c.b16 %v8307, %v8305
          %v8390 = vpack.c.b16 %v8308, %v8306
          %v8391 = vpack.c.b16 %v8311, %v8309
          %v8392 = vpack.c.b16 %v8312, %v8310
          %v8393 = vpack.c.b16 %v8315, %v8313
          %v8394 = vpack.c.b16 %v8316, %v8314
          %v8395 = vpack.c.b16 %v8319, %v8317
          %v8396 = vpack.c.b16 %v8320, %v8318
          %v8397 = vpack.c.b16 %v8323, %v8321
          %v8398 = vpack.c.b16 %v8324, %v8322
          %v8399 = vpack.c.b16 %v8327, %v8325
          %v8400 = vpack.c.b16 %v8328, %v8326
          %v8401 = vpack.c.b16 %v8331, %v8329
          %v8402 = vpack.c.b16 %v8332, %v8330
          %v8403 = vpack.c.b16 %v8335, %v8333
          %v8404 = vpack.c.b16 %v8336, %v8334
          %v8405 = vpack.c.b16 %v8339, %v8337
          %v8406 = vpack.c.b16 %v8340, %v8338
          %v8407 = vpack.c.b16 %v8343, %v8341
          %v8408 = vpack.c.b16 %v8344, %v8342
          %v8409 = vpack.c.b16 %v8347, %v8345
          %v8410 = vpack.c.b16 %v8348, %v8346
          %v8411 = vpack.c.b16 %v8351, %v8349
          %v8412 = vpack.c.b16 %v8352, %v8350
          %v8413 = vpack.c.b16 %v8355, %v8353
          %v8414 = vpack.c.b16 %v8356, %v8354
          %v8415 = vpack.c.b16 %v8359, %v8357
          %v8416 = vpack.c.b16 %v8360, %v8358
          %v8417 = vpack.c.b16 %v8363, %v8361
          %v8418 = vpack.c.b16 %v8364, %v8362
          %v8419 = vpack.c.b16 %v8367, %v8365
          %v8420 = vpack.c.b16 %v8368, %v8366
          %v8421 = vpack.c.b16 %v8371, %v8369
          %v8422 = vpack.c.b16 %v8372, %v8370
          %v8423 = vpack.c.b16 %v8375, %v8373
          %v8424 = vpack.c.b16 %v8376, %v8374
          %8473 = vmatprep.subr.bf16.mxu0 %v8392
          %8474 = vmatpush1.bf16.msra.mxu0 %v8391
          %8475 = vmatprep.subr.bf16.mxu0 %v8390
          %8476 = vmatpush1.bf16.msra.mxu0 %v8389
          %8477 = vmatprep.subr.bf16.mxu0 %v8388
          %8478 = vmatpush1.bf16.msra.mxu0 %v8387
          %8479 = vmatprep.subr.bf16.mxu0 %v8386
          %8480 = vmatpush1.bf16.msra.mxu0 %v8385
          %8481 = vmatprep.subr.bf16.mxu0 %v8384
          %8482 = vmatpush1.bf16.msra.mxu0 %v8383
          %8483 = vmatprep.subr.bf16.mxu0 %v8382
          %8484 = vmatpush1.bf16.msra.mxu0 %v8381
          %8485 = vmatprep.subr.bf16.mxu0 %v8380
          %8486 = vmatpush1.bf16.msra.mxu0 %v8379
          %8487 = vmatprep.subr.bf16.mxu0 %v8378
          %8488 = vmatpush1.bf16.msra.mxu0 %v8377
          %8489 = vmatprep.subr.bf16.mxu0 %v8408
          %8490 = vmatpush2.bf16.msra.mxu0 %v8407
          %8491 = vmatprep.subr.bf16.mxu0 %v8406
          %8492 = vmatpush2.bf16.msra.mxu0 %v8405
          %8493 = vmatprep.subr.bf16.mxu0 %v8404
          %8494 = vmatpush2.bf16.msra.mxu0 %v8403
          %8495 = vmatprep.subr.bf16.mxu0 %v8402
          %8496 = vmatpush2.bf16.msra.mxu0 %v8401
          %8497 = vmatprep.subr.bf16.mxu0 %v8400
          %8498 = vmatpush2.bf16.msra.mxu0 %v8399
          %8499 = vmatprep.subr.bf16.mxu0 %v8398
          %8500 = vmatpush2.bf16.msra.mxu0 %v8397
          %8501 = vmatprep.subr.bf16.mxu0 %v8396
          %8502 = vmatpush2.bf16.msra.mxu0 %v8395
          %8503 = vmatprep.subr.bf16.mxu0 %v8394
          %8504 = vmatpush2.bf16.msra.mxu0 %v8393
          %8505 = vmatprep.mubr.bf16.mxu0 %v6628
          %8506 = vmatmul.mubr.bf16.gmra.mxu0 %v6627
          %v8507 = vpop.f32.mrf.mxu0
          %v8508 = vadd.f32 %v8226, %v8507
          %v8509 = vpop.f32.mrf.mxu0
          %v8510 = vadd.f32 %v8230, %v8509
          %v8511 = vpop.f32.mrf.mxu0
          %v8512 = vpop.f32.mrf.mxu0
          %8513 = vdwg.mxu0
          %8514 = vmatprep.subr.bf16.mxu0 %v8424
          %8515 = vmatpush1.bf16.msra.mxu0 %v8423
          %8516 = vmatprep.subr.bf16.mxu0 %v8422
          %8517 = vmatpush1.bf16.msra.mxu0 %v8421
          %8518 = vmatprep.subr.bf16.mxu0 %v8420
          %8519 = vmatpush1.bf16.msra.mxu0 %v8419
          %8520 = vmatprep.subr.bf16.mxu0 %v8418
          %8521 = vmatpush1.bf16.msra.mxu0 %v8417
          %8522 = vmatprep.subr.bf16.mxu0 %v8416
          %8523 = vmatpush1.bf16.msra.mxu0 %v8415
          %8524 = vmatprep.subr.bf16.mxu0 %v8414
          %8525 = vmatpush1.bf16.msra.mxu0 %v8413
          %8526 = vmatprep.subr.bf16.mxu0 %v8412
          %8527 = vmatpush1.bf16.msra.mxu0 %v8411
          %8528 = vmatprep.subr.bf16.mxu0 %v8410
          %8529 = vmatpush1.bf16.msra.mxu0 %v8409
          %8530 = vmatprep.subr.bf16.mxu0 0
          %8531 = vmatpush2.bf16.msra.mxu0 0
          %8532 = vmatprep.subr.bf16.mxu0 0
          %8533 = vmatpush2.bf16.msra.mxu0 0
          %8534 = vmatprep.subr.bf16.mxu0 0
          %8535 = vmatpush2.bf16.msra.mxu0 0
          %8536 = vmatprep.subr.bf16.mxu0 0
          %8537 = vmatpush2.bf16.msra.mxu0 0
          %8538 = vmatprep.subr.bf16.mxu0 0
          %8539 = vmatpush2.bf16.msra.mxu0 0
          %8540 = vmatprep.subr.bf16.mxu0 0
          %8541 = vmatpush2.bf16.msra.mxu0 0
          %8542 = vmatprep.subr.bf16.mxu0 0
          %8543 = vmatpush2.bf16.msra.mxu0 0
          %8544 = vmatprep.subr.bf16.mxu0 0
          %8545 = vmatpush2.bf16.msra.mxu0 0
          %8546 = vmatprep.mubr.bf16.mxu0 0
          %8547 = vmatmul.mubr.bf16.gmra.mxu0 %v6629
          %v8548 = vpop.f32.mrf.mxu0
          %v8549 = vadd.f32 %v8508, %v8548
          %v8550 = vpop.f32.mrf.mxu0
          %v8551 = vadd.f32 %v8510, %v8550
          %v8552 = vpop.f32.mrf.mxu0
          %v8553 = vpop.f32.mrf.mxu0
          %8554 = vdwg.mxu0
          %v8555 = vmax.f32 %v8549, 0.0
          %v8556 = vmax.f32 %v8551, 0.0
          %v8557 = vmin.f32 %v8549, 0.0
          %v8558 = vmin.f32 %v8551, 0.0
          %v8559 = vrcp.pop 0.1
          %v8560 = vmul.f32 %v8557, %v8559
          %v8561 = vmul.f32 %v8558, %v8559
          %v8562 = vmul.f32 %v8560, 1.442695
          %v8563 = vpow.pop %v8562
          %v8564 = vmul.f32 %v8561, 1.442695
          %v8565 = vpow.pop %v8564
          %v8566 = vsub.f32 %v8563, 1.0
          %v8567 = vsub.f32 %v8565, 1.0
          %v8568 = vmul.f32 %v8566, 0.1
          %v8569 = vmul.f32 %v8567, 0.1
          %v8570 = vadd.f32 %v8555, %v8568
          %v8571 = vadd.f32 %v8556, %v8569
          %v8572 = vpack.c.bf16 %v8570, %v8570
          %v8573 = vpack.c.bf16 %v8571, %v8571
          %s8574 = scalar_lea.vmem %s12, 160
          %v8575 = vld [vmem:[%s8574] sm:$0xf]
          %v8576 = vld [vmem:[%s8574 + $0x4] sm:$0xf]
          %v8577 = vld [vmem:[%s8574 + $0x8] sm:$0xf]
          %v8578 = vld [vmem:[%s8574 + $0xc] sm:$0xf]
          %v8579 = vld [vmem:[%s8574 + $0x10] sm:$0xf]
          %v8580 = vld [vmem:[%s8574 + $0x14] sm:$0xf]
          %v8581 = vld [vmem:[%s8574 + $0x18] sm:$0xf]
          %v8582 = vld [vmem:[%s8574 + $0x1c] sm:$0xf]
          %v8583 = vld [vmem:[%s8574 + $0x20] sm:$0xf]
          %v8584 = vld [vmem:[%s8574 + $0x24] sm:$0xf]
          %v8585 = vld [vmem:[%s8574 + $0x28] sm:$0xf]
          %v8586 = vld [vmem:[%s8574 + $0x2c] sm:$0xf]
          %v8587 = vld [vmem:[%s8574 + $0x30] sm:$0xf]
          %v8588 = vld [vmem:[%s8574 + $0x34] sm:$0xf]
          %v8589 = vld [vmem:[%s8574 + $0x38] sm:$0xf]
          %v8590 = vld [vmem:[%s8574 + $0x3c] sm:$0xf]
          %v8591 = vld [vmem:[%s8574 + $0x40] sm:$0xf]
          %v8592 = vld [vmem:[%s8574 + $0x44] sm:$0xf]
          %v8593 = vld [vmem:[%s8574 + $0x48] sm:$0xf]
          %v8594 = vld [vmem:[%s8574 + $0x4c] sm:$0xf]
          %v8595 = vld [vmem:[%s13 + $0x2] sm:$0x1]
          %v8596 = vlaneseq
          %v8597 = vshrl.u32 %v8596, 7
          %v8598 = vsub.s32 0, %v8597
          %v8599 = vrot.slane %v8595, %v8598
          %v8620 = vunpack.c.l.b16 %v8575
          %v8621 = vunpack.c.l.b16 %v8576
          %v8622 = vunpack.c.l.b16 %v8577
          %v8623 = vunpack.c.l.b16 %v8578
          %v8624 = vunpack.c.l.b16 %v8579
          %v8625 = vunpack.c.l.b16 %v8580
          %v8626 = vunpack.c.l.b16 %v8581
          %v8627 = vunpack.c.l.b16 %v8582
          %v8628 = vunpack.c.l.b16 %v8583
          %v8629 = vunpack.c.l.b16 %v8584
          %v8630 = vunpack.c.l.b16 %v8585
          %v8631 = vunpack.c.l.b16 %v8586
          %v8632 = vunpack.c.l.b16 %v8587
          %v8633 = vunpack.c.l.b16 %v8588
          %v8634 = vunpack.c.l.b16 %v8589
          %v8635 = vunpack.c.l.b16 %v8590
          %v8636 = vunpack.c.l.b16 %v8591
          %v8637 = vunpack.c.l.b16 %v8592
          %v8638 = vunpack.c.l.b16 %v8593
          %v8639 = vunpack.c.l.b16 %v8594
          %v8640 = vpack.c.b16 %v8621, %v8620
          %v8641 = vpack.c.b16 %v8623, %v8622
          %v8642 = vpack.c.b16 %v8625, %v8624
          %v8643 = vpack.c.b16 %v8627, %v8626
          %v8644 = vpack.c.b16 %v8629, %v8628
          %v8645 = vpack.c.b16 %v8631, %v8630
          %v8646 = vpack.c.b16 %v8633, %v8632
          %v8647 = vpack.c.b16 %v8635, %v8634
          %v8648 = vpack.c.b16 %v8637, %v8636
          %v8649 = vpack.c.b16 %v8639, %v8638
          %v8661 = vsel %vm1939, %v8573, 0
          %8663 = vmatprep.subr.bf16.mxu0 0
          %8664 = vmatpush1.bf16.msra.mxu0 %v8647
          %8665 = vmatprep.subr.bf16.mxu0 0
          %8666 = vmatpush1.bf16.msra.mxu0 %v8646
          %8667 = vmatprep.subr.bf16.mxu0 0
          %8668 = vmatpush1.bf16.msra.mxu0 %v8645
          %8669 = vmatprep.subr.bf16.mxu0 0
          %8670 = vmatpush1.bf16.msra.mxu0 %v8644
          %8671 = vmatprep.subr.bf16.mxu0 0
          %8672 = vmatpush1.bf16.msra.mxu0 %v8643
          %8673 = vmatprep.subr.bf16.mxu0 0
          %8674 = vmatpush1.bf16.msra.mxu0 %v8642
          %8675 = vmatprep.subr.bf16.mxu0 0
          %8676 = vmatpush1.bf16.msra.mxu0 %v8641
          %8677 = vmatprep.subr.bf16.mxu0 0
          %8678 = vmatpush1.bf16.msra.mxu0 %v8640
          %8679 = vmatprep.subr.bf16.mxu0 0
          %8680 = vmatpush2.bf16.msra.mxu0 0
          %8681 = vmatprep.subr.bf16.mxu0 0
          %8682 = vmatpush2.bf16.msra.mxu0 0
          %8683 = vmatprep.subr.bf16.mxu0 0
          %8684 = vmatpush2.bf16.msra.mxu0 0
          %8685 = vmatprep.subr.bf16.mxu0 0
          %8686 = vmatpush2.bf16.msra.mxu0 0
          %8687 = vmatprep.subr.bf16.mxu0 0
          %8688 = vmatpush2.bf16.msra.mxu0 0
          %8689 = vmatprep.subr.bf16.mxu0 0
          %8690 = vmatpush2.bf16.msra.mxu0 0
          %8691 = vmatprep.subr.bf16.mxu0 0
          %8692 = vmatpush2.bf16.msra.mxu0 %v8649
          %8693 = vmatprep.subr.bf16.mxu0 0
          %8694 = vmatpush2.bf16.msra.mxu0 %v8648
          %8695 = vmatprep.mubr.bf16.mxu0 %v8661
          %8696 = vmatmul.mubr.bf16.gmra.mxu0 %v8572
          %v8697 = vpop.f32.mrf.mxu0
          %v8698 = vadd.f32 %v8599, %v8697
          %v8699 = vpop.f32.mrf.mxu0
          %v8700 = vpop.f32.mrf.mxu0
          %v8701 = vpop.f32.mrf.mxu0
          %8702 = vdwg.mxu0
          %v8703 = vmax.f32 %v8698, 0.0
          %v8704 = vmin.f32 %v8698, 0.0
          %v8705 = vmul.f32 %v8704, %v8559
          %v8706 = vmul.f32 %v8705, 1.442695
          %v8707 = vpow.pop %v8706
          %v8708 = vsub.f32 %v8707, 1.0
          %v8709 = vmul.f32 %v8708, 0.1
          %v8710 = vadd.f32 %v8703, %v8709
          %v8711 = vpack.c.bf16 %v8710, %v8710
          %s8712 = scalar_lea.vmem %s14, 128
          %v8713 = vld [vmem:[%s8712] sm:$0xf]
          %v8714 = vld [vmem:[%s8712 + $0x4] sm:$0xf]
          %v8715 = vld [vmem:[%s8712 + $0x8] sm:$0xf]
          %v8716 = vld [vmem:[%s8712 + $0xc] sm:$0xf]
          %v8717 = vld [vmem:[%s8712 + $0x10] sm:$0xf]
          %v8718 = vld [vmem:[%s8712 + $0x14] sm:$0xf]
          %v8719 = vld [vmem:[%s8712 + $0x18] sm:$0xf]
          %v8720 = vld [vmem:[%s8712 + $0x1c] sm:$0xf]
          %v8721 = vld [vmem:[%s8712 + $0x20] sm:$0xf]
          %v8722 = vld [vmem:[%s8712 + $0x24] sm:$0xf]
          %v8723 = vld [vmem:[%s8712 + $0x28] sm:$0xf]
          %v8724 = vld [vmem:[%s8712 + $0x2c] sm:$0xf]
          %v8725 = vld [vmem:[%s8712 + $0x30] sm:$0xf]
          %v8726 = vld [vmem:[%s8712 + $0x34] sm:$0xf]
          %v8727 = vld [vmem:[%s8712 + $0x38] sm:$0xf]
          %v8728 = vld [vmem:[%s8712 + $0x3c] sm:$0xf]
          %v8729 = vld [vmem:[#allocation7 + $0x2] sm:$0x1]
          %v8730 = vlaneseq
          %v8731 = vshrl.u32 %v8730, 7
          %v8732 = vsub.s32 0, %v8731
          %v8733 = vrot.slane %v8729, %v8732
          %v8750 = vunpack.c.l.b16 %v8713
          %v8751 = vunpack.c.l.b16 %v8714
          %v8752 = vunpack.c.l.b16 %v8715
          %v8753 = vunpack.c.l.b16 %v8716
          %v8754 = vunpack.c.l.b16 %v8717
          %v8755 = vunpack.c.l.b16 %v8718
          %v8756 = vunpack.c.l.b16 %v8719
          %v8757 = vunpack.c.l.b16 %v8720
          %v8758 = vunpack.c.l.b16 %v8721
          %v8759 = vunpack.c.l.b16 %v8722
          %v8760 = vunpack.c.l.b16 %v8723
          %v8761 = vunpack.c.l.b16 %v8724
          %v8762 = vunpack.c.l.b16 %v8725
          %v8763 = vunpack.c.l.b16 %v8726
          %v8764 = vunpack.c.l.b16 %v8727
          %v8765 = vunpack.c.l.b16 %v8728
          %v8766 = vpack.c.b16 %v8751, %v8750
          %v8767 = vpack.c.b16 %v8753, %v8752
          %v8768 = vpack.c.b16 %v8755, %v8754
          %v8769 = vpack.c.b16 %v8757, %v8756
          %v8770 = vpack.c.b16 %v8759, %v8758
          %v8771 = vpack.c.b16 %v8761, %v8760
          %v8772 = vpack.c.b16 %v8763, %v8762
          %v8773 = vpack.c.b16 %v8765, %v8764
          %8782 = vmatprep.subr.bf16.mxu0 0
          %8783 = vmatpush1.bf16.msra.mxu0 %v8773
          %8784 = vmatprep.subr.bf16.mxu0 0
          %8785 = vmatpush1.bf16.msra.mxu0 %v8772
          %8786 = vmatprep.subr.bf16.mxu0 0
          %8787 = vmatpush1.bf16.msra.mxu0 %v8771
          %8788 = vmatprep.subr.bf16.mxu0 0
          %8789 = vmatpush1.bf16.msra.mxu0 %v8770
          %8790 = vmatprep.subr.bf16.mxu0 0
          %8791 = vmatpush1.bf16.msra.mxu0 %v8769
          %8792 = vmatprep.subr.bf16.mxu0 0
          %8793 = vmatpush1.bf16.msra.mxu0 %v8768
          %8794 = vmatprep.subr.bf16.mxu0 0
          %8795 = vmatpush1.bf16.msra.mxu0 %v8767
          %8796 = vmatprep.subr.bf16.mxu0 0
          %8797 = vmatpush1.bf16.msra.mxu0 %v8766
          %8798 = vmatprep.subr.bf16.mxu0 0
          %8799 = vmatpush2.bf16.msra.mxu0 0
          %8800 = vmatprep.subr.bf16.mxu0 0
          %8801 = vmatpush2.bf16.msra.mxu0 0
          %8802 = vmatprep.subr.bf16.mxu0 0
          %8803 = vmatpush2.bf16.msra.mxu0 0
          %8804 = vmatprep.subr.bf16.mxu0 0
          %8805 = vmatpush2.bf16.msra.mxu0 0
          %8806 = vmatprep.subr.bf16.mxu0 0
          %8807 = vmatpush2.bf16.msra.mxu0 0
          %8808 = vmatprep.subr.bf16.mxu0 0
          %8809 = vmatpush2.bf16.msra.mxu0 0
          %8810 = vmatprep.subr.bf16.mxu0 0
          %8811 = vmatpush2.bf16.msra.mxu0 0
          %8812 = vmatprep.subr.bf16.mxu0 0
          %8813 = vmatpush2.bf16.msra.mxu0 0
          %8814 = vmatprep.mubr.bf16.mxu0 0
          %8815 = vmatmul.mubr.bf16.gmra.mxu0 %v8711
          %v8816 = vpop.f32.mrf.mxu0
          %v8817 = vadd.f32 %v8733, %v8816
          %v8818 = vpop.f32.mrf.mxu0
          %v8819 = vpop.f32.mrf.mxu0
          %v8820 = vpop.f32.mrf.mxu0
          %8821 = vdwg.mxu0
          %v8822 = vmax.f32 %v8817, 0.0
          %v8823 = vmin.f32 %v8817, 0.0
          %v8824 = vmul.f32 %v8823, %v8559
          %v8825 = vmul.f32 %v8824, 1.442695
          %v8826 = vpow.pop %v8825
          %v8827 = vsub.f32 %v8826, 1.0
          %v8828 = vmul.f32 %v8827, 0.1
          %v8829 = vadd.f32 %v8822, %v8828
          %v8830 = vpack.c.bf16 %v8829, %v8829
          %s8831 = scalar_lea.vmem [#allocation9], 96
          %v8832 = vld [vmem:[%s8831] sm:$0xf]
          %v8833 = vld [vmem:[%s8831 + $0x4] sm:$0xf]
          %v8834 = vld [vmem:[%s8831 + $0x8] sm:$0xf]
          %v8835 = vld [vmem:[%s8831 + $0xc] sm:$0xf]
          %v8836 = vld [vmem:[%s8831 + $0x10] sm:$0xf]
          %v8837 = vld [vmem:[%s8831 + $0x14] sm:$0xf]
          %v8838 = vld [vmem:[%s8831 + $0x18] sm:$0xf]
          %v8839 = vld [vmem:[%s8831 + $0x1c] sm:$0xf]
          %v8840 = vld [vmem:[%s8831 + $0x20] sm:$0xf]
          %v8841 = vld [vmem:[%s8831 + $0x24] sm:$0xf]
          %v8842 = vld [vmem:[%s8831 + $0x28] sm:$0xf]
          %v8843 = vld [vmem:[%s8831 + $0x2c] sm:$0xf]
          %v8844 = vld [vmem:[#allocation10 + $0x2] sm:$0x1]
          %v8845 = vlaneseq
          %v8846 = vshrl.u32 %v8845, 7
          %v8847 = vsub.s32 0, %v8846
          %v8848 = vrot.slane %v8844, %v8847
          %v8861 = vunpack.c.l.b16 %v8832
          %v8862 = vunpack.c.l.b16 %v8833
          %v8863 = vunpack.c.l.b16 %v8834
          %v8864 = vunpack.c.l.b16 %v8835
          %v8865 = vunpack.c.l.b16 %v8836
          %v8866 = vunpack.c.l.b16 %v8837
          %v8867 = vunpack.c.l.b16 %v8838
          %v8868 = vunpack.c.l.b16 %v8839
          %v8869 = vunpack.c.l.b16 %v8840
          %v8870 = vunpack.c.l.b16 %v8841
          %v8871 = vunpack.c.l.b16 %v8842
          %v8872 = vunpack.c.l.b16 %v8843
          %v8873 = vpack.c.b16 %v8862, %v8861
          %v8874 = vpack.c.b16 %v8864, %v8863
          %v8875 = vpack.c.b16 %v8866, %v8865
          %v8876 = vpack.c.b16 %v8868, %v8867
          %v8877 = vpack.c.b16 %v8870, %v8869
          %v8878 = vpack.c.b16 %v8872, %v8871
          %v8886 = vsel %vm6606, %v8830, 0
          %8888 = vmatprep.subr.bf16.mxu0 0
          %8889 = vmatpush1.bf16.msra.mxu0 0
          %8890 = vmatprep.subr.bf16.mxu0 0
          %8891 = vmatpush1.bf16.msra.mxu0 0
          %8892 = vmatprep.subr.bf16.mxu0 0
          %8893 = vmatpush1.bf16.msra.mxu0 %v8878
          %8894 = vmatprep.subr.bf16.mxu0 0
          %8895 = vmatpush1.bf16.msra.mxu0 %v8877
          %8896 = vmatprep.subr.bf16.mxu0 0
          %8897 = vmatpush1.bf16.msra.mxu0 %v8876
          %8898 = vmatprep.subr.bf16.mxu0 0
          %8899 = vmatpush1.bf16.msra.mxu0 %v8875
          %8900 = vmatprep.subr.bf16.mxu0 0
          %8901 = vmatpush1.bf16.msra.mxu0 %v8874
          %8902 = vmatprep.subr.bf16.mxu0 0
          %8903 = vmatpush1.bf16.msra.mxu0 %v8873
          %8904 = vmatprep.subr.bf16.mxu0 0
          %8905 = vmatpush2.bf16.msra.mxu0 0
          %8906 = vmatprep.subr.bf16.mxu0 0
          %8907 = vmatpush2.bf16.msra.mxu0 0
          %8908 = vmatprep.subr.bf16.mxu0 0
          %8909 = vmatpush2.bf16.msra.mxu0 0
          %8910 = vmatprep.subr.bf16.mxu0 0
          %8911 = vmatpush2.bf16.msra.mxu0 0
          %8912 = vmatprep.subr.bf16.mxu0 0
          %8913 = vmatpush2.bf16.msra.mxu0 0
          %8914 = vmatprep.subr.bf16.mxu0 0
          %8915 = vmatpush2.bf16.msra.mxu0 0
          %8916 = vmatprep.subr.bf16.mxu0 0
          %8917 = vmatpush2.bf16.msra.mxu0 0
          %8918 = vmatprep.subr.bf16.mxu0 0
          %8919 = vmatpush2.bf16.msra.mxu0 0
          %8920 = vmatprep.mubr.bf16.mxu0 0
          %8921 = vmatmul.mubr.bf16.gmra.mxu0 %v8886
          %v8922 = vpop.f32.mrf.mxu0
          %v8923 = vadd.f32 %v8848, %v8922
          %v8924 = vpop.f32.mrf.mxu0
          %v8925 = vpop.f32.mrf.mxu0
          %v8926 = vpop.f32.mrf.mxu0
          %8927 = vdwg.mxu0
          %v8928 = vld [vmem:[#allocation2] sm:$0xff]
          %8930 = vrot.lane.b32.xlu0 %v681, 126
          %v8931 = vpop.permute.xlu0 %8930
          %v8933 = vmul.f32 %v8923, %v8931
          %v8934 = vadd.f32 %v8928, %v8933
          %8935 = vst.msk [vmem:[#allocation2] sm:$0xff] %vm6630, %v8934
        $region116: #{mod_optimized_torchani_forward.1} parent=87 // pred_fallthru
          _
        %s8936 = sadd.s32 %s6632, 3
        %s8937 = sld [smem:[#allocation4 + %s8936]]
        %p8938 = scmp.gt.s32.totalorder %s8937, 0
        // Predicated region
        $region117: #{mod_optimized_torchani_forward.1} parent=87 // pred_check
          %p8939 = pneg %p8938
        $region118: #{mod_optimized_torchani_forward.1} parent=87 // pred_check_branch
          %8941 = sbr.rel (%p8939) target = $region120
        $region119: #{mod_optimized_torchani_forward.1} parent=87 // pred_region
          %s8942 = scalar_lea.vmem [#allocation5], 1152
          %v8943 = vld [vmem:[%s8942] sm:$0xff]
          %v8944 = vld [vmem:[%s8942 + $0x8] sm:$0xff]
          %v8945 = vld [vmem:[%s8942 + $0x10] sm:$0xff]
          %v8946 = vld [vmem:[%s8942 + $0x18] sm:$0xff]
          %v8947 = vld [vmem:[%s8942 + $0x20] sm:$0xff]
          %v8948 = vld [vmem:[%s8942 + $0x28] sm:$0xff]
          %v8949 = vld [vmem:[%s8942 + $0x30] sm:$0xff]
          %v8950 = vld [vmem:[%s8942 + $0x38] sm:$0xff]
          %v8951 = vld [vmem:[%s8942 + $0x40] sm:$0xff]
          %v8952 = vld [vmem:[%s8942 + $0x48] sm:$0xff]
          %v8953 = vld [vmem:[%s8942 + $0x50] sm:$0xff]
          %v8954 = vld [vmem:[%s8942 + $0x58] sm:$0xff]
          %v8955 = vld [vmem:[%s8942 + $0x60] sm:$0xff]
          %v8956 = vld [vmem:[%s8942 + $0x68] sm:$0xff]
          %v8957 = vld [vmem:[%s8942 + $0x70] sm:$0xff]
          %v8958 = vld [vmem:[%s8942 + $0x78] sm:$0xff]
          %v8959 = vld [vmem:[%s8942 + $0x80] sm:$0xff]
          %v8960 = vld [vmem:[%s8942 + $0x88] sm:$0xff]
          %v8961 = vld [vmem:[%s8942 + $0x90] sm:$0xff]
          %v8962 = vld [vmem:[%s8942 + $0x98] sm:$0xff]
          %v8963 = vld [vmem:[%s8942 + $0xa0] sm:$0xff]
          %v8964 = vld [vmem:[%s8942 + $0xa8] sm:$0xff]
          %v8965 = vld [vmem:[%s8942 + $0xb0] sm:$0xff]
          %v8966 = vld [vmem:[%s8942 + $0xb8] sm:$0xff]
          %v8967 = vld [vmem:[%s8942 + $0xc0] sm:$0xff]
          %v8968 = vld [vmem:[%s8942 + $0xc8] sm:$0xff]
          %v8969 = vld [vmem:[%s8942 + $0xd0] sm:$0xff]
          %v8970 = vld [vmem:[%s8942 + $0xd8] sm:$0xff]
          %v8971 = vld [vmem:[%s8942 + $0xe0] sm:$0xff]
          %v8972 = vld [vmem:[%s8942 + $0xe8] sm:$0xff]
          %v8973 = vld [vmem:[%s8942 + $0xf0] sm:$0xff]
          %v8974 = vld [vmem:[%s8942 + $0xf8] sm:$0xff]
          %v8975 = vld [vmem:[%s8942 + $0x100] sm:$0xff]
          %v8976 = vld [vmem:[%s8942 + $0x108] sm:$0xff]
          %v8977 = vld [vmem:[%s8942 + $0x110] sm:$0xff]
          %v8978 = vld [vmem:[%s8942 + $0x118] sm:$0xff]
          %v8979 = vld [vmem:[%s8942 + $0x120] sm:$0xff]
          %v8980 = vld [vmem:[%s8942 + $0x128] sm:$0xff]
          %v8981 = vld [vmem:[%s8942 + $0x130] sm:$0xff]
          %v8982 = vld [vmem:[%s8942 + $0x138] sm:$0xff]
          %v8983 = vld [vmem:[%s8942 + $0x140] sm:$0xff]
          %v8984 = vld [vmem:[%s8942 + $0x148] sm:$0xff]
          %v8985 = vld [vmem:[%s8942 + $0x150] sm:$0xff]
          %v8986 = vld [vmem:[%s8942 + $0x158] sm:$0xff]
          %v8987 = vld [vmem:[%s8942 + $0x160] sm:$0xff]
          %v8988 = vld [vmem:[%s8942 + $0x168] sm:$0xff]
          %v8989 = vld [vmem:[%s8942 + $0x170] sm:$0xff]
          %v8990 = vld [vmem:[%s8942 + $0x178] sm:$0xff]
          %s8991 = scalar_lea.vmem %s11, 3
          %v8992 = vld [vmem:[%s8991] ss:$4 sm:$0x3]
          %v8994 = vlaneseq
          %v8995 = vshrl.u32 %v8994, 7
          %v8996 = vsub.s32 0, %v8995
          %v8997 = vrot.slane %v8992, %v8996
          %v8998 = vlaneseq
          %v8999 = vshrl.u32 %v8998, 7
          %v9000 = vsub.s32 1, %v8999
          %v9001 = vrot.slane %v8992, %v9000
          %v9052 = vunpack.c.l.b16 %v8943
          %v9053 = vunpack.c.h.b16 %v8943
          %v9054 = vunpack.c.l.b16 %v8944
          %v9055 = vunpack.c.h.b16 %v8944
          %v9056 = vunpack.c.l.b16 %v8945
          %v9057 = vunpack.c.h.b16 %v8945
          %v9058 = vunpack.c.l.b16 %v8946
          %v9059 = vunpack.c.h.b16 %v8946
          %v9060 = vunpack.c.l.b16 %v8947
          %v9061 = vunpack.c.h.b16 %v8947
          %v9062 = vunpack.c.l.b16 %v8948
          %v9063 = vunpack.c.h.b16 %v8948
          %v9064 = vunpack.c.l.b16 %v8949
          %v9065 = vunpack.c.h.b16 %v8949
          %v9066 = vunpack.c.l.b16 %v8950
          %v9067 = vunpack.c.h.b16 %v8950
          %v9068 = vunpack.c.l.b16 %v8951
          %v9069 = vunpack.c.h.b16 %v8951
          %v9070 = vunpack.c.l.b16 %v8952
          %v9071 = vunpack.c.h.b16 %v8952
          %v9072 = vunpack.c.l.b16 %v8953
          %v9073 = vunpack.c.h.b16 %v8953
          %v9074 = vunpack.c.l.b16 %v8954
          %v9075 = vunpack.c.h.b16 %v8954
          %v9076 = vunpack.c.l.b16 %v8955
          %v9077 = vunpack.c.h.b16 %v8955
          %v9078 = vunpack.c.l.b16 %v8956
          %v9079 = vunpack.c.h.b16 %v8956
          %v9080 = vunpack.c.l.b16 %v8957
          %v9081 = vunpack.c.h.b16 %v8957
          %v9082 = vunpack.c.l.b16 %v8958
          %v9083 = vunpack.c.h.b16 %v8958
          %v9084 = vunpack.c.l.b16 %v8959
          %v9085 = vunpack.c.h.b16 %v8959
          %v9086 = vunpack.c.l.b16 %v8960
          %v9087 = vunpack.c.h.b16 %v8960
          %v9088 = vunpack.c.l.b16 %v8961
          %v9089 = vunpack.c.h.b16 %v8961
          %v9090 = vunpack.c.l.b16 %v8962
          %v9091 = vunpack.c.h.b16 %v8962
          %v9092 = vunpack.c.l.b16 %v8963
          %v9093 = vunpack.c.h.b16 %v8963
          %v9094 = vunpack.c.l.b16 %v8964
          %v9095 = vunpack.c.h.b16 %v8964
          %v9096 = vunpack.c.l.b16 %v8965
          %v9097 = vunpack.c.h.b16 %v8965
          %v9098 = vunpack.c.l.b16 %v8966
          %v9099 = vunpack.c.h.b16 %v8966
          %v9100 = vunpack.c.l.b16 %v8967
          %v9101 = vunpack.c.h.b16 %v8967
          %v9102 = vunpack.c.l.b16 %v8968
          %v9103 = vunpack.c.h.b16 %v8968
          %v9104 = vunpack.c.l.b16 %v8969
          %v9105 = vunpack.c.h.b16 %v8969
          %v9106 = vunpack.c.l.b16 %v8970
          %v9107 = vunpack.c.h.b16 %v8970
          %v9108 = vunpack.c.l.b16 %v8971
          %v9109 = vunpack.c.h.b16 %v8971
          %v9110 = vunpack.c.l.b16 %v8972
          %v9111 = vunpack.c.h.b16 %v8972
          %v9112 = vunpack.c.l.b16 %v8973
          %v9113 = vunpack.c.h.b16 %v8973
          %v9114 = vunpack.c.l.b16 %v8974
          %v9115 = vunpack.c.h.b16 %v8974
          %v9116 = vunpack.c.l.b16 %v8975
          %v9117 = vunpack.c.h.b16 %v8975
          %v9118 = vunpack.c.l.b16 %v8976
          %v9119 = vunpack.c.h.b16 %v8976
          %v9120 = vunpack.c.l.b16 %v8977
          %v9121 = vunpack.c.h.b16 %v8977
          %v9122 = vunpack.c.l.b16 %v8978
          %v9123 = vunpack.c.h.b16 %v8978
          %v9124 = vunpack.c.l.b16 %v8979
          %v9125 = vunpack.c.h.b16 %v8979
          %v9126 = vunpack.c.l.b16 %v8980
          %v9127 = vunpack.c.h.b16 %v8980
          %v9128 = vunpack.c.l.b16 %v8981
          %v9129 = vunpack.c.h.b16 %v8981
          %v9130 = vunpack.c.l.b16 %v8982
          %v9131 = vunpack.c.h.b16 %v8982
          %v9132 = vunpack.c.l.b16 %v8983
          %v9133 = vunpack.c.h.b16 %v8983
          %v9134 = vunpack.c.l.b16 %v8984
          %v9135 = vunpack.c.h.b16 %v8984
          %v9136 = vunpack.c.l.b16 %v8985
          %v9137 = vunpack.c.h.b16 %v8985
          %v9138 = vunpack.c.l.b16 %v8986
          %v9139 = vunpack.c.h.b16 %v8986
          %v9140 = vunpack.c.l.b16 %v8987
          %v9141 = vunpack.c.h.b16 %v8987
          %v9142 = vunpack.c.l.b16 %v8988
          %v9143 = vunpack.c.h.b16 %v8988
          %v9144 = vunpack.c.l.b16 %v8989
          %v9145 = vunpack.c.h.b16 %v8989
          %v9146 = vunpack.c.l.b16 %v8990
          %v9147 = vunpack.c.h.b16 %v8990
          %v9148 = vpack.c.b16 %v9054, %v9052
          %v9149 = vpack.c.b16 %v9055, %v9053
          %v9150 = vpack.c.b16 %v9058, %v9056
          %v9151 = vpack.c.b16 %v9059, %v9057
          %v9152 = vpack.c.b16 %v9062, %v9060
          %v9153 = vpack.c.b16 %v9063, %v9061
          %v9154 = vpack.c.b16 %v9066, %v9064
          %v9155 = vpack.c.b16 %v9067, %v9065
          %v9156 = vpack.c.b16 %v9070, %v9068
          %v9157 = vpack.c.b16 %v9071, %v9069
          %v9158 = vpack.c.b16 %v9074, %v9072
          %v9159 = vpack.c.b16 %v9075, %v9073
          %v9160 = vpack.c.b16 %v9078, %v9076
          %v9161 = vpack.c.b16 %v9079, %v9077
          %v9162 = vpack.c.b16 %v9082, %v9080
          %v9163 = vpack.c.b16 %v9083, %v9081
          %v9164 = vpack.c.b16 %v9086, %v9084
          %v9165 = vpack.c.b16 %v9087, %v9085
          %v9166 = vpack.c.b16 %v9090, %v9088
          %v9167 = vpack.c.b16 %v9091, %v9089
          %v9168 = vpack.c.b16 %v9094, %v9092
          %v9169 = vpack.c.b16 %v9095, %v9093
          %v9170 = vpack.c.b16 %v9098, %v9096
          %v9171 = vpack.c.b16 %v9099, %v9097
          %v9172 = vpack.c.b16 %v9102, %v9100
          %v9173 = vpack.c.b16 %v9103, %v9101
          %v9174 = vpack.c.b16 %v9106, %v9104
          %v9175 = vpack.c.b16 %v9107, %v9105
          %v9176 = vpack.c.b16 %v9110, %v9108
          %v9177 = vpack.c.b16 %v9111, %v9109
          %v9178 = vpack.c.b16 %v9114, %v9112
          %v9179 = vpack.c.b16 %v9115, %v9113
          %v9180 = vpack.c.b16 %v9118, %v9116
          %v9181 = vpack.c.b16 %v9119, %v9117
          %v9182 = vpack.c.b16 %v9122, %v9120
          %v9183 = vpack.c.b16 %v9123, %v9121
          %v9184 = vpack.c.b16 %v9126, %v9124
          %v9185 = vpack.c.b16 %v9127, %v9125
          %v9186 = vpack.c.b16 %v9130, %v9128
          %v9187 = vpack.c.b16 %v9131, %v9129
          %v9188 = vpack.c.b16 %v9134, %v9132
          %v9189 = vpack.c.b16 %v9135, %v9133
          %v9190 = vpack.c.b16 %v9138, %v9136
          %v9191 = vpack.c.b16 %v9139, %v9137
          %v9192 = vpack.c.b16 %v9142, %v9140
          %v9193 = vpack.c.b16 %v9143, %v9141
          %v9194 = vpack.c.b16 %v9146, %v9144
          %v9195 = vpack.c.b16 %v9147, %v9145
          %9244 = vmatprep.subr.bf16.mxu0 %v9163
          %9245 = vmatpush1.bf16.msra.mxu0 %v9162
          %9246 = vmatprep.subr.bf16.mxu0 %v9161
          %9247 = vmatpush1.bf16.msra.mxu0 %v9160
          %9248 = vmatprep.subr.bf16.mxu0 %v9159
          %9249 = vmatpush1.bf16.msra.mxu0 %v9158
          %9250 = vmatprep.subr.bf16.mxu0 %v9157
          %9251 = vmatpush1.bf16.msra.mxu0 %v9156
          %9252 = vmatprep.subr.bf16.mxu0 %v9155
          %9253 = vmatpush1.bf16.msra.mxu0 %v9154
          %9254 = vmatprep.subr.bf16.mxu0 %v9153
          %9255 = vmatpush1.bf16.msra.mxu0 %v9152
          %9256 = vmatprep.subr.bf16.mxu0 %v9151
          %9257 = vmatpush1.bf16.msra.mxu0 %v9150
          %9258 = vmatprep.subr.bf16.mxu0 %v9149
          %9259 = vmatpush1.bf16.msra.mxu0 %v9148
          %9260 = vmatprep.subr.bf16.mxu0 %v9179
          %9261 = vmatpush2.bf16.msra.mxu0 %v9178
          %9262 = vmatprep.subr.bf16.mxu0 %v9177
          %9263 = vmatpush2.bf16.msra.mxu0 %v9176
          %9264 = vmatprep.subr.bf16.mxu0 %v9175
          %9265 = vmatpush2.bf16.msra.mxu0 %v9174
          %9266 = vmatprep.subr.bf16.mxu0 %v9173
          %9267 = vmatpush2.bf16.msra.mxu0 %v9172
          %9268 = vmatprep.subr.bf16.mxu0 %v9171
          %9269 = vmatpush2.bf16.msra.mxu0 %v9170
          %9270 = vmatprep.subr.bf16.mxu0 %v9169
          %9271 = vmatpush2.bf16.msra.mxu0 %v9168
          %9272 = vmatprep.subr.bf16.mxu0 %v9167
          %9273 = vmatpush2.bf16.msra.mxu0 %v9166
          %9274 = vmatprep.subr.bf16.mxu0 %v9165
          %9275 = vmatpush2.bf16.msra.mxu0 %v9164
          %9276 = vmatprep.mubr.bf16.mxu0 %v6628
          %9277 = vmatmul.mubr.bf16.gmra.mxu0 %v6627
          %v9278 = vpop.f32.mrf.mxu0
          %v9279 = vadd.f32 %v8997, %v9278
          %v9280 = vpop.f32.mrf.mxu0
          %v9281 = vadd.f32 %v9001, %v9280
          %v9282 = vpop.f32.mrf.mxu0
          %v9283 = vpop.f32.mrf.mxu0
          %9284 = vdwg.mxu0
          %9285 = vmatprep.subr.bf16.mxu0 %v9195
          %9286 = vmatpush1.bf16.msra.mxu0 %v9194
          %9287 = vmatprep.subr.bf16.mxu0 %v9193
          %9288 = vmatpush1.bf16.msra.mxu0 %v9192
          %9289 = vmatprep.subr.bf16.mxu0 %v9191
          %9290 = vmatpush1.bf16.msra.mxu0 %v9190
          %9291 = vmatprep.subr.bf16.mxu0 %v9189
          %9292 = vmatpush1.bf16.msra.mxu0 %v9188
          %9293 = vmatprep.subr.bf16.mxu0 %v9187
          %9294 = vmatpush1.bf16.msra.mxu0 %v9186
          %9295 = vmatprep.subr.bf16.mxu0 %v9185
          %9296 = vmatpush1.bf16.msra.mxu0 %v9184
          %9297 = vmatprep.subr.bf16.mxu0 %v9183
          %9298 = vmatpush1.bf16.msra.mxu0 %v9182
          %9299 = vmatprep.subr.bf16.mxu0 %v9181
          %9300 = vmatpush1.bf16.msra.mxu0 %v9180
          %9301 = vmatprep.subr.bf16.mxu0 0
          %9302 = vmatpush2.bf16.msra.mxu0 0
          %9303 = vmatprep.subr.bf16.mxu0 0
          %9304 = vmatpush2.bf16.msra.mxu0 0
          %9305 = vmatprep.subr.bf16.mxu0 0
          %9306 = vmatpush2.bf16.msra.mxu0 0
          %9307 = vmatprep.subr.bf16.mxu0 0
          %9308 = vmatpush2.bf16.msra.mxu0 0
          %9309 = vmatprep.subr.bf16.mxu0 0
          %9310 = vmatpush2.bf16.msra.mxu0 0
          %9311 = vmatprep.subr.bf16.mxu0 0
          %9312 = vmatpush2.bf16.msra.mxu0 0
          %9313 = vmatprep.subr.bf16.mxu0 0
          %9314 = vmatpush2.bf16.msra.mxu0 0
          %9315 = vmatprep.subr.bf16.mxu0 0
          %9316 = vmatpush2.bf16.msra.mxu0 0
          %9317 = vmatprep.mubr.bf16.mxu0 0
          %9318 = vmatmul.mubr.bf16.gmra.mxu0 %v6629
          %v9319 = vpop.f32.mrf.mxu0
          %v9320 = vadd.f32 %v9279, %v9319
          %v9321 = vpop.f32.mrf.mxu0
          %v9322 = vadd.f32 %v9281, %v9321
          %v9323 = vpop.f32.mrf.mxu0
          %v9324 = vpop.f32.mrf.mxu0
          %9325 = vdwg.mxu0
          %v9326 = vmax.f32 %v9320, 0.0
          %v9327 = vmax.f32 %v9322, 0.0
          %v9328 = vmin.f32 %v9320, 0.0
          %v9329 = vmin.f32 %v9322, 0.0
          %v9330 = vrcp.pop 0.1
          %v9331 = vmul.f32 %v9328, %v9330
          %v9332 = vmul.f32 %v9329, %v9330
          %v9333 = vmul.f32 %v9331, 1.442695
          %v9334 = vpow.pop %v9333
          %v9335 = vmul.f32 %v9332, 1.442695
          %v9336 = vpow.pop %v9335
          %v9337 = vsub.f32 %v9334, 1.0
          %v9338 = vsub.f32 %v9336, 1.0
          %v9339 = vmul.f32 %v9337, 0.1
          %v9340 = vmul.f32 %v9338, 0.1
          %v9341 = vadd.f32 %v9326, %v9339
          %v9342 = vadd.f32 %v9327, %v9340
          %v9343 = vpack.c.bf16 %v9341, %v9341
          %v9344 = vpack.c.bf16 %v9342, %v9342
          %s9345 = scalar_lea.vmem %s12, 240
          %v9346 = vld [vmem:[%s9345] sm:$0xf]
          %v9347 = vld [vmem:[%s9345 + $0x4] sm:$0xf]
          %v9348 = vld [vmem:[%s9345 + $0x8] sm:$0xf]
          %v9349 = vld [vmem:[%s9345 + $0xc] sm:$0xf]
          %v9350 = vld [vmem:[%s9345 + $0x10] sm:$0xf]
          %v9351 = vld [vmem:[%s9345 + $0x14] sm:$0xf]
          %v9352 = vld [vmem:[%s9345 + $0x18] sm:$0xf]
          %v9353 = vld [vmem:[%s9345 + $0x1c] sm:$0xf]
          %v9354 = vld [vmem:[%s9345 + $0x20] sm:$0xf]
          %v9355 = vld [vmem:[%s9345 + $0x24] sm:$0xf]
          %v9356 = vld [vmem:[%s9345 + $0x28] sm:$0xf]
          %v9357 = vld [vmem:[%s9345 + $0x2c] sm:$0xf]
          %v9358 = vld [vmem:[%s9345 + $0x30] sm:$0xf]
          %v9359 = vld [vmem:[%s9345 + $0x34] sm:$0xf]
          %v9360 = vld [vmem:[%s9345 + $0x38] sm:$0xf]
          %v9361 = vld [vmem:[%s9345 + $0x3c] sm:$0xf]
          %v9362 = vld [vmem:[%s9345 + $0x40] sm:$0xf]
          %v9363 = vld [vmem:[%s9345 + $0x44] sm:$0xf]
          %v9364 = vld [vmem:[%s9345 + $0x48] sm:$0xf]
          %v9365 = vld [vmem:[%s9345 + $0x4c] sm:$0xf]
          %v9366 = vld [vmem:[%s13 + $0x3] sm:$0x1]
          %v9367 = vlaneseq
          %v9368 = vshrl.u32 %v9367, 7
          %v9369 = vsub.s32 0, %v9368
          %v9370 = vrot.slane %v9366, %v9369
          %v9391 = vunpack.c.l.b16 %v9346
          %v9392 = vunpack.c.l.b16 %v9347
          %v9393 = vunpack.c.l.b16 %v9348
          %v9394 = vunpack.c.l.b16 %v9349
          %v9395 = vunpack.c.l.b16 %v9350
          %v9396 = vunpack.c.l.b16 %v9351
          %v9397 = vunpack.c.l.b16 %v9352
          %v9398 = vunpack.c.l.b16 %v9353
          %v9399 = vunpack.c.l.b16 %v9354
          %v9400 = vunpack.c.l.b16 %v9355
          %v9401 = vunpack.c.l.b16 %v9356
          %v9402 = vunpack.c.l.b16 %v9357
          %v9403 = vunpack.c.l.b16 %v9358
          %v9404 = vunpack.c.l.b16 %v9359
          %v9405 = vunpack.c.l.b16 %v9360
          %v9406 = vunpack.c.l.b16 %v9361
          %v9407 = vunpack.c.l.b16 %v9362
          %v9408 = vunpack.c.l.b16 %v9363
          %v9409 = vunpack.c.l.b16 %v9364
          %v9410 = vunpack.c.l.b16 %v9365
          %v9411 = vpack.c.b16 %v9392, %v9391
          %v9412 = vpack.c.b16 %v9394, %v9393
          %v9413 = vpack.c.b16 %v9396, %v9395
          %v9414 = vpack.c.b16 %v9398, %v9397
          %v9415 = vpack.c.b16 %v9400, %v9399
          %v9416 = vpack.c.b16 %v9402, %v9401
          %v9417 = vpack.c.b16 %v9404, %v9403
          %v9418 = vpack.c.b16 %v9406, %v9405
          %v9419 = vpack.c.b16 %v9408, %v9407
          %v9420 = vpack.c.b16 %v9410, %v9409
          %v9432 = vsel %vm1939, %v9344, 0
          %9434 = vmatprep.subr.bf16.mxu0 0
          %9435 = vmatpush1.bf16.msra.mxu0 %v9418
          %9436 = vmatprep.subr.bf16.mxu0 0
          %9437 = vmatpush1.bf16.msra.mxu0 %v9417
          %9438 = vmatprep.subr.bf16.mxu0 0
          %9439 = vmatpush1.bf16.msra.mxu0 %v9416
          %9440 = vmatprep.subr.bf16.mxu0 0
          %9441 = vmatpush1.bf16.msra.mxu0 %v9415
          %9442 = vmatprep.subr.bf16.mxu0 0
          %9443 = vmatpush1.bf16.msra.mxu0 %v9414
          %9444 = vmatprep.subr.bf16.mxu0 0
          %9445 = vmatpush1.bf16.msra.mxu0 %v9413
          %9446 = vmatprep.subr.bf16.mxu0 0
          %9447 = vmatpush1.bf16.msra.mxu0 %v9412
          %9448 = vmatprep.subr.bf16.mxu0 0
          %9449 = vmatpush1.bf16.msra.mxu0 %v9411
          %9450 = vmatprep.subr.bf16.mxu0 0
          %9451 = vmatpush2.bf16.msra.mxu0 0
          %9452 = vmatprep.subr.bf16.mxu0 0
          %9453 = vmatpush2.bf16.msra.mxu0 0
          %9454 = vmatprep.subr.bf16.mxu0 0
          %9455 = vmatpush2.bf16.msra.mxu0 0
          %9456 = vmatprep.subr.bf16.mxu0 0
          %9457 = vmatpush2.bf16.msra.mxu0 0
          %9458 = vmatprep.subr.bf16.mxu0 0
          %9459 = vmatpush2.bf16.msra.mxu0 0
          %9460 = vmatprep.subr.bf16.mxu0 0
          %9461 = vmatpush2.bf16.msra.mxu0 0
          %9462 = vmatprep.subr.bf16.mxu0 0
          %9463 = vmatpush2.bf16.msra.mxu0 %v9420
          %9464 = vmatprep.subr.bf16.mxu0 0
          %9465 = vmatpush2.bf16.msra.mxu0 %v9419
          %9466 = vmatprep.mubr.bf16.mxu0 %v9432
          %9467 = vmatmul.mubr.bf16.gmra.mxu0 %v9343
          %v9468 = vpop.f32.mrf.mxu0
          %v9469 = vadd.f32 %v9370, %v9468
          %v9470 = vpop.f32.mrf.mxu0
          %v9471 = vpop.f32.mrf.mxu0
          %v9472 = vpop.f32.mrf.mxu0
          %9473 = vdwg.mxu0
          %v9474 = vmax.f32 %v9469, 0.0
          %v9475 = vmin.f32 %v9469, 0.0
          %v9476 = vmul.f32 %v9475, %v9330
          %v9477 = vmul.f32 %v9476, 1.442695
          %v9478 = vpow.pop %v9477
          %v9479 = vsub.f32 %v9478, 1.0
          %v9480 = vmul.f32 %v9479, 0.1
          %v9481 = vadd.f32 %v9474, %v9480
          %v9482 = vpack.c.bf16 %v9481, %v9481
          %s9483 = scalar_lea.vmem %s14, 192
          %v9484 = vld [vmem:[%s9483] sm:$0xf]
          %v9485 = vld [vmem:[%s9483 + $0x4] sm:$0xf]
          %v9486 = vld [vmem:[%s9483 + $0x8] sm:$0xf]
          %v9487 = vld [vmem:[%s9483 + $0xc] sm:$0xf]
          %v9488 = vld [vmem:[%s9483 + $0x10] sm:$0xf]
          %v9489 = vld [vmem:[%s9483 + $0x14] sm:$0xf]
          %v9490 = vld [vmem:[%s9483 + $0x18] sm:$0xf]
          %v9491 = vld [vmem:[%s9483 + $0x1c] sm:$0xf]
          %v9492 = vld [vmem:[%s9483 + $0x20] sm:$0xf]
          %v9493 = vld [vmem:[%s9483 + $0x24] sm:$0xf]
          %v9494 = vld [vmem:[%s9483 + $0x28] sm:$0xf]
          %v9495 = vld [vmem:[%s9483 + $0x2c] sm:$0xf]
          %v9496 = vld [vmem:[%s9483 + $0x30] sm:$0xf]
          %v9497 = vld [vmem:[%s9483 + $0x34] sm:$0xf]
          %v9498 = vld [vmem:[%s9483 + $0x38] sm:$0xf]
          %v9499 = vld [vmem:[%s9483 + $0x3c] sm:$0xf]
          %v9500 = vld [vmem:[#allocation7 + $0x3] sm:$0x1]
          %v9501 = vlaneseq
          %v9502 = vshrl.u32 %v9501, 7
          %v9503 = vsub.s32 0, %v9502
          %v9504 = vrot.slane %v9500, %v9503
          %v9521 = vunpack.c.l.b16 %v9484
          %v9522 = vunpack.c.l.b16 %v9485
          %v9523 = vunpack.c.l.b16 %v9486
          %v9524 = vunpack.c.l.b16 %v9487
          %v9525 = vunpack.c.l.b16 %v9488
          %v9526 = vunpack.c.l.b16 %v9489
          %v9527 = vunpack.c.l.b16 %v9490
          %v9528 = vunpack.c.l.b16 %v9491
          %v9529 = vunpack.c.l.b16 %v9492
          %v9530 = vunpack.c.l.b16 %v9493
          %v9531 = vunpack.c.l.b16 %v9494
          %v9532 = vunpack.c.l.b16 %v9495
          %v9533 = vunpack.c.l.b16 %v9496
          %v9534 = vunpack.c.l.b16 %v9497
          %v9535 = vunpack.c.l.b16 %v9498
          %v9536 = vunpack.c.l.b16 %v9499
          %v9537 = vpack.c.b16 %v9522, %v9521
          %v9538 = vpack.c.b16 %v9524, %v9523
          %v9539 = vpack.c.b16 %v9526, %v9525
          %v9540 = vpack.c.b16 %v9528, %v9527
          %v9541 = vpack.c.b16 %v9530, %v9529
          %v9542 = vpack.c.b16 %v9532, %v9531
          %v9543 = vpack.c.b16 %v9534, %v9533
          %v9544 = vpack.c.b16 %v9536, %v9535
          %9553 = vmatprep.subr.bf16.mxu0 0
          %9554 = vmatpush1.bf16.msra.mxu0 %v9544
          %9555 = vmatprep.subr.bf16.mxu0 0
          %9556 = vmatpush1.bf16.msra.mxu0 %v9543
          %9557 = vmatprep.subr.bf16.mxu0 0
          %9558 = vmatpush1.bf16.msra.mxu0 %v9542
          %9559 = vmatprep.subr.bf16.mxu0 0
          %9560 = vmatpush1.bf16.msra.mxu0 %v9541
          %9561 = vmatprep.subr.bf16.mxu0 0
          %9562 = vmatpush1.bf16.msra.mxu0 %v9540
          %9563 = vmatprep.subr.bf16.mxu0 0
          %9564 = vmatpush1.bf16.msra.mxu0 %v9539
          %9565 = vmatprep.subr.bf16.mxu0 0
          %9566 = vmatpush1.bf16.msra.mxu0 %v9538
          %9567 = vmatprep.subr.bf16.mxu0 0
          %9568 = vmatpush1.bf16.msra.mxu0 %v9537
          %9569 = vmatprep.subr.bf16.mxu0 0
          %9570 = vmatpush2.bf16.msra.mxu0 0
          %9571 = vmatprep.subr.bf16.mxu0 0
          %9572 = vmatpush2.bf16.msra.mxu0 0
          %9573 = vmatprep.subr.bf16.mxu0 0
          %9574 = vmatpush2.bf16.msra.mxu0 0
          %9575 = vmatprep.subr.bf16.mxu0 0
          %9576 = vmatpush2.bf16.msra.mxu0 0
          %9577 = vmatprep.subr.bf16.mxu0 0
          %9578 = vmatpush2.bf16.msra.mxu0 0
          %9579 = vmatprep.subr.bf16.mxu0 0
          %9580 = vmatpush2.bf16.msra.mxu0 0
          %9581 = vmatprep.subr.bf16.mxu0 0
          %9582 = vmatpush2.bf16.msra.mxu0 0
          %9583 = vmatprep.subr.bf16.mxu0 0
          %9584 = vmatpush2.bf16.msra.mxu0 0
          %9585 = vmatprep.mubr.bf16.mxu0 0
          %9586 = vmatmul.mubr.bf16.gmra.mxu0 %v9482
          %v9587 = vpop.f32.mrf.mxu0
          %v9588 = vadd.f32 %v9504, %v9587
          %v9589 = vpop.f32.mrf.mxu0
          %v9590 = vpop.f32.mrf.mxu0
          %v9591 = vpop.f32.mrf.mxu0
          %9592 = vdwg.mxu0
          %v9593 = vmax.f32 %v9588, 0.0
          %v9594 = vmin.f32 %v9588, 0.0
          %v9595 = vmul.f32 %v9594, %v9330
          %v9596 = vmul.f32 %v9595, 1.442695
          %v9597 = vpow.pop %v9596
          %v9598 = vsub.f32 %v9597, 1.0
          %v9599 = vmul.f32 %v9598, 0.1
          %v9600 = vadd.f32 %v9593, %v9599
          %v9601 = vpack.c.bf16 %v9600, %v9600
          %s9602 = scalar_lea.vmem [#allocation9], 144
          %v9603 = vld [vmem:[%s9602] sm:$0xf]
          %v9604 = vld [vmem:[%s9602 + $0x4] sm:$0xf]
          %v9605 = vld [vmem:[%s9602 + $0x8] sm:$0xf]
          %v9606 = vld [vmem:[%s9602 + $0xc] sm:$0xf]
          %v9607 = vld [vmem:[%s9602 + $0x10] sm:$0xf]
          %v9608 = vld [vmem:[%s9602 + $0x14] sm:$0xf]
          %v9609 = vld [vmem:[%s9602 + $0x18] sm:$0xf]
          %v9610 = vld [vmem:[%s9602 + $0x1c] sm:$0xf]
          %v9611 = vld [vmem:[%s9602 + $0x20] sm:$0xf]
          %v9612 = vld [vmem:[%s9602 + $0x24] sm:$0xf]
          %v9613 = vld [vmem:[%s9602 + $0x28] sm:$0xf]
          %v9614 = vld [vmem:[%s9602 + $0x2c] sm:$0xf]
          %v9615 = vld [vmem:[#allocation10 + $0x3] sm:$0x1]
          %v9616 = vlaneseq
          %v9617 = vshrl.u32 %v9616, 7
          %v9618 = vsub.s32 0, %v9617
          %v9619 = vrot.slane %v9615, %v9618
          %v9632 = vunpack.c.l.b16 %v9603
          %v9633 = vunpack.c.l.b16 %v9604
          %v9634 = vunpack.c.l.b16 %v9605
          %v9635 = vunpack.c.l.b16 %v9606
          %v9636 = vunpack.c.l.b16 %v9607
          %v9637 = vunpack.c.l.b16 %v9608
          %v9638 = vunpack.c.l.b16 %v9609
          %v9639 = vunpack.c.l.b16 %v9610
          %v9640 = vunpack.c.l.b16 %v9611
          %v9641 = vunpack.c.l.b16 %v9612
          %v9642 = vunpack.c.l.b16 %v9613
          %v9643 = vunpack.c.l.b16 %v9614
          %v9644 = vpack.c.b16 %v9633, %v9632
          %v9645 = vpack.c.b16 %v9635, %v9634
          %v9646 = vpack.c.b16 %v9637, %v9636
          %v9647 = vpack.c.b16 %v9639, %v9638
          %v9648 = vpack.c.b16 %v9641, %v9640
          %v9649 = vpack.c.b16 %v9643, %v9642
          %v9657 = vsel %vm6606, %v9601, 0
          %9659 = vmatprep.subr.bf16.mxu0 0
          %9660 = vmatpush1.bf16.msra.mxu0 0
          %9661 = vmatprep.subr.bf16.mxu0 0
          %9662 = vmatpush1.bf16.msra.mxu0 0
          %9663 = vmatprep.subr.bf16.mxu0 0
          %9664 = vmatpush1.bf16.msra.mxu0 %v9649
          %9665 = vmatprep.subr.bf16.mxu0 0
          %9666 = vmatpush1.bf16.msra.mxu0 %v9648
          %9667 = vmatprep.subr.bf16.mxu0 0
          %9668 = vmatpush1.bf16.msra.mxu0 %v9647
          %9669 = vmatprep.subr.bf16.mxu0 0
          %9670 = vmatpush1.bf16.msra.mxu0 %v9646
          %9671 = vmatprep.subr.bf16.mxu0 0
          %9672 = vmatpush1.bf16.msra.mxu0 %v9645
          %9673 = vmatprep.subr.bf16.mxu0 0
          %9674 = vmatpush1.bf16.msra.mxu0 %v9644
          %9675 = vmatprep.subr.bf16.mxu0 0
          %9676 = vmatpush2.bf16.msra.mxu0 0
          %9677 = vmatprep.subr.bf16.mxu0 0
          %9678 = vmatpush2.bf16.msra.mxu0 0
          %9679 = vmatprep.subr.bf16.mxu0 0
          %9680 = vmatpush2.bf16.msra.mxu0 0
          %9681 = vmatprep.subr.bf16.mxu0 0
          %9682 = vmatpush2.bf16.msra.mxu0 0
          %9683 = vmatprep.subr.bf16.mxu0 0
          %9684 = vmatpush2.bf16.msra.mxu0 0
          %9685 = vmatprep.subr.bf16.mxu0 0
          %9686 = vmatpush2.bf16.msra.mxu0 0
          %9687 = vmatprep.subr.bf16.mxu0 0
          %9688 = vmatpush2.bf16.msra.mxu0 0
          %9689 = vmatprep.subr.bf16.mxu0 0
          %9690 = vmatpush2.bf16.msra.mxu0 0
          %9691 = vmatprep.mubr.bf16.mxu0 0
          %9692 = vmatmul.mubr.bf16.gmra.mxu0 %v9657
          %v9693 = vpop.f32.mrf.mxu0
          %v9694 = vadd.f32 %v9619, %v9693
          %v9695 = vpop.f32.mrf.mxu0
          %v9696 = vpop.f32.mrf.mxu0
          %v9697 = vpop.f32.mrf.mxu0
          %9698 = vdwg.mxu0
          %v9699 = vld [vmem:[#allocation2] sm:$0xff]
          %9701 = vrot.lane.b32.xlu0 %v681, 125
          %v9702 = vpop.permute.xlu0 %9701
          %v9704 = vmul.f32 %v9694, %v9702
          %v9705 = vadd.f32 %v9699, %v9704
          %9706 = vst.msk [vmem:[#allocation2] sm:$0xff] %vm6630, %v9705
        $region120: #{mod_optimized_torchani_forward.1} parent=87 // pred_fallthru
          _
        %v9707 = vld [vmem:[#allocation2] sm:$0xff]
        %9708 = vst.msk [vmem:[%s676] sm:$0xff] %vm6630, %v9707
        %p9709 = scmp.lt.s32.totalorder %s38, 1
        %s9710 = scalar_select %p9709, %s38, 1
        %s9711 = smul.addr %s9710, 8
        %s9712 = scalar_lea.vmem %s18, %s9711
        // Predicated region
        $region121: #{mod_optimized_torchani_forward.1} parent=87 // pred_check
          %p9713 = pneg %p438
        $region122: #{mod_optimized_torchani_forward.1} parent=87 // pred_check_branch
          %9715 = sbr.rel (%p9713) target = $region124
        $region123: #{mod_optimized_torchani_forward.1} parent=87 // pred_region
          _
        $region124: #{mod_optimized_torchani_forward.1} parent=87 // pred_fallthru
          _
      $region88: #{mod_optimized_torchani_forward.1} parent=5 // pred_fallthru
        _
      %p9716 = scmp.le.s32.totalorder 2, %s33
      // Predicated region
      $region125: #{mod_optimized_torchani_forward.1} parent=5 // pred_check
        %p9717 = pneg %p9716
      $region126: #{mod_optimized_torchani_forward.1} parent=5 // pred_check_branch
        %9719 = sbr.rel (%p9717) target = $region128
      $region127: #{mod_optimized_torchani_forward.1} parent=5 // pred_region
        %s9720 = ssub.s32 %s33, 2
        // Predicated region
        $region129: #{mod_optimized_torchani_forward.1} parent=127 // pred_check
          %p9721 = pneg %p444
        $region130: #{mod_optimized_torchani_forward.1} parent=127 // pred_check_branch
          %9723 = sbr.rel (%p9721) target = $region132
        $region131: #{mod_optimized_torchani_forward.1} parent=127 // pred_region
          %p9724 = scmp.lt.s32.totalorder %s39, 1
          %s9725 = scalar_select %p9724, %s39, 1
          %s9726 = smul.addr %s9725, 8
          %s9727 = scalar_lea.vmem %s18, %s9726
        $region132: #{mod_optimized_torchani_forward.1} parent=127 // pred_fallthru
          _
      $region128: #{mod_optimized_torchani_forward.1} parent=5 // pred_fallthru
        _
    $region6: #{mod_optimized_torchani_forward.1} parent=1 // loop_footer
      %s37 = sadd.s32 1, %s33
    $region7: #{mod_optimized_torchani_forward.1} parent=1 // loop_footer_branch
      %32 = sbr.rel target = $region3
    $region8: #{mod_optimized_torchani_forward.1} parent=1 // loop_exit
      _
    %9728 = vsyncpa [#allocation6], 1
    %s9729 = scalar_lea.sflag [#allocation6], 1
    %9730 = vsyncpa %s9729, 1
    %9731 = vsyncpa [#allocation8], 1
    %9732 = vsyncpa [#allocation11], 1

</llo_original>
